<compile_context>
chip_gen: v7x
topology: tpu7x:2x2x1
jax: 0.10.0
libtpu: 0.0.40
codegen_flags: <defaults>
</compile_context>

<pallas_src>
import math
import functools
import numpy as np

import jax
import jax.numpy as jnp
from jax.experimental import pallas as pl
from jax.experimental.pallas import tpu as pltpu

# ----------------------------- model config (small, Swin-like) ------------------------
IMG = 16          # image size
PATCH = 2         # patch size  -> 8x8 = 64 tokens after embed
IN_CH = 3         # RGB
EMBED = 16        # embed dim stage 1
WINDOW = 4        # window size
HEADS = (2, 4)    # heads per stage
DEPTHS = (2, 2)   # blocks per stage
NUM_CLASSES = 10
LN_EPS = 1e-5

# bf16 MXU operands on v6e/v7x (f32 accumulate).  Off by default to keep f32 parity.
MXU_DTYPE = jnp.float32

T1 = (IMG // PATCH) ** 2        # tokens / image, stage 1 (64)
T2 = T1 // 4                    # tokens / image, stage 2 (16)
PD = IN_CH * PATCH * PATCH      # flattened patch dim (12)
C1 = EMBED
C2 = 2 * EMBED
NEG = -1e9                      # "different window" mask -> softmax weight exactly 0


# ----------------------------- shared math helpers -------------------------------------
def _ln(x, g, b):
    mu = jnp.mean(x, axis=-1, keepdims=True)
    xc = x - mu
    var = jnp.mean(xc * xc, axis=-1, keepdims=True)
    return xc * jax.lax.rsqrt(var + LN_EPS) * g + b


def _gelu(x):
    # exact GELU (PyTorch nn.GELU default, approximate='none')
    return 0.5 * x * (1.0 + jax.lax.erf(x * (1.0 / math.sqrt(2.0))))


def _mm(a, b):
    return jnp.dot(a.astype(MXU_DTYPE), b.astype(MXU_DTYPE),
                   preferred_element_type=jnp.float32)


def _mm_nt(a, b):
    """a @ b.T with the contraction on the last dims (no explicit/XLU transpose)."""
    return jax.lax.dot_general(a.astype(MXU_DTYPE), b.astype(MXU_DTYPE),
                               (((1,), (1,)), ((), ())),
                               preferred_element_type=jnp.float32)


# ----------------------------- in-kernel Swin block -------------------------------------
def _swin_block(x, slab_ref, bias_ref, *, C, heads):
    """LN -> windowed MSA -> +res -> LN -> MLP -> +res on (T, C) tokens of ONE image.

    The (shifted-)window structure, relative-position bias and Swin -100 shift mask are
    pre-folded into bias_ref ((heads*T, T)); out-of-window pairs carry -1e9 so their
    softmax weight is exactly 0, making full-token attention equal to per-window
    attention without any token permutation.  q-scale is folded into qkv_w/qkv_b.
    """
    T = x.shape[0]
    Dh = C // heads
    r = 7 * C
    qkv_w = slab_ref[0:C, 0:3 * C]
    proj_w = slab_ref[C:2 * C, 0:C]
    fc1_w = slab_ref[2 * C:3 * C, 0:4 * C]
    fc2_w = slab_ref[3 * C:7 * C, 0:C]
    ln1_g = slab_ref[r + 0:r + 1, 0:C]
    ln1_b = slab_ref[r + 1:r + 2, 0:C]
    qkv_b = slab_ref[r + 2:r + 3, 0:3 * C]
    proj_b = slab_ref[r + 3:r + 4, 0:C]
    ln2_g = slab_ref[r + 4:r + 5, 0:C]
    ln2_b = slab_ref[r + 5:r + 6, 0:C]
    fc1_b = slab_ref[r + 6:r + 7, 0:4 * C]
    fc2_b = slab_ref[r + 7:r + 8, 0:C]

    # --- attention branch ---
    h = _ln(x, ln1_g, ln1_b)
    qkv = _mm(h, qkv_w) + qkv_b                                            # (T, 3C)
    # per-head q.k^T (contract last dims); stack heads along sublanes -> one softmax.
    s = jnp.concatenate(
        [_mm_nt(qkv[:, hh * Dh:(hh + 1) * Dh],
                qkv[:, C + hh * Dh:C + (hh + 1) * Dh])
         for hh in range(heads)], axis=0)                                  # (heads*T, T)
    s = s + bias_ref[...]
    s = s - jnp.max(s, axis=-1, keepdims=True)
    p = jnp.exp(s)
    p = p / jnp.sum(p, axis=-1, keepdims=True)        # exact divide (matches torch softmax)
    attn = jnp.concatenate(
        [_mm(p[hh * T:(hh + 1) * T, :],
             qkv[:, 2 * C + hh * Dh:2 * C + (hh + 1) * Dh])
         for hh in range(heads)], axis=-1)                                 # (T, C)
    x = x + _mm(attn, proj_w) + proj_b                 # one projection for all heads

    # --- MLP branch ---
    m = _ln(x, ln2_g, ln2_b)
    m = _gelu(_mm(m, fc1_w) + fc1_b)
    return x + _mm(m, fc2_w) + fc2_b


# ----------------------------- the single fused kernel ----------------------------------
def _base_swin_kernel(x_ref, pe_ref, s1b0_ref, s1b0_bias_ref, s1b1_ref, s1b1_bias_ref,
                      mg_ref, s2b0_ref, s2b0_bias_ref, s2b1_ref, s2b1_bias_ref,
                      hd_ref, o_ref):
    """Whole BaseSwin forward for ONE image (grid axis = batch)."""
    # ---- patch embed (stride-PATCH conv == matmul on flattened patches) + LayerNorm ----
    pe_w = pe_ref[0:PD, :]
    pe_b = pe_ref[PD:PD + 1, :]
    pe_g = pe_ref[PD + 1:PD + 2, :]
    pe_bb = pe_ref[PD + 2:PD + 3, :]
    tok = _ln(_mm(x_ref[...], pe_w) + pe_b, pe_g, pe_bb)                   # (T1, C1)

    # ---- stage 1 (W-MSA, SW-MSA): window structure lives in the bias tables ----
    tok = _swin_block(tok, s1b0_ref, s1b0_bias_ref, C=C1, heads=HEADS[0])
    tok = _swin_block(tok, s1b1_ref, s1b1_bias_ref, C=C1, heads=HEADS[0])

    # ---- patch merging: strided 2x2 token gather via constant selection matmul + LN + red
    sel = mg_ref[0:4 * T2, 0:T1]                                           # (4*T2, T1)
    msel = _mm(sel, tok)                                                   # rows [x0;x1;x2;x3]
    xm = jnp.concatenate([msel[k * T2:(k + 1) * T2, :] for k in range(4)], axis=-1)
    mg_g = mg_ref[4 * T2:4 * T2 + 1, 0:4 * C1]
    mg_b = mg_ref[4 * T2 + 1:4 * T2 + 2, 0:4 * C1]
    red_w = mg_ref[4 * T2 + 2:4 * T2 + 2 + 4 * C1, 0:C2]
    tok = _mm(_ln(xm, mg_g, mg_b), red_w)                                  # (T2, C2)

    # ---- stage 2 (window == resolution -> single window, no shift) ----
    tok = _swin_block(tok, s2b0_ref, s2b0_bias_ref, C=C2, heads=HEADS[1])
    tok = _swin_block(tok, s2b1_ref, s2b1_bias_ref, C=C2, heads=HEADS[1])

    # ---- head: Reduce('b n e -> b e', mean) -> LayerNorm -> fc (BaseSwin order) ----
    pooled = jnp.mean(tok, axis=0, keepdims=True)                          # (1, C2)
    hd_g = hd_ref[0:1, :]
    hd_b = hd_ref[1:2, :]
    fc_w = hd_ref[2:2 + C2, 0:NUM_CLASSES]
    fc_b = hd_ref[2 + C2:3 + C2, 0:NUM_CLASSES]
    logits = _mm(_ln(pooled, hd_g, hd_b), fc_w) + fc_b                     # (1, NUM_CLASSES)
    o_ref[...] = logits[None]


# ----------------------------- wrapper -------------------------------------------------
def base_swin_forward(packed, x):
    """BaseSwin.forward (eval mode): one fused Pallas call.  x is NCHW float32."""
    B = x.shape[0]
    Hc = Wc = IMG // PATCH
    # Patch extraction; column order (Cin, ph, pw) matches flattening a PyTorch Conv2d
    # weight of shape (E, Cin, ph, pw).
    xp = x.reshape(B, IN_CH, Hc, PATCH, Wc, PATCH).transpose(0, 2, 4, 1, 3, 5)
    xp = xp.reshape(B * T1, PD)

    ops = (packed["pe"], packed["s1b0"], packed["s1b0_bias"],
           packed["s1b1"], packed["s1b1_bias"], packed["merge"],
           packed["s2b0"], packed["s2b0_bias"], packed["s2b1"], packed["s2b1_bias"],
           packed["head"])
    const_spec = lambda a: pl.BlockSpec(a.shape, lambda b: (0, 0))

    out = pl.pallas_call(
        _base_swin_kernel,
        out_shape=jax.ShapeDtypeStruct((B, 1, NUM_CLASSES), jnp.float32),
        grid=(B,),                                    # one independent image per program
        in_specs=[pl.BlockSpec((T1, PD), lambda b: (b, 0))] + [const_spec(a) for a in ops],
        out_specs=pl.BlockSpec((1, 1, NUM_CLASSES), lambda b: (b, 0, 0)),
        compiler_params=pltpu.CompilerParams(dimension_semantics=("parallel",)),
    )(xp, *ops)
    return out.reshape(B, NUM_CLASSES)


# ----------------------------- static tables -------------------------------------------
def relative_position_index(ws):
    coords = np.stack(np.meshgrid(np.arange(ws), np.arange(ws), indexing="ij"))
    cf = coords.reshape(2, -1)
    rel = (cf[:, :, None] - cf[:, None, :]).transpose(1, 2, 0).astype(np.int64)
    rel[:, :, 0] += ws - 1
    rel[:, :, 1] += ws - 1
    rel[:, :, 0] *= 2 * ws - 1
    return rel.sum(-1)                                                   # (ws*ws, ws*ws)


def shift_attn_mask(H, W, ws, shift):
    """Standard Swin -100/0 shift mask, (nW, N, N)."""
    img = np.zeros((H, W), np.float32)
    cnt = 0
    for hs in (slice(0, -ws), slice(-ws, -shift), slice(-shift, None)):
        for wl in (slice(0, -ws), slice(-ws, -shift), slice(-shift, None)):
            img[hs, wl] = cnt
            cnt += 1
    mw = img.reshape(H // ws, ws, W // ws, ws).transpose(0, 2, 1, 3).reshape(-1, ws * ws)
    am = mw[:, None, :] - mw[:, :, None]
    return np.where(am != 0, -100.0, 0.0).astype(np.float32)


def full_attn_bias(rel_table, heads, H, W, ws, shift):
    """(heads*T, T) full-token bias encoding Swin window structure for one block.

    Same-(shifted-)window pairs get rel-pos bias (+ -100 Swin shift-region mask);
    all other pairs get -1e9 (=> exactly-zero softmax weight == per-window attention).
    """
    T = H * W
    ridx = relative_position_index(ws)
    bias = np.full((heads, T, T), NEG, dtype=np.float32)

    def region(r, size):
        if shift == 0:
            return 0
        if r < size - ws:
            return 0
        if r < size - shift:
            return 1
        return 2

    info = []
    for t in range(T):
        h, w = divmod(t, W)
        rh, rw = (h - shift) % H, (w - shift) % W          # coords after roll(-shift)
        info.append(((rh // ws, rw // ws),
                     (rh % ws) * ws + (rw % ws),
                     region(rh, H) * 3 + region(rw, W)))
    for tq in range(T):
        win1, loc1, reg1 = info[tq]
        for tk in range(T):
            win2, loc2, reg2 = info[tk]
            if win1 != win2:
                continue
            val = rel_table[ridx[loc1, loc2], :].astype(np.float32)
            if shift > 0 and reg1 != reg2:
                val = val - 100.0
            bias[:, tq, tk] = val
    return bias.reshape(heads * T, T)


def merge_select_matrix(H, W):
    """(4*T2, T1) 0/1 matrix selecting the x0/x1/x2/x3 tokens of timm PatchMerging."""
    H2, W2 = H // 2, W // 2
    t2 = H2 * W2
    sel = np.zeros((4 * t2, H * W), np.float32)
    for k, (dh, dw) in enumerate(((0, 0), (1, 0), (0, 1), (1, 1))):
        for j in range(t2):
            h2, w2 = divmod(j, W2)
            sel[k * t2 + j, (2 * h2 + dh) * W + (2 * w2 + dw)] = 1.0
    return sel


# ----------------------------- parameters ----------------------------------------------
def init_raw_params(key):
    keys = iter(jax.random.split(key, 128))
    WSTD = 0.15

    def rnd(shape, std):
        return jax.random.normal(next(keys), shape, jnp.float32) * std

    def block_raw(C, heads):
        return dict(
            ln1_g=1.0 + rnd((C,), 0.05), ln1_b=rnd((C,), 0.05),
            qkv_w=rnd((C, 3 * C), WSTD), qkv_b=rnd((3 * C,), 0.05),
            rel_table=rnd(((2 * WINDOW - 1) ** 2, heads), 1.0),
            proj_w=rnd((C, C), WSTD), proj_b=rnd((C,), 0.05),
            ln2_g=1.0 + rnd((C,), 0.05), ln2_b=rnd((C,), 0.05),
            fc1_w=rnd((C, 4 * C), WSTD), fc1_b=rnd((4 * C,), 0.05),
            fc2_w=rnd((4 * C, C), WSTD), fc2_b=rnd((C,), 0.05),
        )

    return dict(
        pe=dict(w=rnd((PD, C1), WSTD), b=rnd((C1,), 0.05),
                g=1.0 + rnd((C1,), 0.05), bb=rnd((C1,), 0.05)),
        stage1=[block_raw(C1, HEADS[0]) for _ in range(DEPTHS[0])],
        merge=dict(g=1.0 + rnd((4 * C1,), 0.05), b=rnd((4 * C1,), 0.05),
                   red_w=rnd((4 * C1, C2), WSTD)),       # no bias (timm PatchMerging)
        stage2=[block_raw(C2, HEADS[1]) for _ in range(DEPTHS[1])],
        head=dict(g=1.0 + rnd((C2,), 0.05), b=rnd((C2,), 0.05),
                  fc_w=rnd((C2, NUM_CLASSES), WSTD), fc_b=rnd((NUM_CLASSES,), 0.05)),
    )


def pack_block_slab(bp, C, heads):
    """One lane-dense (7C+8, 4C) slab per block: 4 weight mats + 8 tiny vectors."""
    Dh = C // heads
    scale = Dh ** -0.5
    slab = np.zeros((7 * C + 8, 4 * C), np.float32)
    qkv_w = np.asarray(bp["qkv_w"]).copy()
    qkv_b = np.asarray(bp["qkv_b"]).copy()
    qkv_w[:, :C] *= scale                                 # fold q scale into weights
    qkv_b[:C] *= scale
    slab[0:C, 0:3 * C] = qkv_w
    slab[C:2 * C, 0:C] = np.asarray(bp["proj_w"])
    slab[2 * C:3 * C, 0:4 * C] = np.asarray(bp["fc1_w"])
    slab[3 * C:7 * C, 0:C] = np.asarray(bp["fc2_w"])
    r = 7 * C
    slab[r + 0, 0:C] = np.asarray(bp["ln1_g"])
    slab[r + 1, 0:C] = np.asarray(bp["ln1_b"])
    slab[r + 2, 0:3 * C] = qkv_b
    slab[r + 3, 0:C] = np.asarray(bp["proj_b"])
    slab[r + 4, 0:C] = np.asarray(bp["ln2_g"])
    slab[r + 5, 0:C] = np.asarray(bp["ln2_b"])
    slab[r + 6, 0:4 * C] = np.asarray(bp["fc1_b"])
    slab[r + 7, 0:C] = np.asarray(bp["fc2_b"])
    return jnp.asarray(slab)


def pack_params(raw):
    Hc = Wc = IMG // PATCH

    pe = np.zeros((PD + 3, C1), np.float32)
    pe[0:PD] = np.asarray(raw["pe"]["w"])
    pe[PD] = np.asarray(raw["pe"]["b"])
    pe[PD + 1] = np.asarray(raw["pe"]["g"])
    pe[PD + 2] = np.asarray(raw["pe"]["bb"])

    mg = np.zeros((4 * T2 + 2 + 4 * C1, max(T1, 4 * C1)), np.float32)
    mg[0:4 * T2, 0:T1] = merge_select_matrix(Hc, Wc)
    mg[4 * T2, 0:4 * C1] = np.asarray(raw["merge"]["g"])
    mg[4 * T2 + 1, 0:4 * C1] = np.asarray(raw["merge"]["b"])
    mg[4 * T2 + 2:4 * T2 + 2 + 4 * C1, 0:C2] = np.asarray(raw["merge"]["red_w"])

    hd = np.zeros((3 + C2, C2), np.float32)
    hd[0] = np.asarray(raw["head"]["g"])
    hd[1] = np.asarray(raw["head"]["b"])
    hd[2:2 + C2, 0:NUM_CLASSES] = np.asarray(raw["head"]["fc_w"])
    hd[2 + C2, 0:NUM_CLASSES] = np.asarray(raw["head"]["fc_b"])

    def bias(bp, heads, H, W, shift):
        return jnp.asarray(full_attn_bias(np.asarray(bp["rel_table"]), heads, H, W,
                                          WINDOW, shift))

    return dict(
        pe=jnp.asarray(pe),
        s1b0=pack_block_slab(raw["stage1"][0], C1, HEADS[0]),
        s1b0_bias=bias(raw["stage1"][0], HEADS[0], Hc, Wc, 0),
        s1b1=pack_block_slab(raw["stage1"][1], C1, HEADS[0]),
        s1b1_bias=bias(raw["stage1"][1], HEADS[0], Hc, Wc, WINDOW // 2),
        merge=jnp.asarray(mg),
        s2b0=pack_block_slab(raw["stage2"][0], C2, HEADS[1]),
        s2b0_bias=bias(raw["stage2"][0], HEADS[1], Hc // 2, Wc // 2, 0),
        s2b1=pack_block_slab(raw["stage2"][1], C2, HEADS[1]),
        s2b1_bias=bias(raw["stage2"][1], HEADS[1], Hc // 2, Wc // 2, 0),
        head=jnp.asarray(hd),
    )


# ----------------------------- pure-JAX reference (standard windowed algorithm) ---------
HI = jax.lax.Precision.HIGHEST


def _ref_block(tok, bp, *, B, Hc, Wc, C, heads, shift):
    ws = WINDOW
    N = ws * ws
    Dh = C // heads
    nWh, nWw = Hc // ws, Wc // ws
    nW = nWh * nWw

    shortcut = tok
    h = _ln(tok, bp["ln1_g"], bp["ln1_b"])
    img = h.reshape(B, Hc, Wc, C)
    if shift:
        img = jnp.roll(img, (-shift, -shift), axis=(1, 2))
    win = img.reshape(B, nWh, ws, nWw, ws, C).transpose(0, 1, 3, 2, 4, 5)
    win = win.reshape(B * nW, N, C)
    qkv = jnp.einsum("bnc,cd->bnd", win, bp["qkv_w"], precision=HI) + bp["qkv_b"]
    qkv = qkv.reshape(B * nW, N, 3, heads, Dh).transpose(2, 0, 3, 1, 4)
    q, k, v = qkv[0] * (Dh ** -0.5), qkv[1], qkv[2]
    att = jnp.einsum("bhnd,bhmd->bhnm", q, k, precision=HI)
    ridx = relative_position_index(ws).reshape(-1)
    rel = bp["rel_table"][ridx].reshape(N, N, heads).transpose(2, 0, 1)
    att = att + rel[None]
    if shift:
        mask = jnp.asarray(shift_attn_mask(Hc, Wc, ws, shift))           # (nW, N, N)
        att = att.reshape(B, nW, heads, N, N) + mask[None, :, None]
        att = att.reshape(B * nW, heads, N, N)
    att = att - jnp.max(att, axis=-1, keepdims=True)
    att = jnp.exp(att)
    att = att / jnp.sum(att, axis=-1, keepdims=True)
    out = jnp.einsum("bhnm,bhmd->bhnd", att, v, precision=HI)
    out = out.transpose(0, 2, 1, 3).reshape(B * nW, N, C)
    out = jnp.einsum("bnc,cd->bnd", out, bp["proj_w"], precision=HI) + bp["proj_b"]
    img = out.reshape(B, nWh, nWw, ws, ws, C).transpose(0, 1, 3, 2, 4, 5)
    img = img.reshape(B, Hc, Wc, C)
    if shift:
        img = jnp.roll(img, (shift, shift), axis=(1, 2))
    x = shortcut + img.reshape(B, Hc * Wc, C)
    m = _ln(x, bp["ln2_g"], bp["ln2_b"])
    m = _gelu(jnp.einsum("bnc,cd->bnd", m, bp["fc1_w"], precision=HI) + bp["fc1_b"])
    return x + jnp.einsum("bnc,cd->bnd", m, bp["fc2_w"], precision=HI) + bp["fc2_b"]


def reference_forward(raw, x):
    B = x.shape[0]
    Hc = Wc = IMG // PATCH
    xp = x.reshape(B, IN_CH, Hc, PATCH, Wc, PATCH).transpose(0, 2, 4, 1, 3, 5)
    xp = xp.reshape(B, T1, PD)
    tok = jnp.einsum("bnc,cd->bnd", xp, raw["pe"]["w"], precision=HI) + raw["pe"]["b"]
    tok = _ln(tok, raw["pe"]["g"], raw["pe"]["bb"])
    C = C1
    for bi, bp in enumerate(raw["stage1"]):
        shift = 0 if bi % 2 == 0 else WINDOW // 2
        tok = _ref_block(tok, bp, B=B, Hc=Hc, Wc=Wc, C=C, heads=HEADS[0], shift=shift)
    img = tok.reshape(B, Hc, Wc, C)
    x0, x1 = img[:, 0::2, 0::2], img[:, 1::2, 0::2]
    x2, x3 = img[:, 0::2, 1::2], img[:, 1::2, 1::2]
    xm = jnp.concatenate([x0, x1, x2, x3], axis=-1).reshape(B, T2, 4 * C)
    xm = _ln(xm, raw["merge"]["g"], raw["merge"]["b"])
    tok = jnp.einsum("bnc,cd->bnd", xm, raw["merge"]["red_w"], precision=HI)
    Hc, Wc, C = Hc // 2, Wc // 2, C2
    for bp in raw["stage2"]:
        tok = _ref_block(tok, bp, B=B, Hc=Hc, Wc=Wc, C=C, heads=HEADS[1], shift=0)
    pooled = jnp.mean(tok, axis=1)                       # Reduce('b n e -> b e', mean)
    h = _ln(pooled, raw["head"]["g"], raw["head"]["b"])  # then LayerNorm (BaseSwin order)
    return jnp.einsum("bc,cd->bd", h, raw["head"]["fc_w"], precision=HI) + raw["head"]["fc_b"]


# ----------------------------- main -----------------------------------------------------
if __name__ == "__main__":
    raw = init_raw_params(jax.random.PRNGKey(42))
    packed = pack_params(raw)
    x = jax.random.normal(jax.random.PRNGKey(0), (2, IN_CH, IMG, IMG), jnp.float32)

    fwd = jax.jit(functools.partial(base_swin_forward, packed))
    out = fwd(x)
    jax.block_until_ready(out)

    assert out.shape == (2, NUM_CLASSES) and out.dtype == jnp.float32
    assert bool(jnp.all(jnp.isfinite(out)))

    # validate the fused kernel against the standard roll/partition Swin algorithm
    ref = jax.jit(functools.partial(reference_forward, raw))(x)
    jax.block_until_ready(ref)
    err = float(jnp.max(jnp.abs(out - ref)))
    if not err < 2e-3:
        raise AssertionError(f"kernel/reference mismatch: max abs err = {err}")
    print("KERNEL_OK")
</pallas_src>

<mosaic_0001>
module attributes {stable_mosaic.version = 11 : i64} {
  func.func @_base_swin_kernel(%arg0: i32, %arg1: memref<64x12xf32, #tpu.memory_space<vmem>>, %arg2: memref<15x16xf32, #tpu.memory_space<vmem>>, %arg3: memref<120x64xf32, #tpu.memory_space<vmem>>, %arg4: memref<128x64xf32, #tpu.memory_space<vmem>>, %arg5: memref<120x64xf32, #tpu.memory_space<vmem>>, %arg6: memref<128x64xf32, #tpu.memory_space<vmem>>, %arg7: memref<130x64xf32, #tpu.memory_space<vmem>>, %arg8: memref<232x128xf32, #tpu.memory_space<vmem>>, %arg9: memref<64x16xf32, #tpu.memory_space<vmem>>, %arg10: memref<232x128xf32, #tpu.memory_space<vmem>>, %arg11: memref<64x16xf32, #tpu.memory_space<vmem>>, %arg12: memref<35x32xf32, #tpu.memory_space<vmem>>, %arg13: memref<1x1x10xf32, #tpu.memory_space<vmem>>) attributes {dimension_semantics = [#tpu.dimension_semantics<parallel>], iteration_bounds = array<i64: 2>, scalar_prefetch = 0 : i64, scratch_operands = 0 : i64, tpu.core_type = #tpu.core_type<tc>, window_params = [{transform_indices = @transform_0, window_bounds = array<i64: 64, 12>}, {pipeline_mode = #tpu.pipeline_mode<synchronous>, transform_indices = @transform_1, window_bounds = array<i64: 15, 16>}, {pipeline_mode = #tpu.pipeline_mode<synchronous>, transform_indices = @transform_2, window_bounds = array<i64: 120, 64>}, {pipeline_mode = #tpu.pipeline_mode<synchronous>, transform_indices = @transform_3, window_bounds = array<i64: 128, 64>}, {pipeline_mode = #tpu.pipeline_mode<synchronous>, transform_indices = @transform_4, window_bounds = array<i64: 120, 64>}, {pipeline_mode = #tpu.pipeline_mode<synchronous>, transform_indices = @transform_5, window_bounds = array<i64: 128, 64>}, {pipeline_mode = #tpu.pipeline_mode<synchronous>, transform_indices = @transform_6, window_bounds = array<i64: 130, 64>}, {pipeline_mode = #tpu.pipeline_mode<synchronous>, transform_indices = @transform_7, window_bounds = array<i64: 232, 128>}, {pipeline_mode = #tpu.pipeline_mode<synchronous>, transform_indices = @transform_8, window_bounds = array<i64: 64, 16>}, {pipeline_mode = #tpu.pipeline_mode<synchronous>, transform_indices = @transform_9, window_bounds = array<i64: 232, 128>}, {pipeline_mode = #tpu.pipeline_mode<synchronous>, transform_indices = @transform_10, window_bounds = array<i64: 64, 16>}, {pipeline_mode = #tpu.pipeline_mode<synchronous>, transform_indices = @transform_11, window_bounds = array<i64: 35, 32>}, {transform_indices = @transform_12, window_bounds = array<i64: 1, 1, 10>}]} {
    %c0 = arith.constant 0 : index
    %c0_0 = arith.constant 0 : index
    %0 = vector.load %arg2[%c0, %c0_0] : memref<15x16xf32, #tpu.memory_space<vmem>>, vector<12x16xf32>
    %c12 = arith.constant 12 : index
    %c0_1 = arith.constant 0 : index
    %1 = vector.load %arg2[%c12, %c0_1] : memref<15x16xf32, #tpu.memory_space<vmem>>, vector<1x16xf32>
    %c13 = arith.constant 13 : index
    %c0_2 = arith.constant 0 : index
    %2 = vector.load %arg2[%c13, %c0_2] : memref<15x16xf32, #tpu.memory_space<vmem>>, vector<1x16xf32>
    %c14 = arith.constant 14 : index
    %c0_3 = arith.constant 0 : index
    %3 = vector.load %arg2[%c14, %c0_3] : memref<15x16xf32, #tpu.memory_space<vmem>>, vector<1x16xf32>
    %c0_4 = arith.constant 0 : index
    %c0_5 = arith.constant 0 : index
    %4 = vector.load %arg1[%c0_4, %c0_5] : memref<64x12xf32, #tpu.memory_space<vmem>>, vector<64x12xf32>
    %cst = arith.constant dense<0.000000e+00> : vector<64x16xf32>
    %5 = tpu.matmul %4, %0, %cst {dimension_numbers = #tpu.dot_dimension_numbers<[1], [0], [0], [1], [0, 0, 1, 1], [], []>} : vector<64x12xf32>, vector<12x16xf32>, vector<64x16xf32> -> vector<64x16xf32>
    %6 = vector.broadcast %1 : vector<1x16xf32> to vector<64x16xf32>
    %7 = arith.addf %5, %6 : vector<64x16xf32>
    %cst_6 = arith.constant dense<0.000000e+00> : vector<64xf32>
    %8 = vector.multi_reduction <add>, %7, %cst_6 [1] : vector<64x16xf32> to vector<64xf32>
    %9 = vector.shape_cast %8 : vector<64xf32> to vector<64x1xf32>
    %cst_7 = arith.constant 1.600000e+01 : f32
    %10 = vector.broadcast %cst_7 : f32 to vector<64x1xf32>
    %11 = arith.divf %9, %10 : vector<64x1xf32>
    %12 = vector.broadcast %11 : vector<64x1xf32> to vector<64x16xf32>
    %13 = arith.subf %7, %12 : vector<64x16xf32>
    %14 = arith.mulf %13, %13 : vector<64x16xf32>
    %cst_8 = arith.constant dense<0.000000e+00> : vector<64xf32>
    %15 = vector.multi_reduction <add>, %14, %cst_8 [1] : vector<64x16xf32> to vector<64xf32>
    %16 = vector.shape_cast %15 : vector<64xf32> to vector<64x1xf32>
    %cst_9 = arith.constant 1.600000e+01 : f32
    %17 = vector.broadcast %cst_9 : f32 to vector<64x1xf32>
    %18 = arith.divf %16, %17 : vector<64x1xf32>
    %cst_10 = arith.constant 9.99999974E-6 : f32
    %19 = vector.broadcast %cst_10 : f32 to vector<64x1xf32>
    %20 = arith.addf %18, %19 : vector<64x1xf32>
    %21 = math.rsqrt %20 : vector<64x1xf32>
    %22 = vector.broadcast %21 : vector<64x1xf32> to vector<64x16xf32>
    %23 = arith.mulf %13, %22 : vector<64x16xf32>
    %24 = vector.broadcast %2 : vector<1x16xf32> to vector<64x16xf32>
    %25 = arith.mulf %23, %24 : vector<64x16xf32>
    %26 = vector.broadcast %3 : vector<1x16xf32> to vector<64x16xf32>
    %27 = arith.addf %25, %26 : vector<64x16xf32>
    %c0_11 = arith.constant 0 : index
    %c0_12 = arith.constant 0 : index
    %28 = vector.load %arg3[%c0_11, %c0_12] : memref<120x64xf32, #tpu.memory_space<vmem>>, vector<16x48xf32>
    %c16 = arith.constant 16 : index
    %c0_13 = arith.constant 0 : index
    %29 = vector.load %arg3[%c16, %c0_13] : memref<120x64xf32, #tpu.memory_space<vmem>>, vector<16x16xf32>
    %c32 = arith.constant 32 : index
    %c0_14 = arith.constant 0 : index
    %30 = vector.load %arg3[%c32, %c0_14] : memref<120x64xf32, #tpu.memory_space<vmem>>, vector<16x64xf32>
    %c48 = arith.constant 48 : index
    %c0_15 = arith.constant 0 : index
    %31 = vector.load %arg3[%c48, %c0_15] : memref<120x64xf32, #tpu.memory_space<vmem>>, vector<64x16xf32>
    %c112 = arith.constant 112 : index
    %c0_16 = arith.constant 0 : index
    %32 = vector.load %arg3[%c112, %c0_16] : memref<120x64xf32, #tpu.memory_space<vmem>>, vector<1x16xf32>
    %c113 = arith.constant 113 : index
    %c0_17 = arith.constant 0 : index
    %33 = vector.load %arg3[%c113, %c0_17] : memref<120x64xf32, #tpu.memory_space<vmem>>, vector<1x16xf32>
    %c114 = arith.constant 114 : index
    %c0_18 = arith.constant 0 : index
    %34 = vector.load %arg3[%c114, %c0_18] : memref<120x64xf32, #tpu.memory_space<vmem>>, vector<1x48xf32>
    %c115 = arith.constant 115 : index
    %c0_19 = arith.constant 0 : index
    %35 = vector.load %arg3[%c115, %c0_19] : memref<120x64xf32, #tpu.memory_space<vmem>>, vector<1x16xf32>
    %c116 = arith.constant 116 : index
    %c0_20 = arith.constant 0 : index
    %36 = vector.load %arg3[%c116, %c0_20] : memref<120x64xf32, #tpu.memory_space<vmem>>, vector<1x16xf32>
    %c117 = arith.constant 117 : index
    %c0_21 = arith.constant 0 : index
    %37 = vector.load %arg3[%c117, %c0_21] : memref<120x64xf32, #tpu.memory_space<vmem>>, vector<1x16xf32>
    %c118 = arith.constant 118 : index
    %c0_22 = arith.constant 0 : index
    %38 = vector.load %arg3[%c118, %c0_22] : memref<120x64xf32, #tpu.memory_space<vmem>>, vector<1x64xf32>
    %c119 = arith.constant 119 : index
    %c0_23 = arith.constant 0 : index
    %39 = vector.load %arg3[%c119, %c0_23] : memref<120x64xf32, #tpu.memory_space<vmem>>, vector<1x16xf32>
    %cst_24 = arith.constant dense<0.000000e+00> : vector<64xf32>
    %40 = vector.multi_reduction <add>, %27, %cst_24 [1] : vector<64x16xf32> to vector<64xf32>
    %41 = vector.shape_cast %40 : vector<64xf32> to vector<64x1xf32>
    %cst_25 = arith.constant 1.600000e+01 : f32
    %42 = vector.broadcast %cst_25 : f32 to vector<64x1xf32>
    %43 = arith.divf %41, %42 : vector<64x1xf32>
    %44 = vector.broadcast %43 : vector<64x1xf32> to vector<64x16xf32>
    %45 = arith.subf %27, %44 : vector<64x16xf32>
    %46 = arith.mulf %45, %45 : vector<64x16xf32>
    %cst_26 = arith.constant dense<0.000000e+00> : vector<64xf32>
    %47 = vector.multi_reduction <add>, %46, %cst_26 [1] : vector<64x16xf32> to vector<64xf32>
    %48 = vector.shape_cast %47 : vector<64xf32> to vector<64x1xf32>
    %cst_27 = arith.constant 1.600000e+01 : f32
    %49 = vector.broadcast %cst_27 : f32 to vector<64x1xf32>
    %50 = arith.divf %48, %49 : vector<64x1xf32>
    %cst_28 = arith.constant 9.99999974E-6 : f32
    %51 = vector.broadcast %cst_28 : f32 to vector<64x1xf32>
    %52 = arith.addf %50, %51 : vector<64x1xf32>
    %53 = math.rsqrt %52 : vector<64x1xf32>
    %54 = vector.broadcast %53 : vector<64x1xf32> to vector<64x16xf32>
    %55 = arith.mulf %45, %54 : vector<64x16xf32>
    %56 = vector.broadcast %32 : vector<1x16xf32> to vector<64x16xf32>
    %57 = arith.mulf %55, %56 : vector<64x16xf32>
    %58 = vector.broadcast %33 : vector<1x16xf32> to vector<64x16xf32>
    %59 = arith.addf %57, %58 : vector<64x16xf32>
    %cst_29 = arith.constant dense<0.000000e+00> : vector<64x48xf32>
    %60 = tpu.matmul %59, %28, %cst_29 {dimension_numbers = #tpu.dot_dimension_numbers<[1], [0], [0], [1], [0, 0, 1, 1], [], []>} : vector<64x16xf32>, vector<16x48xf32>, vector<64x48xf32> -> vector<64x48xf32>
    %61 = vector.broadcast %34 : vector<1x48xf32> to vector<64x48xf32>
    %62 = arith.addf %60, %61 : vector<64x48xf32>
    %63 = vector.extract_strided_slice %62 {offsets = [0, 0], sizes = [64, 8], strides = [1, 1]} : vector<64x48xf32> to vector<64x8xf32>
    %64 = vector.extract_strided_slice %62 {offsets = [0, 16], sizes = [64, 8], strides = [1, 1]} : vector<64x48xf32> to vector<64x8xf32>
    %cst_30 = arith.constant dense<0.000000e+00> : vector<64x64xf32>
    %65 = tpu.matmul %63, %64, %cst_30 {dimension_numbers = #tpu.dot_dimension_numbers<[1], [1], [0], [0], [0, 0, 1, 0], [], []>} : vector<64x8xf32>, vector<64x8xf32>, vector<64x64xf32> -> vector<64x64xf32>
    %66 = vector.extract_strided_slice %62 {offsets = [0, 8], sizes = [64, 8], strides = [1, 1]} : vector<64x48xf32> to vector<64x8xf32>
    %67 = vector.extract_strided_slice %62 {offsets = [0, 24], sizes = [64, 8], strides = [1, 1]} : vector<64x48xf32> to vector<64x8xf32>
    %cst_31 = arith.constant dense<0.000000e+00> : vector<64x64xf32>
    %68 = tpu.matmul %66, %67, %cst_31 {dimension_numbers = #tpu.dot_dimension_numbers<[1], [1], [0], [0], [0, 0, 1, 0], [], []>} : vector<64x8xf32>, vector<64x8xf32>, vector<64x64xf32> -> vector<64x64xf32>
    %69 = tpu.concatenate %65, %68 in 0 : vector<64x64xf32>, vector<64x64xf32> -> vector<128x64xf32>
    %c0_32 = arith.constant 0 : index
    %c0_33 = arith.constant 0 : index
    %70 = vector.load %arg4[%c0_32, %c0_33] : memref<128x64xf32, #tpu.memory_space<vmem>>, vector<128x64xf32>
    %71 = arith.addf %69, %70 : vector<128x64xf32>
    %cst_34 = arith.constant dense<0xFF800000> : vector<128xf32>
    %72 = vector.multi_reduction <maximumf>, %71, %cst_34 [1] : vector<128x64xf32> to vector<128xf32>
    %73 = vector.shape_cast %72 : vector<128xf32> to vector<128x1xf32>
    %74 = vector.broadcast %73 : vector<128x1xf32> to vector<128x64xf32>
    %75 = arith.subf %71, %74 : vector<128x64xf32>
    %76 = math.exp %75 : vector<128x64xf32>
    %cst_35 = arith.constant dense<0.000000e+00> : vector<128xf32>
    %77 = vector.multi_reduction <add>, %76, %cst_35 [1] : vector<128x64xf32> to vector<128xf32>
    %78 = vector.shape_cast %77 : vector<128xf32> to vector<128x1xf32>
    %79 = vector.broadcast %78 : vector<128x1xf32> to vector<128x64xf32>
    %80 = arith.divf %76, %79 : vector<128x64xf32>
    %81 = vector.extract_strided_slice %80 {offsets = [0, 0], sizes = [64, 64], strides = [1, 1]} : vector<128x64xf32> to vector<64x64xf32>
    %82 = vector.extract_strided_slice %62 {offsets = [0, 32], sizes = [64, 8], strides = [1, 1]} : vector<64x48xf32> to vector<64x8xf32>
    %cst_36 = arith.constant dense<0.000000e+00> : vector<64x8xf32>
    %83 = tpu.matmul %81, %82, %cst_36 {dimension_numbers = #tpu.dot_dimension_numbers<[1], [0], [0], [1], [0, 0, 1, 1], [], []>} : vector<64x64xf32>, vector<64x8xf32>, vector<64x8xf32> -> vector<64x8xf32>
    %84 = vector.extract_strided_slice %80 {offsets = [64, 0], sizes = [64, 64], strides = [1, 1]} : vector<128x64xf32> to vector<64x64xf32>
    %85 = vector.extract_strided_slice %62 {offsets = [0, 40], sizes = [64, 8], strides = [1, 1]} : vector<64x48xf32> to vector<64x8xf32>
    %cst_37 = arith.constant dense<0.000000e+00> : vector<64x8xf32>
    %86 = tpu.matmul %84, %85, %cst_37 {dimension_numbers = #tpu.dot_dimension_numbers<[1], [0], [0], [1], [0, 0, 1, 1], [], []>} : vector<64x64xf32>, vector<64x8xf32>, vector<64x8xf32> -> vector<64x8xf32>
    %87 = tpu.concatenate %83, %86 in 1 : vector<64x8xf32>, vector<64x8xf32> -> vector<64x16xf32>
    %cst_38 = arith.constant dense<0.000000e+00> : vector<64x16xf32>
    %88 = tpu.matmul %87, %29, %cst_38 {dimension_numbers = #tpu.dot_dimension_numbers<[1], [0], [0], [1], [0, 0, 1, 1], [], []>} : vector<64x16xf32>, vector<16x16xf32>, vector<64x16xf32> -> vector<64x16xf32>
    %89 = arith.addf %27, %88 : vector<64x16xf32>
    %90 = vector.broadcast %35 : vector<1x16xf32> to vector<64x16xf32>
    %91 = arith.addf %89, %90 : vector<64x16xf32>
    %cst_39 = arith.constant dense<0.000000e+00> : vector<64xf32>
    %92 = vector.multi_reduction <add>, %91, %cst_39 [1] : vector<64x16xf32> to vector<64xf32>
    %93 = vector.shape_cast %92 : vector<64xf32> to vector<64x1xf32>
    %cst_40 = arith.constant 1.600000e+01 : f32
    %94 = vector.broadcast %cst_40 : f32 to vector<64x1xf32>
    %95 = arith.divf %93, %94 : vector<64x1xf32>
    %96 = vector.broadcast %95 : vector<64x1xf32> to vector<64x16xf32>
    %97 = arith.subf %91, %96 : vector<64x16xf32>
    %98 = arith.mulf %97, %97 : vector<64x16xf32>
    %cst_41 = arith.constant dense<0.000000e+00> : vector<64xf32>
    %99 = vector.multi_reduction <add>, %98, %cst_41 [1] : vector<64x16xf32> to vector<64xf32>
    %100 = vector.shape_cast %99 : vector<64xf32> to vector<64x1xf32>
    %cst_42 = arith.constant 1.600000e+01 : f32
    %101 = vector.broadcast %cst_42 : f32 to vector<64x1xf32>
    %102 = arith.divf %100, %101 : vector<64x1xf32>
    %cst_43 = arith.constant 9.99999974E-6 : f32
    %103 = vector.broadcast %cst_43 : f32 to vector<64x1xf32>
    %104 = arith.addf %102, %103 : vector<64x1xf32>
    %105 = math.rsqrt %104 : vector<64x1xf32>
    %106 = vector.broadcast %105 : vector<64x1xf32> to vector<64x16xf32>
    %107 = arith.mulf %97, %106 : vector<64x16xf32>
    %108 = vector.broadcast %36 : vector<1x16xf32> to vector<64x16xf32>
    %109 = arith.mulf %107, %108 : vector<64x16xf32>
    %110 = vector.broadcast %37 : vector<1x16xf32> to vector<64x16xf32>
    %111 = arith.addf %109, %110 : vector<64x16xf32>
    %cst_44 = arith.constant dense<0.000000e+00> : vector<64x64xf32>
    %112 = tpu.matmul %111, %30, %cst_44 {dimension_numbers = #tpu.dot_dimension_numbers<[1], [0], [0], [1], [0, 0, 1, 1], [], []>} : vector<64x16xf32>, vector<16x64xf32>, vector<64x64xf32> -> vector<64x64xf32>
    %113 = vector.broadcast %38 : vector<1x64xf32> to vector<64x64xf32>
    %114 = arith.addf %112, %113 : vector<64x64xf32>
    %cst_45 = arith.constant 5.000000e-01 : f32
    %115 = vector.broadcast %cst_45 : f32 to vector<64x64xf32>
    %116 = arith.mulf %115, %114 : vector<64x64xf32>
    %cst_46 = arith.constant 0.707106769 : f32
    %117 = vector.broadcast %cst_46 : f32 to vector<64x64xf32>
    %118 = arith.mulf %114, %117 : vector<64x64xf32>
    %119 = math.erf %118 : vector<64x64xf32>
    %cst_47 = arith.constant 1.000000e+00 : f32
    %120 = vector.broadcast %cst_47 : f32 to vector<64x64xf32>
    %121 = arith.addf %120, %119 : vector<64x64xf32>
    %122 = arith.mulf %116, %121 : vector<64x64xf32>
    %cst_48 = arith.constant dense<0.000000e+00> : vector<64x16xf32>
    %123 = tpu.matmul %122, %31, %cst_48 {dimension_numbers = #tpu.dot_dimension_numbers<[1], [0], [0], [1], [0, 0, 1, 1], [], []>} : vector<64x64xf32>, vector<64x16xf32>, vector<64x16xf32> -> vector<64x16xf32>
    %124 = arith.addf %91, %123 : vector<64x16xf32>
    %125 = vector.broadcast %39 : vector<1x16xf32> to vector<64x16xf32>
    %126 = arith.addf %124, %125 : vector<64x16xf32>
    %c0_49 = arith.constant 0 : index
    %c0_50 = arith.constant 0 : index
    %127 = vector.load %arg5[%c0_49, %c0_50] : memref<120x64xf32, #tpu.memory_space<vmem>>, vector<16x48xf32>
    %c16_51 = arith.constant 16 : index
    %c0_52 = arith.constant 0 : index
    %128 = vector.load %arg5[%c16_51, %c0_52] : memref<120x64xf32, #tpu.memory_space<vmem>>, vector<16x16xf32>
    %c32_53 = arith.constant 32 : index
    %c0_54 = arith.constant 0 : index
    %129 = vector.load %arg5[%c32_53, %c0_54] : memref<120x64xf32, #tpu.memory_space<vmem>>, vector<16x64xf32>
    %c48_55 = arith.constant 48 : index
    %c0_56 = arith.constant 0 : index
    %130 = vector.load %arg5[%c48_55, %c0_56] : memref<120x64xf32, #tpu.memory_space<vmem>>, vector<64x16xf32>
    %c112_57 = arith.constant 112 : index
    %c0_58 = arith.constant 0 : index
    %131 = vector.load %arg5[%c112_57, %c0_58] : memref<120x64xf32, #tpu.memory_space<vmem>>, vector<1x16xf32>
    %c113_59 = arith.constant 113 : index
    %c0_60 = arith.constant 0 : index
    %132 = vector.load %arg5[%c113_59, %c0_60] : memref<120x64xf32, #tpu.memory_space<vmem>>, vector<1x16xf32>
    %c114_61 = arith.constant 114 : index
    %c0_62 = arith.constant 0 : index
    %133 = vector.load %arg5[%c114_61, %c0_62] : memref<120x64xf32, #tpu.memory_space<vmem>>, vector<1x48xf32>
    %c115_63 = arith.constant 115 : index
    %c0_64 = arith.constant 0 : index
    %134 = vector.load %arg5[%c115_63, %c0_64] : memref<120x64xf32, #tpu.memory_space<vmem>>, vector<1x16xf32>
    %c116_65 = arith.constant 116 : index
    %c0_66 = arith.constant 0 : index
    %135 = vector.load %arg5[%c116_65, %c0_66] : memref<120x64xf32, #tpu.memory_space<vmem>>, vector<1x16xf32>
    %c117_67 = arith.constant 117 : index
    %c0_68 = arith.constant 0 : index
    %136 = vector.load %arg5[%c117_67, %c0_68] : memref<120x64xf32, #tpu.memory_space<vmem>>, vector<1x16xf32>
    %c118_69 = arith.constant 118 : index
    %c0_70 = arith.constant 0 : index
    %137 = vector.load %arg5[%c118_69, %c0_70] : memref<120x64xf32, #tpu.memory_space<vmem>>, vector<1x64xf32>
    %c119_71 = arith.constant 119 : index
    %c0_72 = arith.constant 0 : index
    %138 = vector.load %arg5[%c119_71, %c0_72] : memref<120x64xf32, #tpu.memory_space<vmem>>, vector<1x16xf32>
    %cst_73 = arith.constant dense<0.000000e+00> : vector<64xf32>
    %139 = vector.multi_reduction <add>, %126, %cst_73 [1] : vector<64x16xf32> to vector<64xf32>
    %140 = vector.shape_cast %139 : vector<64xf32> to vector<64x1xf32>
    %cst_74 = arith.constant 1.600000e+01 : f32
    %141 = vector.broadcast %cst_74 : f32 to vector<64x1xf32>
    %142 = arith.divf %140, %141 : vector<64x1xf32>
    %143 = vector.broadcast %142 : vector<64x1xf32> to vector<64x16xf32>
    %144 = arith.subf %126, %143 : vector<64x16xf32>
    %145 = arith.mulf %144, %144 : vector<64x16xf32>
    %cst_75 = arith.constant dense<0.000000e+00> : vector<64xf32>
    %146 = vector.multi_reduction <add>, %145, %cst_75 [1] : vector<64x16xf32> to vector<64xf32>
    %147 = vector.shape_cast %146 : vector<64xf32> to vector<64x1xf32>
    %cst_76 = arith.constant 1.600000e+01 : f32
    %148 = vector.broadcast %cst_76 : f32 to vector<64x1xf32>
    %149 = arith.divf %147, %148 : vector<64x1xf32>
    %cst_77 = arith.constant 9.99999974E-6 : f32
    %150 = vector.broadcast %cst_77 : f32 to vector<64x1xf32>
    %151 = arith.addf %149, %150 : vector<64x1xf32>
    %152 = math.rsqrt %151 : vector<64x1xf32>
    %153 = vector.broadcast %152 : vector<64x1xf32> to vector<64x16xf32>
    %154 = arith.mulf %144, %153 : vector<64x16xf32>
    %155 = vector.broadcast %131 : vector<1x16xf32> to vector<64x16xf32>
    %156 = arith.mulf %154, %155 : vector<64x16xf32>
    %157 = vector.broadcast %132 : vector<1x16xf32> to vector<64x16xf32>
    %158 = arith.addf %156, %157 : vector<64x16xf32>
    %cst_78 = arith.constant dense<0.000000e+00> : vector<64x48xf32>
    %159 = tpu.matmul %158, %127, %cst_78 {dimension_numbers = #tpu.dot_dimension_numbers<[1], [0], [0], [1], [0, 0, 1, 1], [], []>} : vector<64x16xf32>, vector<16x48xf32>, vector<64x48xf32> -> vector<64x48xf32>
    %160 = vector.broadcast %133 : vector<1x48xf32> to vector<64x48xf32>
    %161 = arith.addf %159, %160 : vector<64x48xf32>
    %162 = vector.extract_strided_slice %161 {offsets = [0, 0], sizes = [64, 8], strides = [1, 1]} : vector<64x48xf32> to vector<64x8xf32>
    %163 = vector.extract_strided_slice %161 {offsets = [0, 16], sizes = [64, 8], strides = [1, 1]} : vector<64x48xf32> to vector<64x8xf32>
    %cst_79 = arith.constant dense<0.000000e+00> : vector<64x64xf32>
    %164 = tpu.matmul %162, %163, %cst_79 {dimension_numbers = #tpu.dot_dimension_numbers<[1], [1], [0], [0], [0, 0, 1, 0], [], []>} : vector<64x8xf32>, vector<64x8xf32>, vector<64x64xf32> -> vector<64x64xf32>
    %165 = vector.extract_strided_slice %161 {offsets = [0, 8], sizes = [64, 8], strides = [1, 1]} : vector<64x48xf32> to vector<64x8xf32>
    %166 = vector.extract_strided_slice %161 {offsets = [0, 24], sizes = [64, 8], strides = [1, 1]} : vector<64x48xf32> to vector<64x8xf32>
    %cst_80 = arith.constant dense<0.000000e+00> : vector<64x64xf32>
    %167 = tpu.matmul %165, %166, %cst_80 {dimension_numbers = #tpu.dot_dimension_numbers<[1], [1], [0], [0], [0, 0, 1, 0], [], []>} : vector<64x8xf32>, vector<64x8xf32>, vector<64x64xf32> -> vector<64x64xf32>
    %168 = tpu.concatenate %164, %167 in 0 : vector<64x64xf32>, vector<64x64xf32> -> vector<128x64xf32>
    %c0_81 = arith.constant 0 : index
    %c0_82 = arith.constant 0 : index
    %169 = vector.load %arg6[%c0_81, %c0_82] : memref<128x64xf32, #tpu.memory_space<vmem>>, vector<128x64xf32>
    %170 = arith.addf %168, %169 : vector<128x64xf32>
    %cst_83 = arith.constant dense<0xFF800000> : vector<128xf32>
    %171 = vector.multi_reduction <maximumf>, %170, %cst_83 [1] : vector<128x64xf32> to vector<128xf32>
    %172 = vector.shape_cast %171 : vector<128xf32> to vector<128x1xf32>
    %173 = vector.broadcast %172 : vector<128x1xf32> to vector<128x64xf32>
    %174 = arith.subf %170, %173 : vector<128x64xf32>
    %175 = math.exp %174 : vector<128x64xf32>
    %cst_84 = arith.constant dense<0.000000e+00> : vector<128xf32>
    %176 = vector.multi_reduction <add>, %175, %cst_84 [1] : vector<128x64xf32> to vector<128xf32>
    %177 = vector.shape_cast %176 : vector<128xf32> to vector<128x1xf32>
    %178 = vector.broadcast %177 : vector<128x1xf32> to vector<128x64xf32>
    %179 = arith.divf %175, %178 : vector<128x64xf32>
    %180 = vector.extract_strided_slice %179 {offsets = [0, 0], sizes = [64, 64], strides = [1, 1]} : vector<128x64xf32> to vector<64x64xf32>
    %181 = vector.extract_strided_slice %161 {offsets = [0, 32], sizes = [64, 8], strides = [1, 1]} : vector<64x48xf32> to vector<64x8xf32>
    %cst_85 = arith.constant dense<0.000000e+00> : vector<64x8xf32>
    %182 = tpu.matmul %180, %181, %cst_85 {dimension_numbers = #tpu.dot_dimension_numbers<[1], [0], [0], [1], [0, 0, 1, 1], [], []>} : vector<64x64xf32>, vector<64x8xf32>, vector<64x8xf32> -> vector<64x8xf32>
    %183 = vector.extract_strided_slice %179 {offsets = [64, 0], sizes = [64, 64], strides = [1, 1]} : vector<128x64xf32> to vector<64x64xf32>
    %184 = vector.extract_strided_slice %161 {offsets = [0, 40], sizes = [64, 8], strides = [1, 1]} : vector<64x48xf32> to vector<64x8xf32>
    %cst_86 = arith.constant dense<0.000000e+00> : vector<64x8xf32>
    %185 = tpu.matmul %183, %184, %cst_86 {dimension_numbers = #tpu.dot_dimension_numbers<[1], [0], [0], [1], [0, 0, 1, 1], [], []>} : vector<64x64xf32>, vector<64x8xf32>, vector<64x8xf32> -> vector<64x8xf32>
    %186 = tpu.concatenate %182, %185 in 1 : vector<64x8xf32>, vector<64x8xf32> -> vector<64x16xf32>
    %cst_87 = arith.constant dense<0.000000e+00> : vector<64x16xf32>
    %187 = tpu.matmul %186, %128, %cst_87 {dimension_numbers = #tpu.dot_dimension_numbers<[1], [0], [0], [1], [0, 0, 1, 1], [], []>} : vector<64x16xf32>, vector<16x16xf32>, vector<64x16xf32> -> vector<64x16xf32>
    %188 = arith.addf %126, %187 : vector<64x16xf32>
    %189 = vector.broadcast %134 : vector<1x16xf32> to vector<64x16xf32>
    %190 = arith.addf %188, %189 : vector<64x16xf32>
    %cst_88 = arith.constant dense<0.000000e+00> : vector<64xf32>
    %191 = vector.multi_reduction <add>, %190, %cst_88 [1] : vector<64x16xf32> to vector<64xf32>
    %192 = vector.shape_cast %191 : vector<64xf32> to vector<64x1xf32>
    %cst_89 = arith.constant 1.600000e+01 : f32
    %193 = vector.broadcast %cst_89 : f32 to vector<64x1xf32>
    %194 = arith.divf %192, %193 : vector<64x1xf32>
    %195 = vector.broadcast %194 : vector<64x1xf32> to vector<64x16xf32>
    %196 = arith.subf %190, %195 : vector<64x16xf32>
    %197 = arith.mulf %196, %196 : vector<64x16xf32>
    %cst_90 = arith.constant dense<0.000000e+00> : vector<64xf32>
    %198 = vector.multi_reduction <add>, %197, %cst_90 [1] : vector<64x16xf32> to vector<64xf32>
    %199 = vector.shape_cast %198 : vector<64xf32> to vector<64x1xf32>
    %cst_91 = arith.constant 1.600000e+01 : f32
    %200 = vector.broadcast %cst_91 : f32 to vector<64x1xf32>
    %201 = arith.divf %199, %200 : vector<64x1xf32>
    %cst_92 = arith.constant 9.99999974E-6 : f32
    %202 = vector.broadcast %cst_92 : f32 to vector<64x1xf32>
    %203 = arith.addf %201, %202 : vector<64x1xf32>
    %204 = math.rsqrt %203 : vector<64x1xf32>
    %205 = vector.broadcast %204 : vector<64x1xf32> to vector<64x16xf32>
    %206 = arith.mulf %196, %205 : vector<64x16xf32>
    %207 = vector.broadcast %135 : vector<1x16xf32> to vector<64x16xf32>
    %208 = arith.mulf %206, %207 : vector<64x16xf32>
    %209 = vector.broadcast %136 : vector<1x16xf32> to vector<64x16xf32>
    %210 = arith.addf %208, %209 : vector<64x16xf32>
    %cst_93 = arith.constant dense<0.000000e+00> : vector<64x64xf32>
    %211 = tpu.matmul %210, %129, %cst_93 {dimension_numbers = #tpu.dot_dimension_numbers<[1], [0], [0], [1], [0, 0, 1, 1], [], []>} : vector<64x16xf32>, vector<16x64xf32>, vector<64x64xf32> -> vector<64x64xf32>
    %212 = vector.broadcast %137 : vector<1x64xf32> to vector<64x64xf32>
    %213 = arith.addf %211, %212 : vector<64x64xf32>
    %cst_94 = arith.constant 5.000000e-01 : f32
    %214 = vector.broadcast %cst_94 : f32 to vector<64x64xf32>
    %215 = arith.mulf %214, %213 : vector<64x64xf32>
    %cst_95 = arith.constant 0.707106769 : f32
    %216 = vector.broadcast %cst_95 : f32 to vector<64x64xf32>
    %217 = arith.mulf %213, %216 : vector<64x64xf32>
    %218 = math.erf %217 : vector<64x64xf32>
    %cst_96 = arith.constant 1.000000e+00 : f32
    %219 = vector.broadcast %cst_96 : f32 to vector<64x64xf32>
    %220 = arith.addf %219, %218 : vector<64x64xf32>
    %221 = arith.mulf %215, %220 : vector<64x64xf32>
    %cst_97 = arith.constant dense<0.000000e+00> : vector<64x16xf32>
    %222 = tpu.matmul %221, %130, %cst_97 {dimension_numbers = #tpu.dot_dimension_numbers<[1], [0], [0], [1], [0, 0, 1, 1], [], []>} : vector<64x64xf32>, vector<64x16xf32>, vector<64x16xf32> -> vector<64x16xf32>
    %223 = arith.addf %190, %222 : vector<64x16xf32>
    %224 = vector.broadcast %138 : vector<1x16xf32> to vector<64x16xf32>
    %225 = arith.addf %223, %224 : vector<64x16xf32>
    %c0_98 = arith.constant 0 : index
    %c0_99 = arith.constant 0 : index
    %226 = vector.load %arg7[%c0_98, %c0_99] : memref<130x64xf32, #tpu.memory_space<vmem>>, vector<64x64xf32>
    %cst_100 = arith.constant dense<0.000000e+00> : vector<64x16xf32>
    %227 = tpu.matmul %226, %225, %cst_100 {dimension_numbers = #tpu.dot_dimension_numbers<[1], [0], [0], [1], [0, 0, 1, 1], [], []>} : vector<64x64xf32>, vector<64x16xf32>, vector<64x16xf32> -> vector<64x16xf32>
    %228 = vector.extract_strided_slice %227 {offsets = [0, 0], sizes = [16, 16], strides = [1, 1]} : vector<64x16xf32> to vector<16x16xf32>
    %229 = vector.extract_strided_slice %227 {offsets = [16, 0], sizes = [16, 16], strides = [1, 1]} : vector<64x16xf32> to vector<16x16xf32>
    %230 = vector.extract_strided_slice %227 {offsets = [32, 0], sizes = [16, 16], strides = [1, 1]} : vector<64x16xf32> to vector<16x16xf32>
    %231 = vector.extract_strided_slice %227 {offsets = [48, 0], sizes = [16, 16], strides = [1, 1]} : vector<64x16xf32> to vector<16x16xf32>
    %232 = tpu.concatenate %228, %229, %230, %231 in 1 : vector<16x16xf32>, vector<16x16xf32>, vector<16x16xf32>, vector<16x16xf32> -> vector<16x64xf32>
    %c64 = arith.constant 64 : index
    %c0_101 = arith.constant 0 : index
    %233 = vector.load %arg7[%c64, %c0_101] : memref<130x64xf32, #tpu.memory_space<vmem>>, vector<1x64xf32>
    %c65 = arith.constant 65 : index
    %c0_102 = arith.constant 0 : index
    %234 = vector.load %arg7[%c65, %c0_102] : memref<130x64xf32, #tpu.memory_space<vmem>>, vector<1x64xf32>
    %c66 = arith.constant 66 : index
    %c0_103 = arith.constant 0 : index
    %235 = vector.load %arg7[%c66, %c0_103] : memref<130x64xf32, #tpu.memory_space<vmem>>, vector<64x32xf32>
    %cst_104 = arith.constant dense<0.000000e+00> : vector<16xf32>
    %236 = vector.multi_reduction <add>, %232, %cst_104 [1] : vector<16x64xf32> to vector<16xf32>
    %237 = vector.shape_cast %236 : vector<16xf32> to vector<16x1xf32>
    %cst_105 = arith.constant 6.400000e+01 : f32
    %238 = vector.broadcast %cst_105 : f32 to vector<16x1xf32>
    %239 = arith.divf %237, %238 : vector<16x1xf32>
    %240 = vector.broadcast %239 : vector<16x1xf32> to vector<16x64xf32>
    %241 = arith.subf %232, %240 : vector<16x64xf32>
    %242 = arith.mulf %241, %241 : vector<16x64xf32>
    %cst_106 = arith.constant dense<0.000000e+00> : vector<16xf32>
    %243 = vector.multi_reduction <add>, %242, %cst_106 [1] : vector<16x64xf32> to vector<16xf32>
    %244 = vector.shape_cast %243 : vector<16xf32> to vector<16x1xf32>
    %cst_107 = arith.constant 6.400000e+01 : f32
    %245 = vector.broadcast %cst_107 : f32 to vector<16x1xf32>
    %246 = arith.divf %244, %245 : vector<16x1xf32>
    %cst_108 = arith.constant 9.99999974E-6 : f32
    %247 = vector.broadcast %cst_108 : f32 to vector<16x1xf32>
    %248 = arith.addf %246, %247 : vector<16x1xf32>
    %249 = math.rsqrt %248 : vector<16x1xf32>
    %250 = vector.broadcast %249 : vector<16x1xf32> to vector<16x64xf32>
    %251 = arith.mulf %241, %250 : vector<16x64xf32>
    %252 = vector.broadcast %233 : vector<1x64xf32> to vector<16x64xf32>
    %253 = arith.mulf %251, %252 : vector<16x64xf32>
    %254 = vector.broadcast %234 : vector<1x64xf32> to vector<16x64xf32>
    %255 = arith.addf %253, %254 : vector<16x64xf32>
    %cst_109 = arith.constant dense<0.000000e+00> : vector<16x32xf32>
    %256 = tpu.matmul %255, %235, %cst_109 {dimension_numbers = #tpu.dot_dimension_numbers<[1], [0], [0], [1], [0, 0, 1, 1], [], []>} : vector<16x64xf32>, vector<64x32xf32>, vector<16x32xf32> -> vector<16x32xf32>
    %c0_110 = arith.constant 0 : index
    %c0_111 = arith.constant 0 : index
    %257 = vector.load %arg8[%c0_110, %c0_111] : memref<232x128xf32, #tpu.memory_space<vmem>>, vector<32x96xf32>
    %c32_112 = arith.constant 32 : index
    %c0_113 = arith.constant 0 : index
    %258 = vector.load %arg8[%c32_112, %c0_113] : memref<232x128xf32, #tpu.memory_space<vmem>>, vector<32x32xf32>
    %c64_114 = arith.constant 64 : index
    %c0_115 = arith.constant 0 : index
    %259 = vector.load %arg8[%c64_114, %c0_115] : memref<232x128xf32, #tpu.memory_space<vmem>>, vector<32x128xf32>
    %c96 = arith.constant 96 : index
    %c0_116 = arith.constant 0 : index
    %260 = vector.load %arg8[%c96, %c0_116] : memref<232x128xf32, #tpu.memory_space<vmem>>, vector<128x32xf32>
    %c224 = arith.constant 224 : index
    %c0_117 = arith.constant 0 : index
    %261 = vector.load %arg8[%c224, %c0_117] : memref<232x128xf32, #tpu.memory_space<vmem>>, vector<1x32xf32>
    %c225 = arith.constant 225 : index
    %c0_118 = arith.constant 0 : index
    %262 = vector.load %arg8[%c225, %c0_118] : memref<232x128xf32, #tpu.memory_space<vmem>>, vector<1x32xf32>
    %c226 = arith.constant 226 : index
    %c0_119 = arith.constant 0 : index
    %263 = vector.load %arg8[%c226, %c0_119] : memref<232x128xf32, #tpu.memory_space<vmem>>, vector<1x96xf32>
    %c227 = arith.constant 227 : index
    %c0_120 = arith.constant 0 : index
    %264 = vector.load %arg8[%c227, %c0_120] : memref<232x128xf32, #tpu.memory_space<vmem>>, vector<1x32xf32>
    %c228 = arith.constant 228 : index
    %c0_121 = arith.constant 0 : index
    %265 = vector.load %arg8[%c228, %c0_121] : memref<232x128xf32, #tpu.memory_space<vmem>>, vector<1x32xf32>
    %c229 = arith.constant 229 : index
    %c0_122 = arith.constant 0 : index
    %266 = vector.load %arg8[%c229, %c0_122] : memref<232x128xf32, #tpu.memory_space<vmem>>, vector<1x32xf32>
    %c230 = arith.constant 230 : index
    %c0_123 = arith.constant 0 : index
    %267 = vector.load %arg8[%c230, %c0_123] : memref<232x128xf32, #tpu.memory_space<vmem>>, vector<1x128xf32>
    %c231 = arith.constant 231 : index
    %c0_124 = arith.constant 0 : index
    %268 = vector.load %arg8[%c231, %c0_124] : memref<232x128xf32, #tpu.memory_space<vmem>>, vector<1x32xf32>
    %cst_125 = arith.constant dense<0.000000e+00> : vector<16xf32>
    %269 = vector.multi_reduction <add>, %256, %cst_125 [1] : vector<16x32xf32> to vector<16xf32>
    %270 = vector.shape_cast %269 : vector<16xf32> to vector<16x1xf32>
    %cst_126 = arith.constant 3.200000e+01 : f32
    %271 = vector.broadcast %cst_126 : f32 to vector<16x1xf32>
    %272 = arith.divf %270, %271 : vector<16x1xf32>
    %273 = vector.broadcast %272 : vector<16x1xf32> to vector<16x32xf32>
    %274 = arith.subf %256, %273 : vector<16x32xf32>
    %275 = arith.mulf %274, %274 : vector<16x32xf32>
    %cst_127 = arith.constant dense<0.000000e+00> : vector<16xf32>
    %276 = vector.multi_reduction <add>, %275, %cst_127 [1] : vector<16x32xf32> to vector<16xf32>
    %277 = vector.shape_cast %276 : vector<16xf32> to vector<16x1xf32>
    %cst_128 = arith.constant 3.200000e+01 : f32
    %278 = vector.broadcast %cst_128 : f32 to vector<16x1xf32>
    %279 = arith.divf %277, %278 : vector<16x1xf32>
    %cst_129 = arith.constant 9.99999974E-6 : f32
    %280 = vector.broadcast %cst_129 : f32 to vector<16x1xf32>
    %281 = arith.addf %279, %280 : vector<16x1xf32>
    %282 = math.rsqrt %281 : vector<16x1xf32>
    %283 = vector.broadcast %282 : vector<16x1xf32> to vector<16x32xf32>
    %284 = arith.mulf %274, %283 : vector<16x32xf32>
    %285 = vector.broadcast %261 : vector<1x32xf32> to vector<16x32xf32>
    %286 = arith.mulf %284, %285 : vector<16x32xf32>
    %287 = vector.broadcast %262 : vector<1x32xf32> to vector<16x32xf32>
    %288 = arith.addf %286, %287 : vector<16x32xf32>
    %cst_130 = arith.constant dense<0.000000e+00> : vector<16x96xf32>
    %289 = tpu.matmul %288, %257, %cst_130 {dimension_numbers = #tpu.dot_dimension_numbers<[1], [0], [0], [1], [0, 0, 1, 1], [], []>} : vector<16x32xf32>, vector<32x96xf32>, vector<16x96xf32> -> vector<16x96xf32>
    %290 = vector.broadcast %263 : vector<1x96xf32> to vector<16x96xf32>
    %291 = arith.addf %289, %290 : vector<16x96xf32>
    %292 = vector.extract_strided_slice %291 {offsets = [0, 0], sizes = [16, 8], strides = [1, 1]} : vector<16x96xf32> to vector<16x8xf32>
    %293 = vector.extract_strided_slice %291 {offsets = [0, 32], sizes = [16, 8], strides = [1, 1]} : vector<16x96xf32> to vector<16x8xf32>
    %cst_131 = arith.constant dense<0.000000e+00> : vector<16x16xf32>
    %294 = tpu.matmul %292, %293, %cst_131 {dimension_numbers = #tpu.dot_dimension_numbers<[1], [1], [0], [0], [0, 0, 1, 0], [], []>} : vector<16x8xf32>, vector<16x8xf32>, vector<16x16xf32> -> vector<16x16xf32>
    %295 = vector.extract_strided_slice %291 {offsets = [0, 8], sizes = [16, 8], strides = [1, 1]} : vector<16x96xf32> to vector<16x8xf32>
    %296 = vector.extract_strided_slice %291 {offsets = [0, 40], sizes = [16, 8], strides = [1, 1]} : vector<16x96xf32> to vector<16x8xf32>
    %cst_132 = arith.constant dense<0.000000e+00> : vector<16x16xf32>
    %297 = tpu.matmul %295, %296, %cst_132 {dimension_numbers = #tpu.dot_dimension_numbers<[1], [1], [0], [0], [0, 0, 1, 0], [], []>} : vector<16x8xf32>, vector<16x8xf32>, vector<16x16xf32> -> vector<16x16xf32>
    %298 = vector.extract_strided_slice %291 {offsets = [0, 16], sizes = [16, 8], strides = [1, 1]} : vector<16x96xf32> to vector<16x8xf32>
    %299 = vector.extract_strided_slice %291 {offsets = [0, 48], sizes = [16, 8], strides = [1, 1]} : vector<16x96xf32> to vector<16x8xf32>
    %cst_133 = arith.constant dense<0.000000e+00> : vector<16x16xf32>
    %300 = tpu.matmul %298, %299, %cst_133 {dimension_numbers = #tpu.dot_dimension_numbers<[1], [1], [0], [0], [0, 0, 1, 0], [], []>} : vector<16x8xf32>, vector<16x8xf32>, vector<16x16xf32> -> vector<16x16xf32>
    %301 = vector.extract_strided_slice %291 {offsets = [0, 24], sizes = [16, 8], strides = [1, 1]} : vector<16x96xf32> to vector<16x8xf32>
    %302 = vector.extract_strided_slice %291 {offsets = [0, 56], sizes = [16, 8], strides = [1, 1]} : vector<16x96xf32> to vector<16x8xf32>
    %cst_134 = arith.constant dense<0.000000e+00> : vector<16x16xf32>
    %303 = tpu.matmul %301, %302, %cst_134 {dimension_numbers = #tpu.dot_dimension_numbers<[1], [1], [0], [0], [0, 0, 1, 0], [], []>} : vector<16x8xf32>, vector<16x8xf32>, vector<16x16xf32> -> vector<16x16xf32>
    %304 = tpu.concatenate %294, %297, %300, %303 in 0 : vector<16x16xf32>, vector<16x16xf32>, vector<16x16xf32>, vector<16x16xf32> -> vector<64x16xf32>
    %c0_135 = arith.constant 0 : index
    %c0_136 = arith.constant 0 : index
    %305 = vector.load %arg9[%c0_135, %c0_136] : memref<64x16xf32, #tpu.memory_space<vmem>>, vector<64x16xf32>
    %306 = arith.addf %304, %305 : vector<64x16xf32>
    %cst_137 = arith.constant dense<0xFF800000> : vector<64xf32>
    %307 = vector.multi_reduction <maximumf>, %306, %cst_137 [1] : vector<64x16xf32> to vector<64xf32>
    %308 = vector.shape_cast %307 : vector<64xf32> to vector<64x1xf32>
    %309 = vector.broadcast %308 : vector<64x1xf32> to vector<64x16xf32>
    %310 = arith.subf %306, %309 : vector<64x16xf32>
    %311 = math.exp %310 : vector<64x16xf32>
    %cst_138 = arith.constant dense<0.000000e+00> : vector<64xf32>
    %312 = vector.multi_reduction <add>, %311, %cst_138 [1] : vector<64x16xf32> to vector<64xf32>
    %313 = vector.shape_cast %312 : vector<64xf32> to vector<64x1xf32>
    %314 = vector.broadcast %313 : vector<64x1xf32> to vector<64x16xf32>
    %315 = arith.divf %311, %314 : vector<64x16xf32>
    %316 = vector.extract_strided_slice %315 {offsets = [0, 0], sizes = [16, 16], strides = [1, 1]} : vector<64x16xf32> to vector<16x16xf32>
    %317 = vector.extract_strided_slice %291 {offsets = [0, 64], sizes = [16, 8], strides = [1, 1]} : vector<16x96xf32> to vector<16x8xf32>
    %cst_139 = arith.constant dense<0.000000e+00> : vector<16x8xf32>
    %318 = tpu.matmul %316, %317, %cst_139 {dimension_numbers = #tpu.dot_dimension_numbers<[1], [0], [0], [1], [0, 0, 1, 1], [], []>} : vector<16x16xf32>, vector<16x8xf32>, vector<16x8xf32> -> vector<16x8xf32>
    %319 = vector.extract_strided_slice %315 {offsets = [16, 0], sizes = [16, 16], strides = [1, 1]} : vector<64x16xf32> to vector<16x16xf32>
    %320 = vector.extract_strided_slice %291 {offsets = [0, 72], sizes = [16, 8], strides = [1, 1]} : vector<16x96xf32> to vector<16x8xf32>
    %cst_140 = arith.constant dense<0.000000e+00> : vector<16x8xf32>
    %321 = tpu.matmul %319, %320, %cst_140 {dimension_numbers = #tpu.dot_dimension_numbers<[1], [0], [0], [1], [0, 0, 1, 1], [], []>} : vector<16x16xf32>, vector<16x8xf32>, vector<16x8xf32> -> vector<16x8xf32>
    %322 = vector.extract_strided_slice %315 {offsets = [32, 0], sizes = [16, 16], strides = [1, 1]} : vector<64x16xf32> to vector<16x16xf32>
    %323 = vector.extract_strided_slice %291 {offsets = [0, 80], sizes = [16, 8], strides = [1, 1]} : vector<16x96xf32> to vector<16x8xf32>
    %cst_141 = arith.constant dense<0.000000e+00> : vector<16x8xf32>
    %324 = tpu.matmul %322, %323, %cst_141 {dimension_numbers = #tpu.dot_dimension_numbers<[1], [0], [0], [1], [0, 0, 1, 1], [], []>} : vector<16x16xf32>, vector<16x8xf32>, vector<16x8xf32> -> vector<16x8xf32>
    %325 = vector.extract_strided_slice %315 {offsets = [48, 0], sizes = [16, 16], strides = [1, 1]} : vector<64x16xf32> to vector<16x16xf32>
    %326 = vector.extract_strided_slice %291 {offsets = [0, 88], sizes = [16, 8], strides = [1, 1]} : vector<16x96xf32> to vector<16x8xf32>
    %cst_142 = arith.constant dense<0.000000e+00> : vector<16x8xf32>
    %327 = tpu.matmul %325, %326, %cst_142 {dimension_numbers = #tpu.dot_dimension_numbers<[1], [0], [0], [1], [0, 0, 1, 1], [], []>} : vector<16x16xf32>, vector<16x8xf32>, vector<16x8xf32> -> vector<16x8xf32>
    %328 = tpu.concatenate %318, %321, %324, %327 in 1 : vector<16x8xf32>, vector<16x8xf32>, vector<16x8xf32>, vector<16x8xf32> -> vector<16x32xf32>
    %cst_143 = arith.constant dense<0.000000e+00> : vector<16x32xf32>
    %329 = tpu.matmul %328, %258, %cst_143 {dimension_numbers = #tpu.dot_dimension_numbers<[1], [0], [0], [1], [0, 0, 1, 1], [], []>} : vector<16x32xf32>, vector<32x32xf32>, vector<16x32xf32> -> vector<16x32xf32>
    %330 = arith.addf %256, %329 : vector<16x32xf32>
    %331 = vector.broadcast %264 : vector<1x32xf32> to vector<16x32xf32>
    %332 = arith.addf %330, %331 : vector<16x32xf32>
    %cst_144 = arith.constant dense<0.000000e+00> : vector<16xf32>
    %333 = vector.multi_reduction <add>, %332, %cst_144 [1] : vector<16x32xf32> to vector<16xf32>
    %334 = vector.shape_cast %333 : vector<16xf32> to vector<16x1xf32>
    %cst_145 = arith.constant 3.200000e+01 : f32
    %335 = vector.broadcast %cst_145 : f32 to vector<16x1xf32>
    %336 = arith.divf %334, %335 : vector<16x1xf32>
    %337 = vector.broadcast %336 : vector<16x1xf32> to vector<16x32xf32>
    %338 = arith.subf %332, %337 : vector<16x32xf32>
    %339 = arith.mulf %338, %338 : vector<16x32xf32>
    %cst_146 = arith.constant dense<0.000000e+00> : vector<16xf32>
    %340 = vector.multi_reduction <add>, %339, %cst_146 [1] : vector<16x32xf32> to vector<16xf32>
    %341 = vector.shape_cast %340 : vector<16xf32> to vector<16x1xf32>
    %cst_147 = arith.constant 3.200000e+01 : f32
    %342 = vector.broadcast %cst_147 : f32 to vector<16x1xf32>
    %343 = arith.divf %341, %342 : vector<16x1xf32>
    %cst_148 = arith.constant 9.99999974E-6 : f32
    %344 = vector.broadcast %cst_148 : f32 to vector<16x1xf32>
    %345 = arith.addf %343, %344 : vector<16x1xf32>
    %346 = math.rsqrt %345 : vector<16x1xf32>
    %347 = vector.broadcast %346 : vector<16x1xf32> to vector<16x32xf32>
    %348 = arith.mulf %338, %347 : vector<16x32xf32>
    %349 = vector.broadcast %265 : vector<1x32xf32> to vector<16x32xf32>
    %350 = arith.mulf %348, %349 : vector<16x32xf32>
    %351 = vector.broadcast %266 : vector<1x32xf32> to vector<16x32xf32>
    %352 = arith.addf %350, %351 : vector<16x32xf32>
    %cst_149 = arith.constant dense<0.000000e+00> : vector<16x128xf32>
    %353 = tpu.matmul %352, %259, %cst_149 {dimension_numbers = #tpu.dot_dimension_numbers<[1], [0], [0], [1], [0, 0, 1, 1], [], []>} : vector<16x32xf32>, vector<32x128xf32>, vector<16x128xf32> -> vector<16x128xf32>
    %354 = vector.broadcast %267 : vector<1x128xf32> to vector<16x128xf32>
    %355 = arith.addf %353, %354 : vector<16x128xf32>
    %cst_150 = arith.constant 5.000000e-01 : f32
    %356 = vector.broadcast %cst_150 : f32 to vector<16x128xf32>
    %357 = arith.mulf %356, %355 : vector<16x128xf32>
    %cst_151 = arith.constant 0.707106769 : f32
    %358 = vector.broadcast %cst_151 : f32 to vector<16x128xf32>
    %359 = arith.mulf %355, %358 : vector<16x128xf32>
    %360 = math.erf %359 : vector<16x128xf32>
    %cst_152 = arith.constant 1.000000e+00 : f32
    %361 = vector.broadcast %cst_152 : f32 to vector<16x128xf32>
    %362 = arith.addf %361, %360 : vector<16x128xf32>
    %363 = arith.mulf %357, %362 : vector<16x128xf32>
    %cst_153 = arith.constant dense<0.000000e+00> : vector<16x32xf32>
    %364 = tpu.matmul %363, %260, %cst_153 {dimension_numbers = #tpu.dot_dimension_numbers<[1], [0], [0], [1], [0, 0, 1, 1], [], []>} : vector<16x128xf32>, vector<128x32xf32>, vector<16x32xf32> -> vector<16x32xf32>
    %365 = arith.addf %332, %364 : vector<16x32xf32>
    %366 = vector.broadcast %268 : vector<1x32xf32> to vector<16x32xf32>
    %367 = arith.addf %365, %366 : vector<16x32xf32>
    %c0_154 = arith.constant 0 : index
    %c0_155 = arith.constant 0 : index
    %368 = vector.load %arg10[%c0_154, %c0_155] : memref<232x128xf32, #tpu.memory_space<vmem>>, vector<32x96xf32>
    %c32_156 = arith.constant 32 : index
    %c0_157 = arith.constant 0 : index
    %369 = vector.load %arg10[%c32_156, %c0_157] : memref<232x128xf32, #tpu.memory_space<vmem>>, vector<32x32xf32>
    %c64_158 = arith.constant 64 : index
    %c0_159 = arith.constant 0 : index
    %370 = vector.load %arg10[%c64_158, %c0_159] : memref<232x128xf32, #tpu.memory_space<vmem>>, vector<32x128xf32>
    %c96_160 = arith.constant 96 : index
    %c0_161 = arith.constant 0 : index
    %371 = vector.load %arg10[%c96_160, %c0_161] : memref<232x128xf32, #tpu.memory_space<vmem>>, vector<128x32xf32>
    %c224_162 = arith.constant 224 : index
    %c0_163 = arith.constant 0 : index
    %372 = vector.load %arg10[%c224_162, %c0_163] : memref<232x128xf32, #tpu.memory_space<vmem>>, vector<1x32xf32>
    %c225_164 = arith.constant 225 : index
    %c0_165 = arith.constant 0 : index
    %373 = vector.load %arg10[%c225_164, %c0_165] : memref<232x128xf32, #tpu.memory_space<vmem>>, vector<1x32xf32>
    %c226_166 = arith.constant 226 : index
    %c0_167 = arith.constant 0 : index
    %374 = vector.load %arg10[%c226_166, %c0_167] : memref<232x128xf32, #tpu.memory_space<vmem>>, vector<1x96xf32>
    %c227_168 = arith.constant 227 : index
    %c0_169 = arith.constant 0 : index
    %375 = vector.load %arg10[%c227_168, %c0_169] : memref<232x128xf32, #tpu.memory_space<vmem>>, vector<1x32xf32>
    %c228_170 = arith.constant 228 : index
    %c0_171 = arith.constant 0 : index
    %376 = vector.load %arg10[%c228_170, %c0_171] : memref<232x128xf32, #tpu.memory_space<vmem>>, vector<1x32xf32>
    %c229_172 = arith.constant 229 : index
    %c0_173 = arith.constant 0 : index
    %377 = vector.load %arg10[%c229_172, %c0_173] : memref<232x128xf32, #tpu.memory_space<vmem>>, vector<1x32xf32>
    %c230_174 = arith.constant 230 : index
    %c0_175 = arith.constant 0 : index
    %378 = vector.load %arg10[%c230_174, %c0_175] : memref<232x128xf32, #tpu.memory_space<vmem>>, vector<1x128xf32>
    %c231_176 = arith.constant 231 : index
    %c0_177 = arith.constant 0 : index
    %379 = vector.load %arg10[%c231_176, %c0_177] : memref<232x128xf32, #tpu.memory_space<vmem>>, vector<1x32xf32>
    %cst_178 = arith.constant dense<0.000000e+00> : vector<16xf32>
    %380 = vector.multi_reduction <add>, %367, %cst_178 [1] : vector<16x32xf32> to vector<16xf32>
    %381 = vector.shape_cast %380 : vector<16xf32> to vector<16x1xf32>
    %cst_179 = arith.constant 3.200000e+01 : f32
    %382 = vector.broadcast %cst_179 : f32 to vector<16x1xf32>
    %383 = arith.divf %381, %382 : vector<16x1xf32>
    %384 = vector.broadcast %383 : vector<16x1xf32> to vector<16x32xf32>
    %385 = arith.subf %367, %384 : vector<16x32xf32>
    %386 = arith.mulf %385, %385 : vector<16x32xf32>
    %cst_180 = arith.constant dense<0.000000e+00> : vector<16xf32>
    %387 = vector.multi_reduction <add>, %386, %cst_180 [1] : vector<16x32xf32> to vector<16xf32>
    %388 = vector.shape_cast %387 : vector<16xf32> to vector<16x1xf32>
    %cst_181 = arith.constant 3.200000e+01 : f32
    %389 = vector.broadcast %cst_181 : f32 to vector<16x1xf32>
    %390 = arith.divf %388, %389 : vector<16x1xf32>
    %cst_182 = arith.constant 9.99999974E-6 : f32
    %391 = vector.broadcast %cst_182 : f32 to vector<16x1xf32>
    %392 = arith.addf %390, %391 : vector<16x1xf32>
    %393 = math.rsqrt %392 : vector<16x1xf32>
    %394 = vector.broadcast %393 : vector<16x1xf32> to vector<16x32xf32>
    %395 = arith.mulf %385, %394 : vector<16x32xf32>
    %396 = vector.broadcast %372 : vector<1x32xf32> to vector<16x32xf32>
    %397 = arith.mulf %395, %396 : vector<16x32xf32>
    %398 = vector.broadcast %373 : vector<1x32xf32> to vector<16x32xf32>
    %399 = arith.addf %397, %398 : vector<16x32xf32>
    %cst_183 = arith.constant dense<0.000000e+00> : vector<16x96xf32>
    %400 = tpu.matmul %399, %368, %cst_183 {dimension_numbers = #tpu.dot_dimension_numbers<[1], [0], [0], [1], [0, 0, 1, 1], [], []>} : vector<16x32xf32>, vector<32x96xf32>, vector<16x96xf32> -> vector<16x96xf32>
    %401 = vector.broadcast %374 : vector<1x96xf32> to vector<16x96xf32>
    %402 = arith.addf %400, %401 : vector<16x96xf32>
    %403 = vector.extract_strided_slice %402 {offsets = [0, 0], sizes = [16, 8], strides = [1, 1]} : vector<16x96xf32> to vector<16x8xf32>
    %404 = vector.extract_strided_slice %402 {offsets = [0, 32], sizes = [16, 8], strides = [1, 1]} : vector<16x96xf32> to vector<16x8xf32>
    %cst_184 = arith.constant dense<0.000000e+00> : vector<16x16xf32>
    %405 = tpu.matmul %403, %404, %cst_184 {dimension_numbers = #tpu.dot_dimension_numbers<[1], [1], [0], [0], [0, 0, 1, 0], [], []>} : vector<16x8xf32>, vector<16x8xf32>, vector<16x16xf32> -> vector<16x16xf32>
    %406 = vector.extract_strided_slice %402 {offsets = [0, 8], sizes = [16, 8], strides = [1, 1]} : vector<16x96xf32> to vector<16x8xf32>
    %407 = vector.extract_strided_slice %402 {offsets = [0, 40], sizes = [16, 8], strides = [1, 1]} : vector<16x96xf32> to vector<16x8xf32>
    %cst_185 = arith.constant dense<0.000000e+00> : vector<16x16xf32>
    %408 = tpu.matmul %406, %407, %cst_185 {dimension_numbers = #tpu.dot_dimension_numbers<[1], [1], [0], [0], [0, 0, 1, 0], [], []>} : vector<16x8xf32>, vector<16x8xf32>, vector<16x16xf32> -> vector<16x16xf32>
    %409 = vector.extract_strided_slice %402 {offsets = [0, 16], sizes = [16, 8], strides = [1, 1]} : vector<16x96xf32> to vector<16x8xf32>
    %410 = vector.extract_strided_slice %402 {offsets = [0, 48], sizes = [16, 8], strides = [1, 1]} : vector<16x96xf32> to vector<16x8xf32>
    %cst_186 = arith.constant dense<0.000000e+00> : vector<16x16xf32>
    %411 = tpu.matmul %409, %410, %cst_186 {dimension_numbers = #tpu.dot_dimension_numbers<[1], [1], [0], [0], [0, 0, 1, 0], [], []>} : vector<16x8xf32>, vector<16x8xf32>, vector<16x16xf32> -> vector<16x16xf32>
    %412 = vector.extract_strided_slice %402 {offsets = [0, 24], sizes = [16, 8], strides = [1, 1]} : vector<16x96xf32> to vector<16x8xf32>
    %413 = vector.extract_strided_slice %402 {offsets = [0, 56], sizes = [16, 8], strides = [1, 1]} : vector<16x96xf32> to vector<16x8xf32>
    %cst_187 = arith.constant dense<0.000000e+00> : vector<16x16xf32>
    %414 = tpu.matmul %412, %413, %cst_187 {dimension_numbers = #tpu.dot_dimension_numbers<[1], [1], [0], [0], [0, 0, 1, 0], [], []>} : vector<16x8xf32>, vector<16x8xf32>, vector<16x16xf32> -> vector<16x16xf32>
    %415 = tpu.concatenate %405, %408, %411, %414 in 0 : vector<16x16xf32>, vector<16x16xf32>, vector<16x16xf32>, vector<16x16xf32> -> vector<64x16xf32>
    %c0_188 = arith.constant 0 : index
    %c0_189 = arith.constant 0 : index
    %416 = vector.load %arg11[%c0_188, %c0_189] : memref<64x16xf32, #tpu.memory_space<vmem>>, vector<64x16xf32>
    %417 = arith.addf %415, %416 : vector<64x16xf32>
    %cst_190 = arith.constant dense<0xFF800000> : vector<64xf32>
    %418 = vector.multi_reduction <maximumf>, %417, %cst_190 [1] : vector<64x16xf32> to vector<64xf32>
    %419 = vector.shape_cast %418 : vector<64xf32> to vector<64x1xf32>
    %420 = vector.broadcast %419 : vector<64x1xf32> to vector<64x16xf32>
    %421 = arith.subf %417, %420 : vector<64x16xf32>
    %422 = math.exp %421 : vector<64x16xf32>
    %cst_191 = arith.constant dense<0.000000e+00> : vector<64xf32>
    %423 = vector.multi_reduction <add>, %422, %cst_191 [1] : vector<64x16xf32> to vector<64xf32>
    %424 = vector.shape_cast %423 : vector<64xf32> to vector<64x1xf32>
    %425 = vector.broadcast %424 : vector<64x1xf32> to vector<64x16xf32>
    %426 = arith.divf %422, %425 : vector<64x16xf32>
    %427 = vector.extract_strided_slice %426 {offsets = [0, 0], sizes = [16, 16], strides = [1, 1]} : vector<64x16xf32> to vector<16x16xf32>
    %428 = vector.extract_strided_slice %402 {offsets = [0, 64], sizes = [16, 8], strides = [1, 1]} : vector<16x96xf32> to vector<16x8xf32>
    %cst_192 = arith.constant dense<0.000000e+00> : vector<16x8xf32>
    %429 = tpu.matmul %427, %428, %cst_192 {dimension_numbers = #tpu.dot_dimension_numbers<[1], [0], [0], [1], [0, 0, 1, 1], [], []>} : vector<16x16xf32>, vector<16x8xf32>, vector<16x8xf32> -> vector<16x8xf32>
    %430 = vector.extract_strided_slice %426 {offsets = [16, 0], sizes = [16, 16], strides = [1, 1]} : vector<64x16xf32> to vector<16x16xf32>
    %431 = vector.extract_strided_slice %402 {offsets = [0, 72], sizes = [16, 8], strides = [1, 1]} : vector<16x96xf32> to vector<16x8xf32>
    %cst_193 = arith.constant dense<0.000000e+00> : vector<16x8xf32>
    %432 = tpu.matmul %430, %431, %cst_193 {dimension_numbers = #tpu.dot_dimension_numbers<[1], [0], [0], [1], [0, 0, 1, 1], [], []>} : vector<16x16xf32>, vector<16x8xf32>, vector<16x8xf32> -> vector<16x8xf32>
    %433 = vector.extract_strided_slice %426 {offsets = [32, 0], sizes = [16, 16], strides = [1, 1]} : vector<64x16xf32> to vector<16x16xf32>
    %434 = vector.extract_strided_slice %402 {offsets = [0, 80], sizes = [16, 8], strides = [1, 1]} : vector<16x96xf32> to vector<16x8xf32>
    %cst_194 = arith.constant dense<0.000000e+00> : vector<16x8xf32>
    %435 = tpu.matmul %433, %434, %cst_194 {dimension_numbers = #tpu.dot_dimension_numbers<[1], [0], [0], [1], [0, 0, 1, 1], [], []>} : vector<16x16xf32>, vector<16x8xf32>, vector<16x8xf32> -> vector<16x8xf32>
    %436 = vector.extract_strided_slice %426 {offsets = [48, 0], sizes = [16, 16], strides = [1, 1]} : vector<64x16xf32> to vector<16x16xf32>
    %437 = vector.extract_strided_slice %402 {offsets = [0, 88], sizes = [16, 8], strides = [1, 1]} : vector<16x96xf32> to vector<16x8xf32>
    %cst_195 = arith.constant dense<0.000000e+00> : vector<16x8xf32>
    %438 = tpu.matmul %436, %437, %cst_195 {dimension_numbers = #tpu.dot_dimension_numbers<[1], [0], [0], [1], [0, 0, 1, 1], [], []>} : vector<16x16xf32>, vector<16x8xf32>, vector<16x8xf32> -> vector<16x8xf32>
    %439 = tpu.concatenate %429, %432, %435, %438 in 1 : vector<16x8xf32>, vector<16x8xf32>, vector<16x8xf32>, vector<16x8xf32> -> vector<16x32xf32>
    %cst_196 = arith.constant dense<0.000000e+00> : vector<16x32xf32>
    %440 = tpu.matmul %439, %369, %cst_196 {dimension_numbers = #tpu.dot_dimension_numbers<[1], [0], [0], [1], [0, 0, 1, 1], [], []>} : vector<16x32xf32>, vector<32x32xf32>, vector<16x32xf32> -> vector<16x32xf32>
    %441 = arith.addf %367, %440 : vector<16x32xf32>
    %442 = vector.broadcast %375 : vector<1x32xf32> to vector<16x32xf32>
    %443 = arith.addf %441, %442 : vector<16x32xf32>
    %cst_197 = arith.constant dense<0.000000e+00> : vector<16xf32>
    %444 = vector.multi_reduction <add>, %443, %cst_197 [1] : vector<16x32xf32> to vector<16xf32>
    %445 = vector.shape_cast %444 : vector<16xf32> to vector<16x1xf32>
    %cst_198 = arith.constant 3.200000e+01 : f32
    %446 = vector.broadcast %cst_198 : f32 to vector<16x1xf32>
    %447 = arith.divf %445, %446 : vector<16x1xf32>
    %448 = vector.broadcast %447 : vector<16x1xf32> to vector<16x32xf32>
    %449 = arith.subf %443, %448 : vector<16x32xf32>
    %450 = arith.mulf %449, %449 : vector<16x32xf32>
    %cst_199 = arith.constant dense<0.000000e+00> : vector<16xf32>
    %451 = vector.multi_reduction <add>, %450, %cst_199 [1] : vector<16x32xf32> to vector<16xf32>
    %452 = vector.shape_cast %451 : vector<16xf32> to vector<16x1xf32>
    %cst_200 = arith.constant 3.200000e+01 : f32
    %453 = vector.broadcast %cst_200 : f32 to vector<16x1xf32>
    %454 = arith.divf %452, %453 : vector<16x1xf32>
    %cst_201 = arith.constant 9.99999974E-6 : f32
    %455 = vector.broadcast %cst_201 : f32 to vector<16x1xf32>
    %456 = arith.addf %454, %455 : vector<16x1xf32>
    %457 = math.rsqrt %456 : vector<16x1xf32>
    %458 = vector.broadcast %457 : vector<16x1xf32> to vector<16x32xf32>
    %459 = arith.mulf %449, %458 : vector<16x32xf32>
    %460 = vector.broadcast %376 : vector<1x32xf32> to vector<16x32xf32>
    %461 = arith.mulf %459, %460 : vector<16x32xf32>
    %462 = vector.broadcast %377 : vector<1x32xf32> to vector<16x32xf32>
    %463 = arith.addf %461, %462 : vector<16x32xf32>
    %cst_202 = arith.constant dense<0.000000e+00> : vector<16x128xf32>
    %464 = tpu.matmul %463, %370, %cst_202 {dimension_numbers = #tpu.dot_dimension_numbers<[1], [0], [0], [1], [0, 0, 1, 1], [], []>} : vector<16x32xf32>, vector<32x128xf32>, vector<16x128xf32> -> vector<16x128xf32>
    %465 = vector.broadcast %378 : vector<1x128xf32> to vector<16x128xf32>
    %466 = arith.addf %464, %465 : vector<16x128xf32>
    %cst_203 = arith.constant 5.000000e-01 : f32
    %467 = vector.broadcast %cst_203 : f32 to vector<16x128xf32>
    %468 = arith.mulf %467, %466 : vector<16x128xf32>
    %cst_204 = arith.constant 0.707106769 : f32
    %469 = vector.broadcast %cst_204 : f32 to vector<16x128xf32>
    %470 = arith.mulf %466, %469 : vector<16x128xf32>
    %471 = math.erf %470 : vector<16x128xf32>
    %cst_205 = arith.constant 1.000000e+00 : f32
    %472 = vector.broadcast %cst_205 : f32 to vector<16x128xf32>
    %473 = arith.addf %472, %471 : vector<16x128xf32>
    %474 = arith.mulf %468, %473 : vector<16x128xf32>
    %cst_206 = arith.constant dense<0.000000e+00> : vector<16x32xf32>
    %475 = tpu.matmul %474, %371, %cst_206 {dimension_numbers = #tpu.dot_dimension_numbers<[1], [0], [0], [1], [0, 0, 1, 1], [], []>} : vector<16x128xf32>, vector<128x32xf32>, vector<16x32xf32> -> vector<16x32xf32>
    %476 = arith.addf %443, %475 : vector<16x32xf32>
    %477 = vector.broadcast %379 : vector<1x32xf32> to vector<16x32xf32>
    %478 = arith.addf %476, %477 : vector<16x32xf32>
    %cst_207 = arith.constant dense<0.000000e+00> : vector<32xf32>
    %479 = vector.multi_reduction <add>, %478, %cst_207 [0] : vector<16x32xf32> to vector<32xf32>
    %480 = vector.shape_cast %479 : vector<32xf32> to vector<1x32xf32>
    %cst_208 = arith.constant 1.600000e+01 : f32
    %481 = vector.broadcast %cst_208 : f32 to vector<1x32xf32>
    %482 = arith.divf %480, %481 : vector<1x32xf32>
    %c0_209 = arith.constant 0 : index
    %c0_210 = arith.constant 0 : index
    %483 = vector.load %arg12[%c0_209, %c0_210] : memref<35x32xf32, #tpu.memory_space<vmem>>, vector<1x32xf32>
    %c1 = arith.constant 1 : index
    %c0_211 = arith.constant 0 : index
    %484 = vector.load %arg12[%c1, %c0_211] : memref<35x32xf32, #tpu.memory_space<vmem>>, vector<1x32xf32>
    %c2 = arith.constant 2 : index
    %c0_212 = arith.constant 0 : index
    %485 = vector.load %arg12[%c2, %c0_212] : memref<35x32xf32, #tpu.memory_space<vmem>>, vector<32x10xf32>
    %c34 = arith.constant 34 : index
    %c0_213 = arith.constant 0 : index
    %486 = vector.load %arg12[%c34, %c0_213] : memref<35x32xf32, #tpu.memory_space<vmem>>, vector<1x10xf32>
    %cst_214 = arith.constant dense<0.000000e+00> : vector<1xf32>
    %487 = vector.multi_reduction <add>, %482, %cst_214 [1] : vector<1x32xf32> to vector<1xf32>
    %488 = vector.shape_cast %487 : vector<1xf32> to vector<1x1xf32>
    %cst_215 = arith.constant 3.200000e+01 : f32
    %489 = vector.broadcast %cst_215 : f32 to vector<1x1xf32>
    %490 = arith.divf %488, %489 : vector<1x1xf32>
    %491 = vector.broadcast %490 : vector<1x1xf32> to vector<1x32xf32>
    %492 = arith.subf %482, %491 : vector<1x32xf32>
    %493 = arith.mulf %492, %492 : vector<1x32xf32>
    %cst_216 = arith.constant dense<0.000000e+00> : vector<1xf32>
    %494 = vector.multi_reduction <add>, %493, %cst_216 [1] : vector<1x32xf32> to vector<1xf32>
    %495 = vector.shape_cast %494 : vector<1xf32> to vector<1x1xf32>
    %cst_217 = arith.constant 3.200000e+01 : f32
    %496 = vector.broadcast %cst_217 : f32 to vector<1x1xf32>
    %497 = arith.divf %495, %496 : vector<1x1xf32>
    %cst_218 = arith.constant 9.99999974E-6 : f32
    %498 = vector.broadcast %cst_218 : f32 to vector<1x1xf32>
    %499 = arith.addf %497, %498 : vector<1x1xf32>
    %500 = math.rsqrt %499 : vector<1x1xf32>
    %501 = vector.broadcast %500 : vector<1x1xf32> to vector<1x32xf32>
    %502 = arith.mulf %492, %501 : vector<1x32xf32>
    %503 = arith.mulf %502, %483 : vector<1x32xf32>
    %504 = arith.addf %503, %484 : vector<1x32xf32>
    %cst_219 = arith.constant dense<0.000000e+00> : vector<1x10xf32>
    %505 = tpu.matmul %504, %485, %cst_219 {dimension_numbers = #tpu.dot_dimension_numbers<[1], [0], [0], [1], [0, 0, 1, 1], [], []>} : vector<1x32xf32>, vector<32x10xf32>, vector<1x10xf32> -> vector<1x10xf32>
    %506 = arith.addf %505, %486 : vector<1x10xf32>
    %507 = vector.shape_cast %506 : vector<1x10xf32> to vector<1x1x10xf32>
    %c0_220 = arith.constant 0 : index
    %c0_221 = arith.constant 0 : index
    %c0_222 = arith.constant 0 : index
    %508 = vector.load %arg13[%c0_220, %c0_221, %c0_222] : memref<1x1x10xf32, #tpu.memory_space<vmem>>, vector<1x1x10xf32>
    tpu.vector_store %arg13[%c0_220, %c0_221, %c0_222], %507 {strides = array<i32>} : memref<1x1x10xf32, #tpu.memory_space<vmem>>, vector<1x1x10xf32>,
    return
  }
  func.func @transform_0(%arg0: i32) -> (i32, i32) {
    %c0_i32 = arith.constant 0 : i32
    %c0_i32_0 = arith.constant 0 : i32
    return %arg0, %c0_i32 : i32, i32
  }
  func.func @transform_1(%arg0: i32) -> (i32, i32) {
    %c0_i32 = arith.constant 0 : i32
    %c0_i32_0 = arith.constant 0 : i32
    %c0_i32_1 = arith.constant 0 : i32
    return %c0_i32, %c0_i32_0 : i32, i32
  }
  func.func @transform_2(%arg0: i32) -> (i32, i32) {
    %c0_i32 = arith.constant 0 : i32
    %c0_i32_0 = arith.constant 0 : i32
    %c0_i32_1 = arith.constant 0 : i32
    return %c0_i32, %c0_i32_0 : i32, i32
  }
  func.func @transform_3(%arg0: i32) -> (i32, i32) {
    %c0_i32 = arith.constant 0 : i32
    %c0_i32_0 = arith.constant 0 : i32
    %c0_i32_1 = arith.constant 0 : i32
    return %c0_i32, %c0_i32_0 : i32, i32
  }
  func.func @transform_4(%arg0: i32) -> (i32, i32) {
    %c0_i32 = arith.constant 0 : i32
    %c0_i32_0 = arith.constant 0 : i32
    %c0_i32_1 = arith.constant 0 : i32
    return %c0_i32, %c0_i32_0 : i32, i32
  }
  func.func @transform_5(%arg0: i32) -> (i32, i32) {
    %c0_i32 = arith.constant 0 : i32
    %c0_i32_0 = arith.constant 0 : i32
    %c0_i32_1 = arith.constant 0 : i32
    return %c0_i32, %c0_i32_0 : i32, i32
  }
  func.func @transform_6(%arg0: i32) -> (i32, i32) {
    %c0_i32 = arith.constant 0 : i32
    %c0_i32_0 = arith.constant 0 : i32
    %c0_i32_1 = arith.constant 0 : i32
    return %c0_i32, %c0_i32_0 : i32, i32
  }
  func.func @transform_7(%arg0: i32) -> (i32, i32) {
    %c0_i32 = arith.constant 0 : i32
    %c0_i32_0 = arith.constant 0 : i32
    %c0_i32_1 = arith.constant 0 : i32
    return %c0_i32, %c0_i32_0 : i32, i32
  }
  func.func @transform_8(%arg0: i32) -> (i32, i32) {
    %c0_i32 = arith.constant 0 : i32
    %c0_i32_0 = arith.constant 0 : i32
    %c0_i32_1 = arith.constant 0 : i32
    return %c0_i32, %c0_i32_0 : i32, i32
  }
  func.func @transform_9(%arg0: i32) -> (i32, i32) {
    %c0_i32 = arith.constant 0 : i32
    %c0_i32_0 = arith.constant 0 : i32
    %c0_i32_1 = arith.constant 0 : i32
    return %c0_i32, %c0_i32_0 : i32, i32
  }
  func.func @transform_10(%arg0: i32) -> (i32, i32) {
    %c0_i32 = arith.constant 0 : i32
    %c0_i32_0 = arith.constant 0 : i32
    %c0_i32_1 = arith.constant 0 : i32
    return %c0_i32, %c0_i32_0 : i32, i32
  }
  func.func @transform_11(%arg0: i32) -> (i32, i32) {
    %c0_i32 = arith.constant 0 : i32
    %c0_i32_0 = arith.constant 0 : i32
    %c0_i32_1 = arith.constant 0 : i32
    return %c0_i32, %c0_i32_0 : i32, i32
  }
  func.func @transform_12(%arg0: i32) -> (i32, i32, i32) {
    %c0_i32 = arith.constant 0 : i32
    %c0_i32_0 = arith.constant 0 : i32
    %c0_i32_1 = arith.constant 0 : i32
    return %arg0, %c0_i32, %c0_i32_0 : i32, i32, i32
  }
}

</mosaic_0001>

<llo_original>
// kernel: base_swin_forward.1
$region0: #{base_swin_forward.1}
  #allocation0 [shape = 'u32[]', space=smem, size = 0x4, offset = 0x4, fixed_abs, tag = 'smem constant byte address 0x4 - core index']
  #allocation1 [shape = 'u32[144,128]{1,0:T(1,128)}', space=vmem, size = 0x12000, scoped, tag = 'internal scratch']
  %s0 = inlined_call_operand.vmem [shape: f32[128,12], index: 0, kind: input, shape index: {}]
  %s1 = inlined_call_operand.vmem [shape: f32[15,16], index: 1, kind: input, shape index: {}]
  %s2 = inlined_call_operand.vmem [shape: f32[120,64], index: 2, kind: input, shape index: {}]
  %s3 = inlined_call_operand.vmem [shape: f32[128,64], index: 3, kind: input, shape index: {}]
  %s4 = inlined_call_operand.vmem [shape: f32[120,64], index: 4, kind: input, shape index: {}]
  %s5 = inlined_call_operand.vmem [shape: f32[128,64], index: 5, kind: input, shape index: {}]
  %s6 = inlined_call_operand.vmem [shape: f32[130,64], index: 6, kind: input, shape index: {}]
  %s7 = inlined_call_operand.vmem [shape: f32[232,128], index: 7, kind: input, shape index: {}]
  %s8 = inlined_call_operand.vmem [shape: f32[64,16], index: 8, kind: input, shape index: {}]
  %s9 = inlined_call_operand.vmem [shape: f32[232,128], index: 9, kind: input, shape index: {}]
  %s10 = inlined_call_operand.vmem [shape: f32[64,16], index: 10, kind: input, shape index: {}]
  %s11 = inlined_call_operand.vmem [shape: f32[35,32], index: 11, kind: input, shape index: {}]
  %s12 = inlined_call_operand.hbm [shape: f32[2,1,10], index: 12, kind: output, shape index: {}]
  %s13 = sld [smem:[#allocation0]]
  $region81: #{base_swin_forward.1} parent=0
    _
  %s15 = ssub.s32 1, %s13
  %s16 = scalar_select 0, %s15, %s13
  $region1: #{base_swin_forward.1} parent=0
    #allocation2 [shape = 'u8[1024]{0}', space=vmem, size = 0x400, scoped, tag = 'output window, operand 0']
    #allocation3 [shape = 's32[2]{0}', space=sflag, size = 0x8, scoped, tag = 'scoped memory for base_swin_forward.1']
    %17 = vsyncpa [#allocation3], 0
    %s18 = scalar_lea.sflag [#allocation3], 1
    %19 = vsyncpa %s18, 0
    loop: start=0, step=1, limit=4
    $region2: #{base_swin_forward.1} parent=1 // loop_pre_header
      _
    $region3: #{base_swin_forward.1} parent=1 // loop_header
      %s21 = sphi 0, %s25
      %p22 = scmp.ge.s32.totalorder %s21, 4
      %s31 = sphi 0, %s33
      %s34 = sphi 0, %s31
      %s35 = sphi 0, %s34
      %s51 = sphi 0, %s35
      %s55 = sphi 0, %s55
      %s57 = sphi 0, %s55
      %s58 = sphi 0, %s57
      %s72 = sphi 0, %s58
      %s76 = sphi 0, %s76
      %s78 = sphi 0, %s76
      %s79 = sphi 0, %s78
      %s93 = sphi 0, %s79
      %s97 = sphi 0, %s97
      %s99 = sphi 0, %s97
      %s100 = sphi 0, %s99
      %s114 = sphi 0, %s100
      %s118 = sphi 0, %s118
      %s120 = sphi 0, %s118
      %s121 = sphi 0, %s120
      %s135 = sphi 0, %s121
      %s139 = sphi 0, %s139
      %s141 = sphi 0, %s139
      %s142 = sphi 0, %s141
      %s156 = sphi 0, %s142
      %s160 = sphi 0, %s160
      %s162 = sphi 0, %s160
      %s163 = sphi 0, %s162
      %s177 = sphi 0, %s163
      %s181 = sphi 0, %s181
      %s183 = sphi 0, %s181
      %s184 = sphi 0, %s183
      %s198 = sphi 0, %s184
      %s202 = sphi 0, %s202
      %s204 = sphi 0, %s202
      %s205 = sphi 0, %s204
      %s219 = sphi 0, %s205
      %s223 = sphi 0, %s223
      %s225 = sphi 0, %s223
      %s226 = sphi 0, %s225
      %s240 = sphi 0, %s226
      %s244 = sphi 0, %s244
      %s246 = sphi 0, %s244
      %s247 = sphi 0, %s246
      %s261 = sphi 0, %s247
      %s265 = sphi 0, %s265
      %s267 = sphi 0, %s265
      %s268 = sphi 0, %s267
      %s282 = sphi 0, %s268
      %s288 = sphi 0, %s290
      %s291 = sphi 0, %s288
      %s292 = sphi 0, %s291
      %s308 = sphi 0, %s292
    $region4: #{base_swin_forward.1} parent=1 // loop_header_branch
      %24 = sbr.rel (%p22) target = $region8
    $region5: #{base_swin_forward.1} parent=1 // loop_body
      %s26 = ssub.s32 %s21, 1
      %s27 = ssub.s32 %s21, 2
      %s28 = sadd.s32 %s21, 1
      %s29 = ssub.s32 %s21, %s28
      %p30 = scmp.eq.s32.totalorder %s29, 0
      %s32 = sadd.s32 %s31, 1
      %s33 = scalar_select %p30, %s31, %s32
      %p36 = pneg %p30
      %p37 = scmp.eq.s32.totalorder %s21, 1
      %p38 = por %p36, %p37
      %p39 = scmp.ne.s32.totalorder %s31, %s34
      %p40 = scmp.eq.s32.totalorder %s21, 0
      %p41 = por %p39, %p40
      %p42 = scmp.ne.s32.totalorder %s31, %s34
      %p43 = scmp.eq.s32.totalorder %s26, 1
      %p44 = por %p42, %p43
      %p45 = scmp.ne.s32.totalorder %s34, %s35
      %p46 = scmp.eq.s32.totalorder %s26, 0
      %p47 = por %p45, %p46
      %p48 = scmp.ne.s32.totalorder %s34, %s35
      %p49 = scmp.eq.s32.totalorder %s27, 1
      %p50 = por %p48, %p49
      %p52 = scmp.ne.s32.totalorder %s35, %s51
      %p53 = scmp.eq.s32.totalorder %s27, 0
      %p54 = por %p52, %p53
      %s56 = sadd.s32 %s55, 1
      %p59 = scmp.eq.s32.totalorder %s21, 1
      %p60 = scmp.ne.s32.totalorder %s55, %s57
      %p61 = scmp.eq.s32.totalorder %s21, 0
      %p62 = por %p60, %p61
      %p63 = scmp.ne.s32.totalorder %s55, %s57
      %p64 = scmp.eq.s32.totalorder %s26, 1
      %p65 = por %p63, %p64
      %p66 = scmp.ne.s32.totalorder %s57, %s58
      %p67 = scmp.eq.s32.totalorder %s26, 0
      %p68 = por %p66, %p67
      %p69 = scmp.ne.s32.totalorder %s57, %s58
      %p70 = scmp.eq.s32.totalorder %s27, 1
      %p71 = por %p69, %p70
      %p73 = scmp.ne.s32.totalorder %s58, %s72
      %p74 = scmp.eq.s32.totalorder %s27, 0
      %p75 = por %p73, %p74
      %s77 = sadd.s32 %s76, 1
      %p80 = scmp.eq.s32.totalorder %s21, 1
      %p81 = scmp.ne.s32.totalorder %s76, %s78
      %p82 = scmp.eq.s32.totalorder %s21, 0
      %p83 = por %p81, %p82
      %p84 = scmp.ne.s32.totalorder %s76, %s78
      %p85 = scmp.eq.s32.totalorder %s26, 1
      %p86 = por %p84, %p85
      %p87 = scmp.ne.s32.totalorder %s78, %s79
      %p88 = scmp.eq.s32.totalorder %s26, 0
      %p89 = por %p87, %p88
      %p90 = scmp.ne.s32.totalorder %s78, %s79
      %p91 = scmp.eq.s32.totalorder %s27, 1
      %p92 = por %p90, %p91
      %p94 = scmp.ne.s32.totalorder %s79, %s93
      %p95 = scmp.eq.s32.totalorder %s27, 0
      %p96 = por %p94, %p95
      %s98 = sadd.s32 %s97, 1
      %p101 = scmp.eq.s32.totalorder %s21, 1
      %p102 = scmp.ne.s32.totalorder %s97, %s99
      %p103 = scmp.eq.s32.totalorder %s21, 0
      %p104 = por %p102, %p103
      %p105 = scmp.ne.s32.totalorder %s97, %s99
      %p106 = scmp.eq.s32.totalorder %s26, 1
      %p107 = por %p105, %p106
      %p108 = scmp.ne.s32.totalorder %s99, %s100
      %p109 = scmp.eq.s32.totalorder %s26, 0
      %p110 = por %p108, %p109
      %p111 = scmp.ne.s32.totalorder %s99, %s100
      %p112 = scmp.eq.s32.totalorder %s27, 1
      %p113 = por %p111, %p112
      %p115 = scmp.ne.s32.totalorder %s100, %s114
      %p116 = scmp.eq.s32.totalorder %s27, 0
      %p117 = por %p115, %p116
      %s119 = sadd.s32 %s118, 1
      %p122 = scmp.eq.s32.totalorder %s21, 1
      %p123 = scmp.ne.s32.totalorder %s118, %s120
      %p124 = scmp.eq.s32.totalorder %s21, 0
      %p125 = por %p123, %p124
      %p126 = scmp.ne.s32.totalorder %s118, %s120
      %p127 = scmp.eq.s32.totalorder %s26, 1
      %p128 = por %p126, %p127
      %p129 = scmp.ne.s32.totalorder %s120, %s121
      %p130 = scmp.eq.s32.totalorder %s26, 0
      %p131 = por %p129, %p130
      %p132 = scmp.ne.s32.totalorder %s120, %s121
      %p133 = scmp.eq.s32.totalorder %s27, 1
      %p134 = por %p132, %p133
      %p136 = scmp.ne.s32.totalorder %s121, %s135
      %p137 = scmp.eq.s32.totalorder %s27, 0
      %p138 = por %p136, %p137
      %s140 = sadd.s32 %s139, 1
      %p143 = scmp.eq.s32.totalorder %s21, 1
      %p144 = scmp.ne.s32.totalorder %s139, %s141
      %p145 = scmp.eq.s32.totalorder %s21, 0
      %p146 = por %p144, %p145
      %p147 = scmp.ne.s32.totalorder %s139, %s141
      %p148 = scmp.eq.s32.totalorder %s26, 1
      %p149 = por %p147, %p148
      %p150 = scmp.ne.s32.totalorder %s141, %s142
      %p151 = scmp.eq.s32.totalorder %s26, 0
      %p152 = por %p150, %p151
      %p153 = scmp.ne.s32.totalorder %s141, %s142
      %p154 = scmp.eq.s32.totalorder %s27, 1
      %p155 = por %p153, %p154
      %p157 = scmp.ne.s32.totalorder %s142, %s156
      %p158 = scmp.eq.s32.totalorder %s27, 0
      %p159 = por %p157, %p158
      %s161 = sadd.s32 %s160, 1
      %p164 = scmp.eq.s32.totalorder %s21, 1
      %p165 = scmp.ne.s32.totalorder %s160, %s162
      %p166 = scmp.eq.s32.totalorder %s21, 0
      %p167 = por %p165, %p166
      %p168 = scmp.ne.s32.totalorder %s160, %s162
      %p169 = scmp.eq.s32.totalorder %s26, 1
      %p170 = por %p168, %p169
      %p171 = scmp.ne.s32.totalorder %s162, %s163
      %p172 = scmp.eq.s32.totalorder %s26, 0
      %p173 = por %p171, %p172
      %p174 = scmp.ne.s32.totalorder %s162, %s163
      %p175 = scmp.eq.s32.totalorder %s27, 1
      %p176 = por %p174, %p175
      %p178 = scmp.ne.s32.totalorder %s163, %s177
      %p179 = scmp.eq.s32.totalorder %s27, 0
      %p180 = por %p178, %p179
      %s182 = sadd.s32 %s181, 1
      %p185 = scmp.eq.s32.totalorder %s21, 1
      %p186 = scmp.ne.s32.totalorder %s181, %s183
      %p187 = scmp.eq.s32.totalorder %s21, 0
      %p188 = por %p186, %p187
      %p189 = scmp.ne.s32.totalorder %s181, %s183
      %p190 = scmp.eq.s32.totalorder %s26, 1
      %p191 = por %p189, %p190
      %p192 = scmp.ne.s32.totalorder %s183, %s184
      %p193 = scmp.eq.s32.totalorder %s26, 0
      %p194 = por %p192, %p193
      %p195 = scmp.ne.s32.totalorder %s183, %s184
      %p196 = scmp.eq.s32.totalorder %s27, 1
      %p197 = por %p195, %p196
      %p199 = scmp.ne.s32.totalorder %s184, %s198
      %p200 = scmp.eq.s32.totalorder %s27, 0
      %p201 = por %p199, %p200
      %s203 = sadd.s32 %s202, 1
      %p206 = scmp.eq.s32.totalorder %s21, 1
      %p207 = scmp.ne.s32.totalorder %s202, %s204
      %p208 = scmp.eq.s32.totalorder %s21, 0
      %p209 = por %p207, %p208
      %p210 = scmp.ne.s32.totalorder %s202, %s204
      %p211 = scmp.eq.s32.totalorder %s26, 1
      %p212 = por %p210, %p211
      %p213 = scmp.ne.s32.totalorder %s204, %s205
      %p214 = scmp.eq.s32.totalorder %s26, 0
      %p215 = por %p213, %p214
      %p216 = scmp.ne.s32.totalorder %s204, %s205
      %p217 = scmp.eq.s32.totalorder %s27, 1
      %p218 = por %p216, %p217
      %p220 = scmp.ne.s32.totalorder %s205, %s219
      %p221 = scmp.eq.s32.totalorder %s27, 0
      %p222 = por %p220, %p221
      %s224 = sadd.s32 %s223, 1
      %p227 = scmp.eq.s32.totalorder %s21, 1
      %p228 = scmp.ne.s32.totalorder %s223, %s225
      %p229 = scmp.eq.s32.totalorder %s21, 0
      %p230 = por %p228, %p229
      %p231 = scmp.ne.s32.totalorder %s223, %s225
      %p232 = scmp.eq.s32.totalorder %s26, 1
      %p233 = por %p231, %p232
      %p234 = scmp.ne.s32.totalorder %s225, %s226
      %p235 = scmp.eq.s32.totalorder %s26, 0
      %p236 = por %p234, %p235
      %p237 = scmp.ne.s32.totalorder %s225, %s226
      %p238 = scmp.eq.s32.totalorder %s27, 1
      %p239 = por %p237, %p238
      %p241 = scmp.ne.s32.totalorder %s226, %s240
      %p242 = scmp.eq.s32.totalorder %s27, 0
      %p243 = por %p241, %p242
      %s245 = sadd.s32 %s244, 1
      %p248 = scmp.eq.s32.totalorder %s21, 1
      %p249 = scmp.ne.s32.totalorder %s244, %s246
      %p250 = scmp.eq.s32.totalorder %s21, 0
      %p251 = por %p249, %p250
      %p252 = scmp.ne.s32.totalorder %s244, %s246
      %p253 = scmp.eq.s32.totalorder %s26, 1
      %p254 = por %p252, %p253
      %p255 = scmp.ne.s32.totalorder %s246, %s247
      %p256 = scmp.eq.s32.totalorder %s26, 0
      %p257 = por %p255, %p256
      %p258 = scmp.ne.s32.totalorder %s246, %s247
      %p259 = scmp.eq.s32.totalorder %s27, 1
      %p260 = por %p258, %p259
      %p262 = scmp.ne.s32.totalorder %s247, %s261
      %p263 = scmp.eq.s32.totalorder %s27, 0
      %p264 = por %p262, %p263
      %s266 = sadd.s32 %s265, 1
      %p269 = scmp.eq.s32.totalorder %s21, 1
      %p270 = scmp.ne.s32.totalorder %s265, %s267
      %p271 = scmp.eq.s32.totalorder %s21, 0
      %p272 = por %p270, %p271
      %p273 = scmp.ne.s32.totalorder %s265, %s267
      %p274 = scmp.eq.s32.totalorder %s26, 1
      %p275 = por %p273, %p274
      %p276 = scmp.ne.s32.totalorder %s267, %s268
      %p277 = scmp.eq.s32.totalorder %s26, 0
      %p278 = por %p276, %p277
      %p279 = scmp.ne.s32.totalorder %s267, %s268
      %p280 = scmp.eq.s32.totalorder %s27, 1
      %p281 = por %p279, %p280
      %p283 = scmp.ne.s32.totalorder %s268, %s282
      %p284 = scmp.eq.s32.totalorder %s27, 0
      %p285 = por %p283, %p284
      %s286 = ssub.s32 %s21, %s28
      %p287 = scmp.eq.s32.totalorder %s286, 0
      %s289 = sadd.s32 %s288, 1
      %s290 = scalar_select %p287, %s288, %s289
      %p293 = pneg %p287
      %p294 = scmp.eq.s32.totalorder %s21, 1
      %p295 = por %p293, %p294
      %p296 = scmp.ne.s32.totalorder %s288, %s291
      %p297 = scmp.eq.s32.totalorder %s21, 0
      %p298 = por %p296, %p297
      %p299 = scmp.ne.s32.totalorder %s288, %s291
      %p300 = scmp.eq.s32.totalorder %s26, 1
      %p301 = por %p299, %p300
      %p302 = scmp.ne.s32.totalorder %s291, %s292
      %p303 = scmp.eq.s32.totalorder %s26, 0
      %p304 = por %p302, %p303
      %p305 = scmp.ne.s32.totalorder %s291, %s292
      %p306 = scmp.eq.s32.totalorder %s27, 1
      %p307 = por %p305, %p306
      %p309 = scmp.ne.s32.totalorder %s292, %s308
      %p310 = scmp.eq.s32.totalorder %s27, 0
      %p311 = por %p309, %p310
      %p312 = scmp.le.s32.totalorder 1, %s21
      %p313 = scmp.lt.s32.totalorder %s21, 3
      %p314 = pnand %p312, %p313
      %p315 = pneg %p314
      // Predicated region
      $region9: #{base_swin_forward.1} parent=5 // pred_check
        _
      $region10: #{base_swin_forward.1} parent=5 // pred_check_branch
        %317 = sbr.rel (%p314) target = $region12
      $region11: #{base_swin_forward.1} parent=5 // pred_region
        %s318 = ssub.s32 %s21, 1
        // Predicated region
        $region13: #{base_swin_forward.1} parent=11 // pred_check
          %p319 = pneg %p68
        $region14: #{base_swin_forward.1} parent=11 // pred_check_branch
          %321 = sbr.rel (%p319) target = $region16
        $region15: #{base_swin_forward.1} parent=11 // pred_region
          _
        $region16: #{base_swin_forward.1} parent=11 // pred_fallthru
          _
        // Predicated region
        $region17: #{base_swin_forward.1} parent=11 // pred_check
          %p322 = pneg %p89
        $region18: #{base_swin_forward.1} parent=11 // pred_check_branch
          %324 = sbr.rel (%p322) target = $region20
        $region19: #{base_swin_forward.1} parent=11 // pred_region
          _
        $region20: #{base_swin_forward.1} parent=11 // pred_fallthru
          _
        // Predicated region
        $region21: #{base_swin_forward.1} parent=11 // pred_check
          %p325 = pneg %p110
        $region22: #{base_swin_forward.1} parent=11 // pred_check_branch
          %327 = sbr.rel (%p325) target = $region24
        $region23: #{base_swin_forward.1} parent=11 // pred_region
          _
        $region24: #{base_swin_forward.1} parent=11 // pred_fallthru
          _
        // Predicated region
        $region25: #{base_swin_forward.1} parent=11 // pred_check
          %p328 = pneg %p131
        $region26: #{base_swin_forward.1} parent=11 // pred_check_branch
          %330 = sbr.rel (%p328) target = $region28
        $region27: #{base_swin_forward.1} parent=11 // pred_region
          _
        $region28: #{base_swin_forward.1} parent=11 // pred_fallthru
          _
        // Predicated region
        $region29: #{base_swin_forward.1} parent=11 // pred_check
          %p331 = pneg %p152
        $region30: #{base_swin_forward.1} parent=11 // pred_check_branch
          %333 = sbr.rel (%p331) target = $region32
        $region31: #{base_swin_forward.1} parent=11 // pred_region
          _
        $region32: #{base_swin_forward.1} parent=11 // pred_fallthru
          _
        // Predicated region
        $region33: #{base_swin_forward.1} parent=11 // pred_check
          %p334 = pneg %p173
        $region34: #{base_swin_forward.1} parent=11 // pred_check_branch
          %336 = sbr.rel (%p334) target = $region36
        $region35: #{base_swin_forward.1} parent=11 // pred_region
          _
        $region36: #{base_swin_forward.1} parent=11 // pred_fallthru
          _
        // Predicated region
        $region37: #{base_swin_forward.1} parent=11 // pred_check
          %p337 = pneg %p194
        $region38: #{base_swin_forward.1} parent=11 // pred_check_branch
          %339 = sbr.rel (%p337) target = $region40
        $region39: #{base_swin_forward.1} parent=11 // pred_region
          _
        $region40: #{base_swin_forward.1} parent=11 // pred_fallthru
          _
        // Predicated region
        $region41: #{base_swin_forward.1} parent=11 // pred_check
          %p340 = pneg %p215
        $region42: #{base_swin_forward.1} parent=11 // pred_check_branch
          %342 = sbr.rel (%p340) target = $region44
        $region43: #{base_swin_forward.1} parent=11 // pred_region
          _
        $region44: #{base_swin_forward.1} parent=11 // pred_fallthru
          _
        // Predicated region
        $region45: #{base_swin_forward.1} parent=11 // pred_check
          %p343 = pneg %p236
        $region46: #{base_swin_forward.1} parent=11 // pred_check_branch
          %345 = sbr.rel (%p343) target = $region48
        $region47: #{base_swin_forward.1} parent=11 // pred_region
          _
        $region48: #{base_swin_forward.1} parent=11 // pred_fallthru
          _
        // Predicated region
        $region49: #{base_swin_forward.1} parent=11 // pred_check
          %p346 = pneg %p257
        $region50: #{base_swin_forward.1} parent=11 // pred_check_branch
          %348 = sbr.rel (%p346) target = $region52
        $region51: #{base_swin_forward.1} parent=11 // pred_region
          _
        $region52: #{base_swin_forward.1} parent=11 // pred_fallthru
          _
        // Predicated region
        $region53: #{base_swin_forward.1} parent=11 // pred_check
          %p349 = pneg %p278
        $region54: #{base_swin_forward.1} parent=11 // pred_check_branch
          %351 = sbr.rel (%p349) target = $region56
        $region55: #{base_swin_forward.1} parent=11 // pred_region
          _
        $region56: #{base_swin_forward.1} parent=11 // pred_fallthru
          _
      $region12: #{base_swin_forward.1} parent=5 // pred_fallthru
        _
      %p352 = scmp.lt.s32.totalorder %s21, 2
      // Predicated region
      $region57: #{base_swin_forward.1} parent=5 // pred_check
        %p353 = pneg %p352
      $region58: #{base_swin_forward.1} parent=5 // pred_check_branch
        %355 = sbr.rel (%p353) target = $region60
      $region59: #{base_swin_forward.1} parent=5 // pred_region
        // Predicated region
        $region61: #{base_swin_forward.1} parent=59 // pred_check
          %p356 = pneg %p41
        $region62: #{base_swin_forward.1} parent=59 // pred_check_branch
          %358 = sbr.rel (%p356) target = $region64
        $region63: #{base_swin_forward.1} parent=59 // pred_region
          %s359 = smul.u32 8, %s21
          %p360 = scmp.lt.s32.totalorder %s359, 15
          %s361 = scalar_select %p360, %s359, 15
          %s362 = smul.addr %s361, 8
          %s363 = scalar_lea.vmem %s0, %s362
          %s364 = smul.u32 8, %s21
        $region64: #{base_swin_forward.1} parent=59 // pred_fallthru
          _
      $region60: #{base_swin_forward.1} parent=5 // pred_fallthru
        _
      %p365 = scmp.le.s32.totalorder 1, %s21
      %p366 = scmp.lt.s32.totalorder %s21, 3
      %p367 = pnand %p365, %p366
      %p368 = pneg %p367
      // Predicated region
      $region65: #{base_swin_forward.1} parent=5 // pred_check
        _
      $region66: #{base_swin_forward.1} parent=5 // pred_check_branch
        %370 = sbr.rel (%p367) target = $region68
      $region67: #{base_swin_forward.1} parent=5 // pred_region
        %s371 = ssub.s32 %s21, 1
        %s372 = smul.u32 8, %s26
        %p373 = scmp.lt.s32.totalorder %s372, 15
        %s374 = scalar_select %p373, %s372, 15
        %s375 = smul.addr %s374, 8
        %s376 = scalar_lea.vmem %s0, %s375
        %p377 = pneg %p47
        %p378 = pneg %p44
        %p379 = pneg %p68
        %p380 = pneg %p65
        %p381 = pneg %p89
        %p382 = pneg %p86
        %p383 = pneg %p110
        %p384 = pneg %p107
        %p385 = pneg %p131
        %p386 = pneg %p128
        %p387 = pneg %p152
        %p388 = pneg %p149
        %p389 = pneg %p173
        %p390 = pneg %p170
        %p391 = pneg %p194
        %p392 = pneg %p191
        %p393 = pneg %p215
        %p394 = pneg %p212
        %p395 = pneg %p236
        %p396 = pneg %p233
        %p397 = pneg %p257
        %p398 = pneg %p254
        %p399 = pneg %p278
        %p400 = pneg %p275
        %p401 = pneg %p304
        %p402 = pneg %p301
        %s403 = sand.u32 %s291, 1
        %s404 = scalar_lea.sflag [#allocation3], %s403
        %s405 = sand.u32 %s291, 1
        %s406 = scalar_lea.vmem [#allocation2], %s405
        %s407 = smul.u32 8, %s26
        %p408 = scmp.lt.s32.totalorder %s407, 15
        %s409 = scalar_select %p408, %s407, 15
        %s410 = smul.addr %s409, 8
        %s411 = scalar_lea.vmem %s0, %s410
        %s412 = smul.u32 8, %s26
        %v413 = vld [vmem:[%s1] sm:$0xff]
        %v414 = vld [vmem:[%s1 + $0x8] sm:$0xf]
        %v415 = vld [vmem:[%s1 + $0xc] sm:$0x1]
        %v416 = vld [vmem:[%s1 + $0xd] sm:$0x1]
        %v417 = vld [vmem:[%s1 + $0xe] sm:$0x1]
        %v418 = vld [vmem:[%s411] sm:$0xff]
        %v419 = vld [vmem:[%s411 + $0x8] sm:$0xff]
        %v420 = vld [vmem:[%s411 + $0x10] sm:$0xff]
        %v421 = vld [vmem:[%s411 + $0x18] sm:$0xff]
        %v422 = vld [vmem:[%s411 + $0x20] sm:$0xff]
        %v423 = vld [vmem:[%s411 + $0x28] sm:$0xff]
        %v424 = vld [vmem:[%s411 + $0x30] sm:$0xff]
        %v425 = vld [vmem:[%s411 + $0x38] sm:$0xff]
        %v426 = vlaneseq
        %v427 = vshrl.u32 %v426, 7
        %v428 = vsub.s32 0, %v427
        %v429 = vrot.slane %v415, %v428
        %vm430 = vcmask 97280
        %v432 = vsel %vm430, %v418, 0
        %v435 = vsel %vm430, %v419, 0
        %v438 = vsel %vm430, %v420, 0
        %v441 = vsel %vm430, %v421, 0
        %v444 = vsel %vm430, %v422, 0
        %v447 = vsel %vm430, %v423, 0
        %v450 = vsel %vm430, %v424, 0
        %v453 = vsel %vm430, %v425, 0
        %vm455 = vcmask 1043456
        %v457 = vsel %vm455, %v414, 0
        %459 = vmatprep.subr.mxu0 0.0
        %460 = vmatpush1.msra.mxu0 %v413
        %461 = vmatprep.subr.mxu0 0.0
        %462 = vmatpush1.msra.mxu0 %v457
        %463 = vmatprep.subr.mxu0 0.0
        %464 = vmatpush1.msra.mxu0 0.0
        %465 = vmatprep.subr.mxu0 0.0
        %466 = vmatpush1.msra.mxu0 0.0
        %467 = vmatprep.subr.mxu0 0.0
        %468 = vmatpush1.msra.mxu0 0.0
        %469 = vmatprep.subr.mxu0 0.0
        %470 = vmatpush1.msra.mxu0 0.0
        %471 = vmatprep.subr.mxu0 0.0
        %472 = vmatpush1.msra.mxu0 0.0
        %473 = vmatprep.subr.mxu0 0.0
        %474 = vmatpush1.msra.mxu0 0.0
        %475 = vmatprep.subr.mxu0 0.0
        %476 = vmatpush1.msra.mxu0 0.0
        %477 = vmatprep.subr.mxu0 0.0
        %478 = vmatpush1.msra.mxu0 0.0
        %479 = vmatprep.subr.mxu0 0.0
        %480 = vmatpush1.msra.mxu0 0.0
        %481 = vmatprep.subr.mxu0 0.0
        %482 = vmatpush1.msra.mxu0 0.0
        %483 = vmatprep.subr.mxu0 0.0
        %484 = vmatpush1.msra.mxu0 0.0
        %485 = vmatprep.subr.mxu0 0.0
        %486 = vmatpush1.msra.mxu0 0.0
        %487 = vmatprep.subr.mxu0 0.0
        %488 = vmatpush1.msra.mxu0 0.0
        %489 = vmatprep.subr.mxu0 0.0
        %490 = vmatpush1.msra.mxu0 0.0
        %491 = vmatprep.subr.mxu0 0.0
        %492 = vmatpush1.msra.mxu0 0.0
        %493 = vmatprep.subr.mxu0 0.0
        %494 = vmatpush1.msra.mxu0 0.0
        %495 = vmatprep.subr.mxu0 0.0
        %496 = vmatpush1.msra.mxu0 0.0
        %497 = vmatprep.subr.mxu0 0.0
        %498 = vmatpush1.msra.mxu0 0.0
        %499 = vmatprep.subr.mxu0 0.0
        %500 = vmatpush1.msra.mxu0 0.0
        %501 = vmatprep.subr.mxu0 0.0
        %502 = vmatpush1.msra.mxu0 0.0
        %503 = vmatprep.subr.mxu0 0.0
        %504 = vmatpush1.msra.mxu0 0.0
        %505 = vmatprep.subr.mxu0 0.0
        %506 = vmatpush1.msra.mxu0 0.0
        %507 = vmatprep.subr.mxu0 0.0
        %508 = vmatpush1.msra.mxu0 0.0
        %509 = vmatprep.subr.mxu0 0.0
        %510 = vmatpush1.msra.mxu0 0.0
        %511 = vmatprep.subr.mxu0 0.0
        %512 = vmatpush1.msra.mxu0 0.0
        %513 = vmatprep.subr.mxu0 0.0
        %514 = vmatpush1.msra.mxu0 0.0
        %515 = vmatprep.subr.mxu0 0.0
        %516 = vmatpush1.msra.mxu0 0.0
        %517 = vmatprep.subr.mxu0 0.0
        %518 = vmatpush1.msra.mxu0 0.0
        %519 = vmatprep.subr.mxu0 0.0
        %520 = vmatpush1.msra.mxu0 0.0
        %521 = vmatprep.subr.mxu0 0.0
        %522 = vmatpush1.msra.mxu0 0.0
        %523 = vmatprep.mubr.f32.mxu0 0.0
        %524 = vmatmul.mubr.f32.gmra.mrb[0].mxu0 %v432
        %v525 = vpop.f32.mrb[0].mxu0
        %v526 = vadd.f32 %v429, %v525
        %v527 = vpop.f32.mrb[0].mxu0
        %528 = vmatprep.mubr.f32.mxu0 0.0
        %529 = vmatmul.mubr.f32.gmra.mrb[0].mxu0 %v435
        %v530 = vpop.f32.mrb[0].mxu0
        %v531 = vadd.f32 %v429, %v530
        %v532 = vpop.f32.mrb[0].mxu0
        %533 = vmatprep.mubr.f32.mxu0 0.0
        %534 = vmatmul.mubr.f32.gmra.mrb[0].mxu0 %v438
        %v535 = vpop.f32.mrb[0].mxu0
        %v536 = vadd.f32 %v429, %v535
        %v537 = vpop.f32.mrb[0].mxu0
        %538 = vmatprep.mubr.f32.mxu0 0.0
        %539 = vmatmul.mubr.f32.gmra.mrb[0].mxu0 %v441
        %v540 = vpop.f32.mrb[0].mxu0
        %v541 = vadd.f32 %v429, %v540
        %v542 = vpop.f32.mrb[0].mxu0
        %543 = vmatprep.mubr.f32.mxu0 0.0
        %544 = vmatmul.mubr.f32.gmra.mrb[0].mxu0 %v444
        %v545 = vpop.f32.mrb[0].mxu0
        %v546 = vadd.f32 %v429, %v545
        %v547 = vpop.f32.mrb[0].mxu0
        %548 = vmatprep.mubr.f32.mxu0 0.0
        %549 = vmatmul.mubr.f32.gmra.mrb[0].mxu0 %v447
        %v550 = vpop.f32.mrb[0].mxu0
        %v551 = vadd.f32 %v429, %v550
        %v552 = vpop.f32.mrb[0].mxu0
        %553 = vmatprep.mubr.f32.mxu0 0.0
        %554 = vmatmul.mubr.f32.gmra.mrb[0].mxu0 %v450
        %v555 = vpop.f32.mrb[0].mxu0
        %v556 = vadd.f32 %v429, %v555
        %v557 = vpop.f32.mrb[0].mxu0
        %558 = vmatprep.mubr.f32.mxu0 0.0
        %559 = vmatmul.mubr.f32.gmra.mrb[0].mxu0 %v453
        %v560 = vpop.f32.mrb[0].mxu0
        %v561 = vadd.f32 %v429, %v560
        %v562 = vpop.f32.mrb[0].mxu0
        %563 = vdwg.mxu0
        %vm564 = vcmask 130048
        %v565 = vsel %vm564, %v526, 0.0
        %566 = vadd.xlane.f32.xlu0 %v565
        %v567 = vpop.xlane.xlu0 %566
        %v568 = vsel %vm564, %v531, 0.0
        %569 = vadd.xlane.f32.xlu0 %v568
        %v570 = vpop.xlane.xlu0 %569
        %v571 = vsel %vm564, %v536, 0.0
        %572 = vadd.xlane.f32.xlu0 %v571
        %v573 = vpop.xlane.xlu0 %572
        %v574 = vsel %vm564, %v541, 0.0
        %575 = vadd.xlane.f32.xlu0 %v574
        %v576 = vpop.xlane.xlu0 %575
        %v577 = vsel %vm564, %v546, 0.0
        %578 = vadd.xlane.f32.xlu0 %v577
        %v579 = vpop.xlane.xlu0 %578
        %v580 = vsel %vm564, %v551, 0.0
        %581 = vadd.xlane.f32.xlu0 %v580
        %v582 = vpop.xlane.xlu0 %581
        %v583 = vsel %vm564, %v556, 0.0
        %584 = vadd.xlane.f32.xlu0 %v583
        %v585 = vpop.xlane.xlu0 %584
        %v586 = vsel %vm564, %v561, 0.0
        %587 = vadd.xlane.f32.xlu0 %v586
        %v588 = vpop.xlane.xlu0 %587
        %v589 = vrcp.pop 16.0
        %v590 = vmul.f32 %v567, %v589
        %v591 = vmul.f32 %v570, %v589
        %v592 = vmul.f32 %v573, %v589
        %v593 = vmul.f32 %v576, %v589
        %v594 = vmul.f32 %v579, %v589
        %v595 = vmul.f32 %v582, %v589
        %v596 = vmul.f32 %v585, %v589
        %v597 = vmul.f32 %v588, %v589
        %v598 = vsub.f32 %v526, %v590
        %v599 = vsub.f32 %v531, %v591
        %v600 = vsub.f32 %v536, %v592
        %v601 = vsub.f32 %v541, %v593
        %v602 = vsub.f32 %v546, %v594
        %v603 = vsub.f32 %v551, %v595
        %v604 = vsub.f32 %v556, %v596
        %v605 = vsub.f32 %v561, %v597
        %v606 = vmul.f32 %v598, %v598
        %v607 = vmul.f32 %v599, %v599
        %v608 = vmul.f32 %v600, %v600
        %v609 = vmul.f32 %v601, %v601
        %v610 = vmul.f32 %v602, %v602
        %v611 = vmul.f32 %v603, %v603
        %v612 = vmul.f32 %v604, %v604
        %v613 = vmul.f32 %v605, %v605
        %v614 = vsel %vm564, %v606, 0.0
        %615 = vadd.xlane.f32.xlu0 %v614
        %v616 = vpop.xlane.xlu0 %615
        %v617 = vsel %vm564, %v607, 0.0
        %618 = vadd.xlane.f32.xlu0 %v617
        %v619 = vpop.xlane.xlu0 %618
        %v620 = vsel %vm564, %v608, 0.0
        %621 = vadd.xlane.f32.xlu0 %v620
        %v622 = vpop.xlane.xlu0 %621
        %v623 = vsel %vm564, %v609, 0.0
        %624 = vadd.xlane.f32.xlu0 %v623
        %v625 = vpop.xlane.xlu0 %624
        %v626 = vsel %vm564, %v610, 0.0
        %627 = vadd.xlane.f32.xlu0 %v626
        %v628 = vpop.xlane.xlu0 %627
        %v629 = vsel %vm564, %v611, 0.0
        %630 = vadd.xlane.f32.xlu0 %v629
        %v631 = vpop.xlane.xlu0 %630
        %v632 = vsel %vm564, %v612, 0.0
        %633 = vadd.xlane.f32.xlu0 %v632
        %v634 = vpop.xlane.xlu0 %633
        %v635 = vsel %vm564, %v613, 0.0
        %636 = vadd.xlane.f32.xlu0 %v635
        %v637 = vpop.xlane.xlu0 %636
        %v638 = vmul.f32 %v616, %v589
        %v639 = vmul.f32 %v619, %v589
        %v640 = vmul.f32 %v622, %v589
        %v641 = vmul.f32 %v625, %v589
        %v642 = vmul.f32 %v628, %v589
        %v643 = vmul.f32 %v631, %v589
        %v644 = vmul.f32 %v634, %v589
        %v645 = vmul.f32 %v637, %v589
        %v646 = vadd.f32 %v638, 1e-05
        %v647 = vadd.f32 %v639, 1e-05
        %v648 = vadd.f32 %v640, 1e-05
        %v649 = vadd.f32 %v641, 1e-05
        %v650 = vadd.f32 %v642, 1e-05
        %v651 = vadd.f32 %v643, 1e-05
        %v652 = vadd.f32 %v644, 1e-05
        %v653 = vadd.f32 %v645, 1e-05
        %v654 = vrsqrt.pop %v646
        %v655 = vrsqrt.pop %v647
        %v656 = vrsqrt.pop %v648
        %v657 = vrsqrt.pop %v649
        %v658 = vrsqrt.pop %v650
        %v659 = vrsqrt.pop %v651
        %v660 = vrsqrt.pop %v652
        %v661 = vrsqrt.pop %v653
        %v662 = vmul.f32 %v598, %v654
        %v663 = vmul.f32 %v599, %v655
        %v664 = vmul.f32 %v600, %v656
        %v665 = vmul.f32 %v601, %v657
        %v666 = vmul.f32 %v602, %v658
        %v667 = vmul.f32 %v603, %v659
        %v668 = vmul.f32 %v604, %v660
        %v669 = vmul.f32 %v605, %v661
        %v670 = vlaneseq
        %v671 = vshrl.u32 %v670, 7
        %v672 = vsub.s32 0, %v671
        %v673 = vrot.slane %v416, %v672
        %v674 = vmul.f32 %v662, %v673
        %v675 = vmul.f32 %v663, %v673
        %v676 = vmul.f32 %v664, %v673
        %v677 = vmul.f32 %v665, %v673
        %v678 = vmul.f32 %v666, %v673
        %v679 = vmul.f32 %v667, %v673
        %v680 = vmul.f32 %v668, %v673
        %v681 = vmul.f32 %v669, %v673
        %v682 = vlaneseq
        %v683 = vshrl.u32 %v682, 7
        %v684 = vsub.s32 0, %v683
        %v685 = vrot.slane %v417, %v684
        %v686 = vadd.f32 %v674, %v685
        %v687 = vadd.f32 %v675, %v685
        %v688 = vadd.f32 %v676, %v685
        %v689 = vadd.f32 %v677, %v685
        %v690 = vadd.f32 %v678, %v685
        %v691 = vadd.f32 %v679, %v685
        %v692 = vadd.f32 %v680, %v685
        %v693 = vadd.f32 %v681, %v685
        %v694 = vld [vmem:[%s2] sm:$0xff]
        %v695 = vld [vmem:[%s2 + $0x8] sm:$0xff]
        %v696 = vld [vmem:[%s2 + $0x10] sm:$0xff]
        %v697 = vld [vmem:[%s2 + $0x18] sm:$0xff]
        %v698 = vld [vmem:[%s2 + $0x20] sm:$0xff]
        %v699 = vld [vmem:[%s2 + $0x28] sm:$0xff]
        %v700 = vld [vmem:[%s2 + $0x30] sm:$0xff]
        %v701 = vld [vmem:[%s2 + $0x38] sm:$0xff]
        %v702 = vld [vmem:[%s2 + $0x40] sm:$0xff]
        %v703 = vld [vmem:[%s2 + $0x48] sm:$0xff]
        %v704 = vld [vmem:[%s2 + $0x50] sm:$0xff]
        %v705 = vld [vmem:[%s2 + $0x58] sm:$0xff]
        %v706 = vld [vmem:[%s2 + $0x60] sm:$0xff]
        %v707 = vld [vmem:[%s2 + $0x68] sm:$0xff]
        %v708 = vld [vmem:[%s2 + $0x70] sm:$0x1]
        %v709 = vld [vmem:[%s2 + $0x71] sm:$0x1]
        %v710 = vld [vmem:[%s2 + $0x72] sm:$0x1]
        %v711 = vld [vmem:[%s2 + $0x73] sm:$0x1]
        %v712 = vld [vmem:[%s2 + $0x74] sm:$0x1]
        %v713 = vld [vmem:[%s2 + $0x75] sm:$0x1]
        %v714 = vld [vmem:[%s2 + $0x76] sm:$0x1]
        %v715 = vld [vmem:[%s2 + $0x77] sm:$0x1]
        %v716 = vsel %vm564, %v686, 0.0
        %717 = vadd.xlane.f32.xlu0 %v716
        %v718 = vpop.xlane.xlu0 %717
        %v719 = vsel %vm564, %v687, 0.0
        %720 = vadd.xlane.f32.xlu0 %v719
        %v721 = vpop.xlane.xlu0 %720
        %v722 = vsel %vm564, %v688, 0.0
        %723 = vadd.xlane.f32.xlu0 %v722
        %v724 = vpop.xlane.xlu0 %723
        %v725 = vsel %vm564, %v689, 0.0
        %726 = vadd.xlane.f32.xlu0 %v725
        %v727 = vpop.xlane.xlu0 %726
        %v728 = vsel %vm564, %v690, 0.0
        %729 = vadd.xlane.f32.xlu0 %v728
        %v730 = vpop.xlane.xlu0 %729
        %v731 = vsel %vm564, %v691, 0.0
        %732 = vadd.xlane.f32.xlu0 %v731
        %v733 = vpop.xlane.xlu0 %732
        %v734 = vsel %vm564, %v692, 0.0
        %735 = vadd.xlane.f32.xlu0 %v734
        %v736 = vpop.xlane.xlu0 %735
        %v737 = vsel %vm564, %v693, 0.0
        %738 = vadd.xlane.f32.xlu0 %v737
        %v739 = vpop.xlane.xlu0 %738
        %v740 = vmul.f32 %v718, %v589
        %v741 = vmul.f32 %v721, %v589
        %v742 = vmul.f32 %v724, %v589
        %v743 = vmul.f32 %v727, %v589
        %v744 = vmul.f32 %v730, %v589
        %v745 = vmul.f32 %v733, %v589
        %v746 = vmul.f32 %v736, %v589
        %v747 = vmul.f32 %v739, %v589
        %v748 = vsub.f32 %v686, %v740
        %v749 = vsub.f32 %v687, %v741
        %v750 = vsub.f32 %v688, %v742
        %v751 = vsub.f32 %v689, %v743
        %v752 = vsub.f32 %v690, %v744
        %v753 = vsub.f32 %v691, %v745
        %v754 = vsub.f32 %v692, %v746
        %v755 = vsub.f32 %v693, %v747
        %v756 = vmul.f32 %v748, %v748
        %v757 = vmul.f32 %v749, %v749
        %v758 = vmul.f32 %v750, %v750
        %v759 = vmul.f32 %v751, %v751
        %v760 = vmul.f32 %v752, %v752
        %v761 = vmul.f32 %v753, %v753
        %v762 = vmul.f32 %v754, %v754
        %v763 = vmul.f32 %v755, %v755
        %v764 = vsel %vm564, %v756, 0.0
        %765 = vadd.xlane.f32.xlu0 %v764
        %v766 = vpop.xlane.xlu0 %765
        %v767 = vsel %vm564, %v757, 0.0
        %768 = vadd.xlane.f32.xlu0 %v767
        %v769 = vpop.xlane.xlu0 %768
        %v770 = vsel %vm564, %v758, 0.0
        %771 = vadd.xlane.f32.xlu0 %v770
        %v772 = vpop.xlane.xlu0 %771
        %v773 = vsel %vm564, %v759, 0.0
        %774 = vadd.xlane.f32.xlu0 %v773
        %v775 = vpop.xlane.xlu0 %774
        %v776 = vsel %vm564, %v760, 0.0
        %777 = vadd.xlane.f32.xlu0 %v776
        %v778 = vpop.xlane.xlu0 %777
        %v779 = vsel %vm564, %v761, 0.0
        %780 = vadd.xlane.f32.xlu0 %v779
        %v781 = vpop.xlane.xlu0 %780
        %v782 = vsel %vm564, %v762, 0.0
        %783 = vadd.xlane.f32.xlu0 %v782
        %v784 = vpop.xlane.xlu0 %783
        %v785 = vsel %vm564, %v763, 0.0
        %786 = vadd.xlane.f32.xlu0 %v785
        %v787 = vpop.xlane.xlu0 %786
        %v788 = vmul.f32 %v766, %v589
        %v789 = vmul.f32 %v769, %v589
        %v790 = vmul.f32 %v772, %v589
        %v791 = vmul.f32 %v775, %v589
        %v792 = vmul.f32 %v778, %v589
        %v793 = vmul.f32 %v781, %v589
        %v794 = vmul.f32 %v784, %v589
        %v795 = vmul.f32 %v787, %v589
        %v796 = vadd.f32 %v788, 1e-05
        %v797 = vadd.f32 %v789, 1e-05
        %v798 = vadd.f32 %v790, 1e-05
        %v799 = vadd.f32 %v791, 1e-05
        %v800 = vadd.f32 %v792, 1e-05
        %v801 = vadd.f32 %v793, 1e-05
        %v802 = vadd.f32 %v794, 1e-05
        %v803 = vadd.f32 %v795, 1e-05
        %v804 = vrsqrt.pop %v796
        %v805 = vrsqrt.pop %v797
        %v806 = vrsqrt.pop %v798
        %v807 = vrsqrt.pop %v799
        %v808 = vrsqrt.pop %v800
        %v809 = vrsqrt.pop %v801
        %v810 = vrsqrt.pop %v802
        %v811 = vrsqrt.pop %v803
        %v812 = vmul.f32 %v748, %v804
        %v813 = vmul.f32 %v749, %v805
        %v814 = vmul.f32 %v750, %v806
        %v815 = vmul.f32 %v751, %v807
        %v816 = vmul.f32 %v752, %v808
        %v817 = vmul.f32 %v753, %v809
        %v818 = vmul.f32 %v754, %v810
        %v819 = vmul.f32 %v755, %v811
        %v820 = vlaneseq
        %v821 = vshrl.u32 %v820, 7
        %v822 = vsub.s32 0, %v821
        %v823 = vrot.slane %v708, %v822
        %v824 = vmul.f32 %v812, %v823
        %v825 = vmul.f32 %v813, %v823
        %v826 = vmul.f32 %v814, %v823
        %v827 = vmul.f32 %v815, %v823
        %v828 = vmul.f32 %v816, %v823
        %v829 = vmul.f32 %v817, %v823
        %v830 = vmul.f32 %v818, %v823
        %v831 = vmul.f32 %v819, %v823
        %v832 = vlaneseq
        %v833 = vshrl.u32 %v832, 7
        %v834 = vsub.s32 0, %v833
        %v835 = vrot.slane %v709, %v834
        %v836 = vadd.f32 %v824, %v835
        %v837 = vadd.f32 %v825, %v835
        %v838 = vadd.f32 %v826, %v835
        %v839 = vadd.f32 %v827, %v835
        %v840 = vadd.f32 %v828, %v835
        %v841 = vadd.f32 %v829, %v835
        %v842 = vadd.f32 %v830, %v835
        %v843 = vadd.f32 %v831, %v835
        %v844 = vlaneseq
        %v845 = vshrl.u32 %v844, 7
        %v846 = vsub.s32 0, %v845
        %v847 = vrot.slane %v710, %v846
        %v849 = vsel %vm564, %v836, 0
        %v852 = vsel %vm564, %v837, 0
        %v855 = vsel %vm564, %v838, 0
        %v858 = vsel %vm564, %v839, 0
        %v861 = vsel %vm564, %v840, 0
        %v864 = vsel %vm564, %v841, 0
        %v867 = vsel %vm564, %v842, 0
        %v870 = vsel %vm564, %v843, 0
        %872 = vmatprep.subr.mxu0 0.0
        %873 = vmatpush1.msra.mxu0 %v694
        %874 = vmatprep.subr.mxu0 0.0
        %875 = vmatpush1.msra.mxu0 %v695
        %876 = vmatprep.subr.mxu0 0.0
        %877 = vmatpush1.msra.mxu0 0.0
        %878 = vmatprep.subr.mxu0 0.0
        %879 = vmatpush1.msra.mxu0 0.0
        %880 = vmatprep.subr.mxu0 0.0
        %881 = vmatpush1.msra.mxu0 0.0
        %882 = vmatprep.subr.mxu0 0.0
        %883 = vmatpush1.msra.mxu0 0.0
        %884 = vmatprep.subr.mxu0 0.0
        %885 = vmatpush1.msra.mxu0 0.0
        %886 = vmatprep.subr.mxu0 0.0
        %887 = vmatpush1.msra.mxu0 0.0
        %888 = vmatprep.subr.mxu0 0.0
        %889 = vmatpush1.msra.mxu0 0.0
        %890 = vmatprep.subr.mxu0 0.0
        %891 = vmatpush1.msra.mxu0 0.0
        %892 = vmatprep.subr.mxu0 0.0
        %893 = vmatpush1.msra.mxu0 0.0
        %894 = vmatprep.subr.mxu0 0.0
        %895 = vmatpush1.msra.mxu0 0.0
        %896 = vmatprep.subr.mxu0 0.0
        %897 = vmatpush1.msra.mxu0 0.0
        %898 = vmatprep.subr.mxu0 0.0
        %899 = vmatpush1.msra.mxu0 0.0
        %900 = vmatprep.subr.mxu0 0.0
        %901 = vmatpush1.msra.mxu0 0.0
        %902 = vmatprep.subr.mxu0 0.0
        %903 = vmatpush1.msra.mxu0 0.0
        %904 = vmatprep.subr.mxu0 0.0
        %905 = vmatpush1.msra.mxu0 0.0
        %906 = vmatprep.subr.mxu0 0.0
        %907 = vmatpush1.msra.mxu0 0.0
        %908 = vmatprep.subr.mxu0 0.0
        %909 = vmatpush1.msra.mxu0 0.0
        %910 = vmatprep.subr.mxu0 0.0
        %911 = vmatpush1.msra.mxu0 0.0
        %912 = vmatprep.subr.mxu0 0.0
        %913 = vmatpush1.msra.mxu0 0.0
        %914 = vmatprep.subr.mxu0 0.0
        %915 = vmatpush1.msra.mxu0 0.0
        %916 = vmatprep.subr.mxu0 0.0
        %917 = vmatpush1.msra.mxu0 0.0
        %918 = vmatprep.subr.mxu0 0.0
        %919 = vmatpush1.msra.mxu0 0.0
        %920 = vmatprep.subr.mxu0 0.0
        %921 = vmatpush1.msra.mxu0 0.0
        %922 = vmatprep.subr.mxu0 0.0
        %923 = vmatpush1.msra.mxu0 0.0
        %924 = vmatprep.subr.mxu0 0.0
        %925 = vmatpush1.msra.mxu0 0.0
        %926 = vmatprep.subr.mxu0 0.0
        %927 = vmatpush1.msra.mxu0 0.0
        %928 = vmatprep.subr.mxu0 0.0
        %929 = vmatpush1.msra.mxu0 0.0
        %930 = vmatprep.subr.mxu0 0.0
        %931 = vmatpush1.msra.mxu0 0.0
        %932 = vmatprep.subr.mxu0 0.0
        %933 = vmatpush1.msra.mxu0 0.0
        %934 = vmatprep.subr.mxu0 0.0
        %935 = vmatpush1.msra.mxu0 0.0
        %936 = vmatprep.mubr.f32.mxu0 0.0
        %937 = vmatmul.mubr.f32.gmra.mrb[0].mxu0 %v849
        %v938 = vpop.f32.mrb[0].mxu0
        %v939 = vadd.f32 %v847, %v938
        %v940 = vpop.f32.mrb[0].mxu0
        %941 = vmatprep.mubr.f32.mxu0 0.0
        %942 = vmatmul.mubr.f32.gmra.mrb[0].mxu0 %v852
        %v943 = vpop.f32.mrb[0].mxu0
        %v944 = vadd.f32 %v847, %v943
        %v945 = vpop.f32.mrb[0].mxu0
        %946 = vmatprep.mubr.f32.mxu0 0.0
        %947 = vmatmul.mubr.f32.gmra.mrb[0].mxu0 %v855
        %v948 = vpop.f32.mrb[0].mxu0
        %v949 = vadd.f32 %v847, %v948
        %v950 = vpop.f32.mrb[0].mxu0
        %951 = vmatprep.mubr.f32.mxu0 0.0
        %952 = vmatmul.mubr.f32.gmra.mrb[0].mxu0 %v858
        %v953 = vpop.f32.mrb[0].mxu0
        %v954 = vadd.f32 %v847, %v953
        %v955 = vpop.f32.mrb[0].mxu0
        %956 = vmatprep.mubr.f32.mxu0 0.0
        %957 = vmatmul.mubr.f32.gmra.mrb[0].mxu0 %v861
        %v958 = vpop.f32.mrb[0].mxu0
        %v959 = vadd.f32 %v847, %v958
        %v960 = vpop.f32.mrb[0].mxu0
        %961 = vmatprep.mubr.f32.mxu0 0.0
        %962 = vmatmul.mubr.f32.gmra.mrb[0].mxu0 %v864
        %v963 = vpop.f32.mrb[0].mxu0
        %v964 = vadd.f32 %v847, %v963
        %v965 = vpop.f32.mrb[0].mxu0
        %966 = vmatprep.mubr.f32.mxu0 0.0
        %967 = vmatmul.mubr.f32.gmra.mrb[0].mxu0 %v867
        %v968 = vpop.f32.mrb[0].mxu0
        %v969 = vadd.f32 %v847, %v968
        %v970 = vpop.f32.mrb[0].mxu0
        %971 = vmatprep.mubr.f32.mxu0 0.0
        %972 = vmatmul.mubr.f32.gmra.mrb[0].mxu0 %v870
        %v973 = vpop.f32.mrb[0].mxu0
        %v974 = vadd.f32 %v847, %v973
        %v975 = vpop.f32.mrb[0].mxu0
        %976 = vdwg.mxu0
        %985 = vrot.lane.b32.xlu0 %v939, 112
        %v986 = vpop.permute.xlu0 %985
        %987 = vrot.lane.b32.xlu0 %v944, 112
        %v988 = vpop.permute.xlu0 %987
        %989 = vrot.lane.b32.xlu0 %v949, 112
        %v990 = vpop.permute.xlu0 %989
        %991 = vrot.lane.b32.xlu0 %v954, 112
        %v992 = vpop.permute.xlu0 %991
        %993 = vrot.lane.b32.xlu0 %v959, 112
        %v994 = vpop.permute.xlu0 %993
        %995 = vrot.lane.b32.xlu0 %v964, 112
        %v996 = vpop.permute.xlu0 %995
        %997 = vrot.lane.b32.xlu0 %v969, 112
        %v998 = vpop.permute.xlu0 %997
        %999 = vrot.lane.b32.xlu0 %v974, 112
        %v1000 = vpop.permute.xlu0 %999
        %vm1001 = vcmask 64512
        %v1002 = vsel %vm1001, %v939, 0
        %v1004 = vsel %vm1001, %v944, 0
        %v1006 = vsel %vm1001, %v949, 0
        %v1008 = vsel %vm1001, %v954, 0
        %v1010 = vsel %vm1001, %v959, 0
        %v1012 = vsel %vm1001, %v964, 0
        %v1014 = vsel %vm1001, %v969, 0
        %v1016 = vsel %vm1001, %v974, 0
        %v1018 = vsel %vm1001, %v986, 0
        %v1020 = vsel %vm1001, %v988, 0
        %v1022 = vsel %vm1001, %v990, 0
        %v1024 = vsel %vm1001, %v992, 0
        %v1026 = vsel %vm1001, %v994, 0
        %v1028 = vsel %vm1001, %v996, 0
        %v1030 = vsel %vm1001, %v998, 0
        %v1032 = vsel %vm1001, %v1000, 0
        %1034 = vmatprep.subr.mxu0 0.0
        %1035 = vmatpush1.xpose.msra.mxu0 %v1018
        %1036 = vmatprep.subr.mxu0 0.0
        %1037 = vmatpush1.xpose.msra.mxu0 %v1020
        %1038 = vmatprep.subr.mxu0 0.0
        %1039 = vmatpush1.xpose.msra.mxu0 %v1022
        %1040 = vmatprep.subr.mxu0 0.0
        %1041 = vmatpush1.xpose.msra.mxu0 %v1024
        %1042 = vmatprep.subr.mxu0 0.0
        %1043 = vmatpush1.xpose.msra.mxu0 %v1026
        %1044 = vmatprep.subr.mxu0 0.0
        %1045 = vmatpush1.xpose.msra.mxu0 %v1028
        %1046 = vmatprep.subr.mxu0 0.0
        %1047 = vmatpush1.xpose.msra.mxu0 %v1030
        %1048 = vmatprep.subr.mxu0 0.0
        %1049 = vmatpush1.xpose.msra.mxu0 %v1032
        %1050 = vmatprep.subr.mxu0 0.0
        %1051 = vmatpush1.xpose.msra.mxu0 0.0
        %1052 = vmatprep.subr.mxu0 0.0
        %1053 = vmatpush1.xpose.msra.mxu0 0.0
        %1054 = vmatprep.subr.mxu0 0.0
        %1055 = vmatpush1.xpose.msra.mxu0 0.0
        %1056 = vmatprep.subr.mxu0 0.0
        %1057 = vmatpush1.xpose.msra.mxu0 0.0
        %1058 = vmatprep.subr.mxu0 0.0
        %1059 = vmatpush1.xpose.msra.mxu0 0.0
        %1060 = vmatprep.subr.mxu0 0.0
        %1061 = vmatpush1.xpose.msra.mxu0 0.0
        %1062 = vmatprep.subr.mxu0 0.0
        %1063 = vmatpush1.xpose.msra.mxu0 0.0
        %1064 = vmatprep.subr.mxu0 0.0
        %1065 = vmatpush1.xpose.msra.mxu0 0.0
        %1066 = vmatprep.subr.mxu0 0.0
        %1067 = vmatpush1.xpose.msra.mxu0 0.0
        %1068 = vmatprep.subr.mxu0 0.0
        %1069 = vmatpush1.xpose.msra.mxu0 0.0
        %1070 = vmatprep.subr.mxu0 0.0
        %1071 = vmatpush1.xpose.msra.mxu0 0.0
        %1072 = vmatprep.subr.mxu0 0.0
        %1073 = vmatpush1.xpose.msra.mxu0 0.0
        %1074 = vmatprep.subr.mxu0 0.0
        %1075 = vmatpush1.xpose.msra.mxu0 0.0
        %1076 = vmatprep.subr.mxu0 0.0
        %1077 = vmatpush1.xpose.msra.mxu0 0.0
        %1078 = vmatprep.subr.mxu0 0.0
        %1079 = vmatpush1.xpose.msra.mxu0 0.0
        %1080 = vmatprep.subr.mxu0 0.0
        %1081 = vmatpush1.xpose.msra.mxu0 0.0
        %1082 = vmatprep.subr.mxu0 0.0
        %1083 = vmatpush1.xpose.msra.mxu0 0.0
        %1084 = vmatprep.subr.mxu0 0.0
        %1085 = vmatpush1.xpose.msra.mxu0 0.0
        %1086 = vmatprep.subr.mxu0 0.0
        %1087 = vmatpush1.xpose.msra.mxu0 0.0
        %1088 = vmatprep.subr.mxu0 0.0
        %1089 = vmatpush1.xpose.msra.mxu0 0.0
        %1090 = vmatprep.subr.mxu0 0.0
        %1091 = vmatpush1.xpose.msra.mxu0 0.0
        %1092 = vmatprep.subr.mxu0 0.0
        %1093 = vmatpush1.xpose.msra.mxu0 0.0
        %1094 = vmatprep.subr.mxu0 0.0
        %1095 = vmatpush1.xpose.msra.mxu0 0.0
        %1096 = vmatprep.subr.mxu0 0.0
        %1097 = vmatpush1.xpose.msra.mxu0 0.0
        %1098 = vmatprep.mubr.f32.mxu0 0.0
        %1099 = vmatmul.mubr.f32.gmra.mrb[0].mxu0 %v1002
        %v1100 = vpop.f32.mrb[0].mxu0
        %v1101 = vadd.f32 0.0, %v1100
        %v1102 = vpop.f32.mrb[0].mxu0
        %1103 = vmatprep.mubr.f32.mxu0 0.0
        %1104 = vmatmul.mubr.f32.gmra.mrb[0].mxu0 %v1004
        %v1105 = vpop.f32.mrb[0].mxu0
        %v1106 = vadd.f32 0.0, %v1105
        %v1107 = vpop.f32.mrb[0].mxu0
        %1108 = vmatprep.mubr.f32.mxu0 0.0
        %1109 = vmatmul.mubr.f32.gmra.mrb[0].mxu0 %v1006
        %v1110 = vpop.f32.mrb[0].mxu0
        %v1111 = vadd.f32 0.0, %v1110
        %v1112 = vpop.f32.mrb[0].mxu0
        %1113 = vmatprep.mubr.f32.mxu0 0.0
        %1114 = vmatmul.mubr.f32.gmra.mrb[0].mxu0 %v1008
        %v1115 = vpop.f32.mrb[0].mxu0
        %v1116 = vadd.f32 0.0, %v1115
        %v1117 = vpop.f32.mrb[0].mxu0
        %1118 = vmatprep.mubr.f32.mxu0 0.0
        %1119 = vmatmul.mubr.f32.gmra.mrb[0].mxu0 %v1010
        %v1120 = vpop.f32.mrb[0].mxu0
        %v1121 = vadd.f32 0.0, %v1120
        %v1122 = vpop.f32.mrb[0].mxu0
        %1123 = vmatprep.mubr.f32.mxu0 0.0
        %1124 = vmatmul.mubr.f32.gmra.mrb[0].mxu0 %v1012
        %v1125 = vpop.f32.mrb[0].mxu0
        %v1126 = vadd.f32 0.0, %v1125
        %v1127 = vpop.f32.mrb[0].mxu0
        %1128 = vmatprep.mubr.f32.mxu0 0.0
        %1129 = vmatmul.mubr.f32.gmra.mrb[0].mxu0 %v1014
        %v1130 = vpop.f32.mrb[0].mxu0
        %v1131 = vadd.f32 0.0, %v1130
        %v1132 = vpop.f32.mrb[0].mxu0
        %1133 = vmatprep.mubr.f32.mxu0 0.0
        %1134 = vmatmul.mubr.f32.gmra.mrb[0].mxu0 %v1016
        %v1135 = vpop.f32.mrb[0].mxu0
        %v1136 = vadd.f32 0.0, %v1135
        %v1137 = vpop.f32.mrb[0].mxu0
        %1138 = vdwg.mxu0
        %1139 = vrot.lane.b32.xlu0 %v939, 120
        %v1140 = vpop.permute.xlu0 %1139
        %1141 = vrot.lane.b32.xlu0 %v944, 120
        %v1142 = vpop.permute.xlu0 %1141
        %1143 = vrot.lane.b32.xlu0 %v949, 120
        %v1144 = vpop.permute.xlu0 %1143
        %1145 = vrot.lane.b32.xlu0 %v954, 120
        %v1146 = vpop.permute.xlu0 %1145
        %1147 = vrot.lane.b32.xlu0 %v959, 120
        %v1148 = vpop.permute.xlu0 %1147
        %1149 = vrot.lane.b32.xlu0 %v964, 120
        %v1150 = vpop.permute.xlu0 %1149
        %1151 = vrot.lane.b32.xlu0 %v969, 120
        %v1152 = vpop.permute.xlu0 %1151
        %1153 = vrot.lane.b32.xlu0 %v974, 120
        %v1154 = vpop.permute.xlu0 %1153
        %1155 = vrot.lane.b32.xlu0 %v939, 104
        %v1156 = vpop.permute.xlu0 %1155
        %1157 = vrot.lane.b32.xlu0 %v944, 104
        %v1158 = vpop.permute.xlu0 %1157
        %1159 = vrot.lane.b32.xlu0 %v949, 104
        %v1160 = vpop.permute.xlu0 %1159
        %1161 = vrot.lane.b32.xlu0 %v954, 104
        %v1162 = vpop.permute.xlu0 %1161
        %1163 = vrot.lane.b32.xlu0 %v959, 104
        %v1164 = vpop.permute.xlu0 %1163
        %1165 = vrot.lane.b32.xlu0 %v964, 104
        %v1166 = vpop.permute.xlu0 %1165
        %1167 = vrot.lane.b32.xlu0 %v969, 104
        %v1168 = vpop.permute.xlu0 %1167
        %1169 = vrot.lane.b32.xlu0 %v974, 104
        %v1170 = vpop.permute.xlu0 %1169
        %v1171 = vsel %vm1001, %v1140, 0
        %v1173 = vsel %vm1001, %v1142, 0
        %v1175 = vsel %vm1001, %v1144, 0
        %v1177 = vsel %vm1001, %v1146, 0
        %v1179 = vsel %vm1001, %v1148, 0
        %v1181 = vsel %vm1001, %v1150, 0
        %v1183 = vsel %vm1001, %v1152, 0
        %v1185 = vsel %vm1001, %v1154, 0
        %v1187 = vsel %vm1001, %v1156, 0
        %v1189 = vsel %vm1001, %v1158, 0
        %v1191 = vsel %vm1001, %v1160, 0
        %v1193 = vsel %vm1001, %v1162, 0
        %v1195 = vsel %vm1001, %v1164, 0
        %v1197 = vsel %vm1001, %v1166, 0
        %v1199 = vsel %vm1001, %v1168, 0
        %v1201 = vsel %vm1001, %v1170, 0
        %1203 = vmatprep.subr.mxu0 0.0
        %1204 = vmatpush1.xpose.msra.mxu0 %v1187
        %1205 = vmatprep.subr.mxu0 0.0
        %1206 = vmatpush1.xpose.msra.mxu0 %v1189
        %1207 = vmatprep.subr.mxu0 0.0
        %1208 = vmatpush1.xpose.msra.mxu0 %v1191
        %1209 = vmatprep.subr.mxu0 0.0
        %1210 = vmatpush1.xpose.msra.mxu0 %v1193
        %1211 = vmatprep.subr.mxu0 0.0
        %1212 = vmatpush1.xpose.msra.mxu0 %v1195
        %1213 = vmatprep.subr.mxu0 0.0
        %1214 = vmatpush1.xpose.msra.mxu0 %v1197
        %1215 = vmatprep.subr.mxu0 0.0
        %1216 = vmatpush1.xpose.msra.mxu0 %v1199
        %1217 = vmatprep.subr.mxu0 0.0
        %1218 = vmatpush1.xpose.msra.mxu0 %v1201
        %1219 = vmatprep.subr.mxu0 0.0
        %1220 = vmatpush1.xpose.msra.mxu0 0.0
        %1221 = vmatprep.subr.mxu0 0.0
        %1222 = vmatpush1.xpose.msra.mxu0 0.0
        %1223 = vmatprep.subr.mxu0 0.0
        %1224 = vmatpush1.xpose.msra.mxu0 0.0
        %1225 = vmatprep.subr.mxu0 0.0
        %1226 = vmatpush1.xpose.msra.mxu0 0.0
        %1227 = vmatprep.subr.mxu0 0.0
        %1228 = vmatpush1.xpose.msra.mxu0 0.0
        %1229 = vmatprep.subr.mxu0 0.0
        %1230 = vmatpush1.xpose.msra.mxu0 0.0
        %1231 = vmatprep.subr.mxu0 0.0
        %1232 = vmatpush1.xpose.msra.mxu0 0.0
        %1233 = vmatprep.subr.mxu0 0.0
        %1234 = vmatpush1.xpose.msra.mxu0 0.0
        %1235 = vmatprep.subr.mxu0 0.0
        %1236 = vmatpush1.xpose.msra.mxu0 0.0
        %1237 = vmatprep.subr.mxu0 0.0
        %1238 = vmatpush1.xpose.msra.mxu0 0.0
        %1239 = vmatprep.subr.mxu0 0.0
        %1240 = vmatpush1.xpose.msra.mxu0 0.0
        %1241 = vmatprep.subr.mxu0 0.0
        %1242 = vmatpush1.xpose.msra.mxu0 0.0
        %1243 = vmatprep.subr.mxu0 0.0
        %1244 = vmatpush1.xpose.msra.mxu0 0.0
        %1245 = vmatprep.subr.mxu0 0.0
        %1246 = vmatpush1.xpose.msra.mxu0 0.0
        %1247 = vmatprep.subr.mxu0 0.0
        %1248 = vmatpush1.xpose.msra.mxu0 0.0
        %1249 = vmatprep.subr.mxu0 0.0
        %1250 = vmatpush1.xpose.msra.mxu0 0.0
        %1251 = vmatprep.subr.mxu0 0.0
        %1252 = vmatpush1.xpose.msra.mxu0 0.0
        %1253 = vmatprep.subr.mxu0 0.0
        %1254 = vmatpush1.xpose.msra.mxu0 0.0
        %1255 = vmatprep.subr.mxu0 0.0
        %1256 = vmatpush1.xpose.msra.mxu0 0.0
        %1257 = vmatprep.subr.mxu0 0.0
        %1258 = vmatpush1.xpose.msra.mxu0 0.0
        %1259 = vmatprep.subr.mxu0 0.0
        %1260 = vmatpush1.xpose.msra.mxu0 0.0
        %1261 = vmatprep.subr.mxu0 0.0
        %1262 = vmatpush1.xpose.msra.mxu0 0.0
        %1263 = vmatprep.subr.mxu0 0.0
        %1264 = vmatpush1.xpose.msra.mxu0 0.0
        %1265 = vmatprep.subr.mxu0 0.0
        %1266 = vmatpush1.xpose.msra.mxu0 0.0
        %1267 = vmatprep.mubr.f32.mxu0 0.0
        %1268 = vmatmul.mubr.f32.gmra.mrb[0].mxu0 %v1171
        %v1269 = vpop.f32.mrb[0].mxu0
        %v1270 = vadd.f32 0.0, %v1269
        %v1271 = vpop.f32.mrb[0].mxu0
        %1272 = vmatprep.mubr.f32.mxu0 0.0
        %1273 = vmatmul.mubr.f32.gmra.mrb[0].mxu0 %v1173
        %v1274 = vpop.f32.mrb[0].mxu0
        %v1275 = vadd.f32 0.0, %v1274
        %v1276 = vpop.f32.mrb[0].mxu0
        %1277 = vmatprep.mubr.f32.mxu0 0.0
        %1278 = vmatmul.mubr.f32.gmra.mrb[0].mxu0 %v1175
        %v1279 = vpop.f32.mrb[0].mxu0
        %v1280 = vadd.f32 0.0, %v1279
        %v1281 = vpop.f32.mrb[0].mxu0
        %1282 = vmatprep.mubr.f32.mxu0 0.0
        %1283 = vmatmul.mubr.f32.gmra.mrb[0].mxu0 %v1177
        %v1284 = vpop.f32.mrb[0].mxu0
        %v1285 = vadd.f32 0.0, %v1284
        %v1286 = vpop.f32.mrb[0].mxu0
        %1287 = vmatprep.mubr.f32.mxu0 0.0
        %1288 = vmatmul.mubr.f32.gmra.mrb[0].mxu0 %v1179
        %v1289 = vpop.f32.mrb[0].mxu0
        %v1290 = vadd.f32 0.0, %v1289
        %v1291 = vpop.f32.mrb[0].mxu0
        %1292 = vmatprep.mubr.f32.mxu0 0.0
        %1293 = vmatmul.mubr.f32.gmra.mrb[0].mxu0 %v1181
        %v1294 = vpop.f32.mrb[0].mxu0
        %v1295 = vadd.f32 0.0, %v1294
        %v1296 = vpop.f32.mrb[0].mxu0
        %1297 = vmatprep.mubr.f32.mxu0 0.0
        %1298 = vmatmul.mubr.f32.gmra.mrb[0].mxu0 %v1183
        %v1299 = vpop.f32.mrb[0].mxu0
        %v1300 = vadd.f32 0.0, %v1299
        %v1301 = vpop.f32.mrb[0].mxu0
        %1302 = vmatprep.mubr.f32.mxu0 0.0
        %1303 = vmatmul.mubr.f32.gmra.mrb[0].mxu0 %v1185
        %v1304 = vpop.f32.mrb[0].mxu0
        %v1305 = vadd.f32 0.0, %v1304
        %v1306 = vpop.f32.mrb[0].mxu0
        %1307 = vdwg.mxu0
        %v1308 = vld [vmem:[%s3] sm:$0xff]
        %v1309 = vld [vmem:[%s3 + $0x8] sm:$0xff]
        %v1310 = vld [vmem:[%s3 + $0x10] sm:$0xff]
        %v1311 = vld [vmem:[%s3 + $0x18] sm:$0xff]
        %v1312 = vld [vmem:[%s3 + $0x20] sm:$0xff]
        %v1313 = vld [vmem:[%s3 + $0x28] sm:$0xff]
        %v1314 = vld [vmem:[%s3 + $0x30] sm:$0xff]
        %v1315 = vld [vmem:[%s3 + $0x38] sm:$0xff]
        %v1316 = vld [vmem:[%s3 + $0x40] sm:$0xff]
        %v1317 = vld [vmem:[%s3 + $0x48] sm:$0xff]
        %v1318 = vld [vmem:[%s3 + $0x50] sm:$0xff]
        %v1319 = vld [vmem:[%s3 + $0x58] sm:$0xff]
        %v1320 = vld [vmem:[%s3 + $0x60] sm:$0xff]
        %v1321 = vld [vmem:[%s3 + $0x68] sm:$0xff]
        %v1322 = vld [vmem:[%s3 + $0x70] sm:$0xff]
        %v1323 = vld [vmem:[%s3 + $0x78] sm:$0xff]
        %v1324 = vadd.f32 %v1101, %v1308
        %v1325 = vadd.f32 %v1106, %v1309
        %v1326 = vadd.f32 %v1111, %v1310
        %v1327 = vadd.f32 %v1116, %v1311
        %v1328 = vadd.f32 %v1121, %v1312
        %v1329 = vadd.f32 %v1126, %v1313
        %v1330 = vadd.f32 %v1131, %v1314
        %v1331 = vadd.f32 %v1136, %v1315
        %v1332 = vadd.f32 %v1270, %v1316
        %v1333 = vadd.f32 %v1275, %v1317
        %v1334 = vadd.f32 %v1280, %v1318
        %v1335 = vadd.f32 %v1285, %v1319
        %v1336 = vadd.f32 %v1290, %v1320
        %v1337 = vadd.f32 %v1295, %v1321
        %v1338 = vadd.f32 %v1300, %v1322
        %v1339 = vadd.f32 %v1305, %v1323
        %vm1340 = vcmask 523264
        %v1341 = vsel %vm1340, %v1324, -inf
        %1342 = vmax.xlane.f32.xlu0 %v1341
        %v1343 = vpop.xlane.xlu0 %1342
        %v1344 = vsel %vm1340, %v1325, -inf
        %1345 = vmax.xlane.f32.xlu0 %v1344
        %v1346 = vpop.xlane.xlu0 %1345
        %v1347 = vsel %vm1340, %v1326, -inf
        %1348 = vmax.xlane.f32.xlu0 %v1347
        %v1349 = vpop.xlane.xlu0 %1348
        %v1350 = vsel %vm1340, %v1327, -inf
        %1351 = vmax.xlane.f32.xlu0 %v1350
        %v1352 = vpop.xlane.xlu0 %1351
        %v1353 = vsel %vm1340, %v1328, -inf
        %1354 = vmax.xlane.f32.xlu0 %v1353
        %v1355 = vpop.xlane.xlu0 %1354
        %v1356 = vsel %vm1340, %v1329, -inf
        %1357 = vmax.xlane.f32.xlu0 %v1356
        %v1358 = vpop.xlane.xlu0 %1357
        %v1359 = vsel %vm1340, %v1330, -inf
        %1360 = vmax.xlane.f32.xlu0 %v1359
        %v1361 = vpop.xlane.xlu0 %1360
        %v1362 = vsel %vm1340, %v1331, -inf
        %1363 = vmax.xlane.f32.xlu0 %v1362
        %v1364 = vpop.xlane.xlu0 %1363
        %v1365 = vsel %vm1340, %v1332, -inf
        %1366 = vmax.xlane.f32.xlu0 %v1365
        %v1367 = vpop.xlane.xlu0 %1366
        %v1368 = vsel %vm1340, %v1333, -inf
        %1369 = vmax.xlane.f32.xlu0 %v1368
        %v1370 = vpop.xlane.xlu0 %1369
        %v1371 = vsel %vm1340, %v1334, -inf
        %1372 = vmax.xlane.f32.xlu0 %v1371
        %v1373 = vpop.xlane.xlu0 %1372
        %v1374 = vsel %vm1340, %v1335, -inf
        %1375 = vmax.xlane.f32.xlu0 %v1374
        %v1376 = vpop.xlane.xlu0 %1375
        %v1377 = vsel %vm1340, %v1336, -inf
        %1378 = vmax.xlane.f32.xlu0 %v1377
        %v1379 = vpop.xlane.xlu0 %1378
        %v1380 = vsel %vm1340, %v1337, -inf
        %1381 = vmax.xlane.f32.xlu0 %v1380
        %v1382 = vpop.xlane.xlu0 %1381
        %v1383 = vsel %vm1340, %v1338, -inf
        %1384 = vmax.xlane.f32.xlu0 %v1383
        %v1385 = vpop.xlane.xlu0 %1384
        %v1386 = vsel %vm1340, %v1339, -inf
        %1387 = vmax.xlane.f32.xlu0 %v1386
        %v1388 = vpop.xlane.xlu0 %1387
        %v1389 = vsub.f32 %v1324, %v1343
        %v1390 = vsub.f32 %v1325, %v1346
        %v1391 = vsub.f32 %v1326, %v1349
        %v1392 = vsub.f32 %v1327, %v1352
        %v1393 = vsub.f32 %v1328, %v1355
        %v1394 = vsub.f32 %v1329, %v1358
        %v1395 = vsub.f32 %v1330, %v1361
        %v1396 = vsub.f32 %v1331, %v1364
        %v1397 = vsub.f32 %v1332, %v1367
        %v1398 = vsub.f32 %v1333, %v1370
        %v1399 = vsub.f32 %v1334, %v1373
        %v1400 = vsub.f32 %v1335, %v1376
        %v1401 = vsub.f32 %v1336, %v1379
        %v1402 = vsub.f32 %v1337, %v1382
        %v1403 = vsub.f32 %v1338, %v1385
        %v1404 = vsub.f32 %v1339, %v1388
        %v1405 = vmul.f32 %v1389, 1.442695
        %v1406 = vpow.pop %v1405
        %v1407 = vmul.f32 %v1390, 1.442695
        %v1408 = vpow.pop %v1407
        %v1409 = vmul.f32 %v1391, 1.442695
        %v1410 = vpow.pop %v1409
        %v1411 = vmul.f32 %v1392, 1.442695
        %v1412 = vpow.pop %v1411
        %v1413 = vmul.f32 %v1393, 1.442695
        %v1414 = vpow.pop %v1413
        %v1415 = vmul.f32 %v1394, 1.442695
        %v1416 = vpow.pop %v1415
        %v1417 = vmul.f32 %v1395, 1.442695
        %v1418 = vpow.pop %v1417
        %v1419 = vmul.f32 %v1396, 1.442695
        %v1420 = vpow.pop %v1419
        %v1421 = vmul.f32 %v1397, 1.442695
        %v1422 = vpow.pop %v1421
        %v1423 = vmul.f32 %v1398, 1.442695
        %v1424 = vpow.pop %v1423
        %v1425 = vmul.f32 %v1399, 1.442695
        %v1426 = vpow.pop %v1425
        %v1427 = vmul.f32 %v1400, 1.442695
        %v1428 = vpow.pop %v1427
        %v1429 = vmul.f32 %v1401, 1.442695
        %v1430 = vpow.pop %v1429
        %v1431 = vmul.f32 %v1402, 1.442695
        %v1432 = vpow.pop %v1431
        %v1433 = vmul.f32 %v1403, 1.442695
        %v1434 = vpow.pop %v1433
        %v1435 = vmul.f32 %v1404, 1.442695
        %v1436 = vpow.pop %v1435
        %v1437 = vsel %vm1340, %v1406, 0.0
        %1438 = vadd.xlane.f32.xlu0 %v1437
        %v1439 = vpop.xlane.xlu0 %1438
        %v1440 = vsel %vm1340, %v1408, 0.0
        %1441 = vadd.xlane.f32.xlu0 %v1440
        %v1442 = vpop.xlane.xlu0 %1441
        %v1443 = vsel %vm1340, %v1410, 0.0
        %1444 = vadd.xlane.f32.xlu0 %v1443
        %v1445 = vpop.xlane.xlu0 %1444
        %v1446 = vsel %vm1340, %v1412, 0.0
        %1447 = vadd.xlane.f32.xlu0 %v1446
        %v1448 = vpop.xlane.xlu0 %1447
        %v1449 = vsel %vm1340, %v1414, 0.0
        %1450 = vadd.xlane.f32.xlu0 %v1449
        %v1451 = vpop.xlane.xlu0 %1450
        %v1452 = vsel %vm1340, %v1416, 0.0
        %1453 = vadd.xlane.f32.xlu0 %v1452
        %v1454 = vpop.xlane.xlu0 %1453
        %v1455 = vsel %vm1340, %v1418, 0.0
        %1456 = vadd.xlane.f32.xlu0 %v1455
        %v1457 = vpop.xlane.xlu0 %1456
        %v1458 = vsel %vm1340, %v1420, 0.0
        %1459 = vadd.xlane.f32.xlu0 %v1458
        %v1460 = vpop.xlane.xlu0 %1459
        %v1461 = vsel %vm1340, %v1422, 0.0
        %1462 = vadd.xlane.f32.xlu0 %v1461
        %v1463 = vpop.xlane.xlu0 %1462
        %v1464 = vsel %vm1340, %v1424, 0.0
        %1465 = vadd.xlane.f32.xlu0 %v1464
        %v1466 = vpop.xlane.xlu0 %1465
        %v1467 = vsel %vm1340, %v1426, 0.0
        %1468 = vadd.xlane.f32.xlu0 %v1467
        %v1469 = vpop.xlane.xlu0 %1468
        %v1470 = vsel %vm1340, %v1428, 0.0
        %1471 = vadd.xlane.f32.xlu0 %v1470
        %v1472 = vpop.xlane.xlu0 %1471
        %v1473 = vsel %vm1340, %v1430, 0.0
        %1474 = vadd.xlane.f32.xlu0 %v1473
        %v1475 = vpop.xlane.xlu0 %1474
        %v1476 = vsel %vm1340, %v1432, 0.0
        %1477 = vadd.xlane.f32.xlu0 %v1476
        %v1478 = vpop.xlane.xlu0 %1477
        %v1479 = vsel %vm1340, %v1434, 0.0
        %1480 = vadd.xlane.f32.xlu0 %v1479
        %v1481 = vpop.xlane.xlu0 %1480
        %v1482 = vsel %vm1340, %v1436, 0.0
        %1483 = vadd.xlane.f32.xlu0 %v1482
        %v1484 = vpop.xlane.xlu0 %1483
        %v1485 = vrcp.pop %v1439
        %v1486 = vmul.f32 %v1406, %v1485
        %v1487 = vrcp.pop %v1442
        %v1488 = vmul.f32 %v1408, %v1487
        %v1489 = vrcp.pop %v1445
        %v1490 = vmul.f32 %v1410, %v1489
        %v1491 = vrcp.pop %v1448
        %v1492 = vmul.f32 %v1412, %v1491
        %v1493 = vrcp.pop %v1451
        %v1494 = vmul.f32 %v1414, %v1493
        %v1495 = vrcp.pop %v1454
        %v1496 = vmul.f32 %v1416, %v1495
        %v1497 = vrcp.pop %v1457
        %v1498 = vmul.f32 %v1418, %v1497
        %v1499 = vrcp.pop %v1460
        %v1500 = vmul.f32 %v1420, %v1499
        %v1501 = vrcp.pop %v1463
        %v1502 = vmul.f32 %v1422, %v1501
        %v1503 = vrcp.pop %v1466
        %v1504 = vmul.f32 %v1424, %v1503
        %v1505 = vrcp.pop %v1469
        %v1506 = vmul.f32 %v1426, %v1505
        %v1507 = vrcp.pop %v1472
        %v1508 = vmul.f32 %v1428, %v1507
        %v1509 = vrcp.pop %v1475
        %v1510 = vmul.f32 %v1430, %v1509
        %v1511 = vrcp.pop %v1478
        %v1512 = vmul.f32 %v1432, %v1511
        %v1513 = vrcp.pop %v1481
        %v1514 = vmul.f32 %v1434, %v1513
        %v1515 = vrcp.pop %v1484
        %v1516 = vmul.f32 %v1436, %v1515
        %1517 = vrot.lane.b32.xlu0 %v939, 96
        %v1518 = vpop.permute.xlu0 %1517
        %1519 = vrot.lane.b32.xlu0 %v944, 96
        %v1520 = vpop.permute.xlu0 %1519
        %1521 = vrot.lane.b32.xlu0 %v949, 96
        %v1522 = vpop.permute.xlu0 %1521
        %1523 = vrot.lane.b32.xlu0 %v954, 96
        %v1524 = vpop.permute.xlu0 %1523
        %1525 = vrot.lane.b32.xlu0 %v959, 96
        %v1526 = vpop.permute.xlu0 %1525
        %1527 = vrot.lane.b32.xlu0 %v964, 96
        %v1528 = vpop.permute.xlu0 %1527
        %1529 = vrot.lane.b32.xlu0 %v969, 96
        %v1530 = vpop.permute.xlu0 %1529
        %1531 = vrot.lane.b32.xlu0 %v974, 96
        %v1532 = vpop.permute.xlu0 %1531
        %v1542 = vsel %vm1340, %v1486, 0
        %v1545 = vsel %vm1340, %v1488, 0
        %v1548 = vsel %vm1340, %v1490, 0
        %v1551 = vsel %vm1340, %v1492, 0
        %v1554 = vsel %vm1340, %v1494, 0
        %v1557 = vsel %vm1340, %v1496, 0
        %v1560 = vsel %vm1340, %v1498, 0
        %v1563 = vsel %vm1340, %v1500, 0
        %1565 = vmatprep.subr.mxu0 0.0
        %1566 = vmatpush1.msra.mxu0 %v1518
        %1567 = vmatprep.subr.mxu0 0.0
        %1568 = vmatpush1.msra.mxu0 %v1520
        %1569 = vmatprep.subr.mxu0 0.0
        %1570 = vmatpush1.msra.mxu0 %v1522
        %1571 = vmatprep.subr.mxu0 0.0
        %1572 = vmatpush1.msra.mxu0 %v1524
        %1573 = vmatprep.subr.mxu0 0.0
        %1574 = vmatpush1.msra.mxu0 %v1526
        %1575 = vmatprep.subr.mxu0 0.0
        %1576 = vmatpush1.msra.mxu0 %v1528
        %1577 = vmatprep.subr.mxu0 0.0
        %1578 = vmatpush1.msra.mxu0 %v1530
        %1579 = vmatprep.subr.mxu0 0.0
        %1580 = vmatpush1.msra.mxu0 %v1532
        %1581 = vmatprep.subr.mxu0 0.0
        %1582 = vmatpush1.msra.mxu0 0.0
        %1583 = vmatprep.subr.mxu0 0.0
        %1584 = vmatpush1.msra.mxu0 0.0
        %1585 = vmatprep.subr.mxu0 0.0
        %1586 = vmatpush1.msra.mxu0 0.0
        %1587 = vmatprep.subr.mxu0 0.0
        %1588 = vmatpush1.msra.mxu0 0.0
        %1589 = vmatprep.subr.mxu0 0.0
        %1590 = vmatpush1.msra.mxu0 0.0
        %1591 = vmatprep.subr.mxu0 0.0
        %1592 = vmatpush1.msra.mxu0 0.0
        %1593 = vmatprep.subr.mxu0 0.0
        %1594 = vmatpush1.msra.mxu0 0.0
        %1595 = vmatprep.subr.mxu0 0.0
        %1596 = vmatpush1.msra.mxu0 0.0
        %1597 = vmatprep.subr.mxu0 0.0
        %1598 = vmatpush1.msra.mxu0 0.0
        %1599 = vmatprep.subr.mxu0 0.0
        %1600 = vmatpush1.msra.mxu0 0.0
        %1601 = vmatprep.subr.mxu0 0.0
        %1602 = vmatpush1.msra.mxu0 0.0
        %1603 = vmatprep.subr.mxu0 0.0
        %1604 = vmatpush1.msra.mxu0 0.0
        %1605 = vmatprep.subr.mxu0 0.0
        %1606 = vmatpush1.msra.mxu0 0.0
        %1607 = vmatprep.subr.mxu0 0.0
        %1608 = vmatpush1.msra.mxu0 0.0
        %1609 = vmatprep.subr.mxu0 0.0
        %1610 = vmatpush1.msra.mxu0 0.0
        %1611 = vmatprep.subr.mxu0 0.0
        %1612 = vmatpush1.msra.mxu0 0.0
        %1613 = vmatprep.subr.mxu0 0.0
        %1614 = vmatpush1.msra.mxu0 0.0
        %1615 = vmatprep.subr.mxu0 0.0
        %1616 = vmatpush1.msra.mxu0 0.0
        %1617 = vmatprep.subr.mxu0 0.0
        %1618 = vmatpush1.msra.mxu0 0.0
        %1619 = vmatprep.subr.mxu0 0.0
        %1620 = vmatpush1.msra.mxu0 0.0
        %1621 = vmatprep.subr.mxu0 0.0
        %1622 = vmatpush1.msra.mxu0 0.0
        %1623 = vmatprep.subr.mxu0 0.0
        %1624 = vmatpush1.msra.mxu0 0.0
        %1625 = vmatprep.subr.mxu0 0.0
        %1626 = vmatpush1.msra.mxu0 0.0
        %1627 = vmatprep.subr.mxu0 0.0
        %1628 = vmatpush1.msra.mxu0 0.0
        %1629 = vmatprep.mubr.f32.mxu0 0.0
        %1630 = vmatmul.mubr.f32.gmra.mrb[0].mxu0 %v1542
        %v1631 = vpop.f32.mrb[0].mxu0
        %v1632 = vadd.f32 0.0, %v1631
        %v1633 = vpop.f32.mrb[0].mxu0
        %1634 = vmatprep.mubr.f32.mxu0 0.0
        %1635 = vmatmul.mubr.f32.gmra.mrb[0].mxu0 %v1545
        %v1636 = vpop.f32.mrb[0].mxu0
        %v1637 = vadd.f32 0.0, %v1636
        %v1638 = vpop.f32.mrb[0].mxu0
        %1639 = vmatprep.mubr.f32.mxu0 0.0
        %1640 = vmatmul.mubr.f32.gmra.mrb[0].mxu0 %v1548
        %v1641 = vpop.f32.mrb[0].mxu0
        %v1642 = vadd.f32 0.0, %v1641
        %v1643 = vpop.f32.mrb[0].mxu0
        %1644 = vmatprep.mubr.f32.mxu0 0.0
        %1645 = vmatmul.mubr.f32.gmra.mrb[0].mxu0 %v1551
        %v1646 = vpop.f32.mrb[0].mxu0
        %v1647 = vadd.f32 0.0, %v1646
        %v1648 = vpop.f32.mrb[0].mxu0
        %1649 = vmatprep.mubr.f32.mxu0 0.0
        %1650 = vmatmul.mubr.f32.gmra.mrb[0].mxu0 %v1554
        %v1651 = vpop.f32.mrb[0].mxu0
        %v1652 = vadd.f32 0.0, %v1651
        %v1653 = vpop.f32.mrb[0].mxu0
        %1654 = vmatprep.mubr.f32.mxu0 0.0
        %1655 = vmatmul.mubr.f32.gmra.mrb[0].mxu0 %v1557
        %v1656 = vpop.f32.mrb[0].mxu0
        %v1657 = vadd.f32 0.0, %v1656
        %v1658 = vpop.f32.mrb[0].mxu0
        %1659 = vmatprep.mubr.f32.mxu0 0.0
        %1660 = vmatmul.mubr.f32.gmra.mrb[0].mxu0 %v1560
        %v1661 = vpop.f32.mrb[0].mxu0
        %v1662 = vadd.f32 0.0, %v1661
        %v1663 = vpop.f32.mrb[0].mxu0
        %1664 = vmatprep.mubr.f32.mxu0 0.0
        %1665 = vmatmul.mubr.f32.gmra.mrb[0].mxu0 %v1563
        %v1666 = vpop.f32.mrb[0].mxu0
        %v1667 = vadd.f32 0.0, %v1666
        %v1668 = vpop.f32.mrb[0].mxu0
        %1669 = vdwg.mxu0
        %1670 = vrot.lane.b32.xlu0 %v939, 88
        %v1671 = vpop.permute.xlu0 %1670
        %1672 = vrot.lane.b32.xlu0 %v944, 88
        %v1673 = vpop.permute.xlu0 %1672
        %1674 = vrot.lane.b32.xlu0 %v949, 88
        %v1675 = vpop.permute.xlu0 %1674
        %1676 = vrot.lane.b32.xlu0 %v954, 88
        %v1677 = vpop.permute.xlu0 %1676
        %1678 = vrot.lane.b32.xlu0 %v959, 88
        %v1679 = vpop.permute.xlu0 %1678
        %1680 = vrot.lane.b32.xlu0 %v964, 88
        %v1681 = vpop.permute.xlu0 %1680
        %1682 = vrot.lane.b32.xlu0 %v969, 88
        %v1683 = vpop.permute.xlu0 %1682
        %1684 = vrot.lane.b32.xlu0 %v974, 88
        %v1685 = vpop.permute.xlu0 %1684
        %v1695 = vsel %vm1340, %v1502, 0
        %v1698 = vsel %vm1340, %v1504, 0
        %v1701 = vsel %vm1340, %v1506, 0
        %v1704 = vsel %vm1340, %v1508, 0
        %v1707 = vsel %vm1340, %v1510, 0
        %v1710 = vsel %vm1340, %v1512, 0
        %v1713 = vsel %vm1340, %v1514, 0
        %v1716 = vsel %vm1340, %v1516, 0
        %1718 = vmatprep.subr.mxu0 0.0
        %1719 = vmatpush1.msra.mxu0 %v1671
        %1720 = vmatprep.subr.mxu0 0.0
        %1721 = vmatpush1.msra.mxu0 %v1673
        %1722 = vmatprep.subr.mxu0 0.0
        %1723 = vmatpush1.msra.mxu0 %v1675
        %1724 = vmatprep.subr.mxu0 0.0
        %1725 = vmatpush1.msra.mxu0 %v1677
        %1726 = vmatprep.subr.mxu0 0.0
        %1727 = vmatpush1.msra.mxu0 %v1679
        %1728 = vmatprep.subr.mxu0 0.0
        %1729 = vmatpush1.msra.mxu0 %v1681
        %1730 = vmatprep.subr.mxu0 0.0
        %1731 = vmatpush1.msra.mxu0 %v1683
        %1732 = vmatprep.subr.mxu0 0.0
        %1733 = vmatpush1.msra.mxu0 %v1685
        %1734 = vmatprep.subr.mxu0 0.0
        %1735 = vmatpush1.msra.mxu0 0.0
        %1736 = vmatprep.subr.mxu0 0.0
        %1737 = vmatpush1.msra.mxu0 0.0
        %1738 = vmatprep.subr.mxu0 0.0
        %1739 = vmatpush1.msra.mxu0 0.0
        %1740 = vmatprep.subr.mxu0 0.0
        %1741 = vmatpush1.msra.mxu0 0.0
        %1742 = vmatprep.subr.mxu0 0.0
        %1743 = vmatpush1.msra.mxu0 0.0
        %1744 = vmatprep.subr.mxu0 0.0
        %1745 = vmatpush1.msra.mxu0 0.0
        %1746 = vmatprep.subr.mxu0 0.0
        %1747 = vmatpush1.msra.mxu0 0.0
        %1748 = vmatprep.subr.mxu0 0.0
        %1749 = vmatpush1.msra.mxu0 0.0
        %1750 = vmatprep.subr.mxu0 0.0
        %1751 = vmatpush1.msra.mxu0 0.0
        %1752 = vmatprep.subr.mxu0 0.0
        %1753 = vmatpush1.msra.mxu0 0.0
        %1754 = vmatprep.subr.mxu0 0.0
        %1755 = vmatpush1.msra.mxu0 0.0
        %1756 = vmatprep.subr.mxu0 0.0
        %1757 = vmatpush1.msra.mxu0 0.0
        %1758 = vmatprep.subr.mxu0 0.0
        %1759 = vmatpush1.msra.mxu0 0.0
        %1760 = vmatprep.subr.mxu0 0.0
        %1761 = vmatpush1.msra.mxu0 0.0
        %1762 = vmatprep.subr.mxu0 0.0
        %1763 = vmatpush1.msra.mxu0 0.0
        %1764 = vmatprep.subr.mxu0 0.0
        %1765 = vmatpush1.msra.mxu0 0.0
        %1766 = vmatprep.subr.mxu0 0.0
        %1767 = vmatpush1.msra.mxu0 0.0
        %1768 = vmatprep.subr.mxu0 0.0
        %1769 = vmatpush1.msra.mxu0 0.0
        %1770 = vmatprep.subr.mxu0 0.0
        %1771 = vmatpush1.msra.mxu0 0.0
        %1772 = vmatprep.subr.mxu0 0.0
        %1773 = vmatpush1.msra.mxu0 0.0
        %1774 = vmatprep.subr.mxu0 0.0
        %1775 = vmatpush1.msra.mxu0 0.0
        %1776 = vmatprep.subr.mxu0 0.0
        %1777 = vmatpush1.msra.mxu0 0.0
        %1778 = vmatprep.subr.mxu0 0.0
        %1779 = vmatpush1.msra.mxu0 0.0
        %1780 = vmatprep.subr.mxu0 0.0
        %1781 = vmatpush1.msra.mxu0 0.0
        %1782 = vmatprep.mubr.f32.mxu0 0.0
        %1783 = vmatmul.mubr.f32.gmra.mrb[0].mxu0 %v1695
        %v1784 = vpop.f32.mrb[0].mxu0
        %v1785 = vadd.f32 0.0, %v1784
        %v1786 = vpop.f32.mrb[0].mxu0
        %1787 = vmatprep.mubr.f32.mxu0 0.0
        %1788 = vmatmul.mubr.f32.gmra.mrb[0].mxu0 %v1698
        %v1789 = vpop.f32.mrb[0].mxu0
        %v1790 = vadd.f32 0.0, %v1789
        %v1791 = vpop.f32.mrb[0].mxu0
        %1792 = vmatprep.mubr.f32.mxu0 0.0
        %1793 = vmatmul.mubr.f32.gmra.mrb[0].mxu0 %v1701
        %v1794 = vpop.f32.mrb[0].mxu0
        %v1795 = vadd.f32 0.0, %v1794
        %v1796 = vpop.f32.mrb[0].mxu0
        %1797 = vmatprep.mubr.f32.mxu0 0.0
        %1798 = vmatmul.mubr.f32.gmra.mrb[0].mxu0 %v1704
        %v1799 = vpop.f32.mrb[0].mxu0
        %v1800 = vadd.f32 0.0, %v1799
        %v1801 = vpop.f32.mrb[0].mxu0
        %1802 = vmatprep.mubr.f32.mxu0 0.0
        %1803 = vmatmul.mubr.f32.gmra.mrb[0].mxu0 %v1707
        %v1804 = vpop.f32.mrb[0].mxu0
        %v1805 = vadd.f32 0.0, %v1804
        %v1806 = vpop.f32.mrb[0].mxu0
        %1807 = vmatprep.mubr.f32.mxu0 0.0
        %1808 = vmatmul.mubr.f32.gmra.mrb[0].mxu0 %v1710
        %v1809 = vpop.f32.mrb[0].mxu0
        %v1810 = vadd.f32 0.0, %v1809
        %v1811 = vpop.f32.mrb[0].mxu0
        %1812 = vmatprep.mubr.f32.mxu0 0.0
        %1813 = vmatmul.mubr.f32.gmra.mrb[0].mxu0 %v1713
        %v1814 = vpop.f32.mrb[0].mxu0
        %v1815 = vadd.f32 0.0, %v1814
        %v1816 = vpop.f32.mrb[0].mxu0
        %1817 = vmatprep.mubr.f32.mxu0 0.0
        %1818 = vmatmul.mubr.f32.gmra.mrb[0].mxu0 %v1716
        %v1819 = vpop.f32.mrb[0].mxu0
        %v1820 = vadd.f32 0.0, %v1819
        %v1821 = vpop.f32.mrb[0].mxu0
        %1822 = vdwg.mxu0
        %1831 = vrot.lane.b32.xlu0 %v1785, 8
        %v1832 = vpop.permute.xlu0 %1831
        %1833 = vrot.lane.b32.xlu0 %v1790, 8
        %v1834 = vpop.permute.xlu0 %1833
        %1835 = vrot.lane.b32.xlu0 %v1795, 8
        %v1836 = vpop.permute.xlu0 %1835
        %1837 = vrot.lane.b32.xlu0 %v1800, 8
        %v1838 = vpop.permute.xlu0 %1837
        %1839 = vrot.lane.b32.xlu0 %v1805, 8
        %v1840 = vpop.permute.xlu0 %1839
        %1841 = vrot.lane.b32.xlu0 %v1810, 8
        %v1842 = vpop.permute.xlu0 %1841
        %1843 = vrot.lane.b32.xlu0 %v1815, 8
        %v1844 = vpop.permute.xlu0 %1843
        %1845 = vrot.lane.b32.xlu0 %v1820, 8
        %v1846 = vpop.permute.xlu0 %1845
        %v1855 = vsel %vm1001, %v1632, %v1832
        %v1856 = vsel %vm1001, %v1637, %v1834
        %v1857 = vsel %vm1001, %v1642, %v1836
        %v1858 = vsel %vm1001, %v1647, %v1838
        %v1859 = vsel %vm1001, %v1652, %v1840
        %v1860 = vsel %vm1001, %v1657, %v1842
        %v1861 = vsel %vm1001, %v1662, %v1844
        %v1862 = vsel %vm1001, %v1667, %v1846
        %v1864 = vsel %vm564, %v1855, 0
        %v1867 = vsel %vm564, %v1856, 0
        %v1870 = vsel %vm564, %v1857, 0
        %v1873 = vsel %vm564, %v1858, 0
        %v1876 = vsel %vm564, %v1859, 0
        %v1879 = vsel %vm564, %v1860, 0
        %v1882 = vsel %vm564, %v1861, 0
        %v1885 = vsel %vm564, %v1862, 0
        %1887 = vmatprep.subr.mxu0 0.0
        %1888 = vmatpush1.msra.mxu0 %v696
        %1889 = vmatprep.subr.mxu0 0.0
        %1890 = vmatpush1.msra.mxu0 %v697
        %1891 = vmatprep.subr.mxu0 0.0
        %1892 = vmatpush1.msra.mxu0 0.0
        %1893 = vmatprep.subr.mxu0 0.0
        %1894 = vmatpush1.msra.mxu0 0.0
        %1895 = vmatprep.subr.mxu0 0.0
        %1896 = vmatpush1.msra.mxu0 0.0
        %1897 = vmatprep.subr.mxu0 0.0
        %1898 = vmatpush1.msra.mxu0 0.0
        %1899 = vmatprep.subr.mxu0 0.0
        %1900 = vmatpush1.msra.mxu0 0.0
        %1901 = vmatprep.subr.mxu0 0.0
        %1902 = vmatpush1.msra.mxu0 0.0
        %1903 = vmatprep.subr.mxu0 0.0
        %1904 = vmatpush1.msra.mxu0 0.0
        %1905 = vmatprep.subr.mxu0 0.0
        %1906 = vmatpush1.msra.mxu0 0.0
        %1907 = vmatprep.subr.mxu0 0.0
        %1908 = vmatpush1.msra.mxu0 0.0
        %1909 = vmatprep.subr.mxu0 0.0
        %1910 = vmatpush1.msra.mxu0 0.0
        %1911 = vmatprep.subr.mxu0 0.0
        %1912 = vmatpush1.msra.mxu0 0.0
        %1913 = vmatprep.subr.mxu0 0.0
        %1914 = vmatpush1.msra.mxu0 0.0
        %1915 = vmatprep.subr.mxu0 0.0
        %1916 = vmatpush1.msra.mxu0 0.0
        %1917 = vmatprep.subr.mxu0 0.0
        %1918 = vmatpush1.msra.mxu0 0.0
        %1919 = vmatprep.subr.mxu0 0.0
        %1920 = vmatpush1.msra.mxu0 0.0
        %1921 = vmatprep.subr.mxu0 0.0
        %1922 = vmatpush1.msra.mxu0 0.0
        %1923 = vmatprep.subr.mxu0 0.0
        %1924 = vmatpush1.msra.mxu0 0.0
        %1925 = vmatprep.subr.mxu0 0.0
        %1926 = vmatpush1.msra.mxu0 0.0
        %1927 = vmatprep.subr.mxu0 0.0
        %1928 = vmatpush1.msra.mxu0 0.0
        %1929 = vmatprep.subr.mxu0 0.0
        %1930 = vmatpush1.msra.mxu0 0.0
        %1931 = vmatprep.subr.mxu0 0.0
        %1932 = vmatpush1.msra.mxu0 0.0
        %1933 = vmatprep.subr.mxu0 0.0
        %1934 = vmatpush1.msra.mxu0 0.0
        %1935 = vmatprep.subr.mxu0 0.0
        %1936 = vmatpush1.msra.mxu0 0.0
        %1937 = vmatprep.subr.mxu0 0.0
        %1938 = vmatpush1.msra.mxu0 0.0
        %1939 = vmatprep.subr.mxu0 0.0
        %1940 = vmatpush1.msra.mxu0 0.0
        %1941 = vmatprep.subr.mxu0 0.0
        %1942 = vmatpush1.msra.mxu0 0.0
        %1943 = vmatprep.subr.mxu0 0.0
        %1944 = vmatpush1.msra.mxu0 0.0
        %1945 = vmatprep.subr.mxu0 0.0
        %1946 = vmatpush1.msra.mxu0 0.0
        %1947 = vmatprep.subr.mxu0 0.0
        %1948 = vmatpush1.msra.mxu0 0.0
        %1949 = vmatprep.subr.mxu0 0.0
        %1950 = vmatpush1.msra.mxu0 0.0
        %1951 = vmatprep.mubr.f32.mxu0 0.0
        %1952 = vmatmul.mubr.f32.gmra.mrb[0].mxu0 %v1864
        %v1953 = vpop.f32.mrb[0].mxu0
        %v1954 = vadd.f32 0.0, %v1953
        %v1955 = vpop.f32.mrb[0].mxu0
        %1956 = vmatprep.mubr.f32.mxu0 0.0
        %1957 = vmatmul.mubr.f32.gmra.mrb[0].mxu0 %v1867
        %v1958 = vpop.f32.mrb[0].mxu0
        %v1959 = vadd.f32 0.0, %v1958
        %v1960 = vpop.f32.mrb[0].mxu0
        %1961 = vmatprep.mubr.f32.mxu0 0.0
        %1962 = vmatmul.mubr.f32.gmra.mrb[0].mxu0 %v1870
        %v1963 = vpop.f32.mrb[0].mxu0
        %v1964 = vadd.f32 0.0, %v1963
        %v1965 = vpop.f32.mrb[0].mxu0
        %1966 = vmatprep.mubr.f32.mxu0 0.0
        %1967 = vmatmul.mubr.f32.gmra.mrb[0].mxu0 %v1873
        %v1968 = vpop.f32.mrb[0].mxu0
        %v1969 = vadd.f32 0.0, %v1968
        %v1970 = vpop.f32.mrb[0].mxu0
        %1971 = vmatprep.mubr.f32.mxu0 0.0
        %1972 = vmatmul.mubr.f32.gmra.mrb[0].mxu0 %v1876
        %v1973 = vpop.f32.mrb[0].mxu0
        %v1974 = vadd.f32 0.0, %v1973
        %v1975 = vpop.f32.mrb[0].mxu0
        %1976 = vmatprep.mubr.f32.mxu0 0.0
        %1977 = vmatmul.mubr.f32.gmra.mrb[0].mxu0 %v1879
        %v1978 = vpop.f32.mrb[0].mxu0
        %v1979 = vadd.f32 0.0, %v1978
        %v1980 = vpop.f32.mrb[0].mxu0
        %1981 = vmatprep.mubr.f32.mxu0 0.0
        %1982 = vmatmul.mubr.f32.gmra.mrb[0].mxu0 %v1882
        %v1983 = vpop.f32.mrb[0].mxu0
        %v1984 = vadd.f32 0.0, %v1983
        %v1985 = vpop.f32.mrb[0].mxu0
        %1986 = vmatprep.mubr.f32.mxu0 0.0
        %1987 = vmatmul.mubr.f32.gmra.mrb[0].mxu0 %v1885
        %v1988 = vpop.f32.mrb[0].mxu0
        %v1989 = vadd.f32 0.0, %v1988
        %v1990 = vpop.f32.mrb[0].mxu0
        %1991 = vdwg.mxu0
        %v1992 = vadd.f32 %v686, %v1954
        %v1993 = vadd.f32 %v687, %v1959
        %v1994 = vadd.f32 %v688, %v1964
        %v1995 = vadd.f32 %v689, %v1969
        %v1996 = vadd.f32 %v690, %v1974
        %v1997 = vadd.f32 %v691, %v1979
        %v1998 = vadd.f32 %v692, %v1984
        %v1999 = vadd.f32 %v693, %v1989
        %v2000 = vlaneseq
        %v2001 = vshrl.u32 %v2000, 7
        %v2002 = vsub.s32 0, %v2001
        %v2003 = vrot.slane %v711, %v2002
        %v2004 = vadd.f32 %v1992, %v2003
        %v2005 = vadd.f32 %v1993, %v2003
        %v2006 = vadd.f32 %v1994, %v2003
        %v2007 = vadd.f32 %v1995, %v2003
        %v2008 = vadd.f32 %v1996, %v2003
        %v2009 = vadd.f32 %v1997, %v2003
        %v2010 = vadd.f32 %v1998, %v2003
        %v2011 = vadd.f32 %v1999, %v2003
        %v2012 = vsel %vm564, %v2004, 0.0
        %2013 = vadd.xlane.f32.xlu0 %v2012
        %v2014 = vpop.xlane.xlu0 %2013
        %v2015 = vsel %vm564, %v2005, 0.0
        %2016 = vadd.xlane.f32.xlu0 %v2015
        %v2017 = vpop.xlane.xlu0 %2016
        %v2018 = vsel %vm564, %v2006, 0.0
        %2019 = vadd.xlane.f32.xlu0 %v2018
        %v2020 = vpop.xlane.xlu0 %2019
        %v2021 = vsel %vm564, %v2007, 0.0
        %2022 = vadd.xlane.f32.xlu0 %v2021
        %v2023 = vpop.xlane.xlu0 %2022
        %v2024 = vsel %vm564, %v2008, 0.0
        %2025 = vadd.xlane.f32.xlu0 %v2024
        %v2026 = vpop.xlane.xlu0 %2025
        %v2027 = vsel %vm564, %v2009, 0.0
        %2028 = vadd.xlane.f32.xlu0 %v2027
        %v2029 = vpop.xlane.xlu0 %2028
        %v2030 = vsel %vm564, %v2010, 0.0
        %2031 = vadd.xlane.f32.xlu0 %v2030
        %v2032 = vpop.xlane.xlu0 %2031
        %v2033 = vsel %vm564, %v2011, 0.0
        %2034 = vadd.xlane.f32.xlu0 %v2033
        %v2035 = vpop.xlane.xlu0 %2034
        %v2036 = vmul.f32 %v2014, %v589
        %v2037 = vmul.f32 %v2017, %v589
        %v2038 = vmul.f32 %v2020, %v589
        %v2039 = vmul.f32 %v2023, %v589
        %v2040 = vmul.f32 %v2026, %v589
        %v2041 = vmul.f32 %v2029, %v589
        %v2042 = vmul.f32 %v2032, %v589
        %v2043 = vmul.f32 %v2035, %v589
        %v2044 = vsub.f32 %v2004, %v2036
        %v2045 = vsub.f32 %v2005, %v2037
        %v2046 = vsub.f32 %v2006, %v2038
        %v2047 = vsub.f32 %v2007, %v2039
        %v2048 = vsub.f32 %v2008, %v2040
        %v2049 = vsub.f32 %v2009, %v2041
        %v2050 = vsub.f32 %v2010, %v2042
        %v2051 = vsub.f32 %v2011, %v2043
        %v2052 = vmul.f32 %v2044, %v2044
        %v2053 = vmul.f32 %v2045, %v2045
        %v2054 = vmul.f32 %v2046, %v2046
        %v2055 = vmul.f32 %v2047, %v2047
        %v2056 = vmul.f32 %v2048, %v2048
        %v2057 = vmul.f32 %v2049, %v2049
        %v2058 = vmul.f32 %v2050, %v2050
        %v2059 = vmul.f32 %v2051, %v2051
        %v2060 = vsel %vm564, %v2052, 0.0
        %2061 = vadd.xlane.f32.xlu0 %v2060
        %v2062 = vpop.xlane.xlu0 %2061
        %v2063 = vsel %vm564, %v2053, 0.0
        %2064 = vadd.xlane.f32.xlu0 %v2063
        %v2065 = vpop.xlane.xlu0 %2064
        %v2066 = vsel %vm564, %v2054, 0.0
        %2067 = vadd.xlane.f32.xlu0 %v2066
        %v2068 = vpop.xlane.xlu0 %2067
        %v2069 = vsel %vm564, %v2055, 0.0
        %2070 = vadd.xlane.f32.xlu0 %v2069
        %v2071 = vpop.xlane.xlu0 %2070
        %v2072 = vsel %vm564, %v2056, 0.0
        %2073 = vadd.xlane.f32.xlu0 %v2072
        %v2074 = vpop.xlane.xlu0 %2073
        %v2075 = vsel %vm564, %v2057, 0.0
        %2076 = vadd.xlane.f32.xlu0 %v2075
        %v2077 = vpop.xlane.xlu0 %2076
        %v2078 = vsel %vm564, %v2058, 0.0
        %2079 = vadd.xlane.f32.xlu0 %v2078
        %v2080 = vpop.xlane.xlu0 %2079
        %v2081 = vsel %vm564, %v2059, 0.0
        %2082 = vadd.xlane.f32.xlu0 %v2081
        %v2083 = vpop.xlane.xlu0 %2082
        %v2084 = vmul.f32 %v2062, %v589
        %v2085 = vmul.f32 %v2065, %v589
        %v2086 = vmul.f32 %v2068, %v589
        %v2087 = vmul.f32 %v2071, %v589
        %v2088 = vmul.f32 %v2074, %v589
        %v2089 = vmul.f32 %v2077, %v589
        %v2090 = vmul.f32 %v2080, %v589
        %v2091 = vmul.f32 %v2083, %v589
        %v2092 = vadd.f32 %v2084, 1e-05
        %v2093 = vadd.f32 %v2085, 1e-05
        %v2094 = vadd.f32 %v2086, 1e-05
        %v2095 = vadd.f32 %v2087, 1e-05
        %v2096 = vadd.f32 %v2088, 1e-05
        %v2097 = vadd.f32 %v2089, 1e-05
        %v2098 = vadd.f32 %v2090, 1e-05
        %v2099 = vadd.f32 %v2091, 1e-05
        %v2100 = vrsqrt.pop %v2092
        %v2101 = vrsqrt.pop %v2093
        %v2102 = vrsqrt.pop %v2094
        %v2103 = vrsqrt.pop %v2095
        %v2104 = vrsqrt.pop %v2096
        %v2105 = vrsqrt.pop %v2097
        %v2106 = vrsqrt.pop %v2098
        %v2107 = vrsqrt.pop %v2099
        %v2108 = vmul.f32 %v2044, %v2100
        %v2109 = vmul.f32 %v2045, %v2101
        %v2110 = vmul.f32 %v2046, %v2102
        %v2111 = vmul.f32 %v2047, %v2103
        %v2112 = vmul.f32 %v2048, %v2104
        %v2113 = vmul.f32 %v2049, %v2105
        %v2114 = vmul.f32 %v2050, %v2106
        %v2115 = vmul.f32 %v2051, %v2107
        %v2116 = vlaneseq
        %v2117 = vshrl.u32 %v2116, 7
        %v2118 = vsub.s32 0, %v2117
        %v2119 = vrot.slane %v712, %v2118
        %v2120 = vmul.f32 %v2108, %v2119
        %v2121 = vmul.f32 %v2109, %v2119
        %v2122 = vmul.f32 %v2110, %v2119
        %v2123 = vmul.f32 %v2111, %v2119
        %v2124 = vmul.f32 %v2112, %v2119
        %v2125 = vmul.f32 %v2113, %v2119
        %v2126 = vmul.f32 %v2114, %v2119
        %v2127 = vmul.f32 %v2115, %v2119
        %v2128 = vlaneseq
        %v2129 = vshrl.u32 %v2128, 7
        %v2130 = vsub.s32 0, %v2129
        %v2131 = vrot.slane %v713, %v2130
        %v2132 = vadd.f32 %v2120, %v2131
        %v2133 = vadd.f32 %v2121, %v2131
        %v2134 = vadd.f32 %v2122, %v2131
        %v2135 = vadd.f32 %v2123, %v2131
        %v2136 = vadd.f32 %v2124, %v2131
        %v2137 = vadd.f32 %v2125, %v2131
        %v2138 = vadd.f32 %v2126, %v2131
        %v2139 = vadd.f32 %v2127, %v2131
        %v2140 = vlaneseq
        %v2141 = vshrl.u32 %v2140, 7
        %v2142 = vsub.s32 0, %v2141
        %v2143 = vrot.slane %v714, %v2142
        %v2145 = vsel %vm564, %v2132, 0
        %v2148 = vsel %vm564, %v2133, 0
        %v2151 = vsel %vm564, %v2134, 0
        %v2154 = vsel %vm564, %v2135, 0
        %v2157 = vsel %vm564, %v2136, 0
        %v2160 = vsel %vm564, %v2137, 0
        %v2163 = vsel %vm564, %v2138, 0
        %v2166 = vsel %vm564, %v2139, 0
        %2168 = vmatprep.subr.mxu0 0.0
        %2169 = vmatpush1.msra.mxu0 %v698
        %2170 = vmatprep.subr.mxu0 0.0
        %2171 = vmatpush1.msra.mxu0 %v699
        %2172 = vmatprep.subr.mxu0 0.0
        %2173 = vmatpush1.msra.mxu0 0.0
        %2174 = vmatprep.subr.mxu0 0.0
        %2175 = vmatpush1.msra.mxu0 0.0
        %2176 = vmatprep.subr.mxu0 0.0
        %2177 = vmatpush1.msra.mxu0 0.0
        %2178 = vmatprep.subr.mxu0 0.0
        %2179 = vmatpush1.msra.mxu0 0.0
        %2180 = vmatprep.subr.mxu0 0.0
        %2181 = vmatpush1.msra.mxu0 0.0
        %2182 = vmatprep.subr.mxu0 0.0
        %2183 = vmatpush1.msra.mxu0 0.0
        %2184 = vmatprep.subr.mxu0 0.0
        %2185 = vmatpush1.msra.mxu0 0.0
        %2186 = vmatprep.subr.mxu0 0.0
        %2187 = vmatpush1.msra.mxu0 0.0
        %2188 = vmatprep.subr.mxu0 0.0
        %2189 = vmatpush1.msra.mxu0 0.0
        %2190 = vmatprep.subr.mxu0 0.0
        %2191 = vmatpush1.msra.mxu0 0.0
        %2192 = vmatprep.subr.mxu0 0.0
        %2193 = vmatpush1.msra.mxu0 0.0
        %2194 = vmatprep.subr.mxu0 0.0
        %2195 = vmatpush1.msra.mxu0 0.0
        %2196 = vmatprep.subr.mxu0 0.0
        %2197 = vmatpush1.msra.mxu0 0.0
        %2198 = vmatprep.subr.mxu0 0.0
        %2199 = vmatpush1.msra.mxu0 0.0
        %2200 = vmatprep.subr.mxu0 0.0
        %2201 = vmatpush1.msra.mxu0 0.0
        %2202 = vmatprep.subr.mxu0 0.0
        %2203 = vmatpush1.msra.mxu0 0.0
        %2204 = vmatprep.subr.mxu0 0.0
        %2205 = vmatpush1.msra.mxu0 0.0
        %2206 = vmatprep.subr.mxu0 0.0
        %2207 = vmatpush1.msra.mxu0 0.0
        %2208 = vmatprep.subr.mxu0 0.0
        %2209 = vmatpush1.msra.mxu0 0.0
        %2210 = vmatprep.subr.mxu0 0.0
        %2211 = vmatpush1.msra.mxu0 0.0
        %2212 = vmatprep.subr.mxu0 0.0
        %2213 = vmatpush1.msra.mxu0 0.0
        %2214 = vmatprep.subr.mxu0 0.0
        %2215 = vmatpush1.msra.mxu0 0.0
        %2216 = vmatprep.subr.mxu0 0.0
        %2217 = vmatpush1.msra.mxu0 0.0
        %2218 = vmatprep.subr.mxu0 0.0
        %2219 = vmatpush1.msra.mxu0 0.0
        %2220 = vmatprep.subr.mxu0 0.0
        %2221 = vmatpush1.msra.mxu0 0.0
        %2222 = vmatprep.subr.mxu0 0.0
        %2223 = vmatpush1.msra.mxu0 0.0
        %2224 = vmatprep.subr.mxu0 0.0
        %2225 = vmatpush1.msra.mxu0 0.0
        %2226 = vmatprep.subr.mxu0 0.0
        %2227 = vmatpush1.msra.mxu0 0.0
        %2228 = vmatprep.subr.mxu0 0.0
        %2229 = vmatpush1.msra.mxu0 0.0
        %2230 = vmatprep.subr.mxu0 0.0
        %2231 = vmatpush1.msra.mxu0 0.0
        %2232 = vmatprep.mubr.f32.mxu0 0.0
        %2233 = vmatmul.mubr.f32.gmra.mrb[0].mxu0 %v2145
        %v2234 = vpop.f32.mrb[0].mxu0
        %v2235 = vadd.f32 %v2143, %v2234
        %v2236 = vpop.f32.mrb[0].mxu0
        %2237 = vmatprep.mubr.f32.mxu0 0.0
        %2238 = vmatmul.mubr.f32.gmra.mrb[0].mxu0 %v2148
        %v2239 = vpop.f32.mrb[0].mxu0
        %v2240 = vadd.f32 %v2143, %v2239
        %v2241 = vpop.f32.mrb[0].mxu0
        %2242 = vmatprep.mubr.f32.mxu0 0.0
        %2243 = vmatmul.mubr.f32.gmra.mrb[0].mxu0 %v2151
        %v2244 = vpop.f32.mrb[0].mxu0
        %v2245 = vadd.f32 %v2143, %v2244
        %v2246 = vpop.f32.mrb[0].mxu0
        %2247 = vmatprep.mubr.f32.mxu0 0.0
        %2248 = vmatmul.mubr.f32.gmra.mrb[0].mxu0 %v2154
        %v2249 = vpop.f32.mrb[0].mxu0
        %v2250 = vadd.f32 %v2143, %v2249
        %v2251 = vpop.f32.mrb[0].mxu0
        %2252 = vmatprep.mubr.f32.mxu0 0.0
        %2253 = vmatmul.mubr.f32.gmra.mrb[0].mxu0 %v2157
        %v2254 = vpop.f32.mrb[0].mxu0
        %v2255 = vadd.f32 %v2143, %v2254
        %v2256 = vpop.f32.mrb[0].mxu0
        %2257 = vmatprep.mubr.f32.mxu0 0.0
        %2258 = vmatmul.mubr.f32.gmra.mrb[0].mxu0 %v2160
        %v2259 = vpop.f32.mrb[0].mxu0
        %v2260 = vadd.f32 %v2143, %v2259
        %v2261 = vpop.f32.mrb[0].mxu0
        %2262 = vmatprep.mubr.f32.mxu0 0.0
        %2263 = vmatmul.mubr.f32.gmra.mrb[0].mxu0 %v2163
        %v2264 = vpop.f32.mrb[0].mxu0
        %v2265 = vadd.f32 %v2143, %v2264
        %v2266 = vpop.f32.mrb[0].mxu0
        %2267 = vmatprep.mubr.f32.mxu0 0.0
        %2268 = vmatmul.mubr.f32.gmra.mrb[0].mxu0 %v2166
        %v2269 = vpop.f32.mrb[0].mxu0
        %v2270 = vadd.f32 %v2143, %v2269
        %v2271 = vpop.f32.mrb[0].mxu0
        %2272 = vdwg.mxu0
        %v2273 = vmul.f32 %v2235, 0.5
        %v2274 = vmul.f32 %v2240, 0.5
        %v2275 = vmul.f32 %v2245, 0.5
        %v2276 = vmul.f32 %v2250, 0.5
        %v2277 = vmul.f32 %v2255, 0.5
        %v2278 = vmul.f32 %v2260, 0.5
        %v2279 = vmul.f32 %v2265, 0.5
        %v2280 = vmul.f32 %v2270, 0.5
        %v2281 = vmul.f32 %v2235, 0.70710677
        %v2282 = vmul.f32 %v2240, 0.70710677
        %v2283 = vmul.f32 %v2245, 0.70710677
        %v2284 = vmul.f32 %v2250, 0.70710677
        %v2285 = vmul.f32 %v2255, 0.70710677
        %v2286 = vmul.f32 %v2260, 0.70710677
        %v2287 = vmul.f32 %v2265, 0.70710677
        %v2288 = vmul.f32 %v2270, 0.70710677
        %v2289 = verf.f32.pop %v2281
        %v2290 = verf.f32.pop %v2282
        %v2291 = verf.f32.pop %v2283
        %v2292 = verf.f32.pop %v2284
        %v2293 = verf.f32.pop %v2285
        %v2294 = verf.f32.pop %v2286
        %v2295 = verf.f32.pop %v2287
        %v2296 = verf.f32.pop %v2288
        %v2297 = vadd.f32 %v2289, 1.0
        %v2298 = vadd.f32 %v2290, 1.0
        %v2299 = vadd.f32 %v2291, 1.0
        %v2300 = vadd.f32 %v2292, 1.0
        %v2301 = vadd.f32 %v2293, 1.0
        %v2302 = vadd.f32 %v2294, 1.0
        %v2303 = vadd.f32 %v2295, 1.0
        %v2304 = vadd.f32 %v2296, 1.0
        %v2305 = vmul.f32 %v2273, %v2297
        %v2306 = vmul.f32 %v2274, %v2298
        %v2307 = vmul.f32 %v2275, %v2299
        %v2308 = vmul.f32 %v2276, %v2300
        %v2309 = vmul.f32 %v2277, %v2301
        %v2310 = vmul.f32 %v2278, %v2302
        %v2311 = vmul.f32 %v2279, %v2303
        %v2312 = vmul.f32 %v2280, %v2304
        %v2314 = vsel %vm1340, %v2305, 0
        %v2317 = vsel %vm1340, %v2306, 0
        %v2320 = vsel %vm1340, %v2307, 0
        %v2323 = vsel %vm1340, %v2308, 0
        %v2326 = vsel %vm1340, %v2309, 0
        %v2329 = vsel %vm1340, %v2310, 0
        %v2332 = vsel %vm1340, %v2311, 0
        %v2335 = vsel %vm1340, %v2312, 0
        %2337 = vmatprep.subr.mxu0 0.0
        %2338 = vmatpush1.msra.mxu0 %v700
        %2339 = vmatprep.subr.mxu0 0.0
        %2340 = vmatpush1.msra.mxu0 %v701
        %2341 = vmatprep.subr.mxu0 0.0
        %2342 = vmatpush1.msra.mxu0 %v702
        %2343 = vmatprep.subr.mxu0 0.0
        %2344 = vmatpush1.msra.mxu0 %v703
        %2345 = vmatprep.subr.mxu0 0.0
        %2346 = vmatpush1.msra.mxu0 %v704
        %2347 = vmatprep.subr.mxu0 0.0
        %2348 = vmatpush1.msra.mxu0 %v705
        %2349 = vmatprep.subr.mxu0 0.0
        %2350 = vmatpush1.msra.mxu0 %v706
        %2351 = vmatprep.subr.mxu0 0.0
        %2352 = vmatpush1.msra.mxu0 %v707
        %2353 = vmatprep.subr.mxu0 0.0
        %2354 = vmatpush1.msra.mxu0 0.0
        %2355 = vmatprep.subr.mxu0 0.0
        %2356 = vmatpush1.msra.mxu0 0.0
        %2357 = vmatprep.subr.mxu0 0.0
        %2358 = vmatpush1.msra.mxu0 0.0
        %2359 = vmatprep.subr.mxu0 0.0
        %2360 = vmatpush1.msra.mxu0 0.0
        %2361 = vmatprep.subr.mxu0 0.0
        %2362 = vmatpush1.msra.mxu0 0.0
        %2363 = vmatprep.subr.mxu0 0.0
        %2364 = vmatpush1.msra.mxu0 0.0
        %2365 = vmatprep.subr.mxu0 0.0
        %2366 = vmatpush1.msra.mxu0 0.0
        %2367 = vmatprep.subr.mxu0 0.0
        %2368 = vmatpush1.msra.mxu0 0.0
        %2369 = vmatprep.subr.mxu0 0.0
        %2370 = vmatpush1.msra.mxu0 0.0
        %2371 = vmatprep.subr.mxu0 0.0
        %2372 = vmatpush1.msra.mxu0 0.0
        %2373 = vmatprep.subr.mxu0 0.0
        %2374 = vmatpush1.msra.mxu0 0.0
        %2375 = vmatprep.subr.mxu0 0.0
        %2376 = vmatpush1.msra.mxu0 0.0
        %2377 = vmatprep.subr.mxu0 0.0
        %2378 = vmatpush1.msra.mxu0 0.0
        %2379 = vmatprep.subr.mxu0 0.0
        %2380 = vmatpush1.msra.mxu0 0.0
        %2381 = vmatprep.subr.mxu0 0.0
        %2382 = vmatpush1.msra.mxu0 0.0
        %2383 = vmatprep.subr.mxu0 0.0
        %2384 = vmatpush1.msra.mxu0 0.0
        %2385 = vmatprep.subr.mxu0 0.0
        %2386 = vmatpush1.msra.mxu0 0.0
        %2387 = vmatprep.subr.mxu0 0.0
        %2388 = vmatpush1.msra.mxu0 0.0
        %2389 = vmatprep.subr.mxu0 0.0
        %2390 = vmatpush1.msra.mxu0 0.0
        %2391 = vmatprep.subr.mxu0 0.0
        %2392 = vmatpush1.msra.mxu0 0.0
        %2393 = vmatprep.subr.mxu0 0.0
        %2394 = vmatpush1.msra.mxu0 0.0
        %2395 = vmatprep.subr.mxu0 0.0
        %2396 = vmatpush1.msra.mxu0 0.0
        %2397 = vmatprep.subr.mxu0 0.0
        %2398 = vmatpush1.msra.mxu0 0.0
        %2399 = vmatprep.subr.mxu0 0.0
        %2400 = vmatpush1.msra.mxu0 0.0
        %2401 = vmatprep.mubr.f32.mxu0 0.0
        %2402 = vmatmul.mubr.f32.gmra.mrb[0].mxu0 %v2314
        %v2403 = vpop.f32.mrb[0].mxu0
        %v2404 = vadd.f32 0.0, %v2403
        %v2405 = vpop.f32.mrb[0].mxu0
        %2406 = vmatprep.mubr.f32.mxu0 0.0
        %2407 = vmatmul.mubr.f32.gmra.mrb[0].mxu0 %v2317
        %v2408 = vpop.f32.mrb[0].mxu0
        %v2409 = vadd.f32 0.0, %v2408
        %v2410 = vpop.f32.mrb[0].mxu0
        %2411 = vmatprep.mubr.f32.mxu0 0.0
        %2412 = vmatmul.mubr.f32.gmra.mrb[0].mxu0 %v2320
        %v2413 = vpop.f32.mrb[0].mxu0
        %v2414 = vadd.f32 0.0, %v2413
        %v2415 = vpop.f32.mrb[0].mxu0
        %2416 = vmatprep.mubr.f32.mxu0 0.0
        %2417 = vmatmul.mubr.f32.gmra.mrb[0].mxu0 %v2323
        %v2418 = vpop.f32.mrb[0].mxu0
        %v2419 = vadd.f32 0.0, %v2418
        %v2420 = vpop.f32.mrb[0].mxu0
        %2421 = vmatprep.mubr.f32.mxu0 0.0
        %2422 = vmatmul.mubr.f32.gmra.mrb[0].mxu0 %v2326
        %v2423 = vpop.f32.mrb[0].mxu0
        %v2424 = vadd.f32 0.0, %v2423
        %v2425 = vpop.f32.mrb[0].mxu0
        %2426 = vmatprep.mubr.f32.mxu0 0.0
        %2427 = vmatmul.mubr.f32.gmra.mrb[0].mxu0 %v2329
        %v2428 = vpop.f32.mrb[0].mxu0
        %v2429 = vadd.f32 0.0, %v2428
        %v2430 = vpop.f32.mrb[0].mxu0
        %2431 = vmatprep.mubr.f32.mxu0 0.0
        %2432 = vmatmul.mubr.f32.gmra.mrb[0].mxu0 %v2332
        %v2433 = vpop.f32.mrb[0].mxu0
        %v2434 = vadd.f32 0.0, %v2433
        %v2435 = vpop.f32.mrb[0].mxu0
        %2436 = vmatprep.mubr.f32.mxu0 0.0
        %2437 = vmatmul.mubr.f32.gmra.mrb[0].mxu0 %v2335
        %v2438 = vpop.f32.mrb[0].mxu0
        %v2439 = vadd.f32 0.0, %v2438
        %v2440 = vpop.f32.mrb[0].mxu0
        %2441 = vdwg.mxu0
        %v2442 = vadd.f32 %v2004, %v2404
        %v2443 = vadd.f32 %v2005, %v2409
        %v2444 = vadd.f32 %v2006, %v2414
        %v2445 = vadd.f32 %v2007, %v2419
        %v2446 = vadd.f32 %v2008, %v2424
        %v2447 = vadd.f32 %v2009, %v2429
        %v2448 = vadd.f32 %v2010, %v2434
        %v2449 = vadd.f32 %v2011, %v2439
        %v2450 = vlaneseq
        %v2451 = vshrl.u32 %v2450, 7
        %v2452 = vsub.s32 0, %v2451
        %v2453 = vrot.slane %v715, %v2452
        %v2454 = vadd.f32 %v2442, %v2453
        %v2455 = vadd.f32 %v2443, %v2453
        %v2456 = vadd.f32 %v2444, %v2453
        %v2457 = vadd.f32 %v2445, %v2453
        %v2458 = vadd.f32 %v2446, %v2453
        %v2459 = vadd.f32 %v2447, %v2453
        %v2460 = vadd.f32 %v2448, %v2453
        %v2461 = vadd.f32 %v2449, %v2453
        %v2462 = vld [vmem:[%s4] sm:$0xff]
        %v2463 = vld [vmem:[%s4 + $0x8] sm:$0xff]
        %v2464 = vld [vmem:[%s4 + $0x10] sm:$0xff]
        %v2465 = vld [vmem:[%s4 + $0x18] sm:$0xff]
        %v2466 = vld [vmem:[%s4 + $0x20] sm:$0xff]
        %v2467 = vld [vmem:[%s4 + $0x28] sm:$0xff]
        %v2468 = vld [vmem:[%s4 + $0x30] sm:$0xff]
        %v2469 = vld [vmem:[%s4 + $0x38] sm:$0xff]
        %v2470 = vld [vmem:[%s4 + $0x40] sm:$0xff]
        %v2471 = vld [vmem:[%s4 + $0x48] sm:$0xff]
        %v2472 = vld [vmem:[%s4 + $0x50] sm:$0xff]
        %v2473 = vld [vmem:[%s4 + $0x58] sm:$0xff]
        %v2474 = vld [vmem:[%s4 + $0x60] sm:$0xff]
        %v2475 = vld [vmem:[%s4 + $0x68] sm:$0xff]
        %v2476 = vld [vmem:[%s4 + $0x70] sm:$0x1]
        %v2477 = vld [vmem:[%s4 + $0x71] sm:$0x1]
        %v2478 = vld [vmem:[%s4 + $0x72] sm:$0x1]
        %v2479 = vld [vmem:[%s4 + $0x73] sm:$0x1]
        %v2480 = vld [vmem:[%s4 + $0x74] sm:$0x1]
        %v2481 = vld [vmem:[%s4 + $0x75] sm:$0x1]
        %v2482 = vld [vmem:[%s4 + $0x76] sm:$0x1]
        %v2483 = vld [vmem:[%s4 + $0x77] sm:$0x1]
        %v2484 = vsel %vm564, %v2454, 0.0
        %2485 = vadd.xlane.f32.xlu0 %v2484
        %v2486 = vpop.xlane.xlu0 %2485
        %v2487 = vsel %vm564, %v2455, 0.0
        %2488 = vadd.xlane.f32.xlu0 %v2487
        %v2489 = vpop.xlane.xlu0 %2488
        %v2490 = vsel %vm564, %v2456, 0.0
        %2491 = vadd.xlane.f32.xlu0 %v2490
        %v2492 = vpop.xlane.xlu0 %2491
        %v2493 = vsel %vm564, %v2457, 0.0
        %2494 = vadd.xlane.f32.xlu0 %v2493
        %v2495 = vpop.xlane.xlu0 %2494
        %v2496 = vsel %vm564, %v2458, 0.0
        %2497 = vadd.xlane.f32.xlu0 %v2496
        %v2498 = vpop.xlane.xlu0 %2497
        %v2499 = vsel %vm564, %v2459, 0.0
        %2500 = vadd.xlane.f32.xlu0 %v2499
        %v2501 = vpop.xlane.xlu0 %2500
        %v2502 = vsel %vm564, %v2460, 0.0
        %2503 = vadd.xlane.f32.xlu0 %v2502
        %v2504 = vpop.xlane.xlu0 %2503
        %v2505 = vsel %vm564, %v2461, 0.0
        %2506 = vadd.xlane.f32.xlu0 %v2505
        %v2507 = vpop.xlane.xlu0 %2506
        %v2508 = vmul.f32 %v2486, %v589
        %v2509 = vmul.f32 %v2489, %v589
        %v2510 = vmul.f32 %v2492, %v589
        %v2511 = vmul.f32 %v2495, %v589
        %v2512 = vmul.f32 %v2498, %v589
        %v2513 = vmul.f32 %v2501, %v589
        %v2514 = vmul.f32 %v2504, %v589
        %v2515 = vmul.f32 %v2507, %v589
        %v2516 = vsub.f32 %v2454, %v2508
        %v2517 = vsub.f32 %v2455, %v2509
        %v2518 = vsub.f32 %v2456, %v2510
        %v2519 = vsub.f32 %v2457, %v2511
        %v2520 = vsub.f32 %v2458, %v2512
        %v2521 = vsub.f32 %v2459, %v2513
        %v2522 = vsub.f32 %v2460, %v2514
        %v2523 = vsub.f32 %v2461, %v2515
        %v2524 = vmul.f32 %v2516, %v2516
        %v2525 = vmul.f32 %v2517, %v2517
        %v2526 = vmul.f32 %v2518, %v2518
        %v2527 = vmul.f32 %v2519, %v2519
        %v2528 = vmul.f32 %v2520, %v2520
        %v2529 = vmul.f32 %v2521, %v2521
        %v2530 = vmul.f32 %v2522, %v2522
        %v2531 = vmul.f32 %v2523, %v2523
        %v2532 = vsel %vm564, %v2524, 0.0
        %2533 = vadd.xlane.f32.xlu0 %v2532
        %v2534 = vpop.xlane.xlu0 %2533
        %v2535 = vsel %vm564, %v2525, 0.0
        %2536 = vadd.xlane.f32.xlu0 %v2535
        %v2537 = vpop.xlane.xlu0 %2536
        %v2538 = vsel %vm564, %v2526, 0.0
        %2539 = vadd.xlane.f32.xlu0 %v2538
        %v2540 = vpop.xlane.xlu0 %2539
        %v2541 = vsel %vm564, %v2527, 0.0
        %2542 = vadd.xlane.f32.xlu0 %v2541
        %v2543 = vpop.xlane.xlu0 %2542
        %v2544 = vsel %vm564, %v2528, 0.0
        %2545 = vadd.xlane.f32.xlu0 %v2544
        %v2546 = vpop.xlane.xlu0 %2545
        %v2547 = vsel %vm564, %v2529, 0.0
        %2548 = vadd.xlane.f32.xlu0 %v2547
        %v2549 = vpop.xlane.xlu0 %2548
        %v2550 = vsel %vm564, %v2530, 0.0
        %2551 = vadd.xlane.f32.xlu0 %v2550
        %v2552 = vpop.xlane.xlu0 %2551
        %v2553 = vsel %vm564, %v2531, 0.0
        %2554 = vadd.xlane.f32.xlu0 %v2553
        %v2555 = vpop.xlane.xlu0 %2554
        %v2556 = vmul.f32 %v2534, %v589
        %v2557 = vmul.f32 %v2537, %v589
        %v2558 = vmul.f32 %v2540, %v589
        %v2559 = vmul.f32 %v2543, %v589
        %v2560 = vmul.f32 %v2546, %v589
        %v2561 = vmul.f32 %v2549, %v589
        %v2562 = vmul.f32 %v2552, %v589
        %v2563 = vmul.f32 %v2555, %v589
        %v2564 = vadd.f32 %v2556, 1e-05
        %v2565 = vadd.f32 %v2557, 1e-05
        %v2566 = vadd.f32 %v2558, 1e-05
        %v2567 = vadd.f32 %v2559, 1e-05
        %v2568 = vadd.f32 %v2560, 1e-05
        %v2569 = vadd.f32 %v2561, 1e-05
        %v2570 = vadd.f32 %v2562, 1e-05
        %v2571 = vadd.f32 %v2563, 1e-05
        %v2572 = vrsqrt.pop %v2564
        %v2573 = vrsqrt.pop %v2565
        %v2574 = vrsqrt.pop %v2566
        %v2575 = vrsqrt.pop %v2567
        %v2576 = vrsqrt.pop %v2568
        %v2577 = vrsqrt.pop %v2569
        %v2578 = vrsqrt.pop %v2570
        %v2579 = vrsqrt.pop %v2571
        %v2580 = vmul.f32 %v2516, %v2572
        %v2581 = vmul.f32 %v2517, %v2573
        %v2582 = vmul.f32 %v2518, %v2574
        %v2583 = vmul.f32 %v2519, %v2575
        %v2584 = vmul.f32 %v2520, %v2576
        %v2585 = vmul.f32 %v2521, %v2577
        %v2586 = vmul.f32 %v2522, %v2578
        %v2587 = vmul.f32 %v2523, %v2579
        %v2588 = vlaneseq
        %v2589 = vshrl.u32 %v2588, 7
        %v2590 = vsub.s32 0, %v2589
        %v2591 = vrot.slane %v2476, %v2590
        %v2592 = vmul.f32 %v2580, %v2591
        %v2593 = vmul.f32 %v2581, %v2591
        %v2594 = vmul.f32 %v2582, %v2591
        %v2595 = vmul.f32 %v2583, %v2591
        %v2596 = vmul.f32 %v2584, %v2591
        %v2597 = vmul.f32 %v2585, %v2591
        %v2598 = vmul.f32 %v2586, %v2591
        %v2599 = vmul.f32 %v2587, %v2591
        %v2600 = vlaneseq
        %v2601 = vshrl.u32 %v2600, 7
        %v2602 = vsub.s32 0, %v2601
        %v2603 = vrot.slane %v2477, %v2602
        %v2604 = vadd.f32 %v2592, %v2603
        %v2605 = vadd.f32 %v2593, %v2603
        %v2606 = vadd.f32 %v2594, %v2603
        %v2607 = vadd.f32 %v2595, %v2603
        %v2608 = vadd.f32 %v2596, %v2603
        %v2609 = vadd.f32 %v2597, %v2603
        %v2610 = vadd.f32 %v2598, %v2603
        %v2611 = vadd.f32 %v2599, %v2603
        %v2612 = vlaneseq
        %v2613 = vshrl.u32 %v2612, 7
        %v2614 = vsub.s32 0, %v2613
        %v2615 = vrot.slane %v2478, %v2614
        %v2617 = vsel %vm564, %v2604, 0
        %v2620 = vsel %vm564, %v2605, 0
        %v2623 = vsel %vm564, %v2606, 0
        %v2626 = vsel %vm564, %v2607, 0
        %v2629 = vsel %vm564, %v2608, 0
        %v2632 = vsel %vm564, %v2609, 0
        %v2635 = vsel %vm564, %v2610, 0
        %v2638 = vsel %vm564, %v2611, 0
        %2640 = vmatprep.subr.mxu0 0.0
        %2641 = vmatpush1.msra.mxu0 %v2462
        %2642 = vmatprep.subr.mxu0 0.0
        %2643 = vmatpush1.msra.mxu0 %v2463
        %2644 = vmatprep.subr.mxu0 0.0
        %2645 = vmatpush1.msra.mxu0 0.0
        %2646 = vmatprep.subr.mxu0 0.0
        %2647 = vmatpush1.msra.mxu0 0.0
        %2648 = vmatprep.subr.mxu0 0.0
        %2649 = vmatpush1.msra.mxu0 0.0
        %2650 = vmatprep.subr.mxu0 0.0
        %2651 = vmatpush1.msra.mxu0 0.0
        %2652 = vmatprep.subr.mxu0 0.0
        %2653 = vmatpush1.msra.mxu0 0.0
        %2654 = vmatprep.subr.mxu0 0.0
        %2655 = vmatpush1.msra.mxu0 0.0
        %2656 = vmatprep.subr.mxu0 0.0
        %2657 = vmatpush1.msra.mxu0 0.0
        %2658 = vmatprep.subr.mxu0 0.0
        %2659 = vmatpush1.msra.mxu0 0.0
        %2660 = vmatprep.subr.mxu0 0.0
        %2661 = vmatpush1.msra.mxu0 0.0
        %2662 = vmatprep.subr.mxu0 0.0
        %2663 = vmatpush1.msra.mxu0 0.0
        %2664 = vmatprep.subr.mxu0 0.0
        %2665 = vmatpush1.msra.mxu0 0.0
        %2666 = vmatprep.subr.mxu0 0.0
        %2667 = vmatpush1.msra.mxu0 0.0
        %2668 = vmatprep.subr.mxu0 0.0
        %2669 = vmatpush1.msra.mxu0 0.0
        %2670 = vmatprep.subr.mxu0 0.0
        %2671 = vmatpush1.msra.mxu0 0.0
        %2672 = vmatprep.subr.mxu0 0.0
        %2673 = vmatpush1.msra.mxu0 0.0
        %2674 = vmatprep.subr.mxu0 0.0
        %2675 = vmatpush1.msra.mxu0 0.0
        %2676 = vmatprep.subr.mxu0 0.0
        %2677 = vmatpush1.msra.mxu0 0.0
        %2678 = vmatprep.subr.mxu0 0.0
        %2679 = vmatpush1.msra.mxu0 0.0
        %2680 = vmatprep.subr.mxu0 0.0
        %2681 = vmatpush1.msra.mxu0 0.0
        %2682 = vmatprep.subr.mxu0 0.0
        %2683 = vmatpush1.msra.mxu0 0.0
        %2684 = vmatprep.subr.mxu0 0.0
        %2685 = vmatpush1.msra.mxu0 0.0
        %2686 = vmatprep.subr.mxu0 0.0
        %2687 = vmatpush1.msra.mxu0 0.0
        %2688 = vmatprep.subr.mxu0 0.0
        %2689 = vmatpush1.msra.mxu0 0.0
        %2690 = vmatprep.subr.mxu0 0.0
        %2691 = vmatpush1.msra.mxu0 0.0
        %2692 = vmatprep.subr.mxu0 0.0
        %2693 = vmatpush1.msra.mxu0 0.0
        %2694 = vmatprep.subr.mxu0 0.0
        %2695 = vmatpush1.msra.mxu0 0.0
        %2696 = vmatprep.subr.mxu0 0.0
        %2697 = vmatpush1.msra.mxu0 0.0
        %2698 = vmatprep.subr.mxu0 0.0
        %2699 = vmatpush1.msra.mxu0 0.0
        %2700 = vmatprep.subr.mxu0 0.0
        %2701 = vmatpush1.msra.mxu0 0.0
        %2702 = vmatprep.subr.mxu0 0.0
        %2703 = vmatpush1.msra.mxu0 0.0
        %2704 = vmatprep.mubr.f32.mxu0 0.0
        %2705 = vmatmul.mubr.f32.gmra.mrb[0].mxu0 %v2617
        %v2706 = vpop.f32.mrb[0].mxu0
        %v2707 = vadd.f32 %v2615, %v2706
        %v2708 = vpop.f32.mrb[0].mxu0
        %2709 = vmatprep.mubr.f32.mxu0 0.0
        %2710 = vmatmul.mubr.f32.gmra.mrb[0].mxu0 %v2620
        %v2711 = vpop.f32.mrb[0].mxu0
        %v2712 = vadd.f32 %v2615, %v2711
        %v2713 = vpop.f32.mrb[0].mxu0
        %2714 = vmatprep.mubr.f32.mxu0 0.0
        %2715 = vmatmul.mubr.f32.gmra.mrb[0].mxu0 %v2623
        %v2716 = vpop.f32.mrb[0].mxu0
        %v2717 = vadd.f32 %v2615, %v2716
        %v2718 = vpop.f32.mrb[0].mxu0
        %2719 = vmatprep.mubr.f32.mxu0 0.0
        %2720 = vmatmul.mubr.f32.gmra.mrb[0].mxu0 %v2626
        %v2721 = vpop.f32.mrb[0].mxu0
        %v2722 = vadd.f32 %v2615, %v2721
        %v2723 = vpop.f32.mrb[0].mxu0
        %2724 = vmatprep.mubr.f32.mxu0 0.0
        %2725 = vmatmul.mubr.f32.gmra.mrb[0].mxu0 %v2629
        %v2726 = vpop.f32.mrb[0].mxu0
        %v2727 = vadd.f32 %v2615, %v2726
        %v2728 = vpop.f32.mrb[0].mxu0
        %2729 = vmatprep.mubr.f32.mxu0 0.0
        %2730 = vmatmul.mubr.f32.gmra.mrb[0].mxu0 %v2632
        %v2731 = vpop.f32.mrb[0].mxu0
        %v2732 = vadd.f32 %v2615, %v2731
        %v2733 = vpop.f32.mrb[0].mxu0
        %2734 = vmatprep.mubr.f32.mxu0 0.0
        %2735 = vmatmul.mubr.f32.gmra.mrb[0].mxu0 %v2635
        %v2736 = vpop.f32.mrb[0].mxu0
        %v2737 = vadd.f32 %v2615, %v2736
        %v2738 = vpop.f32.mrb[0].mxu0
        %2739 = vmatprep.mubr.f32.mxu0 0.0
        %2740 = vmatmul.mubr.f32.gmra.mrb[0].mxu0 %v2638
        %v2741 = vpop.f32.mrb[0].mxu0
        %v2742 = vadd.f32 %v2615, %v2741
        %v2743 = vpop.f32.mrb[0].mxu0
        %2744 = vdwg.mxu0
        %2753 = vrot.lane.b32.xlu0 %v2707, 112
        %v2754 = vpop.permute.xlu0 %2753
        %2755 = vrot.lane.b32.xlu0 %v2712, 112
        %v2756 = vpop.permute.xlu0 %2755
        %2757 = vrot.lane.b32.xlu0 %v2717, 112
        %v2758 = vpop.permute.xlu0 %2757
        %2759 = vrot.lane.b32.xlu0 %v2722, 112
        %v2760 = vpop.permute.xlu0 %2759
        %2761 = vrot.lane.b32.xlu0 %v2727, 112
        %v2762 = vpop.permute.xlu0 %2761
        %2763 = vrot.lane.b32.xlu0 %v2732, 112
        %v2764 = vpop.permute.xlu0 %2763
        %2765 = vrot.lane.b32.xlu0 %v2737, 112
        %v2766 = vpop.permute.xlu0 %2765
        %2767 = vrot.lane.b32.xlu0 %v2742, 112
        %v2768 = vpop.permute.xlu0 %2767
        %v2769 = vsel %vm1001, %v2707, 0
        %v2771 = vsel %vm1001, %v2712, 0
        %v2773 = vsel %vm1001, %v2717, 0
        %v2775 = vsel %vm1001, %v2722, 0
        %v2777 = vsel %vm1001, %v2727, 0
        %v2779 = vsel %vm1001, %v2732, 0
        %v2781 = vsel %vm1001, %v2737, 0
        %v2783 = vsel %vm1001, %v2742, 0
        %v2785 = vsel %vm1001, %v2754, 0
        %v2787 = vsel %vm1001, %v2756, 0
        %v2789 = vsel %vm1001, %v2758, 0
        %v2791 = vsel %vm1001, %v2760, 0
        %v2793 = vsel %vm1001, %v2762, 0
        %v2795 = vsel %vm1001, %v2764, 0
        %v2797 = vsel %vm1001, %v2766, 0
        %v2799 = vsel %vm1001, %v2768, 0
        %2801 = vmatprep.subr.mxu0 0.0
        %2802 = vmatpush1.xpose.msra.mxu0 %v2785
        %2803 = vmatprep.subr.mxu0 0.0
        %2804 = vmatpush1.xpose.msra.mxu0 %v2787
        %2805 = vmatprep.subr.mxu0 0.0
        %2806 = vmatpush1.xpose.msra.mxu0 %v2789
        %2807 = vmatprep.subr.mxu0 0.0
        %2808 = vmatpush1.xpose.msra.mxu0 %v2791
        %2809 = vmatprep.subr.mxu0 0.0
        %2810 = vmatpush1.xpose.msra.mxu0 %v2793
        %2811 = vmatprep.subr.mxu0 0.0
        %2812 = vmatpush1.xpose.msra.mxu0 %v2795
        %2813 = vmatprep.subr.mxu0 0.0
        %2814 = vmatpush1.xpose.msra.mxu0 %v2797
        %2815 = vmatprep.subr.mxu0 0.0
        %2816 = vmatpush1.xpose.msra.mxu0 %v2799
        %2817 = vmatprep.subr.mxu0 0.0
        %2818 = vmatpush1.xpose.msra.mxu0 0.0
        %2819 = vmatprep.subr.mxu0 0.0
        %2820 = vmatpush1.xpose.msra.mxu0 0.0
        %2821 = vmatprep.subr.mxu0 0.0
        %2822 = vmatpush1.xpose.msra.mxu0 0.0
        %2823 = vmatprep.subr.mxu0 0.0
        %2824 = vmatpush1.xpose.msra.mxu0 0.0
        %2825 = vmatprep.subr.mxu0 0.0
        %2826 = vmatpush1.xpose.msra.mxu0 0.0
        %2827 = vmatprep.subr.mxu0 0.0
        %2828 = vmatpush1.xpose.msra.mxu0 0.0
        %2829 = vmatprep.subr.mxu0 0.0
        %2830 = vmatpush1.xpose.msra.mxu0 0.0
        %2831 = vmatprep.subr.mxu0 0.0
        %2832 = vmatpush1.xpose.msra.mxu0 0.0
        %2833 = vmatprep.subr.mxu0 0.0
        %2834 = vmatpush1.xpose.msra.mxu0 0.0
        %2835 = vmatprep.subr.mxu0 0.0
        %2836 = vmatpush1.xpose.msra.mxu0 0.0
        %2837 = vmatprep.subr.mxu0 0.0
        %2838 = vmatpush1.xpose.msra.mxu0 0.0
        %2839 = vmatprep.subr.mxu0 0.0
        %2840 = vmatpush1.xpose.msra.mxu0 0.0
        %2841 = vmatprep.subr.mxu0 0.0
        %2842 = vmatpush1.xpose.msra.mxu0 0.0
        %2843 = vmatprep.subr.mxu0 0.0
        %2844 = vmatpush1.xpose.msra.mxu0 0.0
        %2845 = vmatprep.subr.mxu0 0.0
        %2846 = vmatpush1.xpose.msra.mxu0 0.0
        %2847 = vmatprep.subr.mxu0 0.0
        %2848 = vmatpush1.xpose.msra.mxu0 0.0
        %2849 = vmatprep.subr.mxu0 0.0
        %2850 = vmatpush1.xpose.msra.mxu0 0.0
        %2851 = vmatprep.subr.mxu0 0.0
        %2852 = vmatpush1.xpose.msra.mxu0 0.0
        %2853 = vmatprep.subr.mxu0 0.0
        %2854 = vmatpush1.xpose.msra.mxu0 0.0
        %2855 = vmatprep.subr.mxu0 0.0
        %2856 = vmatpush1.xpose.msra.mxu0 0.0
        %2857 = vmatprep.subr.mxu0 0.0
        %2858 = vmatpush1.xpose.msra.mxu0 0.0
        %2859 = vmatprep.subr.mxu0 0.0
        %2860 = vmatpush1.xpose.msra.mxu0 0.0
        %2861 = vmatprep.subr.mxu0 0.0
        %2862 = vmatpush1.xpose.msra.mxu0 0.0
        %2863 = vmatprep.subr.mxu0 0.0
        %2864 = vmatpush1.xpose.msra.mxu0 0.0
        %2865 = vmatprep.mubr.f32.mxu0 0.0
        %2866 = vmatmul.mubr.f32.gmra.mrb[0].mxu0 %v2769
        %v2867 = vpop.f32.mrb[0].mxu0
        %v2868 = vadd.f32 0.0, %v2867
        %v2869 = vpop.f32.mrb[0].mxu0
        %2870 = vmatprep.mubr.f32.mxu0 0.0
        %2871 = vmatmul.mubr.f32.gmra.mrb[0].mxu0 %v2771
        %v2872 = vpop.f32.mrb[0].mxu0
        %v2873 = vadd.f32 0.0, %v2872
        %v2874 = vpop.f32.mrb[0].mxu0
        %2875 = vmatprep.mubr.f32.mxu0 0.0
        %2876 = vmatmul.mubr.f32.gmra.mrb[0].mxu0 %v2773
        %v2877 = vpop.f32.mrb[0].mxu0
        %v2878 = vadd.f32 0.0, %v2877
        %v2879 = vpop.f32.mrb[0].mxu0
        %2880 = vmatprep.mubr.f32.mxu0 0.0
        %2881 = vmatmul.mubr.f32.gmra.mrb[0].mxu0 %v2775
        %v2882 = vpop.f32.mrb[0].mxu0
        %v2883 = vadd.f32 0.0, %v2882
        %v2884 = vpop.f32.mrb[0].mxu0
        %2885 = vmatprep.mubr.f32.mxu0 0.0
        %2886 = vmatmul.mubr.f32.gmra.mrb[0].mxu0 %v2777
        %v2887 = vpop.f32.mrb[0].mxu0
        %v2888 = vadd.f32 0.0, %v2887
        %v2889 = vpop.f32.mrb[0].mxu0
        %2890 = vmatprep.mubr.f32.mxu0 0.0
        %2891 = vmatmul.mubr.f32.gmra.mrb[0].mxu0 %v2779
        %v2892 = vpop.f32.mrb[0].mxu0
        %v2893 = vadd.f32 0.0, %v2892
        %v2894 = vpop.f32.mrb[0].mxu0
        %2895 = vmatprep.mubr.f32.mxu0 0.0
        %2896 = vmatmul.mubr.f32.gmra.mrb[0].mxu0 %v2781
        %v2897 = vpop.f32.mrb[0].mxu0
        %v2898 = vadd.f32 0.0, %v2897
        %v2899 = vpop.f32.mrb[0].mxu0
        %2900 = vmatprep.mubr.f32.mxu0 0.0
        %2901 = vmatmul.mubr.f32.gmra.mrb[0].mxu0 %v2783
        %v2902 = vpop.f32.mrb[0].mxu0
        %v2903 = vadd.f32 0.0, %v2902
        %v2904 = vpop.f32.mrb[0].mxu0
        %2905 = vdwg.mxu0
        %2906 = vrot.lane.b32.xlu0 %v2707, 120
        %v2907 = vpop.permute.xlu0 %2906
        %2908 = vrot.lane.b32.xlu0 %v2712, 120
        %v2909 = vpop.permute.xlu0 %2908
        %2910 = vrot.lane.b32.xlu0 %v2717, 120
        %v2911 = vpop.permute.xlu0 %2910
        %2912 = vrot.lane.b32.xlu0 %v2722, 120
        %v2913 = vpop.permute.xlu0 %2912
        %2914 = vrot.lane.b32.xlu0 %v2727, 120
        %v2915 = vpop.permute.xlu0 %2914
        %2916 = vrot.lane.b32.xlu0 %v2732, 120
        %v2917 = vpop.permute.xlu0 %2916
        %2918 = vrot.lane.b32.xlu0 %v2737, 120
        %v2919 = vpop.permute.xlu0 %2918
        %2920 = vrot.lane.b32.xlu0 %v2742, 120
        %v2921 = vpop.permute.xlu0 %2920
        %2922 = vrot.lane.b32.xlu0 %v2707, 104
        %v2923 = vpop.permute.xlu0 %2922
        %2924 = vrot.lane.b32.xlu0 %v2712, 104
        %v2925 = vpop.permute.xlu0 %2924
        %2926 = vrot.lane.b32.xlu0 %v2717, 104
        %v2927 = vpop.permute.xlu0 %2926
        %2928 = vrot.lane.b32.xlu0 %v2722, 104
        %v2929 = vpop.permute.xlu0 %2928
        %2930 = vrot.lane.b32.xlu0 %v2727, 104
        %v2931 = vpop.permute.xlu0 %2930
        %2932 = vrot.lane.b32.xlu0 %v2732, 104
        %v2933 = vpop.permute.xlu0 %2932
        %2934 = vrot.lane.b32.xlu0 %v2737, 104
        %v2935 = vpop.permute.xlu0 %2934
        %2936 = vrot.lane.b32.xlu0 %v2742, 104
        %v2937 = vpop.permute.xlu0 %2936
        %v2938 = vsel %vm1001, %v2907, 0
        %v2940 = vsel %vm1001, %v2909, 0
        %v2942 = vsel %vm1001, %v2911, 0
        %v2944 = vsel %vm1001, %v2913, 0
        %v2946 = vsel %vm1001, %v2915, 0
        %v2948 = vsel %vm1001, %v2917, 0
        %v2950 = vsel %vm1001, %v2919, 0
        %v2952 = vsel %vm1001, %v2921, 0
        %v2954 = vsel %vm1001, %v2923, 0
        %v2956 = vsel %vm1001, %v2925, 0
        %v2958 = vsel %vm1001, %v2927, 0
        %v2960 = vsel %vm1001, %v2929, 0
        %v2962 = vsel %vm1001, %v2931, 0
        %v2964 = vsel %vm1001, %v2933, 0
        %v2966 = vsel %vm1001, %v2935, 0
        %v2968 = vsel %vm1001, %v2937, 0
        %2970 = vmatprep.subr.mxu0 0.0
        %2971 = vmatpush1.xpose.msra.mxu0 %v2954
        %2972 = vmatprep.subr.mxu0 0.0
        %2973 = vmatpush1.xpose.msra.mxu0 %v2956
        %2974 = vmatprep.subr.mxu0 0.0
        %2975 = vmatpush1.xpose.msra.mxu0 %v2958
        %2976 = vmatprep.subr.mxu0 0.0
        %2977 = vmatpush1.xpose.msra.mxu0 %v2960
        %2978 = vmatprep.subr.mxu0 0.0
        %2979 = vmatpush1.xpose.msra.mxu0 %v2962
        %2980 = vmatprep.subr.mxu0 0.0
        %2981 = vmatpush1.xpose.msra.mxu0 %v2964
        %2982 = vmatprep.subr.mxu0 0.0
        %2983 = vmatpush1.xpose.msra.mxu0 %v2966
        %2984 = vmatprep.subr.mxu0 0.0
        %2985 = vmatpush1.xpose.msra.mxu0 %v2968
        %2986 = vmatprep.subr.mxu0 0.0
        %2987 = vmatpush1.xpose.msra.mxu0 0.0
        %2988 = vmatprep.subr.mxu0 0.0
        %2989 = vmatpush1.xpose.msra.mxu0 0.0
        %2990 = vmatprep.subr.mxu0 0.0
        %2991 = vmatpush1.xpose.msra.mxu0 0.0
        %2992 = vmatprep.subr.mxu0 0.0
        %2993 = vmatpush1.xpose.msra.mxu0 0.0
        %2994 = vmatprep.subr.mxu0 0.0
        %2995 = vmatpush1.xpose.msra.mxu0 0.0
        %2996 = vmatprep.subr.mxu0 0.0
        %2997 = vmatpush1.xpose.msra.mxu0 0.0
        %2998 = vmatprep.subr.mxu0 0.0
        %2999 = vmatpush1.xpose.msra.mxu0 0.0
        %3000 = vmatprep.subr.mxu0 0.0
        %3001 = vmatpush1.xpose.msra.mxu0 0.0
        %3002 = vmatprep.subr.mxu0 0.0
        %3003 = vmatpush1.xpose.msra.mxu0 0.0
        %3004 = vmatprep.subr.mxu0 0.0
        %3005 = vmatpush1.xpose.msra.mxu0 0.0
        %3006 = vmatprep.subr.mxu0 0.0
        %3007 = vmatpush1.xpose.msra.mxu0 0.0
        %3008 = vmatprep.subr.mxu0 0.0
        %3009 = vmatpush1.xpose.msra.mxu0 0.0
        %3010 = vmatprep.subr.mxu0 0.0
        %3011 = vmatpush1.xpose.msra.mxu0 0.0
        %3012 = vmatprep.subr.mxu0 0.0
        %3013 = vmatpush1.xpose.msra.mxu0 0.0
        %3014 = vmatprep.subr.mxu0 0.0
        %3015 = vmatpush1.xpose.msra.mxu0 0.0
        %3016 = vmatprep.subr.mxu0 0.0
        %3017 = vmatpush1.xpose.msra.mxu0 0.0
        %3018 = vmatprep.subr.mxu0 0.0
        %3019 = vmatpush1.xpose.msra.mxu0 0.0
        %3020 = vmatprep.subr.mxu0 0.0
        %3021 = vmatpush1.xpose.msra.mxu0 0.0
        %3022 = vmatprep.subr.mxu0 0.0
        %3023 = vmatpush1.xpose.msra.mxu0 0.0
        %3024 = vmatprep.subr.mxu0 0.0
        %3025 = vmatpush1.xpose.msra.mxu0 0.0
        %3026 = vmatprep.subr.mxu0 0.0
        %3027 = vmatpush1.xpose.msra.mxu0 0.0
        %3028 = vmatprep.subr.mxu0 0.0
        %3029 = vmatpush1.xpose.msra.mxu0 0.0
        %3030 = vmatprep.subr.mxu0 0.0
        %3031 = vmatpush1.xpose.msra.mxu0 0.0
        %3032 = vmatprep.subr.mxu0 0.0
        %3033 = vmatpush1.xpose.msra.mxu0 0.0
        %3034 = vmatprep.mubr.f32.mxu0 0.0
        %3035 = vmatmul.mubr.f32.gmra.mrb[0].mxu0 %v2938
        %v3036 = vpop.f32.mrb[0].mxu0
        %v3037 = vadd.f32 0.0, %v3036
        %v3038 = vpop.f32.mrb[0].mxu0
        %3039 = vmatprep.mubr.f32.mxu0 0.0
        %3040 = vmatmul.mubr.f32.gmra.mrb[0].mxu0 %v2940
        %v3041 = vpop.f32.mrb[0].mxu0
        %v3042 = vadd.f32 0.0, %v3041
        %v3043 = vpop.f32.mrb[0].mxu0
        %3044 = vmatprep.mubr.f32.mxu0 0.0
        %3045 = vmatmul.mubr.f32.gmra.mrb[0].mxu0 %v2942
        %v3046 = vpop.f32.mrb[0].mxu0
        %v3047 = vadd.f32 0.0, %v3046
        %v3048 = vpop.f32.mrb[0].mxu0
        %3049 = vmatprep.mubr.f32.mxu0 0.0
        %3050 = vmatmul.mubr.f32.gmra.mrb[0].mxu0 %v2944
        %v3051 = vpop.f32.mrb[0].mxu0
        %v3052 = vadd.f32 0.0, %v3051
        %v3053 = vpop.f32.mrb[0].mxu0
        %3054 = vmatprep.mubr.f32.mxu0 0.0
        %3055 = vmatmul.mubr.f32.gmra.mrb[0].mxu0 %v2946
        %v3056 = vpop.f32.mrb[0].mxu0
        %v3057 = vadd.f32 0.0, %v3056
        %v3058 = vpop.f32.mrb[0].mxu0
        %3059 = vmatprep.mubr.f32.mxu0 0.0
        %3060 = vmatmul.mubr.f32.gmra.mrb[0].mxu0 %v2948
        %v3061 = vpop.f32.mrb[0].mxu0
        %v3062 = vadd.f32 0.0, %v3061
        %v3063 = vpop.f32.mrb[0].mxu0
        %3064 = vmatprep.mubr.f32.mxu0 0.0
        %3065 = vmatmul.mubr.f32.gmra.mrb[0].mxu0 %v2950
        %v3066 = vpop.f32.mrb[0].mxu0
        %v3067 = vadd.f32 0.0, %v3066
        %v3068 = vpop.f32.mrb[0].mxu0
        %3069 = vmatprep.mubr.f32.mxu0 0.0
        %3070 = vmatmul.mubr.f32.gmra.mrb[0].mxu0 %v2952
        %v3071 = vpop.f32.mrb[0].mxu0
        %v3072 = vadd.f32 0.0, %v3071
        %v3073 = vpop.f32.mrb[0].mxu0
        %3074 = vdwg.mxu0
        %v3075 = vld [vmem:[%s5] sm:$0xff]
        %v3076 = vld [vmem:[%s5 + $0x8] sm:$0xff]
        %v3077 = vld [vmem:[%s5 + $0x10] sm:$0xff]
        %v3078 = vld [vmem:[%s5 + $0x18] sm:$0xff]
        %v3079 = vld [vmem:[%s5 + $0x20] sm:$0xff]
        %v3080 = vld [vmem:[%s5 + $0x28] sm:$0xff]
        %v3081 = vld [vmem:[%s5 + $0x30] sm:$0xff]
        %v3082 = vld [vmem:[%s5 + $0x38] sm:$0xff]
        %v3083 = vld [vmem:[%s5 + $0x40] sm:$0xff]
        %v3084 = vld [vmem:[%s5 + $0x48] sm:$0xff]
        %v3085 = vld [vmem:[%s5 + $0x50] sm:$0xff]
        %v3086 = vld [vmem:[%s5 + $0x58] sm:$0xff]
        %v3087 = vld [vmem:[%s5 + $0x60] sm:$0xff]
        %v3088 = vld [vmem:[%s5 + $0x68] sm:$0xff]
        %v3089 = vld [vmem:[%s5 + $0x70] sm:$0xff]
        %v3090 = vld [vmem:[%s5 + $0x78] sm:$0xff]
        %v3091 = vadd.f32 %v2868, %v3075
        %v3092 = vadd.f32 %v2873, %v3076
        %v3093 = vadd.f32 %v2878, %v3077
        %v3094 = vadd.f32 %v2883, %v3078
        %v3095 = vadd.f32 %v2888, %v3079
        %v3096 = vadd.f32 %v2893, %v3080
        %v3097 = vadd.f32 %v2898, %v3081
        %v3098 = vadd.f32 %v2903, %v3082
        %v3099 = vadd.f32 %v3037, %v3083
        %v3100 = vadd.f32 %v3042, %v3084
        %v3101 = vadd.f32 %v3047, %v3085
        %v3102 = vadd.f32 %v3052, %v3086
        %v3103 = vadd.f32 %v3057, %v3087
        %v3104 = vadd.f32 %v3062, %v3088
        %v3105 = vadd.f32 %v3067, %v3089
        %v3106 = vadd.f32 %v3072, %v3090
        %v3107 = vsel %vm1340, %v3091, -inf
        %3108 = vmax.xlane.f32.xlu0 %v3107
        %v3109 = vpop.xlane.xlu0 %3108
        %v3110 = vsel %vm1340, %v3092, -inf
        %3111 = vmax.xlane.f32.xlu0 %v3110
        %v3112 = vpop.xlane.xlu0 %3111
        %v3113 = vsel %vm1340, %v3093, -inf
        %3114 = vmax.xlane.f32.xlu0 %v3113
        %v3115 = vpop.xlane.xlu0 %3114
        %v3116 = vsel %vm1340, %v3094, -inf
        %3117 = vmax.xlane.f32.xlu0 %v3116
        %v3118 = vpop.xlane.xlu0 %3117
        %v3119 = vsel %vm1340, %v3095, -inf
        %3120 = vmax.xlane.f32.xlu0 %v3119
        %v3121 = vpop.xlane.xlu0 %3120
        %v3122 = vsel %vm1340, %v3096, -inf
        %3123 = vmax.xlane.f32.xlu0 %v3122
        %v3124 = vpop.xlane.xlu0 %3123
        %v3125 = vsel %vm1340, %v3097, -inf
        %3126 = vmax.xlane.f32.xlu0 %v3125
        %v3127 = vpop.xlane.xlu0 %3126
        %v3128 = vsel %vm1340, %v3098, -inf
        %3129 = vmax.xlane.f32.xlu0 %v3128
        %v3130 = vpop.xlane.xlu0 %3129
        %v3131 = vsel %vm1340, %v3099, -inf
        %3132 = vmax.xlane.f32.xlu0 %v3131
        %v3133 = vpop.xlane.xlu0 %3132
        %v3134 = vsel %vm1340, %v3100, -inf
        %3135 = vmax.xlane.f32.xlu0 %v3134
        %v3136 = vpop.xlane.xlu0 %3135
        %v3137 = vsel %vm1340, %v3101, -inf
        %3138 = vmax.xlane.f32.xlu0 %v3137
        %v3139 = vpop.xlane.xlu0 %3138
        %v3140 = vsel %vm1340, %v3102, -inf
        %3141 = vmax.xlane.f32.xlu0 %v3140
        %v3142 = vpop.xlane.xlu0 %3141
        %v3143 = vsel %vm1340, %v3103, -inf
        %3144 = vmax.xlane.f32.xlu0 %v3143
        %v3145 = vpop.xlane.xlu0 %3144
        %v3146 = vsel %vm1340, %v3104, -inf
        %3147 = vmax.xlane.f32.xlu0 %v3146
        %v3148 = vpop.xlane.xlu0 %3147
        %v3149 = vsel %vm1340, %v3105, -inf
        %3150 = vmax.xlane.f32.xlu0 %v3149
        %v3151 = vpop.xlane.xlu0 %3150
        %v3152 = vsel %vm1340, %v3106, -inf
        %3153 = vmax.xlane.f32.xlu0 %v3152
        %v3154 = vpop.xlane.xlu0 %3153
        %v3155 = vsub.f32 %v3091, %v3109
        %v3156 = vsub.f32 %v3092, %v3112
        %v3157 = vsub.f32 %v3093, %v3115
        %v3158 = vsub.f32 %v3094, %v3118
        %v3159 = vsub.f32 %v3095, %v3121
        %v3160 = vsub.f32 %v3096, %v3124
        %v3161 = vsub.f32 %v3097, %v3127
        %v3162 = vsub.f32 %v3098, %v3130
        %v3163 = vsub.f32 %v3099, %v3133
        %v3164 = vsub.f32 %v3100, %v3136
        %v3165 = vsub.f32 %v3101, %v3139
        %v3166 = vsub.f32 %v3102, %v3142
        %v3167 = vsub.f32 %v3103, %v3145
        %v3168 = vsub.f32 %v3104, %v3148
        %v3169 = vsub.f32 %v3105, %v3151
        %v3170 = vsub.f32 %v3106, %v3154
        %v3171 = vmul.f32 %v3155, 1.442695
        %v3172 = vpow.pop %v3171
        %v3173 = vmul.f32 %v3156, 1.442695
        %v3174 = vpow.pop %v3173
        %v3175 = vmul.f32 %v3157, 1.442695
        %v3176 = vpow.pop %v3175
        %v3177 = vmul.f32 %v3158, 1.442695
        %v3178 = vpow.pop %v3177
        %v3179 = vmul.f32 %v3159, 1.442695
        %v3180 = vpow.pop %v3179
        %v3181 = vmul.f32 %v3160, 1.442695
        %v3182 = vpow.pop %v3181
        %v3183 = vmul.f32 %v3161, 1.442695
        %v3184 = vpow.pop %v3183
        %v3185 = vmul.f32 %v3162, 1.442695
        %v3186 = vpow.pop %v3185
        %v3187 = vmul.f32 %v3163, 1.442695
        %v3188 = vpow.pop %v3187
        %v3189 = vmul.f32 %v3164, 1.442695
        %v3190 = vpow.pop %v3189
        %v3191 = vmul.f32 %v3165, 1.442695
        %v3192 = vpow.pop %v3191
        %v3193 = vmul.f32 %v3166, 1.442695
        %v3194 = vpow.pop %v3193
        %v3195 = vmul.f32 %v3167, 1.442695
        %v3196 = vpow.pop %v3195
        %v3197 = vmul.f32 %v3168, 1.442695
        %v3198 = vpow.pop %v3197
        %v3199 = vmul.f32 %v3169, 1.442695
        %v3200 = vpow.pop %v3199
        %v3201 = vmul.f32 %v3170, 1.442695
        %v3202 = vpow.pop %v3201
        %v3203 = vsel %vm1340, %v3172, 0.0
        %3204 = vadd.xlane.f32.xlu0 %v3203
        %v3205 = vpop.xlane.xlu0 %3204
        %v3206 = vsel %vm1340, %v3174, 0.0
        %3207 = vadd.xlane.f32.xlu0 %v3206
        %v3208 = vpop.xlane.xlu0 %3207
        %v3209 = vsel %vm1340, %v3176, 0.0
        %3210 = vadd.xlane.f32.xlu0 %v3209
        %v3211 = vpop.xlane.xlu0 %3210
        %v3212 = vsel %vm1340, %v3178, 0.0
        %3213 = vadd.xlane.f32.xlu0 %v3212
        %v3214 = vpop.xlane.xlu0 %3213
        %v3215 = vsel %vm1340, %v3180, 0.0
        %3216 = vadd.xlane.f32.xlu0 %v3215
        %v3217 = vpop.xlane.xlu0 %3216
        %v3218 = vsel %vm1340, %v3182, 0.0
        %3219 = vadd.xlane.f32.xlu0 %v3218
        %v3220 = vpop.xlane.xlu0 %3219
        %v3221 = vsel %vm1340, %v3184, 0.0
        %3222 = vadd.xlane.f32.xlu0 %v3221
        %v3223 = vpop.xlane.xlu0 %3222
        %v3224 = vsel %vm1340, %v3186, 0.0
        %3225 = vadd.xlane.f32.xlu0 %v3224
        %v3226 = vpop.xlane.xlu0 %3225
        %v3227 = vsel %vm1340, %v3188, 0.0
        %3228 = vadd.xlane.f32.xlu0 %v3227
        %v3229 = vpop.xlane.xlu0 %3228
        %v3230 = vsel %vm1340, %v3190, 0.0
        %3231 = vadd.xlane.f32.xlu0 %v3230
        %v3232 = vpop.xlane.xlu0 %3231
        %v3233 = vsel %vm1340, %v3192, 0.0
        %3234 = vadd.xlane.f32.xlu0 %v3233
        %v3235 = vpop.xlane.xlu0 %3234
        %v3236 = vsel %vm1340, %v3194, 0.0
        %3237 = vadd.xlane.f32.xlu0 %v3236
        %v3238 = vpop.xlane.xlu0 %3237
        %v3239 = vsel %vm1340, %v3196, 0.0
        %3240 = vadd.xlane.f32.xlu0 %v3239
        %v3241 = vpop.xlane.xlu0 %3240
        %v3242 = vsel %vm1340, %v3198, 0.0
        %3243 = vadd.xlane.f32.xlu0 %v3242
        %v3244 = vpop.xlane.xlu0 %3243
        %v3245 = vsel %vm1340, %v3200, 0.0
        %3246 = vadd.xlane.f32.xlu0 %v3245
        %v3247 = vpop.xlane.xlu0 %3246
        %v3248 = vsel %vm1340, %v3202, 0.0
        %3249 = vadd.xlane.f32.xlu0 %v3248
        %v3250 = vpop.xlane.xlu0 %3249
        %v3251 = vrcp.pop %v3205
        %v3252 = vmul.f32 %v3172, %v3251
        %v3253 = vrcp.pop %v3208
        %v3254 = vmul.f32 %v3174, %v3253
        %v3255 = vrcp.pop %v3211
        %v3256 = vmul.f32 %v3176, %v3255
        %v3257 = vrcp.pop %v3214
        %v3258 = vmul.f32 %v3178, %v3257
        %v3259 = vrcp.pop %v3217
        %v3260 = vmul.f32 %v3180, %v3259
        %v3261 = vrcp.pop %v3220
        %v3262 = vmul.f32 %v3182, %v3261
        %v3263 = vrcp.pop %v3223
        %v3264 = vmul.f32 %v3184, %v3263
        %v3265 = vrcp.pop %v3226
        %v3266 = vmul.f32 %v3186, %v3265
        %v3267 = vrcp.pop %v3229
        %v3268 = vmul.f32 %v3188, %v3267
        %v3269 = vrcp.pop %v3232
        %v3270 = vmul.f32 %v3190, %v3269
        %v3271 = vrcp.pop %v3235
        %v3272 = vmul.f32 %v3192, %v3271
        %v3273 = vrcp.pop %v3238
        %v3274 = vmul.f32 %v3194, %v3273
        %v3275 = vrcp.pop %v3241
        %v3276 = vmul.f32 %v3196, %v3275
        %v3277 = vrcp.pop %v3244
        %v3278 = vmul.f32 %v3198, %v3277
        %v3279 = vrcp.pop %v3247
        %v3280 = vmul.f32 %v3200, %v3279
        %v3281 = vrcp.pop %v3250
        %v3282 = vmul.f32 %v3202, %v3281
        %3283 = vrot.lane.b32.xlu0 %v2707, 96
        %v3284 = vpop.permute.xlu0 %3283
        %3285 = vrot.lane.b32.xlu0 %v2712, 96
        %v3286 = vpop.permute.xlu0 %3285
        %3287 = vrot.lane.b32.xlu0 %v2717, 96
        %v3288 = vpop.permute.xlu0 %3287
        %3289 = vrot.lane.b32.xlu0 %v2722, 96
        %v3290 = vpop.permute.xlu0 %3289
        %3291 = vrot.lane.b32.xlu0 %v2727, 96
        %v3292 = vpop.permute.xlu0 %3291
        %3293 = vrot.lane.b32.xlu0 %v2732, 96
        %v3294 = vpop.permute.xlu0 %3293
        %3295 = vrot.lane.b32.xlu0 %v2737, 96
        %v3296 = vpop.permute.xlu0 %3295
        %3297 = vrot.lane.b32.xlu0 %v2742, 96
        %v3298 = vpop.permute.xlu0 %3297
        %v3308 = vsel %vm1340, %v3252, 0
        %v3311 = vsel %vm1340, %v3254, 0
        %v3314 = vsel %vm1340, %v3256, 0
        %v3317 = vsel %vm1340, %v3258, 0
        %v3320 = vsel %vm1340, %v3260, 0
        %v3323 = vsel %vm1340, %v3262, 0
        %v3326 = vsel %vm1340, %v3264, 0
        %v3329 = vsel %vm1340, %v3266, 0
        %3331 = vmatprep.subr.mxu0 0.0
        %3332 = vmatpush1.msra.mxu0 %v3284
        %3333 = vmatprep.subr.mxu0 0.0
        %3334 = vmatpush1.msra.mxu0 %v3286
        %3335 = vmatprep.subr.mxu0 0.0
        %3336 = vmatpush1.msra.mxu0 %v3288
        %3337 = vmatprep.subr.mxu0 0.0
        %3338 = vmatpush1.msra.mxu0 %v3290
        %3339 = vmatprep.subr.mxu0 0.0
        %3340 = vmatpush1.msra.mxu0 %v3292
        %3341 = vmatprep.subr.mxu0 0.0
        %3342 = vmatpush1.msra.mxu0 %v3294
        %3343 = vmatprep.subr.mxu0 0.0
        %3344 = vmatpush1.msra.mxu0 %v3296
        %3345 = vmatprep.subr.mxu0 0.0
        %3346 = vmatpush1.msra.mxu0 %v3298
        %3347 = vmatprep.subr.mxu0 0.0
        %3348 = vmatpush1.msra.mxu0 0.0
        %3349 = vmatprep.subr.mxu0 0.0
        %3350 = vmatpush1.msra.mxu0 0.0
        %3351 = vmatprep.subr.mxu0 0.0
        %3352 = vmatpush1.msra.mxu0 0.0
        %3353 = vmatprep.subr.mxu0 0.0
        %3354 = vmatpush1.msra.mxu0 0.0
        %3355 = vmatprep.subr.mxu0 0.0
        %3356 = vmatpush1.msra.mxu0 0.0
        %3357 = vmatprep.subr.mxu0 0.0
        %3358 = vmatpush1.msra.mxu0 0.0
        %3359 = vmatprep.subr.mxu0 0.0
        %3360 = vmatpush1.msra.mxu0 0.0
        %3361 = vmatprep.subr.mxu0 0.0
        %3362 = vmatpush1.msra.mxu0 0.0
        %3363 = vmatprep.subr.mxu0 0.0
        %3364 = vmatpush1.msra.mxu0 0.0
        %3365 = vmatprep.subr.mxu0 0.0
        %3366 = vmatpush1.msra.mxu0 0.0
        %3367 = vmatprep.subr.mxu0 0.0
        %3368 = vmatpush1.msra.mxu0 0.0
        %3369 = vmatprep.subr.mxu0 0.0
        %3370 = vmatpush1.msra.mxu0 0.0
        %3371 = vmatprep.subr.mxu0 0.0
        %3372 = vmatpush1.msra.mxu0 0.0
        %3373 = vmatprep.subr.mxu0 0.0
        %3374 = vmatpush1.msra.mxu0 0.0
        %3375 = vmatprep.subr.mxu0 0.0
        %3376 = vmatpush1.msra.mxu0 0.0
        %3377 = vmatprep.subr.mxu0 0.0
        %3378 = vmatpush1.msra.mxu0 0.0
        %3379 = vmatprep.subr.mxu0 0.0
        %3380 = vmatpush1.msra.mxu0 0.0
        %3381 = vmatprep.subr.mxu0 0.0
        %3382 = vmatpush1.msra.mxu0 0.0
        %3383 = vmatprep.subr.mxu0 0.0
        %3384 = vmatpush1.msra.mxu0 0.0
        %3385 = vmatprep.subr.mxu0 0.0
        %3386 = vmatpush1.msra.mxu0 0.0
        %3387 = vmatprep.subr.mxu0 0.0
        %3388 = vmatpush1.msra.mxu0 0.0
        %3389 = vmatprep.subr.mxu0 0.0
        %3390 = vmatpush1.msra.mxu0 0.0
        %3391 = vmatprep.subr.mxu0 0.0
        %3392 = vmatpush1.msra.mxu0 0.0
        %3393 = vmatprep.subr.mxu0 0.0
        %3394 = vmatpush1.msra.mxu0 0.0
        %3395 = vmatprep.mubr.f32.mxu0 0.0
        %3396 = vmatmul.mubr.f32.gmra.mrb[0].mxu0 %v3308
        %v3397 = vpop.f32.mrb[0].mxu0
        %v3398 = vadd.f32 0.0, %v3397
        %v3399 = vpop.f32.mrb[0].mxu0
        %3400 = vmatprep.mubr.f32.mxu0 0.0
        %3401 = vmatmul.mubr.f32.gmra.mrb[0].mxu0 %v3311
        %v3402 = vpop.f32.mrb[0].mxu0
        %v3403 = vadd.f32 0.0, %v3402
        %v3404 = vpop.f32.mrb[0].mxu0
        %3405 = vmatprep.mubr.f32.mxu0 0.0
        %3406 = vmatmul.mubr.f32.gmra.mrb[0].mxu0 %v3314
        %v3407 = vpop.f32.mrb[0].mxu0
        %v3408 = vadd.f32 0.0, %v3407
        %v3409 = vpop.f32.mrb[0].mxu0
        %3410 = vmatprep.mubr.f32.mxu0 0.0
        %3411 = vmatmul.mubr.f32.gmra.mrb[0].mxu0 %v3317
        %v3412 = vpop.f32.mrb[0].mxu0
        %v3413 = vadd.f32 0.0, %v3412
        %v3414 = vpop.f32.mrb[0].mxu0
        %3415 = vmatprep.mubr.f32.mxu0 0.0
        %3416 = vmatmul.mubr.f32.gmra.mrb[0].mxu0 %v3320
        %v3417 = vpop.f32.mrb[0].mxu0
        %v3418 = vadd.f32 0.0, %v3417
        %v3419 = vpop.f32.mrb[0].mxu0
        %3420 = vmatprep.mubr.f32.mxu0 0.0
        %3421 = vmatmul.mubr.f32.gmra.mrb[0].mxu0 %v3323
        %v3422 = vpop.f32.mrb[0].mxu0
        %v3423 = vadd.f32 0.0, %v3422
        %v3424 = vpop.f32.mrb[0].mxu0
        %3425 = vmatprep.mubr.f32.mxu0 0.0
        %3426 = vmatmul.mubr.f32.gmra.mrb[0].mxu0 %v3326
        %v3427 = vpop.f32.mrb[0].mxu0
        %v3428 = vadd.f32 0.0, %v3427
        %v3429 = vpop.f32.mrb[0].mxu0
        %3430 = vmatprep.mubr.f32.mxu0 0.0
        %3431 = vmatmul.mubr.f32.gmra.mrb[0].mxu0 %v3329
        %v3432 = vpop.f32.mrb[0].mxu0
        %v3433 = vadd.f32 0.0, %v3432
        %v3434 = vpop.f32.mrb[0].mxu0
        %3435 = vdwg.mxu0
        %3436 = vrot.lane.b32.xlu0 %v2707, 88
        %v3437 = vpop.permute.xlu0 %3436
        %3438 = vrot.lane.b32.xlu0 %v2712, 88
        %v3439 = vpop.permute.xlu0 %3438
        %3440 = vrot.lane.b32.xlu0 %v2717, 88
        %v3441 = vpop.permute.xlu0 %3440
        %3442 = vrot.lane.b32.xlu0 %v2722, 88
        %v3443 = vpop.permute.xlu0 %3442
        %3444 = vrot.lane.b32.xlu0 %v2727, 88
        %v3445 = vpop.permute.xlu0 %3444
        %3446 = vrot.lane.b32.xlu0 %v2732, 88
        %v3447 = vpop.permute.xlu0 %3446
        %3448 = vrot.lane.b32.xlu0 %v2737, 88
        %v3449 = vpop.permute.xlu0 %3448
        %3450 = vrot.lane.b32.xlu0 %v2742, 88
        %v3451 = vpop.permute.xlu0 %3450
        %v3461 = vsel %vm1340, %v3268, 0
        %v3464 = vsel %vm1340, %v3270, 0
        %v3467 = vsel %vm1340, %v3272, 0
        %v3470 = vsel %vm1340, %v3274, 0
        %v3473 = vsel %vm1340, %v3276, 0
        %v3476 = vsel %vm1340, %v3278, 0
        %v3479 = vsel %vm1340, %v3280, 0
        %v3482 = vsel %vm1340, %v3282, 0
        %3484 = vmatprep.subr.mxu0 0.0
        %3485 = vmatpush1.msra.mxu0 %v3437
        %3486 = vmatprep.subr.mxu0 0.0
        %3487 = vmatpush1.msra.mxu0 %v3439
        %3488 = vmatprep.subr.mxu0 0.0
        %3489 = vmatpush1.msra.mxu0 %v3441
        %3490 = vmatprep.subr.mxu0 0.0
        %3491 = vmatpush1.msra.mxu0 %v3443
        %3492 = vmatprep.subr.mxu0 0.0
        %3493 = vmatpush1.msra.mxu0 %v3445
        %3494 = vmatprep.subr.mxu0 0.0
        %3495 = vmatpush1.msra.mxu0 %v3447
        %3496 = vmatprep.subr.mxu0 0.0
        %3497 = vmatpush1.msra.mxu0 %v3449
        %3498 = vmatprep.subr.mxu0 0.0
        %3499 = vmatpush1.msra.mxu0 %v3451
        %3500 = vmatprep.subr.mxu0 0.0
        %3501 = vmatpush1.msra.mxu0 0.0
        %3502 = vmatprep.subr.mxu0 0.0
        %3503 = vmatpush1.msra.mxu0 0.0
        %3504 = vmatprep.subr.mxu0 0.0
        %3505 = vmatpush1.msra.mxu0 0.0
        %3506 = vmatprep.subr.mxu0 0.0
        %3507 = vmatpush1.msra.mxu0 0.0
        %3508 = vmatprep.subr.mxu0 0.0
        %3509 = vmatpush1.msra.mxu0 0.0
        %3510 = vmatprep.subr.mxu0 0.0
        %3511 = vmatpush1.msra.mxu0 0.0
        %3512 = vmatprep.subr.mxu0 0.0
        %3513 = vmatpush1.msra.mxu0 0.0
        %3514 = vmatprep.subr.mxu0 0.0
        %3515 = vmatpush1.msra.mxu0 0.0
        %3516 = vmatprep.subr.mxu0 0.0
        %3517 = vmatpush1.msra.mxu0 0.0
        %3518 = vmatprep.subr.mxu0 0.0
        %3519 = vmatpush1.msra.mxu0 0.0
        %3520 = vmatprep.subr.mxu0 0.0
        %3521 = vmatpush1.msra.mxu0 0.0
        %3522 = vmatprep.subr.mxu0 0.0
        %3523 = vmatpush1.msra.mxu0 0.0
        %3524 = vmatprep.subr.mxu0 0.0
        %3525 = vmatpush1.msra.mxu0 0.0
        %3526 = vmatprep.subr.mxu0 0.0
        %3527 = vmatpush1.msra.mxu0 0.0
        %3528 = vmatprep.subr.mxu0 0.0
        %3529 = vmatpush1.msra.mxu0 0.0
        %3530 = vmatprep.subr.mxu0 0.0
        %3531 = vmatpush1.msra.mxu0 0.0
        %3532 = vmatprep.subr.mxu0 0.0
        %3533 = vmatpush1.msra.mxu0 0.0
        %3534 = vmatprep.subr.mxu0 0.0
        %3535 = vmatpush1.msra.mxu0 0.0
        %3536 = vmatprep.subr.mxu0 0.0
        %3537 = vmatpush1.msra.mxu0 0.0
        %3538 = vmatprep.subr.mxu0 0.0
        %3539 = vmatpush1.msra.mxu0 0.0
        %3540 = vmatprep.subr.mxu0 0.0
        %3541 = vmatpush1.msra.mxu0 0.0
        %3542 = vmatprep.subr.mxu0 0.0
        %3543 = vmatpush1.msra.mxu0 0.0
        %3544 = vmatprep.subr.mxu0 0.0
        %3545 = vmatpush1.msra.mxu0 0.0
        %3546 = vmatprep.subr.mxu0 0.0
        %3547 = vmatpush1.msra.mxu0 0.0
        %3548 = vmatprep.mubr.f32.mxu0 0.0
        %3549 = vmatmul.mubr.f32.gmra.mrb[0].mxu0 %v3461
        %v3550 = vpop.f32.mrb[0].mxu0
        %v3551 = vadd.f32 0.0, %v3550
        %v3552 = vpop.f32.mrb[0].mxu0
        %3553 = vmatprep.mubr.f32.mxu0 0.0
        %3554 = vmatmul.mubr.f32.gmra.mrb[0].mxu0 %v3464
        %v3555 = vpop.f32.mrb[0].mxu0
        %v3556 = vadd.f32 0.0, %v3555
        %v3557 = vpop.f32.mrb[0].mxu0
        %3558 = vmatprep.mubr.f32.mxu0 0.0
        %3559 = vmatmul.mubr.f32.gmra.mrb[0].mxu0 %v3467
        %v3560 = vpop.f32.mrb[0].mxu0
        %v3561 = vadd.f32 0.0, %v3560
        %v3562 = vpop.f32.mrb[0].mxu0
        %3563 = vmatprep.mubr.f32.mxu0 0.0
        %3564 = vmatmul.mubr.f32.gmra.mrb[0].mxu0 %v3470
        %v3565 = vpop.f32.mrb[0].mxu0
        %v3566 = vadd.f32 0.0, %v3565
        %v3567 = vpop.f32.mrb[0].mxu0
        %3568 = vmatprep.mubr.f32.mxu0 0.0
        %3569 = vmatmul.mubr.f32.gmra.mrb[0].mxu0 %v3473
        %v3570 = vpop.f32.mrb[0].mxu0
        %v3571 = vadd.f32 0.0, %v3570
        %v3572 = vpop.f32.mrb[0].mxu0
        %3573 = vmatprep.mubr.f32.mxu0 0.0
        %3574 = vmatmul.mubr.f32.gmra.mrb[0].mxu0 %v3476
        %v3575 = vpop.f32.mrb[0].mxu0
        %v3576 = vadd.f32 0.0, %v3575
        %v3577 = vpop.f32.mrb[0].mxu0
        %3578 = vmatprep.mubr.f32.mxu0 0.0
        %3579 = vmatmul.mubr.f32.gmra.mrb[0].mxu0 %v3479
        %v3580 = vpop.f32.mrb[0].mxu0
        %v3581 = vadd.f32 0.0, %v3580
        %v3582 = vpop.f32.mrb[0].mxu0
        %3583 = vmatprep.mubr.f32.mxu0 0.0
        %3584 = vmatmul.mubr.f32.gmra.mrb[0].mxu0 %v3482
        %v3585 = vpop.f32.mrb[0].mxu0
        %v3586 = vadd.f32 0.0, %v3585
        %v3587 = vpop.f32.mrb[0].mxu0
        %3588 = vdwg.mxu0
        %3597 = vrot.lane.b32.xlu0 %v3551, 8
        %v3598 = vpop.permute.xlu0 %3597
        %3599 = vrot.lane.b32.xlu0 %v3556, 8
        %v3600 = vpop.permute.xlu0 %3599
        %3601 = vrot.lane.b32.xlu0 %v3561, 8
        %v3602 = vpop.permute.xlu0 %3601
        %3603 = vrot.lane.b32.xlu0 %v3566, 8
        %v3604 = vpop.permute.xlu0 %3603
        %3605 = vrot.lane.b32.xlu0 %v3571, 8
        %v3606 = vpop.permute.xlu0 %3605
        %3607 = vrot.lane.b32.xlu0 %v3576, 8
        %v3608 = vpop.permute.xlu0 %3607
        %3609 = vrot.lane.b32.xlu0 %v3581, 8
        %v3610 = vpop.permute.xlu0 %3609
        %3611 = vrot.lane.b32.xlu0 %v3586, 8
        %v3612 = vpop.permute.xlu0 %3611
        %v3621 = vsel %vm1001, %v3398, %v3598
        %v3622 = vsel %vm1001, %v3403, %v3600
        %v3623 = vsel %vm1001, %v3408, %v3602
        %v3624 = vsel %vm1001, %v3413, %v3604
        %v3625 = vsel %vm1001, %v3418, %v3606
        %v3626 = vsel %vm1001, %v3423, %v3608
        %v3627 = vsel %vm1001, %v3428, %v3610
        %v3628 = vsel %vm1001, %v3433, %v3612
        %v3630 = vsel %vm564, %v3621, 0
        %v3633 = vsel %vm564, %v3622, 0
        %v3636 = vsel %vm564, %v3623, 0
        %v3639 = vsel %vm564, %v3624, 0
        %v3642 = vsel %vm564, %v3625, 0
        %v3645 = vsel %vm564, %v3626, 0
        %v3648 = vsel %vm564, %v3627, 0
        %v3651 = vsel %vm564, %v3628, 0
        %3653 = vmatprep.subr.mxu0 0.0
        %3654 = vmatpush1.msra.mxu0 %v2464
        %3655 = vmatprep.subr.mxu0 0.0
        %3656 = vmatpush1.msra.mxu0 %v2465
        %3657 = vmatprep.subr.mxu0 0.0
        %3658 = vmatpush1.msra.mxu0 0.0
        %3659 = vmatprep.subr.mxu0 0.0
        %3660 = vmatpush1.msra.mxu0 0.0
        %3661 = vmatprep.subr.mxu0 0.0
        %3662 = vmatpush1.msra.mxu0 0.0
        %3663 = vmatprep.subr.mxu0 0.0
        %3664 = vmatpush1.msra.mxu0 0.0
        %3665 = vmatprep.subr.mxu0 0.0
        %3666 = vmatpush1.msra.mxu0 0.0
        %3667 = vmatprep.subr.mxu0 0.0
        %3668 = vmatpush1.msra.mxu0 0.0
        %3669 = vmatprep.subr.mxu0 0.0
        %3670 = vmatpush1.msra.mxu0 0.0
        %3671 = vmatprep.subr.mxu0 0.0
        %3672 = vmatpush1.msra.mxu0 0.0
        %3673 = vmatprep.subr.mxu0 0.0
        %3674 = vmatpush1.msra.mxu0 0.0
        %3675 = vmatprep.subr.mxu0 0.0
        %3676 = vmatpush1.msra.mxu0 0.0
        %3677 = vmatprep.subr.mxu0 0.0
        %3678 = vmatpush1.msra.mxu0 0.0
        %3679 = vmatprep.subr.mxu0 0.0
        %3680 = vmatpush1.msra.mxu0 0.0
        %3681 = vmatprep.subr.mxu0 0.0
        %3682 = vmatpush1.msra.mxu0 0.0
        %3683 = vmatprep.subr.mxu0 0.0
        %3684 = vmatpush1.msra.mxu0 0.0
        %3685 = vmatprep.subr.mxu0 0.0
        %3686 = vmatpush1.msra.mxu0 0.0
        %3687 = vmatprep.subr.mxu0 0.0
        %3688 = vmatpush1.msra.mxu0 0.0
        %3689 = vmatprep.subr.mxu0 0.0
        %3690 = vmatpush1.msra.mxu0 0.0
        %3691 = vmatprep.subr.mxu0 0.0
        %3692 = vmatpush1.msra.mxu0 0.0
        %3693 = vmatprep.subr.mxu0 0.0
        %3694 = vmatpush1.msra.mxu0 0.0
        %3695 = vmatprep.subr.mxu0 0.0
        %3696 = vmatpush1.msra.mxu0 0.0
        %3697 = vmatprep.subr.mxu0 0.0
        %3698 = vmatpush1.msra.mxu0 0.0
        %3699 = vmatprep.subr.mxu0 0.0
        %3700 = vmatpush1.msra.mxu0 0.0
        %3701 = vmatprep.subr.mxu0 0.0
        %3702 = vmatpush1.msra.mxu0 0.0
        %3703 = vmatprep.subr.mxu0 0.0
        %3704 = vmatpush1.msra.mxu0 0.0
        %3705 = vmatprep.subr.mxu0 0.0
        %3706 = vmatpush1.msra.mxu0 0.0
        %3707 = vmatprep.subr.mxu0 0.0
        %3708 = vmatpush1.msra.mxu0 0.0
        %3709 = vmatprep.subr.mxu0 0.0
        %3710 = vmatpush1.msra.mxu0 0.0
        %3711 = vmatprep.subr.mxu0 0.0
        %3712 = vmatpush1.msra.mxu0 0.0
        %3713 = vmatprep.subr.mxu0 0.0
        %3714 = vmatpush1.msra.mxu0 0.0
        %3715 = vmatprep.subr.mxu0 0.0
        %3716 = vmatpush1.msra.mxu0 0.0
        %3717 = vmatprep.mubr.f32.mxu0 0.0
        %3718 = vmatmul.mubr.f32.gmra.mrb[0].mxu0 %v3630
        %v3719 = vpop.f32.mrb[0].mxu0
        %v3720 = vadd.f32 0.0, %v3719
        %v3721 = vpop.f32.mrb[0].mxu0
        %3722 = vmatprep.mubr.f32.mxu0 0.0
        %3723 = vmatmul.mubr.f32.gmra.mrb[0].mxu0 %v3633
        %v3724 = vpop.f32.mrb[0].mxu0
        %v3725 = vadd.f32 0.0, %v3724
        %v3726 = vpop.f32.mrb[0].mxu0
        %3727 = vmatprep.mubr.f32.mxu0 0.0
        %3728 = vmatmul.mubr.f32.gmra.mrb[0].mxu0 %v3636
        %v3729 = vpop.f32.mrb[0].mxu0
        %v3730 = vadd.f32 0.0, %v3729
        %v3731 = vpop.f32.mrb[0].mxu0
        %3732 = vmatprep.mubr.f32.mxu0 0.0
        %3733 = vmatmul.mubr.f32.gmra.mrb[0].mxu0 %v3639
        %v3734 = vpop.f32.mrb[0].mxu0
        %v3735 = vadd.f32 0.0, %v3734
        %v3736 = vpop.f32.mrb[0].mxu0
        %3737 = vmatprep.mubr.f32.mxu0 0.0
        %3738 = vmatmul.mubr.f32.gmra.mrb[0].mxu0 %v3642
        %v3739 = vpop.f32.mrb[0].mxu0
        %v3740 = vadd.f32 0.0, %v3739
        %v3741 = vpop.f32.mrb[0].mxu0
        %3742 = vmatprep.mubr.f32.mxu0 0.0
        %3743 = vmatmul.mubr.f32.gmra.mrb[0].mxu0 %v3645
        %v3744 = vpop.f32.mrb[0].mxu0
        %v3745 = vadd.f32 0.0, %v3744
        %v3746 = vpop.f32.mrb[0].mxu0
        %3747 = vmatprep.mubr.f32.mxu0 0.0
        %3748 = vmatmul.mubr.f32.gmra.mrb[0].mxu0 %v3648
        %v3749 = vpop.f32.mrb[0].mxu0
        %v3750 = vadd.f32 0.0, %v3749
        %v3751 = vpop.f32.mrb[0].mxu0
        %3752 = vmatprep.mubr.f32.mxu0 0.0
        %3753 = vmatmul.mubr.f32.gmra.mrb[0].mxu0 %v3651
        %v3754 = vpop.f32.mrb[0].mxu0
        %v3755 = vadd.f32 0.0, %v3754
        %v3756 = vpop.f32.mrb[0].mxu0
        %3757 = vdwg.mxu0
        %v3758 = vadd.f32 %v2454, %v3720
        %v3759 = vadd.f32 %v2455, %v3725
        %v3760 = vadd.f32 %v2456, %v3730
        %v3761 = vadd.f32 %v2457, %v3735
        %v3762 = vadd.f32 %v2458, %v3740
        %v3763 = vadd.f32 %v2459, %v3745
        %v3764 = vadd.f32 %v2460, %v3750
        %v3765 = vadd.f32 %v2461, %v3755
        %v3766 = vlaneseq
        %v3767 = vshrl.u32 %v3766, 7
        %v3768 = vsub.s32 0, %v3767
        %v3769 = vrot.slane %v2479, %v3768
        %v3770 = vadd.f32 %v3758, %v3769
        %v3771 = vadd.f32 %v3759, %v3769
        %v3772 = vadd.f32 %v3760, %v3769
        %v3773 = vadd.f32 %v3761, %v3769
        %v3774 = vadd.f32 %v3762, %v3769
        %v3775 = vadd.f32 %v3763, %v3769
        %v3776 = vadd.f32 %v3764, %v3769
        %v3777 = vadd.f32 %v3765, %v3769
        %v3778 = vsel %vm564, %v3770, 0.0
        %3779 = vadd.xlane.f32.xlu0 %v3778
        %v3780 = vpop.xlane.xlu0 %3779
        %v3781 = vsel %vm564, %v3771, 0.0
        %3782 = vadd.xlane.f32.xlu0 %v3781
        %v3783 = vpop.xlane.xlu0 %3782
        %v3784 = vsel %vm564, %v3772, 0.0
        %3785 = vadd.xlane.f32.xlu0 %v3784
        %v3786 = vpop.xlane.xlu0 %3785
        %v3787 = vsel %vm564, %v3773, 0.0
        %3788 = vadd.xlane.f32.xlu0 %v3787
        %v3789 = vpop.xlane.xlu0 %3788
        %v3790 = vsel %vm564, %v3774, 0.0
        %3791 = vadd.xlane.f32.xlu0 %v3790
        %v3792 = vpop.xlane.xlu0 %3791
        %v3793 = vsel %vm564, %v3775, 0.0
        %3794 = vadd.xlane.f32.xlu0 %v3793
        %v3795 = vpop.xlane.xlu0 %3794
        %v3796 = vsel %vm564, %v3776, 0.0
        %3797 = vadd.xlane.f32.xlu0 %v3796
        %v3798 = vpop.xlane.xlu0 %3797
        %v3799 = vsel %vm564, %v3777, 0.0
        %3800 = vadd.xlane.f32.xlu0 %v3799
        %v3801 = vpop.xlane.xlu0 %3800
        %v3802 = vmul.f32 %v3780, %v589
        %v3803 = vmul.f32 %v3783, %v589
        %v3804 = vmul.f32 %v3786, %v589
        %v3805 = vmul.f32 %v3789, %v589
        %v3806 = vmul.f32 %v3792, %v589
        %v3807 = vmul.f32 %v3795, %v589
        %v3808 = vmul.f32 %v3798, %v589
        %v3809 = vmul.f32 %v3801, %v589
        %v3810 = vsub.f32 %v3770, %v3802
        %v3811 = vsub.f32 %v3771, %v3803
        %v3812 = vsub.f32 %v3772, %v3804
        %v3813 = vsub.f32 %v3773, %v3805
        %v3814 = vsub.f32 %v3774, %v3806
        %v3815 = vsub.f32 %v3775, %v3807
        %v3816 = vsub.f32 %v3776, %v3808
        %v3817 = vsub.f32 %v3777, %v3809
        %v3818 = vmul.f32 %v3810, %v3810
        %v3819 = vmul.f32 %v3811, %v3811
        %v3820 = vmul.f32 %v3812, %v3812
        %v3821 = vmul.f32 %v3813, %v3813
        %v3822 = vmul.f32 %v3814, %v3814
        %v3823 = vmul.f32 %v3815, %v3815
        %v3824 = vmul.f32 %v3816, %v3816
        %v3825 = vmul.f32 %v3817, %v3817
        %v3826 = vsel %vm564, %v3818, 0.0
        %3827 = vadd.xlane.f32.xlu0 %v3826
        %v3828 = vpop.xlane.xlu0 %3827
        %v3829 = vsel %vm564, %v3819, 0.0
        %3830 = vadd.xlane.f32.xlu0 %v3829
        %v3831 = vpop.xlane.xlu0 %3830
        %v3832 = vsel %vm564, %v3820, 0.0
        %3833 = vadd.xlane.f32.xlu0 %v3832
        %v3834 = vpop.xlane.xlu0 %3833
        %v3835 = vsel %vm564, %v3821, 0.0
        %3836 = vadd.xlane.f32.xlu0 %v3835
        %v3837 = vpop.xlane.xlu0 %3836
        %v3838 = vsel %vm564, %v3822, 0.0
        %3839 = vadd.xlane.f32.xlu0 %v3838
        %v3840 = vpop.xlane.xlu0 %3839
        %v3841 = vsel %vm564, %v3823, 0.0
        %3842 = vadd.xlane.f32.xlu0 %v3841
        %v3843 = vpop.xlane.xlu0 %3842
        %v3844 = vsel %vm564, %v3824, 0.0
        %3845 = vadd.xlane.f32.xlu0 %v3844
        %v3846 = vpop.xlane.xlu0 %3845
        %v3847 = vsel %vm564, %v3825, 0.0
        %3848 = vadd.xlane.f32.xlu0 %v3847
        %v3849 = vpop.xlane.xlu0 %3848
        %v3850 = vmul.f32 %v3828, %v589
        %v3851 = vmul.f32 %v3831, %v589
        %v3852 = vmul.f32 %v3834, %v589
        %v3853 = vmul.f32 %v3837, %v589
        %v3854 = vmul.f32 %v3840, %v589
        %v3855 = vmul.f32 %v3843, %v589
        %v3856 = vmul.f32 %v3846, %v589
        %v3857 = vmul.f32 %v3849, %v589
        %v3858 = vadd.f32 %v3850, 1e-05
        %v3859 = vadd.f32 %v3851, 1e-05
        %v3860 = vadd.f32 %v3852, 1e-05
        %v3861 = vadd.f32 %v3853, 1e-05
        %v3862 = vadd.f32 %v3854, 1e-05
        %v3863 = vadd.f32 %v3855, 1e-05
        %v3864 = vadd.f32 %v3856, 1e-05
        %v3865 = vadd.f32 %v3857, 1e-05
        %v3866 = vrsqrt.pop %v3858
        %v3867 = vrsqrt.pop %v3859
        %v3868 = vrsqrt.pop %v3860
        %v3869 = vrsqrt.pop %v3861
        %v3870 = vrsqrt.pop %v3862
        %v3871 = vrsqrt.pop %v3863
        %v3872 = vrsqrt.pop %v3864
        %v3873 = vrsqrt.pop %v3865
        %v3874 = vmul.f32 %v3810, %v3866
        %v3875 = vmul.f32 %v3811, %v3867
        %v3876 = vmul.f32 %v3812, %v3868
        %v3877 = vmul.f32 %v3813, %v3869
        %v3878 = vmul.f32 %v3814, %v3870
        %v3879 = vmul.f32 %v3815, %v3871
        %v3880 = vmul.f32 %v3816, %v3872
        %v3881 = vmul.f32 %v3817, %v3873
        %v3882 = vlaneseq
        %v3883 = vshrl.u32 %v3882, 7
        %v3884 = vsub.s32 0, %v3883
        %v3885 = vrot.slane %v2480, %v3884
        %v3886 = vmul.f32 %v3874, %v3885
        %v3887 = vmul.f32 %v3875, %v3885
        %v3888 = vmul.f32 %v3876, %v3885
        %v3889 = vmul.f32 %v3877, %v3885
        %v3890 = vmul.f32 %v3878, %v3885
        %v3891 = vmul.f32 %v3879, %v3885
        %v3892 = vmul.f32 %v3880, %v3885
        %v3893 = vmul.f32 %v3881, %v3885
        %v3894 = vlaneseq
        %v3895 = vshrl.u32 %v3894, 7
        %v3896 = vsub.s32 0, %v3895
        %v3897 = vrot.slane %v2481, %v3896
        %v3898 = vadd.f32 %v3886, %v3897
        %v3899 = vadd.f32 %v3887, %v3897
        %v3900 = vadd.f32 %v3888, %v3897
        %v3901 = vadd.f32 %v3889, %v3897
        %v3902 = vadd.f32 %v3890, %v3897
        %v3903 = vadd.f32 %v3891, %v3897
        %v3904 = vadd.f32 %v3892, %v3897
        %v3905 = vadd.f32 %v3893, %v3897
        %v3906 = vlaneseq
        %v3907 = vshrl.u32 %v3906, 7
        %v3908 = vsub.s32 0, %v3907
        %v3909 = vrot.slane %v2482, %v3908
        %v3911 = vsel %vm564, %v3898, 0
        %v3914 = vsel %vm564, %v3899, 0
        %v3917 = vsel %vm564, %v3900, 0
        %v3920 = vsel %vm564, %v3901, 0
        %v3923 = vsel %vm564, %v3902, 0
        %v3926 = vsel %vm564, %v3903, 0
        %v3929 = vsel %vm564, %v3904, 0
        %v3932 = vsel %vm564, %v3905, 0
        %3934 = vmatprep.subr.mxu0 0.0
        %3935 = vmatpush1.msra.mxu0 %v2466
        %3936 = vmatprep.subr.mxu0 0.0
        %3937 = vmatpush1.msra.mxu0 %v2467
        %3938 = vmatprep.subr.mxu0 0.0
        %3939 = vmatpush1.msra.mxu0 0.0
        %3940 = vmatprep.subr.mxu0 0.0
        %3941 = vmatpush1.msra.mxu0 0.0
        %3942 = vmatprep.subr.mxu0 0.0
        %3943 = vmatpush1.msra.mxu0 0.0
        %3944 = vmatprep.subr.mxu0 0.0
        %3945 = vmatpush1.msra.mxu0 0.0
        %3946 = vmatprep.subr.mxu0 0.0
        %3947 = vmatpush1.msra.mxu0 0.0
        %3948 = vmatprep.subr.mxu0 0.0
        %3949 = vmatpush1.msra.mxu0 0.0
        %3950 = vmatprep.subr.mxu0 0.0
        %3951 = vmatpush1.msra.mxu0 0.0
        %3952 = vmatprep.subr.mxu0 0.0
        %3953 = vmatpush1.msra.mxu0 0.0
        %3954 = vmatprep.subr.mxu0 0.0
        %3955 = vmatpush1.msra.mxu0 0.0
        %3956 = vmatprep.subr.mxu0 0.0
        %3957 = vmatpush1.msra.mxu0 0.0
        %3958 = vmatprep.subr.mxu0 0.0
        %3959 = vmatpush1.msra.mxu0 0.0
        %3960 = vmatprep.subr.mxu0 0.0
        %3961 = vmatpush1.msra.mxu0 0.0
        %3962 = vmatprep.subr.mxu0 0.0
        %3963 = vmatpush1.msra.mxu0 0.0
        %3964 = vmatprep.subr.mxu0 0.0
        %3965 = vmatpush1.msra.mxu0 0.0
        %3966 = vmatprep.subr.mxu0 0.0
        %3967 = vmatpush1.msra.mxu0 0.0
        %3968 = vmatprep.subr.mxu0 0.0
        %3969 = vmatpush1.msra.mxu0 0.0
        %3970 = vmatprep.subr.mxu0 0.0
        %3971 = vmatpush1.msra.mxu0 0.0
        %3972 = vmatprep.subr.mxu0 0.0
        %3973 = vmatpush1.msra.mxu0 0.0
        %3974 = vmatprep.subr.mxu0 0.0
        %3975 = vmatpush1.msra.mxu0 0.0
        %3976 = vmatprep.subr.mxu0 0.0
        %3977 = vmatpush1.msra.mxu0 0.0
        %3978 = vmatprep.subr.mxu0 0.0
        %3979 = vmatpush1.msra.mxu0 0.0
        %3980 = vmatprep.subr.mxu0 0.0
        %3981 = vmatpush1.msra.mxu0 0.0
        %3982 = vmatprep.subr.mxu0 0.0
        %3983 = vmatpush1.msra.mxu0 0.0
        %3984 = vmatprep.subr.mxu0 0.0
        %3985 = vmatpush1.msra.mxu0 0.0
        %3986 = vmatprep.subr.mxu0 0.0
        %3987 = vmatpush1.msra.mxu0 0.0
        %3988 = vmatprep.subr.mxu0 0.0
        %3989 = vmatpush1.msra.mxu0 0.0
        %3990 = vmatprep.subr.mxu0 0.0
        %3991 = vmatpush1.msra.mxu0 0.0
        %3992 = vmatprep.subr.mxu0 0.0
        %3993 = vmatpush1.msra.mxu0 0.0
        %3994 = vmatprep.subr.mxu0 0.0
        %3995 = vmatpush1.msra.mxu0 0.0
        %3996 = vmatprep.subr.mxu0 0.0
        %3997 = vmatpush1.msra.mxu0 0.0
        %3998 = vmatprep.mubr.f32.mxu0 0.0
        %3999 = vmatmul.mubr.f32.gmra.mrb[0].mxu0 %v3911
        %v4000 = vpop.f32.mrb[0].mxu0
        %v4001 = vadd.f32 %v3909, %v4000
        %v4002 = vpop.f32.mrb[0].mxu0
        %4003 = vmatprep.mubr.f32.mxu0 0.0
        %4004 = vmatmul.mubr.f32.gmra.mrb[0].mxu0 %v3914
        %v4005 = vpop.f32.mrb[0].mxu0
        %v4006 = vadd.f32 %v3909, %v4005
        %v4007 = vpop.f32.mrb[0].mxu0
        %4008 = vmatprep.mubr.f32.mxu0 0.0
        %4009 = vmatmul.mubr.f32.gmra.mrb[0].mxu0 %v3917
        %v4010 = vpop.f32.mrb[0].mxu0
        %v4011 = vadd.f32 %v3909, %v4010
        %v4012 = vpop.f32.mrb[0].mxu0
        %4013 = vmatprep.mubr.f32.mxu0 0.0
        %4014 = vmatmul.mubr.f32.gmra.mrb[0].mxu0 %v3920
        %v4015 = vpop.f32.mrb[0].mxu0
        %v4016 = vadd.f32 %v3909, %v4015
        %v4017 = vpop.f32.mrb[0].mxu0
        %4018 = vmatprep.mubr.f32.mxu0 0.0
        %4019 = vmatmul.mubr.f32.gmra.mrb[0].mxu0 %v3923
        %v4020 = vpop.f32.mrb[0].mxu0
        %v4021 = vadd.f32 %v3909, %v4020
        %v4022 = vpop.f32.mrb[0].mxu0
        %4023 = vmatprep.mubr.f32.mxu0 0.0
        %4024 = vmatmul.mubr.f32.gmra.mrb[0].mxu0 %v3926
        %v4025 = vpop.f32.mrb[0].mxu0
        %v4026 = vadd.f32 %v3909, %v4025
        %v4027 = vpop.f32.mrb[0].mxu0
        %4028 = vmatprep.mubr.f32.mxu0 0.0
        %4029 = vmatmul.mubr.f32.gmra.mrb[0].mxu0 %v3929
        %v4030 = vpop.f32.mrb[0].mxu0
        %v4031 = vadd.f32 %v3909, %v4030
        %v4032 = vpop.f32.mrb[0].mxu0
        %4033 = vmatprep.mubr.f32.mxu0 0.0
        %4034 = vmatmul.mubr.f32.gmra.mrb[0].mxu0 %v3932
        %v4035 = vpop.f32.mrb[0].mxu0
        %v4036 = vadd.f32 %v3909, %v4035
        %v4037 = vpop.f32.mrb[0].mxu0
        %4038 = vdwg.mxu0
        %v4039 = vmul.f32 %v4001, 0.5
        %v4040 = vmul.f32 %v4006, 0.5
        %v4041 = vmul.f32 %v4011, 0.5
        %v4042 = vmul.f32 %v4016, 0.5
        %v4043 = vmul.f32 %v4021, 0.5
        %v4044 = vmul.f32 %v4026, 0.5
        %v4045 = vmul.f32 %v4031, 0.5
        %v4046 = vmul.f32 %v4036, 0.5
        %v4047 = vmul.f32 %v4001, 0.70710677
        %v4048 = vmul.f32 %v4006, 0.70710677
        %v4049 = vmul.f32 %v4011, 0.70710677
        %v4050 = vmul.f32 %v4016, 0.70710677
        %v4051 = vmul.f32 %v4021, 0.70710677
        %v4052 = vmul.f32 %v4026, 0.70710677
        %v4053 = vmul.f32 %v4031, 0.70710677
        %v4054 = vmul.f32 %v4036, 0.70710677
        %v4055 = verf.f32.pop %v4047
        %v4056 = verf.f32.pop %v4048
        %v4057 = verf.f32.pop %v4049
        %v4058 = verf.f32.pop %v4050
        %v4059 = verf.f32.pop %v4051
        %v4060 = verf.f32.pop %v4052
        %v4061 = verf.f32.pop %v4053
        %v4062 = verf.f32.pop %v4054
        %v4063 = vadd.f32 %v4055, 1.0
        %v4064 = vadd.f32 %v4056, 1.0
        %v4065 = vadd.f32 %v4057, 1.0
        %v4066 = vadd.f32 %v4058, 1.0
        %v4067 = vadd.f32 %v4059, 1.0
        %v4068 = vadd.f32 %v4060, 1.0
        %v4069 = vadd.f32 %v4061, 1.0
        %v4070 = vadd.f32 %v4062, 1.0
        %v4071 = vmul.f32 %v4039, %v4063
        %v4072 = vmul.f32 %v4040, %v4064
        %v4073 = vmul.f32 %v4041, %v4065
        %v4074 = vmul.f32 %v4042, %v4066
        %v4075 = vmul.f32 %v4043, %v4067
        %v4076 = vmul.f32 %v4044, %v4068
        %v4077 = vmul.f32 %v4045, %v4069
        %v4078 = vmul.f32 %v4046, %v4070
        %v4080 = vsel %vm1340, %v4071, 0
        %v4083 = vsel %vm1340, %v4072, 0
        %v4086 = vsel %vm1340, %v4073, 0
        %v4089 = vsel %vm1340, %v4074, 0
        %v4092 = vsel %vm1340, %v4075, 0
        %v4095 = vsel %vm1340, %v4076, 0
        %v4098 = vsel %vm1340, %v4077, 0
        %v4101 = vsel %vm1340, %v4078, 0
        %4103 = vmatprep.subr.mxu0 0.0
        %4104 = vmatpush1.msra.mxu0 %v2468
        %4105 = vmatprep.subr.mxu0 0.0
        %4106 = vmatpush1.msra.mxu0 %v2469
        %4107 = vmatprep.subr.mxu0 0.0
        %4108 = vmatpush1.msra.mxu0 %v2470
        %4109 = vmatprep.subr.mxu0 0.0
        %4110 = vmatpush1.msra.mxu0 %v2471
        %4111 = vmatprep.subr.mxu0 0.0
        %4112 = vmatpush1.msra.mxu0 %v2472
        %4113 = vmatprep.subr.mxu0 0.0
        %4114 = vmatpush1.msra.mxu0 %v2473
        %4115 = vmatprep.subr.mxu0 0.0
        %4116 = vmatpush1.msra.mxu0 %v2474
        %4117 = vmatprep.subr.mxu0 0.0
        %4118 = vmatpush1.msra.mxu0 %v2475
        %4119 = vmatprep.subr.mxu0 0.0
        %4120 = vmatpush1.msra.mxu0 0.0
        %4121 = vmatprep.subr.mxu0 0.0
        %4122 = vmatpush1.msra.mxu0 0.0
        %4123 = vmatprep.subr.mxu0 0.0
        %4124 = vmatpush1.msra.mxu0 0.0
        %4125 = vmatprep.subr.mxu0 0.0
        %4126 = vmatpush1.msra.mxu0 0.0
        %4127 = vmatprep.subr.mxu0 0.0
        %4128 = vmatpush1.msra.mxu0 0.0
        %4129 = vmatprep.subr.mxu0 0.0
        %4130 = vmatpush1.msra.mxu0 0.0
        %4131 = vmatprep.subr.mxu0 0.0
        %4132 = vmatpush1.msra.mxu0 0.0
        %4133 = vmatprep.subr.mxu0 0.0
        %4134 = vmatpush1.msra.mxu0 0.0
        %4135 = vmatprep.subr.mxu0 0.0
        %4136 = vmatpush1.msra.mxu0 0.0
        %4137 = vmatprep.subr.mxu0 0.0
        %4138 = vmatpush1.msra.mxu0 0.0
        %4139 = vmatprep.subr.mxu0 0.0
        %4140 = vmatpush1.msra.mxu0 0.0
        %4141 = vmatprep.subr.mxu0 0.0
        %4142 = vmatpush1.msra.mxu0 0.0
        %4143 = vmatprep.subr.mxu0 0.0
        %4144 = vmatpush1.msra.mxu0 0.0
        %4145 = vmatprep.subr.mxu0 0.0
        %4146 = vmatpush1.msra.mxu0 0.0
        %4147 = vmatprep.subr.mxu0 0.0
        %4148 = vmatpush1.msra.mxu0 0.0
        %4149 = vmatprep.subr.mxu0 0.0
        %4150 = vmatpush1.msra.mxu0 0.0
        %4151 = vmatprep.subr.mxu0 0.0
        %4152 = vmatpush1.msra.mxu0 0.0
        %4153 = vmatprep.subr.mxu0 0.0
        %4154 = vmatpush1.msra.mxu0 0.0
        %4155 = vmatprep.subr.mxu0 0.0
        %4156 = vmatpush1.msra.mxu0 0.0
        %4157 = vmatprep.subr.mxu0 0.0
        %4158 = vmatpush1.msra.mxu0 0.0
        %4159 = vmatprep.subr.mxu0 0.0
        %4160 = vmatpush1.msra.mxu0 0.0
        %4161 = vmatprep.subr.mxu0 0.0
        %4162 = vmatpush1.msra.mxu0 0.0
        %4163 = vmatprep.subr.mxu0 0.0
        %4164 = vmatpush1.msra.mxu0 0.0
        %4165 = vmatprep.subr.mxu0 0.0
        %4166 = vmatpush1.msra.mxu0 0.0
        %4167 = vmatprep.mubr.f32.mxu0 0.0
        %4168 = vmatmul.mubr.f32.gmra.mrb[0].mxu0 %v4080
        %v4169 = vpop.f32.mrb[0].mxu0
        %v4170 = vadd.f32 0.0, %v4169
        %v4171 = vpop.f32.mrb[0].mxu0
        %4172 = vmatprep.mubr.f32.mxu0 0.0
        %4173 = vmatmul.mubr.f32.gmra.mrb[0].mxu0 %v4083
        %v4174 = vpop.f32.mrb[0].mxu0
        %v4175 = vadd.f32 0.0, %v4174
        %v4176 = vpop.f32.mrb[0].mxu0
        %4177 = vmatprep.mubr.f32.mxu0 0.0
        %4178 = vmatmul.mubr.f32.gmra.mrb[0].mxu0 %v4086
        %v4179 = vpop.f32.mrb[0].mxu0
        %v4180 = vadd.f32 0.0, %v4179
        %v4181 = vpop.f32.mrb[0].mxu0
        %4182 = vmatprep.mubr.f32.mxu0 0.0
        %4183 = vmatmul.mubr.f32.gmra.mrb[0].mxu0 %v4089
        %v4184 = vpop.f32.mrb[0].mxu0
        %v4185 = vadd.f32 0.0, %v4184
        %v4186 = vpop.f32.mrb[0].mxu0
        %4187 = vmatprep.mubr.f32.mxu0 0.0
        %4188 = vmatmul.mubr.f32.gmra.mrb[0].mxu0 %v4092
        %v4189 = vpop.f32.mrb[0].mxu0
        %v4190 = vadd.f32 0.0, %v4189
        %v4191 = vpop.f32.mrb[0].mxu0
        %4192 = vmatprep.mubr.f32.mxu0 0.0
        %4193 = vmatmul.mubr.f32.gmra.mrb[0].mxu0 %v4095
        %v4194 = vpop.f32.mrb[0].mxu0
        %v4195 = vadd.f32 0.0, %v4194
        %v4196 = vpop.f32.mrb[0].mxu0
        %4197 = vmatprep.mubr.f32.mxu0 0.0
        %4198 = vmatmul.mubr.f32.gmra.mrb[0].mxu0 %v4098
        %v4199 = vpop.f32.mrb[0].mxu0
        %v4200 = vadd.f32 0.0, %v4199
        %v4201 = vpop.f32.mrb[0].mxu0
        %4202 = vmatprep.mubr.f32.mxu0 0.0
        %4203 = vmatmul.mubr.f32.gmra.mrb[0].mxu0 %v4101
        %v4204 = vpop.f32.mrb[0].mxu0
        %v4205 = vadd.f32 0.0, %v4204
        %v4206 = vpop.f32.mrb[0].mxu0
        %4207 = vdwg.mxu0
        %v4208 = vadd.f32 %v3770, %v4170
        %v4209 = vadd.f32 %v3771, %v4175
        %v4210 = vadd.f32 %v3772, %v4180
        %v4211 = vadd.f32 %v3773, %v4185
        %v4212 = vadd.f32 %v3774, %v4190
        %v4213 = vadd.f32 %v3775, %v4195
        %v4214 = vadd.f32 %v3776, %v4200
        %v4215 = vadd.f32 %v3777, %v4205
        %v4216 = vlaneseq
        %v4217 = vshrl.u32 %v4216, 7
        %v4218 = vsub.s32 0, %v4217
        %v4219 = vrot.slane %v2483, %v4218
        %v4220 = vadd.f32 %v4208, %v4219
        %v4221 = vadd.f32 %v4209, %v4219
        %v4222 = vadd.f32 %v4210, %v4219
        %v4223 = vadd.f32 %v4211, %v4219
        %v4224 = vadd.f32 %v4212, %v4219
        %v4225 = vadd.f32 %v4213, %v4219
        %v4226 = vadd.f32 %v4214, %v4219
        %v4227 = vadd.f32 %v4215, %v4219
        %v4228 = vld [vmem:[%s6] sm:$0xff]
        %v4229 = vld [vmem:[%s6 + $0x8] sm:$0xff]
        %v4230 = vld [vmem:[%s6 + $0x10] sm:$0xff]
        %v4231 = vld [vmem:[%s6 + $0x18] sm:$0xff]
        %v4232 = vld [vmem:[%s6 + $0x20] sm:$0xff]
        %v4233 = vld [vmem:[%s6 + $0x28] sm:$0xff]
        %v4234 = vld [vmem:[%s6 + $0x30] sm:$0xff]
        %v4235 = vld [vmem:[%s6 + $0x38] sm:$0xff]
        %v4237 = vsel %vm1340, %v4228, 0
        %v4240 = vsel %vm1340, %v4229, 0
        %v4243 = vsel %vm1340, %v4230, 0
        %v4246 = vsel %vm1340, %v4231, 0
        %v4249 = vsel %vm1340, %v4232, 0
        %v4252 = vsel %vm1340, %v4233, 0
        %v4255 = vsel %vm1340, %v4234, 0
        %v4258 = vsel %vm1340, %v4235, 0
        %4260 = vmatprep.subr.mxu0 0.0
        %4261 = vmatpush1.msra.mxu0 %v4220
        %4262 = vmatprep.subr.mxu0 0.0
        %4263 = vmatpush1.msra.mxu0 %v4221
        %4264 = vmatprep.subr.mxu0 0.0
        %4265 = vmatpush1.msra.mxu0 %v4222
        %4266 = vmatprep.subr.mxu0 0.0
        %4267 = vmatpush1.msra.mxu0 %v4223
        %4268 = vmatprep.subr.mxu0 0.0
        %4269 = vmatpush1.msra.mxu0 %v4224
        %4270 = vmatprep.subr.mxu0 0.0
        %4271 = vmatpush1.msra.mxu0 %v4225
        %4272 = vmatprep.subr.mxu0 0.0
        %4273 = vmatpush1.msra.mxu0 %v4226
        %4274 = vmatprep.subr.mxu0 0.0
        %4275 = vmatpush1.msra.mxu0 %v4227
        %4276 = vmatprep.subr.mxu0 0.0
        %4277 = vmatpush1.msra.mxu0 0.0
        %4278 = vmatprep.subr.mxu0 0.0
        %4279 = vmatpush1.msra.mxu0 0.0
        %4280 = vmatprep.subr.mxu0 0.0
        %4281 = vmatpush1.msra.mxu0 0.0
        %4282 = vmatprep.subr.mxu0 0.0
        %4283 = vmatpush1.msra.mxu0 0.0
        %4284 = vmatprep.subr.mxu0 0.0
        %4285 = vmatpush1.msra.mxu0 0.0
        %4286 = vmatprep.subr.mxu0 0.0
        %4287 = vmatpush1.msra.mxu0 0.0
        %4288 = vmatprep.subr.mxu0 0.0
        %4289 = vmatpush1.msra.mxu0 0.0
        %4290 = vmatprep.subr.mxu0 0.0
        %4291 = vmatpush1.msra.mxu0 0.0
        %4292 = vmatprep.subr.mxu0 0.0
        %4293 = vmatpush1.msra.mxu0 0.0
        %4294 = vmatprep.subr.mxu0 0.0
        %4295 = vmatpush1.msra.mxu0 0.0
        %4296 = vmatprep.subr.mxu0 0.0
        %4297 = vmatpush1.msra.mxu0 0.0
        %4298 = vmatprep.subr.mxu0 0.0
        %4299 = vmatpush1.msra.mxu0 0.0
        %4300 = vmatprep.subr.mxu0 0.0
        %4301 = vmatpush1.msra.mxu0 0.0
        %4302 = vmatprep.subr.mxu0 0.0
        %4303 = vmatpush1.msra.mxu0 0.0
        %4304 = vmatprep.subr.mxu0 0.0
        %4305 = vmatpush1.msra.mxu0 0.0
        %4306 = vmatprep.subr.mxu0 0.0
        %4307 = vmatpush1.msra.mxu0 0.0
        %4308 = vmatprep.subr.mxu0 0.0
        %4309 = vmatpush1.msra.mxu0 0.0
        %4310 = vmatprep.subr.mxu0 0.0
        %4311 = vmatpush1.msra.mxu0 0.0
        %4312 = vmatprep.subr.mxu0 0.0
        %4313 = vmatpush1.msra.mxu0 0.0
        %4314 = vmatprep.subr.mxu0 0.0
        %4315 = vmatpush1.msra.mxu0 0.0
        %4316 = vmatprep.subr.mxu0 0.0
        %4317 = vmatpush1.msra.mxu0 0.0
        %4318 = vmatprep.subr.mxu0 0.0
        %4319 = vmatpush1.msra.mxu0 0.0
        %4320 = vmatprep.subr.mxu0 0.0
        %4321 = vmatpush1.msra.mxu0 0.0
        %4322 = vmatprep.subr.mxu0 0.0
        %4323 = vmatpush1.msra.mxu0 0.0
        %4324 = vmatprep.mubr.f32.mxu0 0.0
        %4325 = vmatmul.mubr.f32.gmra.mrb[0].mxu0 %v4237
        %v4326 = vpop.f32.mrb[0].mxu0
        %v4327 = vadd.f32 0.0, %v4326
        %v4328 = vpop.f32.mrb[0].mxu0
        %4329 = vmatprep.mubr.f32.mxu0 0.0
        %4330 = vmatmul.mubr.f32.gmra.mrb[0].mxu0 %v4240
        %v4331 = vpop.f32.mrb[0].mxu0
        %v4332 = vadd.f32 0.0, %v4331
        %v4333 = vpop.f32.mrb[0].mxu0
        %4334 = vmatprep.mubr.f32.mxu0 0.0
        %4335 = vmatmul.mubr.f32.gmra.mrb[0].mxu0 %v4243
        %v4336 = vpop.f32.mrb[0].mxu0
        %v4337 = vadd.f32 0.0, %v4336
        %v4338 = vpop.f32.mrb[0].mxu0
        %4339 = vmatprep.mubr.f32.mxu0 0.0
        %4340 = vmatmul.mubr.f32.gmra.mrb[0].mxu0 %v4246
        %v4341 = vpop.f32.mrb[0].mxu0
        %v4342 = vadd.f32 0.0, %v4341
        %v4343 = vpop.f32.mrb[0].mxu0
        %4344 = vmatprep.mubr.f32.mxu0 0.0
        %4345 = vmatmul.mubr.f32.gmra.mrb[0].mxu0 %v4249
        %v4346 = vpop.f32.mrb[0].mxu0
        %v4347 = vadd.f32 0.0, %v4346
        %v4348 = vpop.f32.mrb[0].mxu0
        %4349 = vmatprep.mubr.f32.mxu0 0.0
        %4350 = vmatmul.mubr.f32.gmra.mrb[0].mxu0 %v4252
        %v4351 = vpop.f32.mrb[0].mxu0
        %v4352 = vadd.f32 0.0, %v4351
        %v4353 = vpop.f32.mrb[0].mxu0
        %4354 = vmatprep.mubr.f32.mxu0 0.0
        %4355 = vmatmul.mubr.f32.gmra.mrb[0].mxu0 %v4255
        %v4356 = vpop.f32.mrb[0].mxu0
        %v4357 = vadd.f32 0.0, %v4356
        %v4358 = vpop.f32.mrb[0].mxu0
        %4359 = vmatprep.mubr.f32.mxu0 0.0
        %4360 = vmatmul.mubr.f32.gmra.mrb[0].mxu0 %v4258
        %v4361 = vpop.f32.mrb[0].mxu0
        %v4362 = vadd.f32 0.0, %v4361
        %v4363 = vpop.f32.mrb[0].mxu0
        %4364 = vdwg.mxu0
        %4367 = vrot.lane.b32.xlu0 %v4337, 16
        %v4368 = vpop.permute.xlu0 %4367
        %4369 = vrot.lane.b32.xlu0 %v4342, 16
        %v4370 = vpop.permute.xlu0 %4369
        %4375 = vrot.lane.b32.xlu0 %v4347, 32
        %v4376 = vpop.permute.xlu0 %4375
        %4377 = vrot.lane.b32.xlu0 %v4352, 32
        %v4378 = vpop.permute.xlu0 %4377
        %4383 = vrot.lane.b32.xlu0 %v4357, 48
        %v4384 = vpop.permute.xlu0 %4383
        %4385 = vrot.lane.b32.xlu0 %v4362, 48
        %v4386 = vpop.permute.xlu0 %4385
        %v4389 = vsel %vm564, %v4327, %v4368
        %v4390 = vsel %vm564, %v4332, %v4370
        %vm4391 = vcmask 261120
        %v4392 = vsel %vm4391, %v4389, %v4376
        %v4393 = vsel %vm4391, %v4390, %v4378
        %vm4394 = vcmask 392192
        %v4395 = vsel %vm4394, %v4392, %v4384
        %v4396 = vsel %vm4394, %v4393, %v4386
        %v4397 = vld [vmem:[%s6 + $0x40] sm:$0x1]
        %v4398 = vld [vmem:[%s6 + $0x41] sm:$0x1]
        %v4399 = vld [vmem:[%s6 + $0x42] sm:$0xff]
        %v4400 = vld [vmem:[%s6 + $0x4a] sm:$0xff]
        %v4401 = vld [vmem:[%s6 + $0x52] sm:$0xff]
        %v4402 = vld [vmem:[%s6 + $0x5a] sm:$0xff]
        %v4403 = vld [vmem:[%s6 + $0x62] sm:$0xff]
        %v4404 = vld [vmem:[%s6 + $0x6a] sm:$0xff]
        %v4405 = vld [vmem:[%s6 + $0x72] sm:$0xff]
        %v4406 = vld [vmem:[%s6 + $0x7a] sm:$0xff]
        %v4407 = vsel %vm1340, %v4395, 0.0
        %4408 = vadd.xlane.f32.xlu0 %v4407
        %v4409 = vpop.xlane.xlu0 %4408
        %v4410 = vsel %vm1340, %v4396, 0.0
        %4411 = vadd.xlane.f32.xlu0 %v4410
        %v4412 = vpop.xlane.xlu0 %4411
        %v4413 = vrcp.pop 64.0
        %v4414 = vmul.f32 %v4409, %v4413
        %v4415 = vmul.f32 %v4412, %v4413
        %v4416 = vsub.f32 %v4395, %v4414
        %v4417 = vsub.f32 %v4396, %v4415
        %v4418 = vmul.f32 %v4416, %v4416
        %v4419 = vmul.f32 %v4417, %v4417
        %v4420 = vsel %vm1340, %v4418, 0.0
        %4421 = vadd.xlane.f32.xlu0 %v4420
        %v4422 = vpop.xlane.xlu0 %4421
        %v4423 = vsel %vm1340, %v4419, 0.0
        %4424 = vadd.xlane.f32.xlu0 %v4423
        %v4425 = vpop.xlane.xlu0 %4424
        %v4426 = vmul.f32 %v4422, %v4413
        %v4427 = vmul.f32 %v4425, %v4413
        %v4428 = vadd.f32 %v4426, 1e-05
        %v4429 = vadd.f32 %v4427, 1e-05
        %v4430 = vrsqrt.pop %v4428
        %v4431 = vrsqrt.pop %v4429
        %v4432 = vmul.f32 %v4416, %v4430
        %v4433 = vmul.f32 %v4417, %v4431
        %v4434 = vlaneseq
        %v4435 = vshrl.u32 %v4434, 7
        %v4436 = vsub.s32 0, %v4435
        %v4437 = vrot.slane %v4397, %v4436
        %v4438 = vmul.f32 %v4432, %v4437
        %v4439 = vmul.f32 %v4433, %v4437
        %v4440 = vlaneseq
        %v4441 = vshrl.u32 %v4440, 7
        %v4442 = vsub.s32 0, %v4441
        %v4443 = vrot.slane %v4398, %v4442
        %v4444 = vadd.f32 %v4438, %v4443
        %v4445 = vadd.f32 %v4439, %v4443
        %v4447 = vsel %vm1340, %v4444, 0
        %v4450 = vsel %vm1340, %v4445, 0
        %4452 = vmatprep.subr.mxu0 0.0
        %4453 = vmatpush1.msra.mxu0 %v4399
        %4454 = vmatprep.subr.mxu0 0.0
        %4455 = vmatpush1.msra.mxu0 %v4400
        %4456 = vmatprep.subr.mxu0 0.0
        %4457 = vmatpush1.msra.mxu0 %v4401
        %4458 = vmatprep.subr.mxu0 0.0
        %4459 = vmatpush1.msra.mxu0 %v4402
        %4460 = vmatprep.subr.mxu0 0.0
        %4461 = vmatpush1.msra.mxu0 %v4403
        %4462 = vmatprep.subr.mxu0 0.0
        %4463 = vmatpush1.msra.mxu0 %v4404
        %4464 = vmatprep.subr.mxu0 0.0
        %4465 = vmatpush1.msra.mxu0 %v4405
        %4466 = vmatprep.subr.mxu0 0.0
        %4467 = vmatpush1.msra.mxu0 %v4406
        %4468 = vmatprep.subr.mxu0 0.0
        %4469 = vmatpush1.msra.mxu0 0.0
        %4470 = vmatprep.subr.mxu0 0.0
        %4471 = vmatpush1.msra.mxu0 0.0
        %4472 = vmatprep.subr.mxu0 0.0
        %4473 = vmatpush1.msra.mxu0 0.0
        %4474 = vmatprep.subr.mxu0 0.0
        %4475 = vmatpush1.msra.mxu0 0.0
        %4476 = vmatprep.subr.mxu0 0.0
        %4477 = vmatpush1.msra.mxu0 0.0
        %4478 = vmatprep.subr.mxu0 0.0
        %4479 = vmatpush1.msra.mxu0 0.0
        %4480 = vmatprep.subr.mxu0 0.0
        %4481 = vmatpush1.msra.mxu0 0.0
        %4482 = vmatprep.subr.mxu0 0.0
        %4483 = vmatpush1.msra.mxu0 0.0
        %4484 = vmatprep.subr.mxu0 0.0
        %4485 = vmatpush1.msra.mxu0 0.0
        %4486 = vmatprep.subr.mxu0 0.0
        %4487 = vmatpush1.msra.mxu0 0.0
        %4488 = vmatprep.subr.mxu0 0.0
        %4489 = vmatpush1.msra.mxu0 0.0
        %4490 = vmatprep.subr.mxu0 0.0
        %4491 = vmatpush1.msra.mxu0 0.0
        %4492 = vmatprep.subr.mxu0 0.0
        %4493 = vmatpush1.msra.mxu0 0.0
        %4494 = vmatprep.subr.mxu0 0.0
        %4495 = vmatpush1.msra.mxu0 0.0
        %4496 = vmatprep.subr.mxu0 0.0
        %4497 = vmatpush1.msra.mxu0 0.0
        %4498 = vmatprep.subr.mxu0 0.0
        %4499 = vmatpush1.msra.mxu0 0.0
        %4500 = vmatprep.subr.mxu0 0.0
        %4501 = vmatpush1.msra.mxu0 0.0
        %4502 = vmatprep.subr.mxu0 0.0
        %4503 = vmatpush1.msra.mxu0 0.0
        %4504 = vmatprep.subr.mxu0 0.0
        %4505 = vmatpush1.msra.mxu0 0.0
        %4506 = vmatprep.subr.mxu0 0.0
        %4507 = vmatpush1.msra.mxu0 0.0
        %4508 = vmatprep.subr.mxu0 0.0
        %4509 = vmatpush1.msra.mxu0 0.0
        %4510 = vmatprep.subr.mxu0 0.0
        %4511 = vmatpush1.msra.mxu0 0.0
        %4512 = vmatprep.subr.mxu0 0.0
        %4513 = vmatpush1.msra.mxu0 0.0
        %4514 = vmatprep.subr.mxu0 0.0
        %4515 = vmatpush1.msra.mxu0 0.0
        %4516 = vmatprep.mubr.f32.mxu0 0.0
        %4517 = vmatmul.mubr.f32.gmra.mrb[0].mxu0 %v4447
        %v4518 = vpop.f32.mrb[0].mxu0
        %v4519 = vadd.f32 0.0, %v4518
        %v4520 = vpop.f32.mrb[0].mxu0
        %4521 = vmatprep.mubr.f32.mxu0 0.0
        %4522 = vmatmul.mubr.f32.gmra.mrb[0].mxu0 %v4450
        %v4523 = vpop.f32.mrb[0].mxu0
        %v4524 = vadd.f32 0.0, %v4523
        %v4525 = vpop.f32.mrb[0].mxu0
        %4526 = vdwg.mxu0
        %v4527 = vld [vmem:[%s7] sm:$0xff]
        %v4528 = vld [vmem:[%s7 + $0x8] sm:$0xff]
        %v4529 = vld [vmem:[%s7 + $0x10] sm:$0xff]
        %v4530 = vld [vmem:[%s7 + $0x18] sm:$0xff]
        %v4531 = vld [vmem:[%s7 + $0x20] sm:$0xff]
        %v4532 = vld [vmem:[%s7 + $0x28] sm:$0xff]
        %v4533 = vld [vmem:[%s7 + $0x30] sm:$0xff]
        %v4534 = vld [vmem:[%s7 + $0x38] sm:$0xff]
        %v4535 = vld [vmem:[%s7 + $0x40] sm:$0xff]
        %v4536 = vld [vmem:[%s7 + $0x48] sm:$0xff]
        %v4537 = vld [vmem:[%s7 + $0x50] sm:$0xff]
        %v4538 = vld [vmem:[%s7 + $0x58] sm:$0xff]
        %v4539 = vld [vmem:[%s7 + $0x60] sm:$0xff]
        %v4540 = vld [vmem:[%s7 + $0x68] sm:$0xff]
        %v4541 = vld [vmem:[%s7 + $0x70] sm:$0xff]
        %v4542 = vld [vmem:[%s7 + $0x78] sm:$0xff]
        %v4543 = vld [vmem:[%s7 + $0x80] sm:$0xff]
        %v4544 = vld [vmem:[%s7 + $0x88] sm:$0xff]
        %v4545 = vld [vmem:[%s7 + $0x90] sm:$0xff]
        %v4546 = vld [vmem:[%s7 + $0x98] sm:$0xff]
        %v4547 = vld [vmem:[%s7 + $0xa0] sm:$0xff]
        %v4548 = vld [vmem:[%s7 + $0xa8] sm:$0xff]
        %v4549 = vld [vmem:[%s7 + $0xb0] sm:$0xff]
        %v4550 = vld [vmem:[%s7 + $0xb8] sm:$0xff]
        %v4551 = vld [vmem:[%s7 + $0xc0] sm:$0xff]
        %v4552 = vld [vmem:[%s7 + $0xc8] sm:$0xff]
        %v4553 = vld [vmem:[%s7 + $0xd0] sm:$0xff]
        %v4554 = vld [vmem:[%s7 + $0xd8] sm:$0xff]
        %v4555 = vld [vmem:[%s7 + $0xe0] sm:$0x1]
        %v4556 = vld [vmem:[%s7 + $0xe1] sm:$0x1]
        %v4557 = vld [vmem:[%s7 + $0xe2] sm:$0x1]
        %v4558 = vld [vmem:[%s7 + $0xe3] sm:$0x1]
        %v4559 = vld [vmem:[%s7 + $0xe4] sm:$0x1]
        %v4560 = vld [vmem:[%s7 + $0xe5] sm:$0x1]
        %v4561 = vld [vmem:[%s7 + $0xe6] sm:$0x1]
        %v4562 = vld [vmem:[%s7 + $0xe7] sm:$0x1]
        %v4563 = vsel %vm4391, %v4519, 0.0
        %4564 = vadd.xlane.f32.xlu0 %v4563
        %v4565 = vpop.xlane.xlu0 %4564
        %v4566 = vsel %vm4391, %v4524, 0.0
        %4567 = vadd.xlane.f32.xlu0 %v4566
        %v4568 = vpop.xlane.xlu0 %4567
        %v4569 = vrcp.pop 32.0
        %v4570 = vmul.f32 %v4565, %v4569
        %v4571 = vmul.f32 %v4568, %v4569
        %v4572 = vsub.f32 %v4519, %v4570
        %v4573 = vsub.f32 %v4524, %v4571
        %v4574 = vmul.f32 %v4572, %v4572
        %v4575 = vmul.f32 %v4573, %v4573
        %v4576 = vsel %vm4391, %v4574, 0.0
        %4577 = vadd.xlane.f32.xlu0 %v4576
        %v4578 = vpop.xlane.xlu0 %4577
        %v4579 = vsel %vm4391, %v4575, 0.0
        %4580 = vadd.xlane.f32.xlu0 %v4579
        %v4581 = vpop.xlane.xlu0 %4580
        %v4582 = vmul.f32 %v4578, %v4569
        %v4583 = vmul.f32 %v4581, %v4569
        %v4584 = vadd.f32 %v4582, 1e-05
        %v4585 = vadd.f32 %v4583, 1e-05
        %v4586 = vrsqrt.pop %v4584
        %v4587 = vrsqrt.pop %v4585
        %v4588 = vmul.f32 %v4572, %v4586
        %v4589 = vmul.f32 %v4573, %v4587
        %v4590 = vlaneseq
        %v4591 = vshrl.u32 %v4590, 7
        %v4592 = vsub.s32 0, %v4591
        %v4593 = vrot.slane %v4555, %v4592
        %v4594 = vmul.f32 %v4588, %v4593
        %v4595 = vmul.f32 %v4589, %v4593
        %v4596 = vlaneseq
        %v4597 = vshrl.u32 %v4596, 7
        %v4598 = vsub.s32 0, %v4597
        %v4599 = vrot.slane %v4556, %v4598
        %v4600 = vadd.f32 %v4594, %v4599
        %v4601 = vadd.f32 %v4595, %v4599
        %v4602 = vlaneseq
        %v4603 = vshrl.u32 %v4602, 7
        %v4604 = vsub.s32 0, %v4603
        %v4605 = vrot.slane %v4557, %v4604
        %v4607 = vsel %vm4391, %v4600, 0
        %v4610 = vsel %vm4391, %v4601, 0
        %4612 = vmatprep.subr.mxu0 0.0
        %4613 = vmatpush1.msra.mxu0 %v4527
        %4614 = vmatprep.subr.mxu0 0.0
        %4615 = vmatpush1.msra.mxu0 %v4528
        %4616 = vmatprep.subr.mxu0 0.0
        %4617 = vmatpush1.msra.mxu0 %v4529
        %4618 = vmatprep.subr.mxu0 0.0
        %4619 = vmatpush1.msra.mxu0 %v4530
        %4620 = vmatprep.subr.mxu0 0.0
        %4621 = vmatpush1.msra.mxu0 0.0
        %4622 = vmatprep.subr.mxu0 0.0
        %4623 = vmatpush1.msra.mxu0 0.0
        %4624 = vmatprep.subr.mxu0 0.0
        %4625 = vmatpush1.msra.mxu0 0.0
        %4626 = vmatprep.subr.mxu0 0.0
        %4627 = vmatpush1.msra.mxu0 0.0
        %4628 = vmatprep.subr.mxu0 0.0
        %4629 = vmatpush1.msra.mxu0 0.0
        %4630 = vmatprep.subr.mxu0 0.0
        %4631 = vmatpush1.msra.mxu0 0.0
        %4632 = vmatprep.subr.mxu0 0.0
        %4633 = vmatpush1.msra.mxu0 0.0
        %4634 = vmatprep.subr.mxu0 0.0
        %4635 = vmatpush1.msra.mxu0 0.0
        %4636 = vmatprep.subr.mxu0 0.0
        %4637 = vmatpush1.msra.mxu0 0.0
        %4638 = vmatprep.subr.mxu0 0.0
        %4639 = vmatpush1.msra.mxu0 0.0
        %4640 = vmatprep.subr.mxu0 0.0
        %4641 = vmatpush1.msra.mxu0 0.0
        %4642 = vmatprep.subr.mxu0 0.0
        %4643 = vmatpush1.msra.mxu0 0.0
        %4644 = vmatprep.subr.mxu0 0.0
        %4645 = vmatpush1.msra.mxu0 0.0
        %4646 = vmatprep.subr.mxu0 0.0
        %4647 = vmatpush1.msra.mxu0 0.0
        %4648 = vmatprep.subr.mxu0 0.0
        %4649 = vmatpush1.msra.mxu0 0.0
        %4650 = vmatprep.subr.mxu0 0.0
        %4651 = vmatpush1.msra.mxu0 0.0
        %4652 = vmatprep.subr.mxu0 0.0
        %4653 = vmatpush1.msra.mxu0 0.0
        %4654 = vmatprep.subr.mxu0 0.0
        %4655 = vmatpush1.msra.mxu0 0.0
        %4656 = vmatprep.subr.mxu0 0.0
        %4657 = vmatpush1.msra.mxu0 0.0
        %4658 = vmatprep.subr.mxu0 0.0
        %4659 = vmatpush1.msra.mxu0 0.0
        %4660 = vmatprep.subr.mxu0 0.0
        %4661 = vmatpush1.msra.mxu0 0.0
        %4662 = vmatprep.subr.mxu0 0.0
        %4663 = vmatpush1.msra.mxu0 0.0
        %4664 = vmatprep.subr.mxu0 0.0
        %4665 = vmatpush1.msra.mxu0 0.0
        %4666 = vmatprep.subr.mxu0 0.0
        %4667 = vmatpush1.msra.mxu0 0.0
        %4668 = vmatprep.subr.mxu0 0.0
        %4669 = vmatpush1.msra.mxu0 0.0
        %4670 = vmatprep.subr.mxu0 0.0
        %4671 = vmatpush1.msra.mxu0 0.0
        %4672 = vmatprep.subr.mxu0 0.0
        %4673 = vmatpush1.msra.mxu0 0.0
        %4674 = vmatprep.subr.mxu0 0.0
        %4675 = vmatpush1.msra.mxu0 0.0
        %4676 = vmatprep.mubr.f32.mxu0 0.0
        %4677 = vmatmul.mubr.f32.gmra.mrb[0].mxu0 %v4607
        %v4678 = vpop.f32.mrb[0].mxu0
        %v4679 = vadd.f32 %v4605, %v4678
        %v4680 = vpop.f32.mrb[0].mxu0
        %4681 = vmatprep.mubr.f32.mxu0 0.0
        %4682 = vmatmul.mubr.f32.gmra.mrb[0].mxu0 %v4610
        %v4683 = vpop.f32.mrb[0].mxu0
        %v4684 = vadd.f32 %v4605, %v4683
        %v4685 = vpop.f32.mrb[0].mxu0
        %4686 = vdwg.mxu0
        %4689 = vrot.lane.b32.xlu0 %v4679, 96
        %v4690 = vpop.permute.xlu0 %4689
        %4691 = vrot.lane.b32.xlu0 %v4684, 96
        %v4692 = vpop.permute.xlu0 %4691
        %v4693 = vsel %vm1001, %v4679, 0
        %v4695 = vsel %vm1001, %v4684, 0
        %v4697 = vsel %vm1001, %v4690, 0
        %v4699 = vsel %vm1001, %v4692, 0
        %4701 = vmatprep.subr.mxu0 0.0
        %4702 = vmatpush1.xpose.msra.mxu0 %v4697
        %4703 = vmatprep.subr.mxu0 0.0
        %4704 = vmatpush1.xpose.msra.mxu0 %v4699
        %4705 = vmatprep.subr.mxu0 0.0
        %4706 = vmatpush1.xpose.msra.mxu0 0.0
        %4707 = vmatprep.subr.mxu0 0.0
        %4708 = vmatpush1.xpose.msra.mxu0 0.0
        %4709 = vmatprep.subr.mxu0 0.0
        %4710 = vmatpush1.xpose.msra.mxu0 0.0
        %4711 = vmatprep.subr.mxu0 0.0
        %4712 = vmatpush1.xpose.msra.mxu0 0.0
        %4713 = vmatprep.subr.mxu0 0.0
        %4714 = vmatpush1.xpose.msra.mxu0 0.0
        %4715 = vmatprep.subr.mxu0 0.0
        %4716 = vmatpush1.xpose.msra.mxu0 0.0
        %4717 = vmatprep.subr.mxu0 0.0
        %4718 = vmatpush1.xpose.msra.mxu0 0.0
        %4719 = vmatprep.subr.mxu0 0.0
        %4720 = vmatpush1.xpose.msra.mxu0 0.0
        %4721 = vmatprep.subr.mxu0 0.0
        %4722 = vmatpush1.xpose.msra.mxu0 0.0
        %4723 = vmatprep.subr.mxu0 0.0
        %4724 = vmatpush1.xpose.msra.mxu0 0.0
        %4725 = vmatprep.subr.mxu0 0.0
        %4726 = vmatpush1.xpose.msra.mxu0 0.0
        %4727 = vmatprep.subr.mxu0 0.0
        %4728 = vmatpush1.xpose.msra.mxu0 0.0
        %4729 = vmatprep.subr.mxu0 0.0
        %4730 = vmatpush1.xpose.msra.mxu0 0.0
        %4731 = vmatprep.subr.mxu0 0.0
        %4732 = vmatpush1.xpose.msra.mxu0 0.0
        %4733 = vmatprep.subr.mxu0 0.0
        %4734 = vmatpush1.xpose.msra.mxu0 0.0
        %4735 = vmatprep.subr.mxu0 0.0
        %4736 = vmatpush1.xpose.msra.mxu0 0.0
        %4737 = vmatprep.subr.mxu0 0.0
        %4738 = vmatpush1.xpose.msra.mxu0 0.0
        %4739 = vmatprep.subr.mxu0 0.0
        %4740 = vmatpush1.xpose.msra.mxu0 0.0
        %4741 = vmatprep.subr.mxu0 0.0
        %4742 = vmatpush1.xpose.msra.mxu0 0.0
        %4743 = vmatprep.subr.mxu0 0.0
        %4744 = vmatpush1.xpose.msra.mxu0 0.0
        %4745 = vmatprep.subr.mxu0 0.0
        %4746 = vmatpush1.xpose.msra.mxu0 0.0
        %4747 = vmatprep.subr.mxu0 0.0
        %4748 = vmatpush1.xpose.msra.mxu0 0.0
        %4749 = vmatprep.subr.mxu0 0.0
        %4750 = vmatpush1.xpose.msra.mxu0 0.0
        %4751 = vmatprep.subr.mxu0 0.0
        %4752 = vmatpush1.xpose.msra.mxu0 0.0
        %4753 = vmatprep.subr.mxu0 0.0
        %4754 = vmatpush1.xpose.msra.mxu0 0.0
        %4755 = vmatprep.subr.mxu0 0.0
        %4756 = vmatpush1.xpose.msra.mxu0 0.0
        %4757 = vmatprep.subr.mxu0 0.0
        %4758 = vmatpush1.xpose.msra.mxu0 0.0
        %4759 = vmatprep.subr.mxu0 0.0
        %4760 = vmatpush1.xpose.msra.mxu0 0.0
        %4761 = vmatprep.subr.mxu0 0.0
        %4762 = vmatpush1.xpose.msra.mxu0 0.0
        %4763 = vmatprep.subr.mxu0 0.0
        %4764 = vmatpush1.xpose.msra.mxu0 0.0
        %4765 = vmatprep.mubr.f32.mxu0 0.0
        %4766 = vmatmul.mubr.f32.gmra.mrb[0].mxu0 %v4693
        %v4767 = vpop.f32.mrb[0].mxu0
        %v4768 = vadd.f32 0.0, %v4767
        %v4769 = vpop.f32.mrb[0].mxu0
        %4770 = vmatprep.mubr.f32.mxu0 0.0
        %4771 = vmatmul.mubr.f32.gmra.mrb[0].mxu0 %v4695
        %v4772 = vpop.f32.mrb[0].mxu0
        %v4773 = vadd.f32 0.0, %v4772
        %v4774 = vpop.f32.mrb[0].mxu0
        %4775 = vdwg.mxu0
        %4776 = vrot.lane.b32.xlu0 %v4679, 120
        %v4777 = vpop.permute.xlu0 %4776
        %4778 = vrot.lane.b32.xlu0 %v4684, 120
        %v4779 = vpop.permute.xlu0 %4778
        %4780 = vrot.lane.b32.xlu0 %v4679, 88
        %v4781 = vpop.permute.xlu0 %4780
        %4782 = vrot.lane.b32.xlu0 %v4684, 88
        %v4783 = vpop.permute.xlu0 %4782
        %v4784 = vsel %vm1001, %v4777, 0
        %v4786 = vsel %vm1001, %v4779, 0
        %v4788 = vsel %vm1001, %v4781, 0
        %v4790 = vsel %vm1001, %v4783, 0
        %4792 = vmatprep.subr.mxu0 0.0
        %4793 = vmatpush1.xpose.msra.mxu0 %v4788
        %4794 = vmatprep.subr.mxu0 0.0
        %4795 = vmatpush1.xpose.msra.mxu0 %v4790
        %4796 = vmatprep.subr.mxu0 0.0
        %4797 = vmatpush1.xpose.msra.mxu0 0.0
        %4798 = vmatprep.subr.mxu0 0.0
        %4799 = vmatpush1.xpose.msra.mxu0 0.0
        %4800 = vmatprep.subr.mxu0 0.0
        %4801 = vmatpush1.xpose.msra.mxu0 0.0
        %4802 = vmatprep.subr.mxu0 0.0
        %4803 = vmatpush1.xpose.msra.mxu0 0.0
        %4804 = vmatprep.subr.mxu0 0.0
        %4805 = vmatpush1.xpose.msra.mxu0 0.0
        %4806 = vmatprep.subr.mxu0 0.0
        %4807 = vmatpush1.xpose.msra.mxu0 0.0
        %4808 = vmatprep.subr.mxu0 0.0
        %4809 = vmatpush1.xpose.msra.mxu0 0.0
        %4810 = vmatprep.subr.mxu0 0.0
        %4811 = vmatpush1.xpose.msra.mxu0 0.0
        %4812 = vmatprep.subr.mxu0 0.0
        %4813 = vmatpush1.xpose.msra.mxu0 0.0
        %4814 = vmatprep.subr.mxu0 0.0
        %4815 = vmatpush1.xpose.msra.mxu0 0.0
        %4816 = vmatprep.subr.mxu0 0.0
        %4817 = vmatpush1.xpose.msra.mxu0 0.0
        %4818 = vmatprep.subr.mxu0 0.0
        %4819 = vmatpush1.xpose.msra.mxu0 0.0
        %4820 = vmatprep.subr.mxu0 0.0
        %4821 = vmatpush1.xpose.msra.mxu0 0.0
        %4822 = vmatprep.subr.mxu0 0.0
        %4823 = vmatpush1.xpose.msra.mxu0 0.0
        %4824 = vmatprep.subr.mxu0 0.0
        %4825 = vmatpush1.xpose.msra.mxu0 0.0
        %4826 = vmatprep.subr.mxu0 0.0
        %4827 = vmatpush1.xpose.msra.mxu0 0.0
        %4828 = vmatprep.subr.mxu0 0.0
        %4829 = vmatpush1.xpose.msra.mxu0 0.0
        %4830 = vmatprep.subr.mxu0 0.0
        %4831 = vmatpush1.xpose.msra.mxu0 0.0
        %4832 = vmatprep.subr.mxu0 0.0
        %4833 = vmatpush1.xpose.msra.mxu0 0.0
        %4834 = vmatprep.subr.mxu0 0.0
        %4835 = vmatpush1.xpose.msra.mxu0 0.0
        %4836 = vmatprep.subr.mxu0 0.0
        %4837 = vmatpush1.xpose.msra.mxu0 0.0
        %4838 = vmatprep.subr.mxu0 0.0
        %4839 = vmatpush1.xpose.msra.mxu0 0.0
        %4840 = vmatprep.subr.mxu0 0.0
        %4841 = vmatpush1.xpose.msra.mxu0 0.0
        %4842 = vmatprep.subr.mxu0 0.0
        %4843 = vmatpush1.xpose.msra.mxu0 0.0
        %4844 = vmatprep.subr.mxu0 0.0
        %4845 = vmatpush1.xpose.msra.mxu0 0.0
        %4846 = vmatprep.subr.mxu0 0.0
        %4847 = vmatpush1.xpose.msra.mxu0 0.0
        %4848 = vmatprep.subr.mxu0 0.0
        %4849 = vmatpush1.xpose.msra.mxu0 0.0
        %4850 = vmatprep.subr.mxu0 0.0
        %4851 = vmatpush1.xpose.msra.mxu0 0.0
        %4852 = vmatprep.subr.mxu0 0.0
        %4853 = vmatpush1.xpose.msra.mxu0 0.0
        %4854 = vmatprep.subr.mxu0 0.0
        %4855 = vmatpush1.xpose.msra.mxu0 0.0
        %4856 = vmatprep.mubr.f32.mxu0 0.0
        %4857 = vmatmul.mubr.f32.gmra.mrb[0].mxu0 %v4784
        %v4858 = vpop.f32.mrb[0].mxu0
        %v4859 = vadd.f32 0.0, %v4858
        %v4860 = vpop.f32.mrb[0].mxu0
        %4861 = vmatprep.mubr.f32.mxu0 0.0
        %4862 = vmatmul.mubr.f32.gmra.mrb[0].mxu0 %v4786
        %v4863 = vpop.f32.mrb[0].mxu0
        %v4864 = vadd.f32 0.0, %v4863
        %v4865 = vpop.f32.mrb[0].mxu0
        %4866 = vdwg.mxu0
        %4867 = vrot.lane.b32.xlu0 %v4679, 112
        %v4868 = vpop.permute.xlu0 %4867
        %4869 = vrot.lane.b32.xlu0 %v4684, 112
        %v4870 = vpop.permute.xlu0 %4869
        %4871 = vrot.lane.b32.xlu0 %v4679, 80
        %v4872 = vpop.permute.xlu0 %4871
        %4873 = vrot.lane.b32.xlu0 %v4684, 80
        %v4874 = vpop.permute.xlu0 %4873
        %v4875 = vsel %vm1001, %v4868, 0
        %v4877 = vsel %vm1001, %v4870, 0
        %v4879 = vsel %vm1001, %v4872, 0
        %v4881 = vsel %vm1001, %v4874, 0
        %4883 = vmatprep.subr.mxu0 0.0
        %4884 = vmatpush1.xpose.msra.mxu0 %v4879
        %4885 = vmatprep.subr.mxu0 0.0
        %4886 = vmatpush1.xpose.msra.mxu0 %v4881
        %4887 = vmatprep.subr.mxu0 0.0
        %4888 = vmatpush1.xpose.msra.mxu0 0.0
        %4889 = vmatprep.subr.mxu0 0.0
        %4890 = vmatpush1.xpose.msra.mxu0 0.0
        %4891 = vmatprep.subr.mxu0 0.0
        %4892 = vmatpush1.xpose.msra.mxu0 0.0
        %4893 = vmatprep.subr.mxu0 0.0
        %4894 = vmatpush1.xpose.msra.mxu0 0.0
        %4895 = vmatprep.subr.mxu0 0.0
        %4896 = vmatpush1.xpose.msra.mxu0 0.0
        %4897 = vmatprep.subr.mxu0 0.0
        %4898 = vmatpush1.xpose.msra.mxu0 0.0
        %4899 = vmatprep.subr.mxu0 0.0
        %4900 = vmatpush1.xpose.msra.mxu0 0.0
        %4901 = vmatprep.subr.mxu0 0.0
        %4902 = vmatpush1.xpose.msra.mxu0 0.0
        %4903 = vmatprep.subr.mxu0 0.0
        %4904 = vmatpush1.xpose.msra.mxu0 0.0
        %4905 = vmatprep.subr.mxu0 0.0
        %4906 = vmatpush1.xpose.msra.mxu0 0.0
        %4907 = vmatprep.subr.mxu0 0.0
        %4908 = vmatpush1.xpose.msra.mxu0 0.0
        %4909 = vmatprep.subr.mxu0 0.0
        %4910 = vmatpush1.xpose.msra.mxu0 0.0
        %4911 = vmatprep.subr.mxu0 0.0
        %4912 = vmatpush1.xpose.msra.mxu0 0.0
        %4913 = vmatprep.subr.mxu0 0.0
        %4914 = vmatpush1.xpose.msra.mxu0 0.0
        %4915 = vmatprep.subr.mxu0 0.0
        %4916 = vmatpush1.xpose.msra.mxu0 0.0
        %4917 = vmatprep.subr.mxu0 0.0
        %4918 = vmatpush1.xpose.msra.mxu0 0.0
        %4919 = vmatprep.subr.mxu0 0.0
        %4920 = vmatpush1.xpose.msra.mxu0 0.0
        %4921 = vmatprep.subr.mxu0 0.0
        %4922 = vmatpush1.xpose.msra.mxu0 0.0
        %4923 = vmatprep.subr.mxu0 0.0
        %4924 = vmatpush1.xpose.msra.mxu0 0.0
        %4925 = vmatprep.subr.mxu0 0.0
        %4926 = vmatpush1.xpose.msra.mxu0 0.0
        %4927 = vmatprep.subr.mxu0 0.0
        %4928 = vmatpush1.xpose.msra.mxu0 0.0
        %4929 = vmatprep.subr.mxu0 0.0
        %4930 = vmatpush1.xpose.msra.mxu0 0.0
        %4931 = vmatprep.subr.mxu0 0.0
        %4932 = vmatpush1.xpose.msra.mxu0 0.0
        %4933 = vmatprep.subr.mxu0 0.0
        %4934 = vmatpush1.xpose.msra.mxu0 0.0
        %4935 = vmatprep.subr.mxu0 0.0
        %4936 = vmatpush1.xpose.msra.mxu0 0.0
        %4937 = vmatprep.subr.mxu0 0.0
        %4938 = vmatpush1.xpose.msra.mxu0 0.0
        %4939 = vmatprep.subr.mxu0 0.0
        %4940 = vmatpush1.xpose.msra.mxu0 0.0
        %4941 = vmatprep.subr.mxu0 0.0
        %4942 = vmatpush1.xpose.msra.mxu0 0.0
        %4943 = vmatprep.subr.mxu0 0.0
        %4944 = vmatpush1.xpose.msra.mxu0 0.0
        %4945 = vmatprep.subr.mxu0 0.0
        %4946 = vmatpush1.xpose.msra.mxu0 0.0
        %4947 = vmatprep.mubr.f32.mxu0 0.0
        %4948 = vmatmul.mubr.f32.gmra.mrb[0].mxu0 %v4875
        %v4949 = vpop.f32.mrb[0].mxu0
        %v4950 = vadd.f32 0.0, %v4949
        %v4951 = vpop.f32.mrb[0].mxu0
        %4952 = vmatprep.mubr.f32.mxu0 0.0
        %4953 = vmatmul.mubr.f32.gmra.mrb[0].mxu0 %v4877
        %v4954 = vpop.f32.mrb[0].mxu0
        %v4955 = vadd.f32 0.0, %v4954
        %v4956 = vpop.f32.mrb[0].mxu0
        %4957 = vdwg.mxu0
        %4958 = vrot.lane.b32.xlu0 %v4679, 104
        %v4959 = vpop.permute.xlu0 %4958
        %4960 = vrot.lane.b32.xlu0 %v4684, 104
        %v4961 = vpop.permute.xlu0 %4960
        %4962 = vrot.lane.b32.xlu0 %v4679, 72
        %v4963 = vpop.permute.xlu0 %4962
        %4964 = vrot.lane.b32.xlu0 %v4684, 72
        %v4965 = vpop.permute.xlu0 %4964
        %v4966 = vsel %vm1001, %v4959, 0
        %v4968 = vsel %vm1001, %v4961, 0
        %v4970 = vsel %vm1001, %v4963, 0
        %v4972 = vsel %vm1001, %v4965, 0
        %4974 = vmatprep.subr.mxu0 0.0
        %4975 = vmatpush1.xpose.msra.mxu0 %v4970
        %4976 = vmatprep.subr.mxu0 0.0
        %4977 = vmatpush1.xpose.msra.mxu0 %v4972
        %4978 = vmatprep.subr.mxu0 0.0
        %4979 = vmatpush1.xpose.msra.mxu0 0.0
        %4980 = vmatprep.subr.mxu0 0.0
        %4981 = vmatpush1.xpose.msra.mxu0 0.0
        %4982 = vmatprep.subr.mxu0 0.0
        %4983 = vmatpush1.xpose.msra.mxu0 0.0
        %4984 = vmatprep.subr.mxu0 0.0
        %4985 = vmatpush1.xpose.msra.mxu0 0.0
        %4986 = vmatprep.subr.mxu0 0.0
        %4987 = vmatpush1.xpose.msra.mxu0 0.0
        %4988 = vmatprep.subr.mxu0 0.0
        %4989 = vmatpush1.xpose.msra.mxu0 0.0
        %4990 = vmatprep.subr.mxu0 0.0
        %4991 = vmatpush1.xpose.msra.mxu0 0.0
        %4992 = vmatprep.subr.mxu0 0.0
        %4993 = vmatpush1.xpose.msra.mxu0 0.0
        %4994 = vmatprep.subr.mxu0 0.0
        %4995 = vmatpush1.xpose.msra.mxu0 0.0
        %4996 = vmatprep.subr.mxu0 0.0
        %4997 = vmatpush1.xpose.msra.mxu0 0.0
        %4998 = vmatprep.subr.mxu0 0.0
        %4999 = vmatpush1.xpose.msra.mxu0 0.0
        %5000 = vmatprep.subr.mxu0 0.0
        %5001 = vmatpush1.xpose.msra.mxu0 0.0
        %5002 = vmatprep.subr.mxu0 0.0
        %5003 = vmatpush1.xpose.msra.mxu0 0.0
        %5004 = vmatprep.subr.mxu0 0.0
        %5005 = vmatpush1.xpose.msra.mxu0 0.0
        %5006 = vmatprep.subr.mxu0 0.0
        %5007 = vmatpush1.xpose.msra.mxu0 0.0
        %5008 = vmatprep.subr.mxu0 0.0
        %5009 = vmatpush1.xpose.msra.mxu0 0.0
        %5010 = vmatprep.subr.mxu0 0.0
        %5011 = vmatpush1.xpose.msra.mxu0 0.0
        %5012 = vmatprep.subr.mxu0 0.0
        %5013 = vmatpush1.xpose.msra.mxu0 0.0
        %5014 = vmatprep.subr.mxu0 0.0
        %5015 = vmatpush1.xpose.msra.mxu0 0.0
        %5016 = vmatprep.subr.mxu0 0.0
        %5017 = vmatpush1.xpose.msra.mxu0 0.0
        %5018 = vmatprep.subr.mxu0 0.0
        %5019 = vmatpush1.xpose.msra.mxu0 0.0
        %5020 = vmatprep.subr.mxu0 0.0
        %5021 = vmatpush1.xpose.msra.mxu0 0.0
        %5022 = vmatprep.subr.mxu0 0.0
        %5023 = vmatpush1.xpose.msra.mxu0 0.0
        %5024 = vmatprep.subr.mxu0 0.0
        %5025 = vmatpush1.xpose.msra.mxu0 0.0
        %5026 = vmatprep.subr.mxu0 0.0
        %5027 = vmatpush1.xpose.msra.mxu0 0.0
        %5028 = vmatprep.subr.mxu0 0.0
        %5029 = vmatpush1.xpose.msra.mxu0 0.0
        %5030 = vmatprep.subr.mxu0 0.0
        %5031 = vmatpush1.xpose.msra.mxu0 0.0
        %5032 = vmatprep.subr.mxu0 0.0
        %5033 = vmatpush1.xpose.msra.mxu0 0.0
        %5034 = vmatprep.subr.mxu0 0.0
        %5035 = vmatpush1.xpose.msra.mxu0 0.0
        %5036 = vmatprep.subr.mxu0 0.0
        %5037 = vmatpush1.xpose.msra.mxu0 0.0
        %5038 = vmatprep.mubr.f32.mxu0 0.0
        %5039 = vmatmul.mubr.f32.gmra.mrb[0].mxu0 %v4966
        %v5040 = vpop.f32.mrb[0].mxu0
        %v5041 = vadd.f32 0.0, %v5040
        %v5042 = vpop.f32.mrb[0].mxu0
        %5043 = vmatprep.mubr.f32.mxu0 0.0
        %5044 = vmatmul.mubr.f32.gmra.mrb[0].mxu0 %v4968
        %v5045 = vpop.f32.mrb[0].mxu0
        %v5046 = vadd.f32 0.0, %v5045
        %v5047 = vpop.f32.mrb[0].mxu0
        %5048 = vdwg.mxu0
        %v5049 = vld [vmem:[%s8] sm:$0xff]
        %v5050 = vld [vmem:[%s8 + $0x8] sm:$0xff]
        %v5051 = vld [vmem:[%s8 + $0x10] sm:$0xff]
        %v5052 = vld [vmem:[%s8 + $0x18] sm:$0xff]
        %v5053 = vld [vmem:[%s8 + $0x20] sm:$0xff]
        %v5054 = vld [vmem:[%s8 + $0x28] sm:$0xff]
        %v5055 = vld [vmem:[%s8 + $0x30] sm:$0xff]
        %v5056 = vld [vmem:[%s8 + $0x38] sm:$0xff]
        %v5057 = vadd.f32 %v4768, %v5049
        %v5058 = vadd.f32 %v4773, %v5050
        %v5059 = vadd.f32 %v4859, %v5051
        %v5060 = vadd.f32 %v4864, %v5052
        %v5061 = vadd.f32 %v4950, %v5053
        %v5062 = vadd.f32 %v4955, %v5054
        %v5063 = vadd.f32 %v5041, %v5055
        %v5064 = vadd.f32 %v5046, %v5056
        %v5065 = vsel %vm564, %v5057, -inf
        %5066 = vmax.xlane.f32.xlu0 %v5065
        %v5067 = vpop.xlane.xlu0 %5066
        %v5068 = vsel %vm564, %v5058, -inf
        %5069 = vmax.xlane.f32.xlu0 %v5068
        %v5070 = vpop.xlane.xlu0 %5069
        %v5071 = vsel %vm564, %v5059, -inf
        %5072 = vmax.xlane.f32.xlu0 %v5071
        %v5073 = vpop.xlane.xlu0 %5072
        %v5074 = vsel %vm564, %v5060, -inf
        %5075 = vmax.xlane.f32.xlu0 %v5074
        %v5076 = vpop.xlane.xlu0 %5075
        %v5077 = vsel %vm564, %v5061, -inf
        %5078 = vmax.xlane.f32.xlu0 %v5077
        %v5079 = vpop.xlane.xlu0 %5078
        %v5080 = vsel %vm564, %v5062, -inf
        %5081 = vmax.xlane.f32.xlu0 %v5080
        %v5082 = vpop.xlane.xlu0 %5081
        %v5083 = vsel %vm564, %v5063, -inf
        %5084 = vmax.xlane.f32.xlu0 %v5083
        %v5085 = vpop.xlane.xlu0 %5084
        %v5086 = vsel %vm564, %v5064, -inf
        %5087 = vmax.xlane.f32.xlu0 %v5086
        %v5088 = vpop.xlane.xlu0 %5087
        %v5089 = vsub.f32 %v5057, %v5067
        %v5090 = vsub.f32 %v5058, %v5070
        %v5091 = vsub.f32 %v5059, %v5073
        %v5092 = vsub.f32 %v5060, %v5076
        %v5093 = vsub.f32 %v5061, %v5079
        %v5094 = vsub.f32 %v5062, %v5082
        %v5095 = vsub.f32 %v5063, %v5085
        %v5096 = vsub.f32 %v5064, %v5088
        %v5097 = vmul.f32 %v5089, 1.442695
        %v5098 = vpow.pop %v5097
        %v5099 = vmul.f32 %v5090, 1.442695
        %v5100 = vpow.pop %v5099
        %v5101 = vmul.f32 %v5091, 1.442695
        %v5102 = vpow.pop %v5101
        %v5103 = vmul.f32 %v5092, 1.442695
        %v5104 = vpow.pop %v5103
        %v5105 = vmul.f32 %v5093, 1.442695
        %v5106 = vpow.pop %v5105
        %v5107 = vmul.f32 %v5094, 1.442695
        %v5108 = vpow.pop %v5107
        %v5109 = vmul.f32 %v5095, 1.442695
        %v5110 = vpow.pop %v5109
        %v5111 = vmul.f32 %v5096, 1.442695
        %v5112 = vpow.pop %v5111
        %v5113 = vsel %vm564, %v5098, 0.0
        %5114 = vadd.xlane.f32.xlu0 %v5113
        %v5115 = vpop.xlane.xlu0 %5114
        %v5116 = vsel %vm564, %v5100, 0.0
        %5117 = vadd.xlane.f32.xlu0 %v5116
        %v5118 = vpop.xlane.xlu0 %5117
        %v5119 = vsel %vm564, %v5102, 0.0
        %5120 = vadd.xlane.f32.xlu0 %v5119
        %v5121 = vpop.xlane.xlu0 %5120
        %v5122 = vsel %vm564, %v5104, 0.0
        %5123 = vadd.xlane.f32.xlu0 %v5122
        %v5124 = vpop.xlane.xlu0 %5123
        %v5125 = vsel %vm564, %v5106, 0.0
        %5126 = vadd.xlane.f32.xlu0 %v5125
        %v5127 = vpop.xlane.xlu0 %5126
        %v5128 = vsel %vm564, %v5108, 0.0
        %5129 = vadd.xlane.f32.xlu0 %v5128
        %v5130 = vpop.xlane.xlu0 %5129
        %v5131 = vsel %vm564, %v5110, 0.0
        %5132 = vadd.xlane.f32.xlu0 %v5131
        %v5133 = vpop.xlane.xlu0 %5132
        %v5134 = vsel %vm564, %v5112, 0.0
        %5135 = vadd.xlane.f32.xlu0 %v5134
        %v5136 = vpop.xlane.xlu0 %5135
        %v5137 = vrcp.pop %v5115
        %v5138 = vmul.f32 %v5098, %v5137
        %v5139 = vrcp.pop %v5118
        %v5140 = vmul.f32 %v5100, %v5139
        %v5141 = vrcp.pop %v5121
        %v5142 = vmul.f32 %v5102, %v5141
        %v5143 = vrcp.pop %v5124
        %v5144 = vmul.f32 %v5104, %v5143
        %v5145 = vrcp.pop %v5127
        %v5146 = vmul.f32 %v5106, %v5145
        %v5147 = vrcp.pop %v5130
        %v5148 = vmul.f32 %v5108, %v5147
        %v5149 = vrcp.pop %v5133
        %v5150 = vmul.f32 %v5110, %v5149
        %v5151 = vrcp.pop %v5136
        %v5152 = vmul.f32 %v5112, %v5151
        %5153 = vrot.lane.b32.xlu0 %v4679, 64
        %v5154 = vpop.permute.xlu0 %5153
        %5155 = vrot.lane.b32.xlu0 %v4684, 64
        %v5156 = vpop.permute.xlu0 %5155
        %v5160 = vsel %vm564, %v5138, 0
        %v5163 = vsel %vm564, %v5140, 0
        %5165 = vmatprep.subr.mxu0 0.0
        %5166 = vmatpush1.msra.mxu0 %v5154
        %5167 = vmatprep.subr.mxu0 0.0
        %5168 = vmatpush1.msra.mxu0 %v5156
        %5169 = vmatprep.subr.mxu0 0.0
        %5170 = vmatpush1.msra.mxu0 0.0
        %5171 = vmatprep.subr.mxu0 0.0
        %5172 = vmatpush1.msra.mxu0 0.0
        %5173 = vmatprep.subr.mxu0 0.0
        %5174 = vmatpush1.msra.mxu0 0.0
        %5175 = vmatprep.subr.mxu0 0.0
        %5176 = vmatpush1.msra.mxu0 0.0
        %5177 = vmatprep.subr.mxu0 0.0
        %5178 = vmatpush1.msra.mxu0 0.0
        %5179 = vmatprep.subr.mxu0 0.0
        %5180 = vmatpush1.msra.mxu0 0.0
        %5181 = vmatprep.subr.mxu0 0.0
        %5182 = vmatpush1.msra.mxu0 0.0
        %5183 = vmatprep.subr.mxu0 0.0
        %5184 = vmatpush1.msra.mxu0 0.0
        %5185 = vmatprep.subr.mxu0 0.0
        %5186 = vmatpush1.msra.mxu0 0.0
        %5187 = vmatprep.subr.mxu0 0.0
        %5188 = vmatpush1.msra.mxu0 0.0
        %5189 = vmatprep.subr.mxu0 0.0
        %5190 = vmatpush1.msra.mxu0 0.0
        %5191 = vmatprep.subr.mxu0 0.0
        %5192 = vmatpush1.msra.mxu0 0.0
        %5193 = vmatprep.subr.mxu0 0.0
        %5194 = vmatpush1.msra.mxu0 0.0
        %5195 = vmatprep.subr.mxu0 0.0
        %5196 = vmatpush1.msra.mxu0 0.0
        %5197 = vmatprep.subr.mxu0 0.0
        %5198 = vmatpush1.msra.mxu0 0.0
        %5199 = vmatprep.subr.mxu0 0.0
        %5200 = vmatpush1.msra.mxu0 0.0
        %5201 = vmatprep.subr.mxu0 0.0
        %5202 = vmatpush1.msra.mxu0 0.0
        %5203 = vmatprep.subr.mxu0 0.0
        %5204 = vmatpush1.msra.mxu0 0.0
        %5205 = vmatprep.subr.mxu0 0.0
        %5206 = vmatpush1.msra.mxu0 0.0
        %5207 = vmatprep.subr.mxu0 0.0
        %5208 = vmatpush1.msra.mxu0 0.0
        %5209 = vmatprep.subr.mxu0 0.0
        %5210 = vmatpush1.msra.mxu0 0.0
        %5211 = vmatprep.subr.mxu0 0.0
        %5212 = vmatpush1.msra.mxu0 0.0
        %5213 = vmatprep.subr.mxu0 0.0
        %5214 = vmatpush1.msra.mxu0 0.0
        %5215 = vmatprep.subr.mxu0 0.0
        %5216 = vmatpush1.msra.mxu0 0.0
        %5217 = vmatprep.subr.mxu0 0.0
        %5218 = vmatpush1.msra.mxu0 0.0
        %5219 = vmatprep.subr.mxu0 0.0
        %5220 = vmatpush1.msra.mxu0 0.0
        %5221 = vmatprep.subr.mxu0 0.0
        %5222 = vmatpush1.msra.mxu0 0.0
        %5223 = vmatprep.subr.mxu0 0.0
        %5224 = vmatpush1.msra.mxu0 0.0
        %5225 = vmatprep.subr.mxu0 0.0
        %5226 = vmatpush1.msra.mxu0 0.0
        %5227 = vmatprep.subr.mxu0 0.0
        %5228 = vmatpush1.msra.mxu0 0.0
        %5229 = vmatprep.mubr.f32.mxu0 0.0
        %5230 = vmatmul.mubr.f32.gmra.mrb[0].mxu0 %v5160
        %v5231 = vpop.f32.mrb[0].mxu0
        %v5232 = vadd.f32 0.0, %v5231
        %v5233 = vpop.f32.mrb[0].mxu0
        %5234 = vmatprep.mubr.f32.mxu0 0.0
        %5235 = vmatmul.mubr.f32.gmra.mrb[0].mxu0 %v5163
        %v5236 = vpop.f32.mrb[0].mxu0
        %v5237 = vadd.f32 0.0, %v5236
        %v5238 = vpop.f32.mrb[0].mxu0
        %5239 = vdwg.mxu0
        %5240 = vrot.lane.b32.xlu0 %v4679, 56
        %v5241 = vpop.permute.xlu0 %5240
        %5242 = vrot.lane.b32.xlu0 %v4684, 56
        %v5243 = vpop.permute.xlu0 %5242
        %v5247 = vsel %vm564, %v5142, 0
        %v5250 = vsel %vm564, %v5144, 0
        %5252 = vmatprep.subr.mxu0 0.0
        %5253 = vmatpush1.msra.mxu0 %v5241
        %5254 = vmatprep.subr.mxu0 0.0
        %5255 = vmatpush1.msra.mxu0 %v5243
        %5256 = vmatprep.subr.mxu0 0.0
        %5257 = vmatpush1.msra.mxu0 0.0
        %5258 = vmatprep.subr.mxu0 0.0
        %5259 = vmatpush1.msra.mxu0 0.0
        %5260 = vmatprep.subr.mxu0 0.0
        %5261 = vmatpush1.msra.mxu0 0.0
        %5262 = vmatprep.subr.mxu0 0.0
        %5263 = vmatpush1.msra.mxu0 0.0
        %5264 = vmatprep.subr.mxu0 0.0
        %5265 = vmatpush1.msra.mxu0 0.0
        %5266 = vmatprep.subr.mxu0 0.0
        %5267 = vmatpush1.msra.mxu0 0.0
        %5268 = vmatprep.subr.mxu0 0.0
        %5269 = vmatpush1.msra.mxu0 0.0
        %5270 = vmatprep.subr.mxu0 0.0
        %5271 = vmatpush1.msra.mxu0 0.0
        %5272 = vmatprep.subr.mxu0 0.0
        %5273 = vmatpush1.msra.mxu0 0.0
        %5274 = vmatprep.subr.mxu0 0.0
        %5275 = vmatpush1.msra.mxu0 0.0
        %5276 = vmatprep.subr.mxu0 0.0
        %5277 = vmatpush1.msra.mxu0 0.0
        %5278 = vmatprep.subr.mxu0 0.0
        %5279 = vmatpush1.msra.mxu0 0.0
        %5280 = vmatprep.subr.mxu0 0.0
        %5281 = vmatpush1.msra.mxu0 0.0
        %5282 = vmatprep.subr.mxu0 0.0
        %5283 = vmatpush1.msra.mxu0 0.0
        %5284 = vmatprep.subr.mxu0 0.0
        %5285 = vmatpush1.msra.mxu0 0.0
        %5286 = vmatprep.subr.mxu0 0.0
        %5287 = vmatpush1.msra.mxu0 0.0
        %5288 = vmatprep.subr.mxu0 0.0
        %5289 = vmatpush1.msra.mxu0 0.0
        %5290 = vmatprep.subr.mxu0 0.0
        %5291 = vmatpush1.msra.mxu0 0.0
        %5292 = vmatprep.subr.mxu0 0.0
        %5293 = vmatpush1.msra.mxu0 0.0
        %5294 = vmatprep.subr.mxu0 0.0
        %5295 = vmatpush1.msra.mxu0 0.0
        %5296 = vmatprep.subr.mxu0 0.0
        %5297 = vmatpush1.msra.mxu0 0.0
        %5298 = vmatprep.subr.mxu0 0.0
        %5299 = vmatpush1.msra.mxu0 0.0
        %5300 = vmatprep.subr.mxu0 0.0
        %5301 = vmatpush1.msra.mxu0 0.0
        %5302 = vmatprep.subr.mxu0 0.0
        %5303 = vmatpush1.msra.mxu0 0.0
        %5304 = vmatprep.subr.mxu0 0.0
        %5305 = vmatpush1.msra.mxu0 0.0
        %5306 = vmatprep.subr.mxu0 0.0
        %5307 = vmatpush1.msra.mxu0 0.0
        %5308 = vmatprep.subr.mxu0 0.0
        %5309 = vmatpush1.msra.mxu0 0.0
        %5310 = vmatprep.subr.mxu0 0.0
        %5311 = vmatpush1.msra.mxu0 0.0
        %5312 = vmatprep.subr.mxu0 0.0
        %5313 = vmatpush1.msra.mxu0 0.0
        %5314 = vmatprep.subr.mxu0 0.0
        %5315 = vmatpush1.msra.mxu0 0.0
        %5316 = vmatprep.mubr.f32.mxu0 0.0
        %5317 = vmatmul.mubr.f32.gmra.mrb[0].mxu0 %v5247
        %v5318 = vpop.f32.mrb[0].mxu0
        %v5319 = vadd.f32 0.0, %v5318
        %v5320 = vpop.f32.mrb[0].mxu0
        %5321 = vmatprep.mubr.f32.mxu0 0.0
        %5322 = vmatmul.mubr.f32.gmra.mrb[0].mxu0 %v5250
        %v5323 = vpop.f32.mrb[0].mxu0
        %v5324 = vadd.f32 0.0, %v5323
        %v5325 = vpop.f32.mrb[0].mxu0
        %5326 = vdwg.mxu0
        %5327 = vrot.lane.b32.xlu0 %v4679, 48
        %v5328 = vpop.permute.xlu0 %5327
        %5329 = vrot.lane.b32.xlu0 %v4684, 48
        %v5330 = vpop.permute.xlu0 %5329
        %v5334 = vsel %vm564, %v5146, 0
        %v5337 = vsel %vm564, %v5148, 0
        %5339 = vmatprep.subr.mxu0 0.0
        %5340 = vmatpush1.msra.mxu0 %v5328
        %5341 = vmatprep.subr.mxu0 0.0
        %5342 = vmatpush1.msra.mxu0 %v5330
        %5343 = vmatprep.subr.mxu0 0.0
        %5344 = vmatpush1.msra.mxu0 0.0
        %5345 = vmatprep.subr.mxu0 0.0
        %5346 = vmatpush1.msra.mxu0 0.0
        %5347 = vmatprep.subr.mxu0 0.0
        %5348 = vmatpush1.msra.mxu0 0.0
        %5349 = vmatprep.subr.mxu0 0.0
        %5350 = vmatpush1.msra.mxu0 0.0
        %5351 = vmatprep.subr.mxu0 0.0
        %5352 = vmatpush1.msra.mxu0 0.0
        %5353 = vmatprep.subr.mxu0 0.0
        %5354 = vmatpush1.msra.mxu0 0.0
        %5355 = vmatprep.subr.mxu0 0.0
        %5356 = vmatpush1.msra.mxu0 0.0
        %5357 = vmatprep.subr.mxu0 0.0
        %5358 = vmatpush1.msra.mxu0 0.0
        %5359 = vmatprep.subr.mxu0 0.0
        %5360 = vmatpush1.msra.mxu0 0.0
        %5361 = vmatprep.subr.mxu0 0.0
        %5362 = vmatpush1.msra.mxu0 0.0
        %5363 = vmatprep.subr.mxu0 0.0
        %5364 = vmatpush1.msra.mxu0 0.0
        %5365 = vmatprep.subr.mxu0 0.0
        %5366 = vmatpush1.msra.mxu0 0.0
        %5367 = vmatprep.subr.mxu0 0.0
        %5368 = vmatpush1.msra.mxu0 0.0
        %5369 = vmatprep.subr.mxu0 0.0
        %5370 = vmatpush1.msra.mxu0 0.0
        %5371 = vmatprep.subr.mxu0 0.0
        %5372 = vmatpush1.msra.mxu0 0.0
        %5373 = vmatprep.subr.mxu0 0.0
        %5374 = vmatpush1.msra.mxu0 0.0
        %5375 = vmatprep.subr.mxu0 0.0
        %5376 = vmatpush1.msra.mxu0 0.0
        %5377 = vmatprep.subr.mxu0 0.0
        %5378 = vmatpush1.msra.mxu0 0.0
        %5379 = vmatprep.subr.mxu0 0.0
        %5380 = vmatpush1.msra.mxu0 0.0
        %5381 = vmatprep.subr.mxu0 0.0
        %5382 = vmatpush1.msra.mxu0 0.0
        %5383 = vmatprep.subr.mxu0 0.0
        %5384 = vmatpush1.msra.mxu0 0.0
        %5385 = vmatprep.subr.mxu0 0.0
        %5386 = vmatpush1.msra.mxu0 0.0
        %5387 = vmatprep.subr.mxu0 0.0
        %5388 = vmatpush1.msra.mxu0 0.0
        %5389 = vmatprep.subr.mxu0 0.0
        %5390 = vmatpush1.msra.mxu0 0.0
        %5391 = vmatprep.subr.mxu0 0.0
        %5392 = vmatpush1.msra.mxu0 0.0
        %5393 = vmatprep.subr.mxu0 0.0
        %5394 = vmatpush1.msra.mxu0 0.0
        %5395 = vmatprep.subr.mxu0 0.0
        %5396 = vmatpush1.msra.mxu0 0.0
        %5397 = vmatprep.subr.mxu0 0.0
        %5398 = vmatpush1.msra.mxu0 0.0
        %5399 = vmatprep.subr.mxu0 0.0
        %5400 = vmatpush1.msra.mxu0 0.0
        %5401 = vmatprep.subr.mxu0 0.0
        %5402 = vmatpush1.msra.mxu0 0.0
        %5403 = vmatprep.mubr.f32.mxu0 0.0
        %5404 = vmatmul.mubr.f32.gmra.mrb[0].mxu0 %v5334
        %v5405 = vpop.f32.mrb[0].mxu0
        %v5406 = vadd.f32 0.0, %v5405
        %v5407 = vpop.f32.mrb[0].mxu0
        %5408 = vmatprep.mubr.f32.mxu0 0.0
        %5409 = vmatmul.mubr.f32.gmra.mrb[0].mxu0 %v5337
        %v5410 = vpop.f32.mrb[0].mxu0
        %v5411 = vadd.f32 0.0, %v5410
        %v5412 = vpop.f32.mrb[0].mxu0
        %5413 = vdwg.mxu0
        %5414 = vrot.lane.b32.xlu0 %v4679, 40
        %v5415 = vpop.permute.xlu0 %5414
        %5416 = vrot.lane.b32.xlu0 %v4684, 40
        %v5417 = vpop.permute.xlu0 %5416
        %v5421 = vsel %vm564, %v5150, 0
        %v5424 = vsel %vm564, %v5152, 0
        %5426 = vmatprep.subr.mxu0 0.0
        %5427 = vmatpush1.msra.mxu0 %v5415
        %5428 = vmatprep.subr.mxu0 0.0
        %5429 = vmatpush1.msra.mxu0 %v5417
        %5430 = vmatprep.subr.mxu0 0.0
        %5431 = vmatpush1.msra.mxu0 0.0
        %5432 = vmatprep.subr.mxu0 0.0
        %5433 = vmatpush1.msra.mxu0 0.0
        %5434 = vmatprep.subr.mxu0 0.0
        %5435 = vmatpush1.msra.mxu0 0.0
        %5436 = vmatprep.subr.mxu0 0.0
        %5437 = vmatpush1.msra.mxu0 0.0
        %5438 = vmatprep.subr.mxu0 0.0
        %5439 = vmatpush1.msra.mxu0 0.0
        %5440 = vmatprep.subr.mxu0 0.0
        %5441 = vmatpush1.msra.mxu0 0.0
        %5442 = vmatprep.subr.mxu0 0.0
        %5443 = vmatpush1.msra.mxu0 0.0
        %5444 = vmatprep.subr.mxu0 0.0
        %5445 = vmatpush1.msra.mxu0 0.0
        %5446 = vmatprep.subr.mxu0 0.0
        %5447 = vmatpush1.msra.mxu0 0.0
        %5448 = vmatprep.subr.mxu0 0.0
        %5449 = vmatpush1.msra.mxu0 0.0
        %5450 = vmatprep.subr.mxu0 0.0
        %5451 = vmatpush1.msra.mxu0 0.0
        %5452 = vmatprep.subr.mxu0 0.0
        %5453 = vmatpush1.msra.mxu0 0.0
        %5454 = vmatprep.subr.mxu0 0.0
        %5455 = vmatpush1.msra.mxu0 0.0
        %5456 = vmatprep.subr.mxu0 0.0
        %5457 = vmatpush1.msra.mxu0 0.0
        %5458 = vmatprep.subr.mxu0 0.0
        %5459 = vmatpush1.msra.mxu0 0.0
        %5460 = vmatprep.subr.mxu0 0.0
        %5461 = vmatpush1.msra.mxu0 0.0
        %5462 = vmatprep.subr.mxu0 0.0
        %5463 = vmatpush1.msra.mxu0 0.0
        %5464 = vmatprep.subr.mxu0 0.0
        %5465 = vmatpush1.msra.mxu0 0.0
        %5466 = vmatprep.subr.mxu0 0.0
        %5467 = vmatpush1.msra.mxu0 0.0
        %5468 = vmatprep.subr.mxu0 0.0
        %5469 = vmatpush1.msra.mxu0 0.0
        %5470 = vmatprep.subr.mxu0 0.0
        %5471 = vmatpush1.msra.mxu0 0.0
        %5472 = vmatprep.subr.mxu0 0.0
        %5473 = vmatpush1.msra.mxu0 0.0
        %5474 = vmatprep.subr.mxu0 0.0
        %5475 = vmatpush1.msra.mxu0 0.0
        %5476 = vmatprep.subr.mxu0 0.0
        %5477 = vmatpush1.msra.mxu0 0.0
        %5478 = vmatprep.subr.mxu0 0.0
        %5479 = vmatpush1.msra.mxu0 0.0
        %5480 = vmatprep.subr.mxu0 0.0
        %5481 = vmatpush1.msra.mxu0 0.0
        %5482 = vmatprep.subr.mxu0 0.0
        %5483 = vmatpush1.msra.mxu0 0.0
        %5484 = vmatprep.subr.mxu0 0.0
        %5485 = vmatpush1.msra.mxu0 0.0
        %5486 = vmatprep.subr.mxu0 0.0
        %5487 = vmatpush1.msra.mxu0 0.0
        %5488 = vmatprep.subr.mxu0 0.0
        %5489 = vmatpush1.msra.mxu0 0.0
        %5490 = vmatprep.mubr.f32.mxu0 0.0
        %5491 = vmatmul.mubr.f32.gmra.mrb[0].mxu0 %v5421
        %v5492 = vpop.f32.mrb[0].mxu0
        %v5493 = vadd.f32 0.0, %v5492
        %v5494 = vpop.f32.mrb[0].mxu0
        %5495 = vmatprep.mubr.f32.mxu0 0.0
        %5496 = vmatmul.mubr.f32.gmra.mrb[0].mxu0 %v5424
        %v5497 = vpop.f32.mrb[0].mxu0
        %v5498 = vadd.f32 0.0, %v5497
        %v5499 = vpop.f32.mrb[0].mxu0
        %5500 = vdwg.mxu0
        %5503 = vrot.lane.b32.xlu0 %v5319, 8
        %v5504 = vpop.permute.xlu0 %5503
        %5505 = vrot.lane.b32.xlu0 %v5324, 8
        %v5506 = vpop.permute.xlu0 %5505
        %5511 = vrot.lane.b32.xlu0 %v5406, 16
        %v5512 = vpop.permute.xlu0 %5511
        %5513 = vrot.lane.b32.xlu0 %v5411, 16
        %v5514 = vpop.permute.xlu0 %5513
        %5519 = vrot.lane.b32.xlu0 %v5493, 24
        %v5520 = vpop.permute.xlu0 %5519
        %5521 = vrot.lane.b32.xlu0 %v5498, 24
        %v5522 = vpop.permute.xlu0 %5521
        %v5525 = vsel %vm1001, %v5232, %v5504
        %v5526 = vsel %vm1001, %v5237, %v5506
        %v5527 = vsel %vm564, %v5525, %v5512
        %v5528 = vsel %vm564, %v5526, %v5514
        %vm5529 = vcmask 195584
        %v5530 = vsel %vm5529, %v5527, %v5520
        %v5531 = vsel %vm5529, %v5528, %v5522
        %v5533 = vsel %vm4391, %v5530, 0
        %v5536 = vsel %vm4391, %v5531, 0
        %5538 = vmatprep.subr.mxu0 0.0
        %5539 = vmatpush1.msra.mxu0 %v4531
        %5540 = vmatprep.subr.mxu0 0.0
        %5541 = vmatpush1.msra.mxu0 %v4532
        %5542 = vmatprep.subr.mxu0 0.0
        %5543 = vmatpush1.msra.mxu0 %v4533
        %5544 = vmatprep.subr.mxu0 0.0
        %5545 = vmatpush1.msra.mxu0 %v4534
        %5546 = vmatprep.subr.mxu0 0.0
        %5547 = vmatpush1.msra.mxu0 0.0
        %5548 = vmatprep.subr.mxu0 0.0
        %5549 = vmatpush1.msra.mxu0 0.0
        %5550 = vmatprep.subr.mxu0 0.0
        %5551 = vmatpush1.msra.mxu0 0.0
        %5552 = vmatprep.subr.mxu0 0.0
        %5553 = vmatpush1.msra.mxu0 0.0
        %5554 = vmatprep.subr.mxu0 0.0
        %5555 = vmatpush1.msra.mxu0 0.0
        %5556 = vmatprep.subr.mxu0 0.0
        %5557 = vmatpush1.msra.mxu0 0.0
        %5558 = vmatprep.subr.mxu0 0.0
        %5559 = vmatpush1.msra.mxu0 0.0
        %5560 = vmatprep.subr.mxu0 0.0
        %5561 = vmatpush1.msra.mxu0 0.0
        %5562 = vmatprep.subr.mxu0 0.0
        %5563 = vmatpush1.msra.mxu0 0.0
        %5564 = vmatprep.subr.mxu0 0.0
        %5565 = vmatpush1.msra.mxu0 0.0
        %5566 = vmatprep.subr.mxu0 0.0
        %5567 = vmatpush1.msra.mxu0 0.0
        %5568 = vmatprep.subr.mxu0 0.0
        %5569 = vmatpush1.msra.mxu0 0.0
        %5570 = vmatprep.subr.mxu0 0.0
        %5571 = vmatpush1.msra.mxu0 0.0
        %5572 = vmatprep.subr.mxu0 0.0
        %5573 = vmatpush1.msra.mxu0 0.0
        %5574 = vmatprep.subr.mxu0 0.0
        %5575 = vmatpush1.msra.mxu0 0.0
        %5576 = vmatprep.subr.mxu0 0.0
        %5577 = vmatpush1.msra.mxu0 0.0
        %5578 = vmatprep.subr.mxu0 0.0
        %5579 = vmatpush1.msra.mxu0 0.0
        %5580 = vmatprep.subr.mxu0 0.0
        %5581 = vmatpush1.msra.mxu0 0.0
        %5582 = vmatprep.subr.mxu0 0.0
        %5583 = vmatpush1.msra.mxu0 0.0
        %5584 = vmatprep.subr.mxu0 0.0
        %5585 = vmatpush1.msra.mxu0 0.0
        %5586 = vmatprep.subr.mxu0 0.0
        %5587 = vmatpush1.msra.mxu0 0.0
        %5588 = vmatprep.subr.mxu0 0.0
        %5589 = vmatpush1.msra.mxu0 0.0
        %5590 = vmatprep.subr.mxu0 0.0
        %5591 = vmatpush1.msra.mxu0 0.0
        %5592 = vmatprep.subr.mxu0 0.0
        %5593 = vmatpush1.msra.mxu0 0.0
        %5594 = vmatprep.subr.mxu0 0.0
        %5595 = vmatpush1.msra.mxu0 0.0
        %5596 = vmatprep.subr.mxu0 0.0
        %5597 = vmatpush1.msra.mxu0 0.0
        %5598 = vmatprep.subr.mxu0 0.0
        %5599 = vmatpush1.msra.mxu0 0.0
        %5600 = vmatprep.subr.mxu0 0.0
        %5601 = vmatpush1.msra.mxu0 0.0
        %5602 = vmatprep.mubr.f32.mxu0 0.0
        %5603 = vmatmul.mubr.f32.gmra.mrb[0].mxu0 %v5533
        %v5604 = vpop.f32.mrb[0].mxu0
        %v5605 = vadd.f32 0.0, %v5604
        %v5606 = vpop.f32.mrb[0].mxu0
        %5607 = vmatprep.mubr.f32.mxu0 0.0
        %5608 = vmatmul.mubr.f32.gmra.mrb[0].mxu0 %v5536
        %v5609 = vpop.f32.mrb[0].mxu0
        %v5610 = vadd.f32 0.0, %v5609
        %v5611 = vpop.f32.mrb[0].mxu0
        %5612 = vdwg.mxu0
        %v5613 = vadd.f32 %v4519, %v5605
        %v5614 = vadd.f32 %v4524, %v5610
        %v5615 = vlaneseq
        %v5616 = vshrl.u32 %v5615, 7
        %v5617 = vsub.s32 0, %v5616
        %v5618 = vrot.slane %v4558, %v5617
        %v5619 = vadd.f32 %v5613, %v5618
        %v5620 = vadd.f32 %v5614, %v5618
        %v5621 = vsel %vm4391, %v5619, 0.0
        %5622 = vadd.xlane.f32.xlu0 %v5621
        %v5623 = vpop.xlane.xlu0 %5622
        %v5624 = vsel %vm4391, %v5620, 0.0
        %5625 = vadd.xlane.f32.xlu0 %v5624
        %v5626 = vpop.xlane.xlu0 %5625
        %v5627 = vmul.f32 %v5623, %v4569
        %v5628 = vmul.f32 %v5626, %v4569
        %v5629 = vsub.f32 %v5619, %v5627
        %v5630 = vsub.f32 %v5620, %v5628
        %v5631 = vmul.f32 %v5629, %v5629
        %v5632 = vmul.f32 %v5630, %v5630
        %v5633 = vsel %vm4391, %v5631, 0.0
        %5634 = vadd.xlane.f32.xlu0 %v5633
        %v5635 = vpop.xlane.xlu0 %5634
        %v5636 = vsel %vm4391, %v5632, 0.0
        %5637 = vadd.xlane.f32.xlu0 %v5636
        %v5638 = vpop.xlane.xlu0 %5637
        %v5639 = vmul.f32 %v5635, %v4569
        %v5640 = vmul.f32 %v5638, %v4569
        %v5641 = vadd.f32 %v5639, 1e-05
        %v5642 = vadd.f32 %v5640, 1e-05
        %v5643 = vrsqrt.pop %v5641
        %v5644 = vrsqrt.pop %v5642
        %v5645 = vmul.f32 %v5629, %v5643
        %v5646 = vmul.f32 %v5630, %v5644
        %v5647 = vlaneseq
        %v5648 = vshrl.u32 %v5647, 7
        %v5649 = vsub.s32 0, %v5648
        %v5650 = vrot.slane %v4559, %v5649
        %v5651 = vmul.f32 %v5645, %v5650
        %v5652 = vmul.f32 %v5646, %v5650
        %v5653 = vlaneseq
        %v5654 = vshrl.u32 %v5653, 7
        %v5655 = vsub.s32 0, %v5654
        %v5656 = vrot.slane %v4560, %v5655
        %v5657 = vadd.f32 %v5651, %v5656
        %v5658 = vadd.f32 %v5652, %v5656
        %v5659 = vlaneseq
        %v5660 = vshrl.u32 %v5659, 7
        %v5661 = vsub.s32 0, %v5660
        %v5662 = vrot.slane %v4561, %v5661
        %v5664 = vsel %vm4391, %v5657, 0
        %v5667 = vsel %vm4391, %v5658, 0
        %5669 = vmatprep.subr.mxu0 0.0
        %5670 = vmatpush1.msra.mxu0 %v4535
        %5671 = vmatprep.subr.mxu0 0.0
        %5672 = vmatpush1.msra.mxu0 %v4536
        %5673 = vmatprep.subr.mxu0 0.0
        %5674 = vmatpush1.msra.mxu0 %v4537
        %5675 = vmatprep.subr.mxu0 0.0
        %5676 = vmatpush1.msra.mxu0 %v4538
        %5677 = vmatprep.subr.mxu0 0.0
        %5678 = vmatpush1.msra.mxu0 0.0
        %5679 = vmatprep.subr.mxu0 0.0
        %5680 = vmatpush1.msra.mxu0 0.0
        %5681 = vmatprep.subr.mxu0 0.0
        %5682 = vmatpush1.msra.mxu0 0.0
        %5683 = vmatprep.subr.mxu0 0.0
        %5684 = vmatpush1.msra.mxu0 0.0
        %5685 = vmatprep.subr.mxu0 0.0
        %5686 = vmatpush1.msra.mxu0 0.0
        %5687 = vmatprep.subr.mxu0 0.0
        %5688 = vmatpush1.msra.mxu0 0.0
        %5689 = vmatprep.subr.mxu0 0.0
        %5690 = vmatpush1.msra.mxu0 0.0
        %5691 = vmatprep.subr.mxu0 0.0
        %5692 = vmatpush1.msra.mxu0 0.0
        %5693 = vmatprep.subr.mxu0 0.0
        %5694 = vmatpush1.msra.mxu0 0.0
        %5695 = vmatprep.subr.mxu0 0.0
        %5696 = vmatpush1.msra.mxu0 0.0
        %5697 = vmatprep.subr.mxu0 0.0
        %5698 = vmatpush1.msra.mxu0 0.0
        %5699 = vmatprep.subr.mxu0 0.0
        %5700 = vmatpush1.msra.mxu0 0.0
        %5701 = vmatprep.subr.mxu0 0.0
        %5702 = vmatpush1.msra.mxu0 0.0
        %5703 = vmatprep.subr.mxu0 0.0
        %5704 = vmatpush1.msra.mxu0 0.0
        %5705 = vmatprep.subr.mxu0 0.0
        %5706 = vmatpush1.msra.mxu0 0.0
        %5707 = vmatprep.subr.mxu0 0.0
        %5708 = vmatpush1.msra.mxu0 0.0
        %5709 = vmatprep.subr.mxu0 0.0
        %5710 = vmatpush1.msra.mxu0 0.0
        %5711 = vmatprep.subr.mxu0 0.0
        %5712 = vmatpush1.msra.mxu0 0.0
        %5713 = vmatprep.subr.mxu0 0.0
        %5714 = vmatpush1.msra.mxu0 0.0
        %5715 = vmatprep.subr.mxu0 0.0
        %5716 = vmatpush1.msra.mxu0 0.0
        %5717 = vmatprep.subr.mxu0 0.0
        %5718 = vmatpush1.msra.mxu0 0.0
        %5719 = vmatprep.subr.mxu0 0.0
        %5720 = vmatpush1.msra.mxu0 0.0
        %5721 = vmatprep.subr.mxu0 0.0
        %5722 = vmatpush1.msra.mxu0 0.0
        %5723 = vmatprep.subr.mxu0 0.0
        %5724 = vmatpush1.msra.mxu0 0.0
        %5725 = vmatprep.subr.mxu0 0.0
        %5726 = vmatpush1.msra.mxu0 0.0
        %5727 = vmatprep.subr.mxu0 0.0
        %5728 = vmatpush1.msra.mxu0 0.0
        %5729 = vmatprep.subr.mxu0 0.0
        %5730 = vmatpush1.msra.mxu0 0.0
        %5731 = vmatprep.subr.mxu0 0.0
        %5732 = vmatpush1.msra.mxu0 0.0
        %5733 = vmatprep.mubr.f32.mxu0 0.0
        %5734 = vmatmul.mubr.f32.gmra.mrb[0].mxu0 %v5664
        %v5735 = vpop.f32.mrb[0].mxu0
        %v5736 = vadd.f32 %v5662, %v5735
        %v5737 = vpop.f32.mrb[0].mxu0
        %5738 = vmatprep.mubr.f32.mxu0 0.0
        %5739 = vmatmul.mubr.f32.gmra.mrb[0].mxu0 %v5667
        %v5740 = vpop.f32.mrb[0].mxu0
        %v5741 = vadd.f32 %v5662, %v5740
        %v5742 = vpop.f32.mrb[0].mxu0
        %5743 = vdwg.mxu0
        %v5744 = vmul.f32 %v5736, 0.5
        %v5745 = vmul.f32 %v5741, 0.5
        %v5746 = vmul.f32 %v5736, 0.70710677
        %v5747 = vmul.f32 %v5741, 0.70710677
        %v5748 = verf.f32.pop %v5746
        %v5749 = verf.f32.pop %v5747
        %v5750 = vadd.f32 %v5748, 1.0
        %v5751 = vadd.f32 %v5749, 1.0
        %v5752 = vmul.f32 %v5744, %v5750
        %v5753 = vmul.f32 %v5745, %v5751
        %5754 = vmatprep.subr.mxu0 0.0
        %5755 = vmatpush1.msra.mxu0 %v4539
        %5756 = vmatprep.subr.mxu0 0.0
        %5757 = vmatpush1.msra.mxu0 %v4540
        %5758 = vmatprep.subr.mxu0 0.0
        %5759 = vmatpush1.msra.mxu0 %v4541
        %5760 = vmatprep.subr.mxu0 0.0
        %5761 = vmatpush1.msra.mxu0 %v4542
        %5762 = vmatprep.subr.mxu0 0.0
        %5763 = vmatpush1.msra.mxu0 %v4543
        %5764 = vmatprep.subr.mxu0 0.0
        %5765 = vmatpush1.msra.mxu0 %v4544
        %5766 = vmatprep.subr.mxu0 0.0
        %5767 = vmatpush1.msra.mxu0 %v4545
        %5768 = vmatprep.subr.mxu0 0.0
        %5769 = vmatpush1.msra.mxu0 %v4546
        %5770 = vmatprep.subr.mxu0 0.0
        %5771 = vmatpush1.msra.mxu0 %v4547
        %5772 = vmatprep.subr.mxu0 0.0
        %5773 = vmatpush1.msra.mxu0 %v4548
        %5774 = vmatprep.subr.mxu0 0.0
        %5775 = vmatpush1.msra.mxu0 %v4549
        %5776 = vmatprep.subr.mxu0 0.0
        %5777 = vmatpush1.msra.mxu0 %v4550
        %5778 = vmatprep.subr.mxu0 0.0
        %5779 = vmatpush1.msra.mxu0 %v4551
        %5780 = vmatprep.subr.mxu0 0.0
        %5781 = vmatpush1.msra.mxu0 %v4552
        %5782 = vmatprep.subr.mxu0 0.0
        %5783 = vmatpush1.msra.mxu0 %v4553
        %5784 = vmatprep.subr.mxu0 0.0
        %5785 = vmatpush1.msra.mxu0 %v4554
        %5786 = vmatprep.subr.mxu0 0.0
        %5787 = vmatpush1.msra.mxu0 0.0
        %5788 = vmatprep.subr.mxu0 0.0
        %5789 = vmatpush1.msra.mxu0 0.0
        %5790 = vmatprep.subr.mxu0 0.0
        %5791 = vmatpush1.msra.mxu0 0.0
        %5792 = vmatprep.subr.mxu0 0.0
        %5793 = vmatpush1.msra.mxu0 0.0
        %5794 = vmatprep.subr.mxu0 0.0
        %5795 = vmatpush1.msra.mxu0 0.0
        %5796 = vmatprep.subr.mxu0 0.0
        %5797 = vmatpush1.msra.mxu0 0.0
        %5798 = vmatprep.subr.mxu0 0.0
        %5799 = vmatpush1.msra.mxu0 0.0
        %5800 = vmatprep.subr.mxu0 0.0
        %5801 = vmatpush1.msra.mxu0 0.0
        %5802 = vmatprep.subr.mxu0 0.0
        %5803 = vmatpush1.msra.mxu0 0.0
        %5804 = vmatprep.subr.mxu0 0.0
        %5805 = vmatpush1.msra.mxu0 0.0
        %5806 = vmatprep.subr.mxu0 0.0
        %5807 = vmatpush1.msra.mxu0 0.0
        %5808 = vmatprep.subr.mxu0 0.0
        %5809 = vmatpush1.msra.mxu0 0.0
        %5810 = vmatprep.subr.mxu0 0.0
        %5811 = vmatpush1.msra.mxu0 0.0
        %5812 = vmatprep.subr.mxu0 0.0
        %5813 = vmatpush1.msra.mxu0 0.0
        %5814 = vmatprep.subr.mxu0 0.0
        %5815 = vmatpush1.msra.mxu0 0.0
        %5816 = vmatprep.subr.mxu0 0.0
        %5817 = vmatpush1.msra.mxu0 0.0
        %5818 = vmatprep.mubr.f32.mxu0 0.0
        %5819 = vmatmul.mubr.f32.gmra.mrb[0].mxu0 %v5752
        %v5820 = vpop.f32.mrb[0].mxu0
        %v5821 = vadd.f32 0.0, %v5820
        %v5822 = vpop.f32.mrb[0].mxu0
        %5823 = vmatprep.mubr.f32.mxu0 0.0
        %5824 = vmatmul.mubr.f32.gmra.mrb[0].mxu0 %v5753
        %v5825 = vpop.f32.mrb[0].mxu0
        %v5826 = vadd.f32 0.0, %v5825
        %v5827 = vpop.f32.mrb[0].mxu0
        %5828 = vdwg.mxu0
        %v5829 = vadd.f32 %v5619, %v5821
        %v5830 = vadd.f32 %v5620, %v5826
        %v5831 = vlaneseq
        %v5832 = vshrl.u32 %v5831, 7
        %v5833 = vsub.s32 0, %v5832
        %v5834 = vrot.slane %v4562, %v5833
        %v5835 = vadd.f32 %v5829, %v5834
        %v5836 = vadd.f32 %v5830, %v5834
        %v5837 = vld [vmem:[%s9] sm:$0xff]
        %v5838 = vld [vmem:[%s9 + $0x8] sm:$0xff]
        %v5839 = vld [vmem:[%s9 + $0x10] sm:$0xff]
        %v5840 = vld [vmem:[%s9 + $0x18] sm:$0xff]
        %v5841 = vld [vmem:[%s9 + $0x20] sm:$0xff]
        %v5842 = vld [vmem:[%s9 + $0x28] sm:$0xff]
        %v5843 = vld [vmem:[%s9 + $0x30] sm:$0xff]
        %v5844 = vld [vmem:[%s9 + $0x38] sm:$0xff]
        %v5845 = vld [vmem:[%s9 + $0x40] sm:$0xff]
        %v5846 = vld [vmem:[%s9 + $0x48] sm:$0xff]
        %v5847 = vld [vmem:[%s9 + $0x50] sm:$0xff]
        %v5848 = vld [vmem:[%s9 + $0x58] sm:$0xff]
        %v5849 = vld [vmem:[%s9 + $0x60] sm:$0xff]
        %v5850 = vld [vmem:[%s9 + $0x68] sm:$0xff]
        %v5851 = vld [vmem:[%s9 + $0x70] sm:$0xff]
        %v5852 = vld [vmem:[%s9 + $0x78] sm:$0xff]
        %v5853 = vld [vmem:[%s9 + $0x80] sm:$0xff]
        %v5854 = vld [vmem:[%s9 + $0x88] sm:$0xff]
        %v5855 = vld [vmem:[%s9 + $0x90] sm:$0xff]
        %v5856 = vld [vmem:[%s9 + $0x98] sm:$0xff]
        %v5857 = vld [vmem:[%s9 + $0xa0] sm:$0xff]
        %v5858 = vld [vmem:[%s9 + $0xa8] sm:$0xff]
        %v5859 = vld [vmem:[%s9 + $0xb0] sm:$0xff]
        %v5860 = vld [vmem:[%s9 + $0xb8] sm:$0xff]
        %v5861 = vld [vmem:[%s9 + $0xc0] sm:$0xff]
        %v5862 = vld [vmem:[%s9 + $0xc8] sm:$0xff]
        %v5863 = vld [vmem:[%s9 + $0xd0] sm:$0xff]
        %v5864 = vld [vmem:[%s9 + $0xd8] sm:$0xff]
        %v5865 = vld [vmem:[%s9 + $0xe0] sm:$0x1]
        %v5866 = vld [vmem:[%s9 + $0xe1] sm:$0x1]
        %v5867 = vld [vmem:[%s9 + $0xe2] sm:$0x1]
        %v5868 = vld [vmem:[%s9 + $0xe3] sm:$0x1]
        %v5869 = vld [vmem:[%s9 + $0xe4] sm:$0x1]
        %v5870 = vld [vmem:[%s9 + $0xe5] sm:$0x1]
        %v5871 = vld [vmem:[%s9 + $0xe6] sm:$0x1]
        %v5872 = vld [vmem:[%s9 + $0xe7] sm:$0x1]
        %v5873 = vsel %vm4391, %v5835, 0.0
        %5874 = vadd.xlane.f32.xlu0 %v5873
        %v5875 = vpop.xlane.xlu0 %5874
        %v5876 = vsel %vm4391, %v5836, 0.0
        %5877 = vadd.xlane.f32.xlu0 %v5876
        %v5878 = vpop.xlane.xlu0 %5877
        %v5879 = vmul.f32 %v5875, %v4569
        %v5880 = vmul.f32 %v5878, %v4569
        %v5881 = vsub.f32 %v5835, %v5879
        %v5882 = vsub.f32 %v5836, %v5880
        %v5883 = vmul.f32 %v5881, %v5881
        %v5884 = vmul.f32 %v5882, %v5882
        %v5885 = vsel %vm4391, %v5883, 0.0
        %5886 = vadd.xlane.f32.xlu0 %v5885
        %v5887 = vpop.xlane.xlu0 %5886
        %v5888 = vsel %vm4391, %v5884, 0.0
        %5889 = vadd.xlane.f32.xlu0 %v5888
        %v5890 = vpop.xlane.xlu0 %5889
        %v5891 = vmul.f32 %v5887, %v4569
        %v5892 = vmul.f32 %v5890, %v4569
        %v5893 = vadd.f32 %v5891, 1e-05
        %v5894 = vadd.f32 %v5892, 1e-05
        %v5895 = vrsqrt.pop %v5893
        %v5896 = vrsqrt.pop %v5894
        %v5897 = vmul.f32 %v5881, %v5895
        %v5898 = vmul.f32 %v5882, %v5896
        %v5899 = vlaneseq
        %v5900 = vshrl.u32 %v5899, 7
        %v5901 = vsub.s32 0, %v5900
        %v5902 = vrot.slane %v5865, %v5901
        %v5903 = vmul.f32 %v5897, %v5902
        %v5904 = vmul.f32 %v5898, %v5902
        %v5905 = vlaneseq
        %v5906 = vshrl.u32 %v5905, 7
        %v5907 = vsub.s32 0, %v5906
        %v5908 = vrot.slane %v5866, %v5907
        %v5909 = vadd.f32 %v5903, %v5908
        %v5910 = vadd.f32 %v5904, %v5908
        %v5911 = vlaneseq
        %v5912 = vshrl.u32 %v5911, 7
        %v5913 = vsub.s32 0, %v5912
        %v5914 = vrot.slane %v5867, %v5913
        %v5916 = vsel %vm4391, %v5909, 0
        %v5919 = vsel %vm4391, %v5910, 0
        %5921 = vmatprep.subr.mxu0 0.0
        %5922 = vmatpush1.msra.mxu0 %v5837
        %5923 = vmatprep.subr.mxu0 0.0
        %5924 = vmatpush1.msra.mxu0 %v5838
        %5925 = vmatprep.subr.mxu0 0.0
        %5926 = vmatpush1.msra.mxu0 %v5839
        %5927 = vmatprep.subr.mxu0 0.0
        %5928 = vmatpush1.msra.mxu0 %v5840
        %5929 = vmatprep.subr.mxu0 0.0
        %5930 = vmatpush1.msra.mxu0 0.0
        %5931 = vmatprep.subr.mxu0 0.0
        %5932 = vmatpush1.msra.mxu0 0.0
        %5933 = vmatprep.subr.mxu0 0.0
        %5934 = vmatpush1.msra.mxu0 0.0
        %5935 = vmatprep.subr.mxu0 0.0
        %5936 = vmatpush1.msra.mxu0 0.0
        %5937 = vmatprep.subr.mxu0 0.0
        %5938 = vmatpush1.msra.mxu0 0.0
        %5939 = vmatprep.subr.mxu0 0.0
        %5940 = vmatpush1.msra.mxu0 0.0
        %5941 = vmatprep.subr.mxu0 0.0
        %5942 = vmatpush1.msra.mxu0 0.0
        %5943 = vmatprep.subr.mxu0 0.0
        %5944 = vmatpush1.msra.mxu0 0.0
        %5945 = vmatprep.subr.mxu0 0.0
        %5946 = vmatpush1.msra.mxu0 0.0
        %5947 = vmatprep.subr.mxu0 0.0
        %5948 = vmatpush1.msra.mxu0 0.0
        %5949 = vmatprep.subr.mxu0 0.0
        %5950 = vmatpush1.msra.mxu0 0.0
        %5951 = vmatprep.subr.mxu0 0.0
        %5952 = vmatpush1.msra.mxu0 0.0
        %5953 = vmatprep.subr.mxu0 0.0
        %5954 = vmatpush1.msra.mxu0 0.0
        %5955 = vmatprep.subr.mxu0 0.0
        %5956 = vmatpush1.msra.mxu0 0.0
        %5957 = vmatprep.subr.mxu0 0.0
        %5958 = vmatpush1.msra.mxu0 0.0
        %5959 = vmatprep.subr.mxu0 0.0
        %5960 = vmatpush1.msra.mxu0 0.0
        %5961 = vmatprep.subr.mxu0 0.0
        %5962 = vmatpush1.msra.mxu0 0.0
        %5963 = vmatprep.subr.mxu0 0.0
        %5964 = vmatpush1.msra.mxu0 0.0
        %5965 = vmatprep.subr.mxu0 0.0
        %5966 = vmatpush1.msra.mxu0 0.0
        %5967 = vmatprep.subr.mxu0 0.0
        %5968 = vmatpush1.msra.mxu0 0.0
        %5969 = vmatprep.subr.mxu0 0.0
        %5970 = vmatpush1.msra.mxu0 0.0
        %5971 = vmatprep.subr.mxu0 0.0
        %5972 = vmatpush1.msra.mxu0 0.0
        %5973 = vmatprep.subr.mxu0 0.0
        %5974 = vmatpush1.msra.mxu0 0.0
        %5975 = vmatprep.subr.mxu0 0.0
        %5976 = vmatpush1.msra.mxu0 0.0
        %5977 = vmatprep.subr.mxu0 0.0
        %5978 = vmatpush1.msra.mxu0 0.0
        %5979 = vmatprep.subr.mxu0 0.0
        %5980 = vmatpush1.msra.mxu0 0.0
        %5981 = vmatprep.subr.mxu0 0.0
        %5982 = vmatpush1.msra.mxu0 0.0
        %5983 = vmatprep.subr.mxu0 0.0
        %5984 = vmatpush1.msra.mxu0 0.0
        %5985 = vmatprep.mubr.f32.mxu0 0.0
        %5986 = vmatmul.mubr.f32.gmra.mrb[0].mxu0 %v5916
        %v5987 = vpop.f32.mrb[0].mxu0
        %v5988 = vadd.f32 %v5914, %v5987
        %v5989 = vpop.f32.mrb[0].mxu0
        %5990 = vmatprep.mubr.f32.mxu0 0.0
        %5991 = vmatmul.mubr.f32.gmra.mrb[0].mxu0 %v5919
        %v5992 = vpop.f32.mrb[0].mxu0
        %v5993 = vadd.f32 %v5914, %v5992
        %v5994 = vpop.f32.mrb[0].mxu0
        %5995 = vdwg.mxu0
        %5998 = vrot.lane.b32.xlu0 %v5988, 96
        %v5999 = vpop.permute.xlu0 %5998
        %6000 = vrot.lane.b32.xlu0 %v5993, 96
        %v6001 = vpop.permute.xlu0 %6000
        %v6002 = vsel %vm1001, %v5988, 0
        %v6004 = vsel %vm1001, %v5993, 0
        %v6006 = vsel %vm1001, %v5999, 0
        %v6008 = vsel %vm1001, %v6001, 0
        %6010 = vmatprep.subr.mxu0 0.0
        %6011 = vmatpush1.xpose.msra.mxu0 %v6006
        %6012 = vmatprep.subr.mxu0 0.0
        %6013 = vmatpush1.xpose.msra.mxu0 %v6008
        %6014 = vmatprep.subr.mxu0 0.0
        %6015 = vmatpush1.xpose.msra.mxu0 0.0
        %6016 = vmatprep.subr.mxu0 0.0
        %6017 = vmatpush1.xpose.msra.mxu0 0.0
        %6018 = vmatprep.subr.mxu0 0.0
        %6019 = vmatpush1.xpose.msra.mxu0 0.0
        %6020 = vmatprep.subr.mxu0 0.0
        %6021 = vmatpush1.xpose.msra.mxu0 0.0
        %6022 = vmatprep.subr.mxu0 0.0
        %6023 = vmatpush1.xpose.msra.mxu0 0.0
        %6024 = vmatprep.subr.mxu0 0.0
        %6025 = vmatpush1.xpose.msra.mxu0 0.0
        %6026 = vmatprep.subr.mxu0 0.0
        %6027 = vmatpush1.xpose.msra.mxu0 0.0
        %6028 = vmatprep.subr.mxu0 0.0
        %6029 = vmatpush1.xpose.msra.mxu0 0.0
        %6030 = vmatprep.subr.mxu0 0.0
        %6031 = vmatpush1.xpose.msra.mxu0 0.0
        %6032 = vmatprep.subr.mxu0 0.0
        %6033 = vmatpush1.xpose.msra.mxu0 0.0
        %6034 = vmatprep.subr.mxu0 0.0
        %6035 = vmatpush1.xpose.msra.mxu0 0.0
        %6036 = vmatprep.subr.mxu0 0.0
        %6037 = vmatpush1.xpose.msra.mxu0 0.0
        %6038 = vmatprep.subr.mxu0 0.0
        %6039 = vmatpush1.xpose.msra.mxu0 0.0
        %6040 = vmatprep.subr.mxu0 0.0
        %6041 = vmatpush1.xpose.msra.mxu0 0.0
        %6042 = vmatprep.subr.mxu0 0.0
        %6043 = vmatpush1.xpose.msra.mxu0 0.0
        %6044 = vmatprep.subr.mxu0 0.0
        %6045 = vmatpush1.xpose.msra.mxu0 0.0
        %6046 = vmatprep.subr.mxu0 0.0
        %6047 = vmatpush1.xpose.msra.mxu0 0.0
        %6048 = vmatprep.subr.mxu0 0.0
        %6049 = vmatpush1.xpose.msra.mxu0 0.0
        %6050 = vmatprep.subr.mxu0 0.0
        %6051 = vmatpush1.xpose.msra.mxu0 0.0
        %6052 = vmatprep.subr.mxu0 0.0
        %6053 = vmatpush1.xpose.msra.mxu0 0.0
        %6054 = vmatprep.subr.mxu0 0.0
        %6055 = vmatpush1.xpose.msra.mxu0 0.0
        %6056 = vmatprep.subr.mxu0 0.0
        %6057 = vmatpush1.xpose.msra.mxu0 0.0
        %6058 = vmatprep.subr.mxu0 0.0
        %6059 = vmatpush1.xpose.msra.mxu0 0.0
        %6060 = vmatprep.subr.mxu0 0.0
        %6061 = vmatpush1.xpose.msra.mxu0 0.0
        %6062 = vmatprep.subr.mxu0 0.0
        %6063 = vmatpush1.xpose.msra.mxu0 0.0
        %6064 = vmatprep.subr.mxu0 0.0
        %6065 = vmatpush1.xpose.msra.mxu0 0.0
        %6066 = vmatprep.subr.mxu0 0.0
        %6067 = vmatpush1.xpose.msra.mxu0 0.0
        %6068 = vmatprep.subr.mxu0 0.0
        %6069 = vmatpush1.xpose.msra.mxu0 0.0
        %6070 = vmatprep.subr.mxu0 0.0
        %6071 = vmatpush1.xpose.msra.mxu0 0.0
        %6072 = vmatprep.subr.mxu0 0.0
        %6073 = vmatpush1.xpose.msra.mxu0 0.0
        %6074 = vmatprep.mubr.f32.mxu0 0.0
        %6075 = vmatmul.mubr.f32.gmra.mrb[0].mxu0 %v6002
        %v6076 = vpop.f32.mrb[0].mxu0
        %v6077 = vadd.f32 0.0, %v6076
        %v6078 = vpop.f32.mrb[0].mxu0
        %6079 = vmatprep.mubr.f32.mxu0 0.0
        %6080 = vmatmul.mubr.f32.gmra.mrb[0].mxu0 %v6004
        %v6081 = vpop.f32.mrb[0].mxu0
        %v6082 = vadd.f32 0.0, %v6081
        %v6083 = vpop.f32.mrb[0].mxu0
        %6084 = vdwg.mxu0
        %6085 = vrot.lane.b32.xlu0 %v5988, 120
        %v6086 = vpop.permute.xlu0 %6085
        %6087 = vrot.lane.b32.xlu0 %v5993, 120
        %v6088 = vpop.permute.xlu0 %6087
        %6089 = vrot.lane.b32.xlu0 %v5988, 88
        %v6090 = vpop.permute.xlu0 %6089
        %6091 = vrot.lane.b32.xlu0 %v5993, 88
        %v6092 = vpop.permute.xlu0 %6091
        %v6093 = vsel %vm1001, %v6086, 0
        %v6095 = vsel %vm1001, %v6088, 0
        %v6097 = vsel %vm1001, %v6090, 0
        %v6099 = vsel %vm1001, %v6092, 0
        %6101 = vmatprep.subr.mxu0 0.0
        %6102 = vmatpush1.xpose.msra.mxu0 %v6097
        %6103 = vmatprep.subr.mxu0 0.0
        %6104 = vmatpush1.xpose.msra.mxu0 %v6099
        %6105 = vmatprep.subr.mxu0 0.0
        %6106 = vmatpush1.xpose.msra.mxu0 0.0
        %6107 = vmatprep.subr.mxu0 0.0
        %6108 = vmatpush1.xpose.msra.mxu0 0.0
        %6109 = vmatprep.subr.mxu0 0.0
        %6110 = vmatpush1.xpose.msra.mxu0 0.0
        %6111 = vmatprep.subr.mxu0 0.0
        %6112 = vmatpush1.xpose.msra.mxu0 0.0
        %6113 = vmatprep.subr.mxu0 0.0
        %6114 = vmatpush1.xpose.msra.mxu0 0.0
        %6115 = vmatprep.subr.mxu0 0.0
        %6116 = vmatpush1.xpose.msra.mxu0 0.0
        %6117 = vmatprep.subr.mxu0 0.0
        %6118 = vmatpush1.xpose.msra.mxu0 0.0
        %6119 = vmatprep.subr.mxu0 0.0
        %6120 = vmatpush1.xpose.msra.mxu0 0.0
        %6121 = vmatprep.subr.mxu0 0.0
        %6122 = vmatpush1.xpose.msra.mxu0 0.0
        %6123 = vmatprep.subr.mxu0 0.0
        %6124 = vmatpush1.xpose.msra.mxu0 0.0
        %6125 = vmatprep.subr.mxu0 0.0
        %6126 = vmatpush1.xpose.msra.mxu0 0.0
        %6127 = vmatprep.subr.mxu0 0.0
        %6128 = vmatpush1.xpose.msra.mxu0 0.0
        %6129 = vmatprep.subr.mxu0 0.0
        %6130 = vmatpush1.xpose.msra.mxu0 0.0
        %6131 = vmatprep.subr.mxu0 0.0
        %6132 = vmatpush1.xpose.msra.mxu0 0.0
        %6133 = vmatprep.subr.mxu0 0.0
        %6134 = vmatpush1.xpose.msra.mxu0 0.0
        %6135 = vmatprep.subr.mxu0 0.0
        %6136 = vmatpush1.xpose.msra.mxu0 0.0
        %6137 = vmatprep.subr.mxu0 0.0
        %6138 = vmatpush1.xpose.msra.mxu0 0.0
        %6139 = vmatprep.subr.mxu0 0.0
        %6140 = vmatpush1.xpose.msra.mxu0 0.0
        %6141 = vmatprep.subr.mxu0 0.0
        %6142 = vmatpush1.xpose.msra.mxu0 0.0
        %6143 = vmatprep.subr.mxu0 0.0
        %6144 = vmatpush1.xpose.msra.mxu0 0.0
        %6145 = vmatprep.subr.mxu0 0.0
        %6146 = vmatpush1.xpose.msra.mxu0 0.0
        %6147 = vmatprep.subr.mxu0 0.0
        %6148 = vmatpush1.xpose.msra.mxu0 0.0
        %6149 = vmatprep.subr.mxu0 0.0
        %6150 = vmatpush1.xpose.msra.mxu0 0.0
        %6151 = vmatprep.subr.mxu0 0.0
        %6152 = vmatpush1.xpose.msra.mxu0 0.0
        %6153 = vmatprep.subr.mxu0 0.0
        %6154 = vmatpush1.xpose.msra.mxu0 0.0
        %6155 = vmatprep.subr.mxu0 0.0
        %6156 = vmatpush1.xpose.msra.mxu0 0.0
        %6157 = vmatprep.subr.mxu0 0.0
        %6158 = vmatpush1.xpose.msra.mxu0 0.0
        %6159 = vmatprep.subr.mxu0 0.0
        %6160 = vmatpush1.xpose.msra.mxu0 0.0
        %6161 = vmatprep.subr.mxu0 0.0
        %6162 = vmatpush1.xpose.msra.mxu0 0.0
        %6163 = vmatprep.subr.mxu0 0.0
        %6164 = vmatpush1.xpose.msra.mxu0 0.0
        %6165 = vmatprep.mubr.f32.mxu0 0.0
        %6166 = vmatmul.mubr.f32.gmra.mrb[0].mxu0 %v6093
        %v6167 = vpop.f32.mrb[0].mxu0
        %v6168 = vadd.f32 0.0, %v6167
        %v6169 = vpop.f32.mrb[0].mxu0
        %6170 = vmatprep.mubr.f32.mxu0 0.0
        %6171 = vmatmul.mubr.f32.gmra.mrb[0].mxu0 %v6095
        %v6172 = vpop.f32.mrb[0].mxu0
        %v6173 = vadd.f32 0.0, %v6172
        %v6174 = vpop.f32.mrb[0].mxu0
        %6175 = vdwg.mxu0
        %6176 = vrot.lane.b32.xlu0 %v5988, 112
        %v6177 = vpop.permute.xlu0 %6176
        %6178 = vrot.lane.b32.xlu0 %v5993, 112
        %v6179 = vpop.permute.xlu0 %6178
        %6180 = vrot.lane.b32.xlu0 %v5988, 80
        %v6181 = vpop.permute.xlu0 %6180
        %6182 = vrot.lane.b32.xlu0 %v5993, 80
        %v6183 = vpop.permute.xlu0 %6182
        %v6184 = vsel %vm1001, %v6177, 0
        %v6186 = vsel %vm1001, %v6179, 0
        %v6188 = vsel %vm1001, %v6181, 0
        %v6190 = vsel %vm1001, %v6183, 0
        %6192 = vmatprep.subr.mxu0 0.0
        %6193 = vmatpush1.xpose.msra.mxu0 %v6188
        %6194 = vmatprep.subr.mxu0 0.0
        %6195 = vmatpush1.xpose.msra.mxu0 %v6190
        %6196 = vmatprep.subr.mxu0 0.0
        %6197 = vmatpush1.xpose.msra.mxu0 0.0
        %6198 = vmatprep.subr.mxu0 0.0
        %6199 = vmatpush1.xpose.msra.mxu0 0.0
        %6200 = vmatprep.subr.mxu0 0.0
        %6201 = vmatpush1.xpose.msra.mxu0 0.0
        %6202 = vmatprep.subr.mxu0 0.0
        %6203 = vmatpush1.xpose.msra.mxu0 0.0
        %6204 = vmatprep.subr.mxu0 0.0
        %6205 = vmatpush1.xpose.msra.mxu0 0.0
        %6206 = vmatprep.subr.mxu0 0.0
        %6207 = vmatpush1.xpose.msra.mxu0 0.0
        %6208 = vmatprep.subr.mxu0 0.0
        %6209 = vmatpush1.xpose.msra.mxu0 0.0
        %6210 = vmatprep.subr.mxu0 0.0
        %6211 = vmatpush1.xpose.msra.mxu0 0.0
        %6212 = vmatprep.subr.mxu0 0.0
        %6213 = vmatpush1.xpose.msra.mxu0 0.0
        %6214 = vmatprep.subr.mxu0 0.0
        %6215 = vmatpush1.xpose.msra.mxu0 0.0
        %6216 = vmatprep.subr.mxu0 0.0
        %6217 = vmatpush1.xpose.msra.mxu0 0.0
        %6218 = vmatprep.subr.mxu0 0.0
        %6219 = vmatpush1.xpose.msra.mxu0 0.0
        %6220 = vmatprep.subr.mxu0 0.0
        %6221 = vmatpush1.xpose.msra.mxu0 0.0
        %6222 = vmatprep.subr.mxu0 0.0
        %6223 = vmatpush1.xpose.msra.mxu0 0.0
        %6224 = vmatprep.subr.mxu0 0.0
        %6225 = vmatpush1.xpose.msra.mxu0 0.0
        %6226 = vmatprep.subr.mxu0 0.0
        %6227 = vmatpush1.xpose.msra.mxu0 0.0
        %6228 = vmatprep.subr.mxu0 0.0
        %6229 = vmatpush1.xpose.msra.mxu0 0.0
        %6230 = vmatprep.subr.mxu0 0.0
        %6231 = vmatpush1.xpose.msra.mxu0 0.0
        %6232 = vmatprep.subr.mxu0 0.0
        %6233 = vmatpush1.xpose.msra.mxu0 0.0
        %6234 = vmatprep.subr.mxu0 0.0
        %6235 = vmatpush1.xpose.msra.mxu0 0.0
        %6236 = vmatprep.subr.mxu0 0.0
        %6237 = vmatpush1.xpose.msra.mxu0 0.0
        %6238 = vmatprep.subr.mxu0 0.0
        %6239 = vmatpush1.xpose.msra.mxu0 0.0
        %6240 = vmatprep.subr.mxu0 0.0
        %6241 = vmatpush1.xpose.msra.mxu0 0.0
        %6242 = vmatprep.subr.mxu0 0.0
        %6243 = vmatpush1.xpose.msra.mxu0 0.0
        %6244 = vmatprep.subr.mxu0 0.0
        %6245 = vmatpush1.xpose.msra.mxu0 0.0
        %6246 = vmatprep.subr.mxu0 0.0
        %6247 = vmatpush1.xpose.msra.mxu0 0.0
        %6248 = vmatprep.subr.mxu0 0.0
        %6249 = vmatpush1.xpose.msra.mxu0 0.0
        %6250 = vmatprep.subr.mxu0 0.0
        %6251 = vmatpush1.xpose.msra.mxu0 0.0
        %6252 = vmatprep.subr.mxu0 0.0
        %6253 = vmatpush1.xpose.msra.mxu0 0.0
        %6254 = vmatprep.subr.mxu0 0.0
        %6255 = vmatpush1.xpose.msra.mxu0 0.0
        %6256 = vmatprep.mubr.f32.mxu0 0.0
        %6257 = vmatmul.mubr.f32.gmra.mrb[0].mxu0 %v6184
        %v6258 = vpop.f32.mrb[0].mxu0
        %v6259 = vadd.f32 0.0, %v6258
        %v6260 = vpop.f32.mrb[0].mxu0
        %6261 = vmatprep.mubr.f32.mxu0 0.0
        %6262 = vmatmul.mubr.f32.gmra.mrb[0].mxu0 %v6186
        %v6263 = vpop.f32.mrb[0].mxu0
        %v6264 = vadd.f32 0.0, %v6263
        %v6265 = vpop.f32.mrb[0].mxu0
        %6266 = vdwg.mxu0
        %6267 = vrot.lane.b32.xlu0 %v5988, 104
        %v6268 = vpop.permute.xlu0 %6267
        %6269 = vrot.lane.b32.xlu0 %v5993, 104
        %v6270 = vpop.permute.xlu0 %6269
        %6271 = vrot.lane.b32.xlu0 %v5988, 72
        %v6272 = vpop.permute.xlu0 %6271
        %6273 = vrot.lane.b32.xlu0 %v5993, 72
        %v6274 = vpop.permute.xlu0 %6273
        %v6275 = vsel %vm1001, %v6268, 0
        %v6277 = vsel %vm1001, %v6270, 0
        %v6279 = vsel %vm1001, %v6272, 0
        %v6281 = vsel %vm1001, %v6274, 0
        %6283 = vmatprep.subr.mxu0 0.0
        %6284 = vmatpush1.xpose.msra.mxu0 %v6279
        %6285 = vmatprep.subr.mxu0 0.0
        %6286 = vmatpush1.xpose.msra.mxu0 %v6281
        %6287 = vmatprep.subr.mxu0 0.0
        %6288 = vmatpush1.xpose.msra.mxu0 0.0
        %6289 = vmatprep.subr.mxu0 0.0
        %6290 = vmatpush1.xpose.msra.mxu0 0.0
        %6291 = vmatprep.subr.mxu0 0.0
        %6292 = vmatpush1.xpose.msra.mxu0 0.0
        %6293 = vmatprep.subr.mxu0 0.0
        %6294 = vmatpush1.xpose.msra.mxu0 0.0
        %6295 = vmatprep.subr.mxu0 0.0
        %6296 = vmatpush1.xpose.msra.mxu0 0.0
        %6297 = vmatprep.subr.mxu0 0.0
        %6298 = vmatpush1.xpose.msra.mxu0 0.0
        %6299 = vmatprep.subr.mxu0 0.0
        %6300 = vmatpush1.xpose.msra.mxu0 0.0
        %6301 = vmatprep.subr.mxu0 0.0
        %6302 = vmatpush1.xpose.msra.mxu0 0.0
        %6303 = vmatprep.subr.mxu0 0.0
        %6304 = vmatpush1.xpose.msra.mxu0 0.0
        %6305 = vmatprep.subr.mxu0 0.0
        %6306 = vmatpush1.xpose.msra.mxu0 0.0
        %6307 = vmatprep.subr.mxu0 0.0
        %6308 = vmatpush1.xpose.msra.mxu0 0.0
        %6309 = vmatprep.subr.mxu0 0.0
        %6310 = vmatpush1.xpose.msra.mxu0 0.0
        %6311 = vmatprep.subr.mxu0 0.0
        %6312 = vmatpush1.xpose.msra.mxu0 0.0
        %6313 = vmatprep.subr.mxu0 0.0
        %6314 = vmatpush1.xpose.msra.mxu0 0.0
        %6315 = vmatprep.subr.mxu0 0.0
        %6316 = vmatpush1.xpose.msra.mxu0 0.0
        %6317 = vmatprep.subr.mxu0 0.0
        %6318 = vmatpush1.xpose.msra.mxu0 0.0
        %6319 = vmatprep.subr.mxu0 0.0
        %6320 = vmatpush1.xpose.msra.mxu0 0.0
        %6321 = vmatprep.subr.mxu0 0.0
        %6322 = vmatpush1.xpose.msra.mxu0 0.0
        %6323 = vmatprep.subr.mxu0 0.0
        %6324 = vmatpush1.xpose.msra.mxu0 0.0
        %6325 = vmatprep.subr.mxu0 0.0
        %6326 = vmatpush1.xpose.msra.mxu0 0.0
        %6327 = vmatprep.subr.mxu0 0.0
        %6328 = vmatpush1.xpose.msra.mxu0 0.0
        %6329 = vmatprep.subr.mxu0 0.0
        %6330 = vmatpush1.xpose.msra.mxu0 0.0
        %6331 = vmatprep.subr.mxu0 0.0
        %6332 = vmatpush1.xpose.msra.mxu0 0.0
        %6333 = vmatprep.subr.mxu0 0.0
        %6334 = vmatpush1.xpose.msra.mxu0 0.0
        %6335 = vmatprep.subr.mxu0 0.0
        %6336 = vmatpush1.xpose.msra.mxu0 0.0
        %6337 = vmatprep.subr.mxu0 0.0
        %6338 = vmatpush1.xpose.msra.mxu0 0.0
        %6339 = vmatprep.subr.mxu0 0.0
        %6340 = vmatpush1.xpose.msra.mxu0 0.0
        %6341 = vmatprep.subr.mxu0 0.0
        %6342 = vmatpush1.xpose.msra.mxu0 0.0
        %6343 = vmatprep.subr.mxu0 0.0
        %6344 = vmatpush1.xpose.msra.mxu0 0.0
        %6345 = vmatprep.subr.mxu0 0.0
        %6346 = vmatpush1.xpose.msra.mxu0 0.0
        %6347 = vmatprep.mubr.f32.mxu0 0.0
        %6348 = vmatmul.mubr.f32.gmra.mrb[0].mxu0 %v6275
        %v6349 = vpop.f32.mrb[0].mxu0
        %v6350 = vadd.f32 0.0, %v6349
        %v6351 = vpop.f32.mrb[0].mxu0
        %6352 = vmatprep.mubr.f32.mxu0 0.0
        %6353 = vmatmul.mubr.f32.gmra.mrb[0].mxu0 %v6277
        %v6354 = vpop.f32.mrb[0].mxu0
        %v6355 = vadd.f32 0.0, %v6354
        %v6356 = vpop.f32.mrb[0].mxu0
        %6357 = vdwg.mxu0
        %v6358 = vld [vmem:[%s10] sm:$0xff]
        %v6359 = vld [vmem:[%s10 + $0x8] sm:$0xff]
        %v6360 = vld [vmem:[%s10 + $0x10] sm:$0xff]
        %v6361 = vld [vmem:[%s10 + $0x18] sm:$0xff]
        %v6362 = vld [vmem:[%s10 + $0x20] sm:$0xff]
        %v6363 = vld [vmem:[%s10 + $0x28] sm:$0xff]
        %v6364 = vld [vmem:[%s10 + $0x30] sm:$0xff]
        %v6365 = vld [vmem:[%s10 + $0x38] sm:$0xff]
        %v6366 = vadd.f32 %v6077, %v6358
        %v6367 = vadd.f32 %v6082, %v6359
        %v6368 = vadd.f32 %v6168, %v6360
        %v6369 = vadd.f32 %v6173, %v6361
        %v6370 = vadd.f32 %v6259, %v6362
        %v6371 = vadd.f32 %v6264, %v6363
        %v6372 = vadd.f32 %v6350, %v6364
        %v6373 = vadd.f32 %v6355, %v6365
        %v6374 = vsel %vm564, %v6366, -inf
        %6375 = vmax.xlane.f32.xlu0 %v6374
        %v6376 = vpop.xlane.xlu0 %6375
        %v6377 = vsel %vm564, %v6367, -inf
        %6378 = vmax.xlane.f32.xlu0 %v6377
        %v6379 = vpop.xlane.xlu0 %6378
        %v6380 = vsel %vm564, %v6368, -inf
        %6381 = vmax.xlane.f32.xlu0 %v6380
        %v6382 = vpop.xlane.xlu0 %6381
        %v6383 = vsel %vm564, %v6369, -inf
        %6384 = vmax.xlane.f32.xlu0 %v6383
        %v6385 = vpop.xlane.xlu0 %6384
        %v6386 = vsel %vm564, %v6370, -inf
        %6387 = vmax.xlane.f32.xlu0 %v6386
        %v6388 = vpop.xlane.xlu0 %6387
        %v6389 = vsel %vm564, %v6371, -inf
        %6390 = vmax.xlane.f32.xlu0 %v6389
        %v6391 = vpop.xlane.xlu0 %6390
        %v6392 = vsel %vm564, %v6372, -inf
        %6393 = vmax.xlane.f32.xlu0 %v6392
        %v6394 = vpop.xlane.xlu0 %6393
        %v6395 = vsel %vm564, %v6373, -inf
        %6396 = vmax.xlane.f32.xlu0 %v6395
        %v6397 = vpop.xlane.xlu0 %6396
        %v6398 = vsub.f32 %v6366, %v6376
        %v6399 = vsub.f32 %v6367, %v6379
        %v6400 = vsub.f32 %v6368, %v6382
        %v6401 = vsub.f32 %v6369, %v6385
        %v6402 = vsub.f32 %v6370, %v6388
        %v6403 = vsub.f32 %v6371, %v6391
        %v6404 = vsub.f32 %v6372, %v6394
        %v6405 = vsub.f32 %v6373, %v6397
        %v6406 = vmul.f32 %v6398, 1.442695
        %v6407 = vpow.pop %v6406
        %v6408 = vmul.f32 %v6399, 1.442695
        %v6409 = vpow.pop %v6408
        %v6410 = vmul.f32 %v6400, 1.442695
        %v6411 = vpow.pop %v6410
        %v6412 = vmul.f32 %v6401, 1.442695
        %v6413 = vpow.pop %v6412
        %v6414 = vmul.f32 %v6402, 1.442695
        %v6415 = vpow.pop %v6414
        %v6416 = vmul.f32 %v6403, 1.442695
        %v6417 = vpow.pop %v6416
        %v6418 = vmul.f32 %v6404, 1.442695
        %v6419 = vpow.pop %v6418
        %v6420 = vmul.f32 %v6405, 1.442695
        %v6421 = vpow.pop %v6420
        %v6422 = vsel %vm564, %v6407, 0.0
        %6423 = vadd.xlane.f32.xlu0 %v6422
        %v6424 = vpop.xlane.xlu0 %6423
        %v6425 = vsel %vm564, %v6409, 0.0
        %6426 = vadd.xlane.f32.xlu0 %v6425
        %v6427 = vpop.xlane.xlu0 %6426
        %v6428 = vsel %vm564, %v6411, 0.0
        %6429 = vadd.xlane.f32.xlu0 %v6428
        %v6430 = vpop.xlane.xlu0 %6429
        %v6431 = vsel %vm564, %v6413, 0.0
        %6432 = vadd.xlane.f32.xlu0 %v6431
        %v6433 = vpop.xlane.xlu0 %6432
        %v6434 = vsel %vm564, %v6415, 0.0
        %6435 = vadd.xlane.f32.xlu0 %v6434
        %v6436 = vpop.xlane.xlu0 %6435
        %v6437 = vsel %vm564, %v6417, 0.0
        %6438 = vadd.xlane.f32.xlu0 %v6437
        %v6439 = vpop.xlane.xlu0 %6438
        %v6440 = vsel %vm564, %v6419, 0.0
        %6441 = vadd.xlane.f32.xlu0 %v6440
        %v6442 = vpop.xlane.xlu0 %6441
        %v6443 = vsel %vm564, %v6421, 0.0
        %6444 = vadd.xlane.f32.xlu0 %v6443
        %v6445 = vpop.xlane.xlu0 %6444
        %v6446 = vrcp.pop %v6424
        %v6447 = vmul.f32 %v6407, %v6446
        %v6448 = vrcp.pop %v6427
        %v6449 = vmul.f32 %v6409, %v6448
        %v6450 = vrcp.pop %v6430
        %v6451 = vmul.f32 %v6411, %v6450
        %v6452 = vrcp.pop %v6433
        %v6453 = vmul.f32 %v6413, %v6452
        %v6454 = vrcp.pop %v6436
        %v6455 = vmul.f32 %v6415, %v6454
        %v6456 = vrcp.pop %v6439
        %v6457 = vmul.f32 %v6417, %v6456
        %v6458 = vrcp.pop %v6442
        %v6459 = vmul.f32 %v6419, %v6458
        %v6460 = vrcp.pop %v6445
        %v6461 = vmul.f32 %v6421, %v6460
        %6462 = vrot.lane.b32.xlu0 %v5988, 64
        %v6463 = vpop.permute.xlu0 %6462
        %6464 = vrot.lane.b32.xlu0 %v5993, 64
        %v6465 = vpop.permute.xlu0 %6464
        %v6469 = vsel %vm564, %v6447, 0
        %v6472 = vsel %vm564, %v6449, 0
        %6474 = vmatprep.subr.mxu0 0.0
        %6475 = vmatpush1.msra.mxu0 %v6463
        %6476 = vmatprep.subr.mxu0 0.0
        %6477 = vmatpush1.msra.mxu0 %v6465
        %6478 = vmatprep.subr.mxu0 0.0
        %6479 = vmatpush1.msra.mxu0 0.0
        %6480 = vmatprep.subr.mxu0 0.0
        %6481 = vmatpush1.msra.mxu0 0.0
        %6482 = vmatprep.subr.mxu0 0.0
        %6483 = vmatpush1.msra.mxu0 0.0
        %6484 = vmatprep.subr.mxu0 0.0
        %6485 = vmatpush1.msra.mxu0 0.0
        %6486 = vmatprep.subr.mxu0 0.0
        %6487 = vmatpush1.msra.mxu0 0.0
        %6488 = vmatprep.subr.mxu0 0.0
        %6489 = vmatpush1.msra.mxu0 0.0
        %6490 = vmatprep.subr.mxu0 0.0
        %6491 = vmatpush1.msra.mxu0 0.0
        %6492 = vmatprep.subr.mxu0 0.0
        %6493 = vmatpush1.msra.mxu0 0.0
        %6494 = vmatprep.subr.mxu0 0.0
        %6495 = vmatpush1.msra.mxu0 0.0
        %6496 = vmatprep.subr.mxu0 0.0
        %6497 = vmatpush1.msra.mxu0 0.0
        %6498 = vmatprep.subr.mxu0 0.0
        %6499 = vmatpush1.msra.mxu0 0.0
        %6500 = vmatprep.subr.mxu0 0.0
        %6501 = vmatpush1.msra.mxu0 0.0
        %6502 = vmatprep.subr.mxu0 0.0
        %6503 = vmatpush1.msra.mxu0 0.0
        %6504 = vmatprep.subr.mxu0 0.0
        %6505 = vmatpush1.msra.mxu0 0.0
        %6506 = vmatprep.subr.mxu0 0.0
        %6507 = vmatpush1.msra.mxu0 0.0
        %6508 = vmatprep.subr.mxu0 0.0
        %6509 = vmatpush1.msra.mxu0 0.0
        %6510 = vmatprep.subr.mxu0 0.0
        %6511 = vmatpush1.msra.mxu0 0.0
        %6512 = vmatprep.subr.mxu0 0.0
        %6513 = vmatpush1.msra.mxu0 0.0
        %6514 = vmatprep.subr.mxu0 0.0
        %6515 = vmatpush1.msra.mxu0 0.0
        %6516 = vmatprep.subr.mxu0 0.0
        %6517 = vmatpush1.msra.mxu0 0.0
        %6518 = vmatprep.subr.mxu0 0.0
        %6519 = vmatpush1.msra.mxu0 0.0
        %6520 = vmatprep.subr.mxu0 0.0
        %6521 = vmatpush1.msra.mxu0 0.0
        %6522 = vmatprep.subr.mxu0 0.0
        %6523 = vmatpush1.msra.mxu0 0.0
        %6524 = vmatprep.subr.mxu0 0.0
        %6525 = vmatpush1.msra.mxu0 0.0
        %6526 = vmatprep.subr.mxu0 0.0
        %6527 = vmatpush1.msra.mxu0 0.0
        %6528 = vmatprep.subr.mxu0 0.0
        %6529 = vmatpush1.msra.mxu0 0.0
        %6530 = vmatprep.subr.mxu0 0.0
        %6531 = vmatpush1.msra.mxu0 0.0
        %6532 = vmatprep.subr.mxu0 0.0
        %6533 = vmatpush1.msra.mxu0 0.0
        %6534 = vmatprep.subr.mxu0 0.0
        %6535 = vmatpush1.msra.mxu0 0.0
        %6536 = vmatprep.subr.mxu0 0.0
        %6537 = vmatpush1.msra.mxu0 0.0
        %6538 = vmatprep.mubr.f32.mxu0 0.0
        %6539 = vmatmul.mubr.f32.gmra.mrb[0].mxu0 %v6469
        %v6540 = vpop.f32.mrb[0].mxu0
        %v6541 = vadd.f32 0.0, %v6540
        %v6542 = vpop.f32.mrb[0].mxu0
        %6543 = vmatprep.mubr.f32.mxu0 0.0
        %6544 = vmatmul.mubr.f32.gmra.mrb[0].mxu0 %v6472
        %v6545 = vpop.f32.mrb[0].mxu0
        %v6546 = vadd.f32 0.0, %v6545
        %v6547 = vpop.f32.mrb[0].mxu0
        %6548 = vdwg.mxu0
        %6549 = vrot.lane.b32.xlu0 %v5988, 56
        %v6550 = vpop.permute.xlu0 %6549
        %6551 = vrot.lane.b32.xlu0 %v5993, 56
        %v6552 = vpop.permute.xlu0 %6551
        %v6556 = vsel %vm564, %v6451, 0
        %v6559 = vsel %vm564, %v6453, 0
        %6561 = vmatprep.subr.mxu0 0.0
        %6562 = vmatpush1.msra.mxu0 %v6550
        %6563 = vmatprep.subr.mxu0 0.0
        %6564 = vmatpush1.msra.mxu0 %v6552
        %6565 = vmatprep.subr.mxu0 0.0
        %6566 = vmatpush1.msra.mxu0 0.0
        %6567 = vmatprep.subr.mxu0 0.0
        %6568 = vmatpush1.msra.mxu0 0.0
        %6569 = vmatprep.subr.mxu0 0.0
        %6570 = vmatpush1.msra.mxu0 0.0
        %6571 = vmatprep.subr.mxu0 0.0
        %6572 = vmatpush1.msra.mxu0 0.0
        %6573 = vmatprep.subr.mxu0 0.0
        %6574 = vmatpush1.msra.mxu0 0.0
        %6575 = vmatprep.subr.mxu0 0.0
        %6576 = vmatpush1.msra.mxu0 0.0
        %6577 = vmatprep.subr.mxu0 0.0
        %6578 = vmatpush1.msra.mxu0 0.0
        %6579 = vmatprep.subr.mxu0 0.0
        %6580 = vmatpush1.msra.mxu0 0.0
        %6581 = vmatprep.subr.mxu0 0.0
        %6582 = vmatpush1.msra.mxu0 0.0
        %6583 = vmatprep.subr.mxu0 0.0
        %6584 = vmatpush1.msra.mxu0 0.0
        %6585 = vmatprep.subr.mxu0 0.0
        %6586 = vmatpush1.msra.mxu0 0.0
        %6587 = vmatprep.subr.mxu0 0.0
        %6588 = vmatpush1.msra.mxu0 0.0
        %6589 = vmatprep.subr.mxu0 0.0
        %6590 = vmatpush1.msra.mxu0 0.0
        %6591 = vmatprep.subr.mxu0 0.0
        %6592 = vmatpush1.msra.mxu0 0.0
        %6593 = vmatprep.subr.mxu0 0.0
        %6594 = vmatpush1.msra.mxu0 0.0
        %6595 = vmatprep.subr.mxu0 0.0
        %6596 = vmatpush1.msra.mxu0 0.0
        %6597 = vmatprep.subr.mxu0 0.0
        %6598 = vmatpush1.msra.mxu0 0.0
        %6599 = vmatprep.subr.mxu0 0.0
        %6600 = vmatpush1.msra.mxu0 0.0
        %6601 = vmatprep.subr.mxu0 0.0
        %6602 = vmatpush1.msra.mxu0 0.0
        %6603 = vmatprep.subr.mxu0 0.0
        %6604 = vmatpush1.msra.mxu0 0.0
        %6605 = vmatprep.subr.mxu0 0.0
        %6606 = vmatpush1.msra.mxu0 0.0
        %6607 = vmatprep.subr.mxu0 0.0
        %6608 = vmatpush1.msra.mxu0 0.0
        %6609 = vmatprep.subr.mxu0 0.0
        %6610 = vmatpush1.msra.mxu0 0.0
        %6611 = vmatprep.subr.mxu0 0.0
        %6612 = vmatpush1.msra.mxu0 0.0
        %6613 = vmatprep.subr.mxu0 0.0
        %6614 = vmatpush1.msra.mxu0 0.0
        %6615 = vmatprep.subr.mxu0 0.0
        %6616 = vmatpush1.msra.mxu0 0.0
        %6617 = vmatprep.subr.mxu0 0.0
        %6618 = vmatpush1.msra.mxu0 0.0
        %6619 = vmatprep.subr.mxu0 0.0
        %6620 = vmatpush1.msra.mxu0 0.0
        %6621 = vmatprep.subr.mxu0 0.0
        %6622 = vmatpush1.msra.mxu0 0.0
        %6623 = vmatprep.subr.mxu0 0.0
        %6624 = vmatpush1.msra.mxu0 0.0
        %6625 = vmatprep.mubr.f32.mxu0 0.0
        %6626 = vmatmul.mubr.f32.gmra.mrb[0].mxu0 %v6556
        %v6627 = vpop.f32.mrb[0].mxu0
        %v6628 = vadd.f32 0.0, %v6627
        %v6629 = vpop.f32.mrb[0].mxu0
        %6630 = vmatprep.mubr.f32.mxu0 0.0
        %6631 = vmatmul.mubr.f32.gmra.mrb[0].mxu0 %v6559
        %v6632 = vpop.f32.mrb[0].mxu0
        %v6633 = vadd.f32 0.0, %v6632
        %v6634 = vpop.f32.mrb[0].mxu0
        %6635 = vdwg.mxu0
        %6636 = vrot.lane.b32.xlu0 %v5988, 48
        %v6637 = vpop.permute.xlu0 %6636
        %6638 = vrot.lane.b32.xlu0 %v5993, 48
        %v6639 = vpop.permute.xlu0 %6638
        %v6643 = vsel %vm564, %v6455, 0
        %v6646 = vsel %vm564, %v6457, 0
        %6648 = vmatprep.subr.mxu0 0.0
        %6649 = vmatpush1.msra.mxu0 %v6637
        %6650 = vmatprep.subr.mxu0 0.0
        %6651 = vmatpush1.msra.mxu0 %v6639
        %6652 = vmatprep.subr.mxu0 0.0
        %6653 = vmatpush1.msra.mxu0 0.0
        %6654 = vmatprep.subr.mxu0 0.0
        %6655 = vmatpush1.msra.mxu0 0.0
        %6656 = vmatprep.subr.mxu0 0.0
        %6657 = vmatpush1.msra.mxu0 0.0
        %6658 = vmatprep.subr.mxu0 0.0
        %6659 = vmatpush1.msra.mxu0 0.0
        %6660 = vmatprep.subr.mxu0 0.0
        %6661 = vmatpush1.msra.mxu0 0.0
        %6662 = vmatprep.subr.mxu0 0.0
        %6663 = vmatpush1.msra.mxu0 0.0
        %6664 = vmatprep.subr.mxu0 0.0
        %6665 = vmatpush1.msra.mxu0 0.0
        %6666 = vmatprep.subr.mxu0 0.0
        %6667 = vmatpush1.msra.mxu0 0.0
        %6668 = vmatprep.subr.mxu0 0.0
        %6669 = vmatpush1.msra.mxu0 0.0
        %6670 = vmatprep.subr.mxu0 0.0
        %6671 = vmatpush1.msra.mxu0 0.0
        %6672 = vmatprep.subr.mxu0 0.0
        %6673 = vmatpush1.msra.mxu0 0.0
        %6674 = vmatprep.subr.mxu0 0.0
        %6675 = vmatpush1.msra.mxu0 0.0
        %6676 = vmatprep.subr.mxu0 0.0
        %6677 = vmatpush1.msra.mxu0 0.0
        %6678 = vmatprep.subr.mxu0 0.0
        %6679 = vmatpush1.msra.mxu0 0.0
        %6680 = vmatprep.subr.mxu0 0.0
        %6681 = vmatpush1.msra.mxu0 0.0
        %6682 = vmatprep.subr.mxu0 0.0
        %6683 = vmatpush1.msra.mxu0 0.0
        %6684 = vmatprep.subr.mxu0 0.0
        %6685 = vmatpush1.msra.mxu0 0.0
        %6686 = vmatprep.subr.mxu0 0.0
        %6687 = vmatpush1.msra.mxu0 0.0
        %6688 = vmatprep.subr.mxu0 0.0
        %6689 = vmatpush1.msra.mxu0 0.0
        %6690 = vmatprep.subr.mxu0 0.0
        %6691 = vmatpush1.msra.mxu0 0.0
        %6692 = vmatprep.subr.mxu0 0.0
        %6693 = vmatpush1.msra.mxu0 0.0
        %6694 = vmatprep.subr.mxu0 0.0
        %6695 = vmatpush1.msra.mxu0 0.0
        %6696 = vmatprep.subr.mxu0 0.0
        %6697 = vmatpush1.msra.mxu0 0.0
        %6698 = vmatprep.subr.mxu0 0.0
        %6699 = vmatpush1.msra.mxu0 0.0
        %6700 = vmatprep.subr.mxu0 0.0
        %6701 = vmatpush1.msra.mxu0 0.0
        %6702 = vmatprep.subr.mxu0 0.0
        %6703 = vmatpush1.msra.mxu0 0.0
        %6704 = vmatprep.subr.mxu0 0.0
        %6705 = vmatpush1.msra.mxu0 0.0
        %6706 = vmatprep.subr.mxu0 0.0
        %6707 = vmatpush1.msra.mxu0 0.0
        %6708 = vmatprep.subr.mxu0 0.0
        %6709 = vmatpush1.msra.mxu0 0.0
        %6710 = vmatprep.subr.mxu0 0.0
        %6711 = vmatpush1.msra.mxu0 0.0
        %6712 = vmatprep.mubr.f32.mxu0 0.0
        %6713 = vmatmul.mubr.f32.gmra.mrb[0].mxu0 %v6643
        %v6714 = vpop.f32.mrb[0].mxu0
        %v6715 = vadd.f32 0.0, %v6714
        %v6716 = vpop.f32.mrb[0].mxu0
        %6717 = vmatprep.mubr.f32.mxu0 0.0
        %6718 = vmatmul.mubr.f32.gmra.mrb[0].mxu0 %v6646
        %v6719 = vpop.f32.mrb[0].mxu0
        %v6720 = vadd.f32 0.0, %v6719
        %v6721 = vpop.f32.mrb[0].mxu0
        %6722 = vdwg.mxu0
        %6723 = vrot.lane.b32.xlu0 %v5988, 40
        %v6724 = vpop.permute.xlu0 %6723
        %6725 = vrot.lane.b32.xlu0 %v5993, 40
        %v6726 = vpop.permute.xlu0 %6725
        %v6730 = vsel %vm564, %v6459, 0
        %v6733 = vsel %vm564, %v6461, 0
        %6735 = vmatprep.subr.mxu0 0.0
        %6736 = vmatpush1.msra.mxu0 %v6724
        %6737 = vmatprep.subr.mxu0 0.0
        %6738 = vmatpush1.msra.mxu0 %v6726
        %6739 = vmatprep.subr.mxu0 0.0
        %6740 = vmatpush1.msra.mxu0 0.0
        %6741 = vmatprep.subr.mxu0 0.0
        %6742 = vmatpush1.msra.mxu0 0.0
        %6743 = vmatprep.subr.mxu0 0.0
        %6744 = vmatpush1.msra.mxu0 0.0
        %6745 = vmatprep.subr.mxu0 0.0
        %6746 = vmatpush1.msra.mxu0 0.0
        %6747 = vmatprep.subr.mxu0 0.0
        %6748 = vmatpush1.msra.mxu0 0.0
        %6749 = vmatprep.subr.mxu0 0.0
        %6750 = vmatpush1.msra.mxu0 0.0
        %6751 = vmatprep.subr.mxu0 0.0
        %6752 = vmatpush1.msra.mxu0 0.0
        %6753 = vmatprep.subr.mxu0 0.0
        %6754 = vmatpush1.msra.mxu0 0.0
        %6755 = vmatprep.subr.mxu0 0.0
        %6756 = vmatpush1.msra.mxu0 0.0
        %6757 = vmatprep.subr.mxu0 0.0
        %6758 = vmatpush1.msra.mxu0 0.0
        %6759 = vmatprep.subr.mxu0 0.0
        %6760 = vmatpush1.msra.mxu0 0.0
        %6761 = vmatprep.subr.mxu0 0.0
        %6762 = vmatpush1.msra.mxu0 0.0
        %6763 = vmatprep.subr.mxu0 0.0
        %6764 = vmatpush1.msra.mxu0 0.0
        %6765 = vmatprep.subr.mxu0 0.0
        %6766 = vmatpush1.msra.mxu0 0.0
        %6767 = vmatprep.subr.mxu0 0.0
        %6768 = vmatpush1.msra.mxu0 0.0
        %6769 = vmatprep.subr.mxu0 0.0
        %6770 = vmatpush1.msra.mxu0 0.0
        %6771 = vmatprep.subr.mxu0 0.0
        %6772 = vmatpush1.msra.mxu0 0.0
        %6773 = vmatprep.subr.mxu0 0.0
        %6774 = vmatpush1.msra.mxu0 0.0
        %6775 = vmatprep.subr.mxu0 0.0
        %6776 = vmatpush1.msra.mxu0 0.0
        %6777 = vmatprep.subr.mxu0 0.0
        %6778 = vmatpush1.msra.mxu0 0.0
        %6779 = vmatprep.subr.mxu0 0.0
        %6780 = vmatpush1.msra.mxu0 0.0
        %6781 = vmatprep.subr.mxu0 0.0
        %6782 = vmatpush1.msra.mxu0 0.0
        %6783 = vmatprep.subr.mxu0 0.0
        %6784 = vmatpush1.msra.mxu0 0.0
        %6785 = vmatprep.subr.mxu0 0.0
        %6786 = vmatpush1.msra.mxu0 0.0
        %6787 = vmatprep.subr.mxu0 0.0
        %6788 = vmatpush1.msra.mxu0 0.0
        %6789 = vmatprep.subr.mxu0 0.0
        %6790 = vmatpush1.msra.mxu0 0.0
        %6791 = vmatprep.subr.mxu0 0.0
        %6792 = vmatpush1.msra.mxu0 0.0
        %6793 = vmatprep.subr.mxu0 0.0
        %6794 = vmatpush1.msra.mxu0 0.0
        %6795 = vmatprep.subr.mxu0 0.0
        %6796 = vmatpush1.msra.mxu0 0.0
        %6797 = vmatprep.subr.mxu0 0.0
        %6798 = vmatpush1.msra.mxu0 0.0
        %6799 = vmatprep.mubr.f32.mxu0 0.0
        %6800 = vmatmul.mubr.f32.gmra.mrb[0].mxu0 %v6730
        %v6801 = vpop.f32.mrb[0].mxu0
        %v6802 = vadd.f32 0.0, %v6801
        %v6803 = vpop.f32.mrb[0].mxu0
        %6804 = vmatprep.mubr.f32.mxu0 0.0
        %6805 = vmatmul.mubr.f32.gmra.mrb[0].mxu0 %v6733
        %v6806 = vpop.f32.mrb[0].mxu0
        %v6807 = vadd.f32 0.0, %v6806
        %v6808 = vpop.f32.mrb[0].mxu0
        %6809 = vdwg.mxu0
        %6812 = vrot.lane.b32.xlu0 %v6628, 8
        %v6813 = vpop.permute.xlu0 %6812
        %6814 = vrot.lane.b32.xlu0 %v6633, 8
        %v6815 = vpop.permute.xlu0 %6814
        %6820 = vrot.lane.b32.xlu0 %v6715, 16
        %v6821 = vpop.permute.xlu0 %6820
        %6822 = vrot.lane.b32.xlu0 %v6720, 16
        %v6823 = vpop.permute.xlu0 %6822
        %6828 = vrot.lane.b32.xlu0 %v6802, 24
        %v6829 = vpop.permute.xlu0 %6828
        %6830 = vrot.lane.b32.xlu0 %v6807, 24
        %v6831 = vpop.permute.xlu0 %6830
        %v6834 = vsel %vm1001, %v6541, %v6813
        %v6835 = vsel %vm1001, %v6546, %v6815
        %v6836 = vsel %vm564, %v6834, %v6821
        %v6837 = vsel %vm564, %v6835, %v6823
        %v6838 = vsel %vm5529, %v6836, %v6829
        %v6839 = vsel %vm5529, %v6837, %v6831
        %v6841 = vsel %vm4391, %v6838, 0
        %v6844 = vsel %vm4391, %v6839, 0
        %6846 = vmatprep.subr.mxu0 0.0
        %6847 = vmatpush1.msra.mxu0 %v5841
        %6848 = vmatprep.subr.mxu0 0.0
        %6849 = vmatpush1.msra.mxu0 %v5842
        %6850 = vmatprep.subr.mxu0 0.0
        %6851 = vmatpush1.msra.mxu0 %v5843
        %6852 = vmatprep.subr.mxu0 0.0
        %6853 = vmatpush1.msra.mxu0 %v5844
        %6854 = vmatprep.subr.mxu0 0.0
        %6855 = vmatpush1.msra.mxu0 0.0
        %6856 = vmatprep.subr.mxu0 0.0
        %6857 = vmatpush1.msra.mxu0 0.0
        %6858 = vmatprep.subr.mxu0 0.0
        %6859 = vmatpush1.msra.mxu0 0.0
        %6860 = vmatprep.subr.mxu0 0.0
        %6861 = vmatpush1.msra.mxu0 0.0
        %6862 = vmatprep.subr.mxu0 0.0
        %6863 = vmatpush1.msra.mxu0 0.0
        %6864 = vmatprep.subr.mxu0 0.0
        %6865 = vmatpush1.msra.mxu0 0.0
        %6866 = vmatprep.subr.mxu0 0.0
        %6867 = vmatpush1.msra.mxu0 0.0
        %6868 = vmatprep.subr.mxu0 0.0
        %6869 = vmatpush1.msra.mxu0 0.0
        %6870 = vmatprep.subr.mxu0 0.0
        %6871 = vmatpush1.msra.mxu0 0.0
        %6872 = vmatprep.subr.mxu0 0.0
        %6873 = vmatpush1.msra.mxu0 0.0
        %6874 = vmatprep.subr.mxu0 0.0
        %6875 = vmatpush1.msra.mxu0 0.0
        %6876 = vmatprep.subr.mxu0 0.0
        %6877 = vmatpush1.msra.mxu0 0.0
        %6878 = vmatprep.subr.mxu0 0.0
        %6879 = vmatpush1.msra.mxu0 0.0
        %6880 = vmatprep.subr.mxu0 0.0
        %6881 = vmatpush1.msra.mxu0 0.0
        %6882 = vmatprep.subr.mxu0 0.0
        %6883 = vmatpush1.msra.mxu0 0.0
        %6884 = vmatprep.subr.mxu0 0.0
        %6885 = vmatpush1.msra.mxu0 0.0
        %6886 = vmatprep.subr.mxu0 0.0
        %6887 = vmatpush1.msra.mxu0 0.0
        %6888 = vmatprep.subr.mxu0 0.0
        %6889 = vmatpush1.msra.mxu0 0.0
        %6890 = vmatprep.subr.mxu0 0.0
        %6891 = vmatpush1.msra.mxu0 0.0
        %6892 = vmatprep.subr.mxu0 0.0
        %6893 = vmatpush1.msra.mxu0 0.0
        %6894 = vmatprep.subr.mxu0 0.0
        %6895 = vmatpush1.msra.mxu0 0.0
        %6896 = vmatprep.subr.mxu0 0.0
        %6897 = vmatpush1.msra.mxu0 0.0
        %6898 = vmatprep.subr.mxu0 0.0
        %6899 = vmatpush1.msra.mxu0 0.0
        %6900 = vmatprep.subr.mxu0 0.0
        %6901 = vmatpush1.msra.mxu0 0.0
        %6902 = vmatprep.subr.mxu0 0.0
        %6903 = vmatpush1.msra.mxu0 0.0
        %6904 = vmatprep.subr.mxu0 0.0
        %6905 = vmatpush1.msra.mxu0 0.0
        %6906 = vmatprep.subr.mxu0 0.0
        %6907 = vmatpush1.msra.mxu0 0.0
        %6908 = vmatprep.subr.mxu0 0.0
        %6909 = vmatpush1.msra.mxu0 0.0
        %6910 = vmatprep.mubr.f32.mxu0 0.0
        %6911 = vmatmul.mubr.f32.gmra.mrb[0].mxu0 %v6841
        %v6912 = vpop.f32.mrb[0].mxu0
        %v6913 = vadd.f32 0.0, %v6912
        %v6914 = vpop.f32.mrb[0].mxu0
        %6915 = vmatprep.mubr.f32.mxu0 0.0
        %6916 = vmatmul.mubr.f32.gmra.mrb[0].mxu0 %v6844
        %v6917 = vpop.f32.mrb[0].mxu0
        %v6918 = vadd.f32 0.0, %v6917
        %v6919 = vpop.f32.mrb[0].mxu0
        %6920 = vdwg.mxu0
        %v6921 = vadd.f32 %v5835, %v6913
        %v6922 = vadd.f32 %v5836, %v6918
        %v6923 = vlaneseq
        %v6924 = vshrl.u32 %v6923, 7
        %v6925 = vsub.s32 0, %v6924
        %v6926 = vrot.slane %v5868, %v6925
        %v6927 = vadd.f32 %v6921, %v6926
        %v6928 = vadd.f32 %v6922, %v6926
        %v6929 = vsel %vm4391, %v6927, 0.0
        %6930 = vadd.xlane.f32.xlu0 %v6929
        %v6931 = vpop.xlane.xlu0 %6930
        %v6932 = vsel %vm4391, %v6928, 0.0
        %6933 = vadd.xlane.f32.xlu0 %v6932
        %v6934 = vpop.xlane.xlu0 %6933
        %v6935 = vmul.f32 %v6931, %v4569
        %v6936 = vmul.f32 %v6934, %v4569
        %v6937 = vsub.f32 %v6927, %v6935
        %v6938 = vsub.f32 %v6928, %v6936
        %v6939 = vmul.f32 %v6937, %v6937
        %v6940 = vmul.f32 %v6938, %v6938
        %v6941 = vsel %vm4391, %v6939, 0.0
        %6942 = vadd.xlane.f32.xlu0 %v6941
        %v6943 = vpop.xlane.xlu0 %6942
        %v6944 = vsel %vm4391, %v6940, 0.0
        %6945 = vadd.xlane.f32.xlu0 %v6944
        %v6946 = vpop.xlane.xlu0 %6945
        %v6947 = vmul.f32 %v6943, %v4569
        %v6948 = vmul.f32 %v6946, %v4569
        %v6949 = vadd.f32 %v6947, 1e-05
        %v6950 = vadd.f32 %v6948, 1e-05
        %v6951 = vrsqrt.pop %v6949
        %v6952 = vrsqrt.pop %v6950
        %v6953 = vmul.f32 %v6937, %v6951
        %v6954 = vmul.f32 %v6938, %v6952
        %v6955 = vlaneseq
        %v6956 = vshrl.u32 %v6955, 7
        %v6957 = vsub.s32 0, %v6956
        %v6958 = vrot.slane %v5869, %v6957
        %v6959 = vmul.f32 %v6953, %v6958
        %v6960 = vmul.f32 %v6954, %v6958
        %v6961 = vlaneseq
        %v6962 = vshrl.u32 %v6961, 7
        %v6963 = vsub.s32 0, %v6962
        %v6964 = vrot.slane %v5870, %v6963
        %v6965 = vadd.f32 %v6959, %v6964
        %v6966 = vadd.f32 %v6960, %v6964
        %v6967 = vlaneseq
        %v6968 = vshrl.u32 %v6967, 7
        %v6969 = vsub.s32 0, %v6968
        %v6970 = vrot.slane %v5871, %v6969
        %v6972 = vsel %vm4391, %v6965, 0
        %v6975 = vsel %vm4391, %v6966, 0
        %6977 = vmatprep.subr.mxu0 0.0
        %6978 = vmatpush1.msra.mxu0 %v5845
        %6979 = vmatprep.subr.mxu0 0.0
        %6980 = vmatpush1.msra.mxu0 %v5846
        %6981 = vmatprep.subr.mxu0 0.0
        %6982 = vmatpush1.msra.mxu0 %v5847
        %6983 = vmatprep.subr.mxu0 0.0
        %6984 = vmatpush1.msra.mxu0 %v5848
        %6985 = vmatprep.subr.mxu0 0.0
        %6986 = vmatpush1.msra.mxu0 0.0
        %6987 = vmatprep.subr.mxu0 0.0
        %6988 = vmatpush1.msra.mxu0 0.0
        %6989 = vmatprep.subr.mxu0 0.0
        %6990 = vmatpush1.msra.mxu0 0.0
        %6991 = vmatprep.subr.mxu0 0.0
        %6992 = vmatpush1.msra.mxu0 0.0
        %6993 = vmatprep.subr.mxu0 0.0
        %6994 = vmatpush1.msra.mxu0 0.0
        %6995 = vmatprep.subr.mxu0 0.0
        %6996 = vmatpush1.msra.mxu0 0.0
        %6997 = vmatprep.subr.mxu0 0.0
        %6998 = vmatpush1.msra.mxu0 0.0
        %6999 = vmatprep.subr.mxu0 0.0
        %7000 = vmatpush1.msra.mxu0 0.0
        %7001 = vmatprep.subr.mxu0 0.0
        %7002 = vmatpush1.msra.mxu0 0.0
        %7003 = vmatprep.subr.mxu0 0.0
        %7004 = vmatpush1.msra.mxu0 0.0
        %7005 = vmatprep.subr.mxu0 0.0
        %7006 = vmatpush1.msra.mxu0 0.0
        %7007 = vmatprep.subr.mxu0 0.0
        %7008 = vmatpush1.msra.mxu0 0.0
        %7009 = vmatprep.subr.mxu0 0.0
        %7010 = vmatpush1.msra.mxu0 0.0
        %7011 = vmatprep.subr.mxu0 0.0
        %7012 = vmatpush1.msra.mxu0 0.0
        %7013 = vmatprep.subr.mxu0 0.0
        %7014 = vmatpush1.msra.mxu0 0.0
        %7015 = vmatprep.subr.mxu0 0.0
        %7016 = vmatpush1.msra.mxu0 0.0
        %7017 = vmatprep.subr.mxu0 0.0
        %7018 = vmatpush1.msra.mxu0 0.0
        %7019 = vmatprep.subr.mxu0 0.0
        %7020 = vmatpush1.msra.mxu0 0.0
        %7021 = vmatprep.subr.mxu0 0.0
        %7022 = vmatpush1.msra.mxu0 0.0
        %7023 = vmatprep.subr.mxu0 0.0
        %7024 = vmatpush1.msra.mxu0 0.0
        %7025 = vmatprep.subr.mxu0 0.0
        %7026 = vmatpush1.msra.mxu0 0.0
        %7027 = vmatprep.subr.mxu0 0.0
        %7028 = vmatpush1.msra.mxu0 0.0
        %7029 = vmatprep.subr.mxu0 0.0
        %7030 = vmatpush1.msra.mxu0 0.0
        %7031 = vmatprep.subr.mxu0 0.0
        %7032 = vmatpush1.msra.mxu0 0.0
        %7033 = vmatprep.subr.mxu0 0.0
        %7034 = vmatpush1.msra.mxu0 0.0
        %7035 = vmatprep.subr.mxu0 0.0
        %7036 = vmatpush1.msra.mxu0 0.0
        %7037 = vmatprep.subr.mxu0 0.0
        %7038 = vmatpush1.msra.mxu0 0.0
        %7039 = vmatprep.subr.mxu0 0.0
        %7040 = vmatpush1.msra.mxu0 0.0
        %7041 = vmatprep.mubr.f32.mxu0 0.0
        %7042 = vmatmul.mubr.f32.gmra.mrb[0].mxu0 %v6972
        %v7043 = vpop.f32.mrb[0].mxu0
        %v7044 = vadd.f32 %v6970, %v7043
        %v7045 = vpop.f32.mrb[0].mxu0
        %7046 = vmatprep.mubr.f32.mxu0 0.0
        %7047 = vmatmul.mubr.f32.gmra.mrb[0].mxu0 %v6975
        %v7048 = vpop.f32.mrb[0].mxu0
        %v7049 = vadd.f32 %v6970, %v7048
        %v7050 = vpop.f32.mrb[0].mxu0
        %7051 = vdwg.mxu0
        %v7052 = vmul.f32 %v7044, 0.5
        %v7053 = vmul.f32 %v7049, 0.5
        %v7054 = vmul.f32 %v7044, 0.70710677
        %v7055 = vmul.f32 %v7049, 0.70710677
        %v7056 = verf.f32.pop %v7054
        %v7057 = verf.f32.pop %v7055
        %v7058 = vadd.f32 %v7056, 1.0
        %v7059 = vadd.f32 %v7057, 1.0
        %v7060 = vmul.f32 %v7052, %v7058
        %v7061 = vmul.f32 %v7053, %v7059
        %7062 = vmatprep.subr.mxu0 0.0
        %7063 = vmatpush1.msra.mxu0 %v5849
        %7064 = vmatprep.subr.mxu0 0.0
        %7065 = vmatpush1.msra.mxu0 %v5850
        %7066 = vmatprep.subr.mxu0 0.0
        %7067 = vmatpush1.msra.mxu0 %v5851
        %7068 = vmatprep.subr.mxu0 0.0
        %7069 = vmatpush1.msra.mxu0 %v5852
        %7070 = vmatprep.subr.mxu0 0.0
        %7071 = vmatpush1.msra.mxu0 %v5853
        %7072 = vmatprep.subr.mxu0 0.0
        %7073 = vmatpush1.msra.mxu0 %v5854
        %7074 = vmatprep.subr.mxu0 0.0
        %7075 = vmatpush1.msra.mxu0 %v5855
        %7076 = vmatprep.subr.mxu0 0.0
        %7077 = vmatpush1.msra.mxu0 %v5856
        %7078 = vmatprep.subr.mxu0 0.0
        %7079 = vmatpush1.msra.mxu0 %v5857
        %7080 = vmatprep.subr.mxu0 0.0
        %7081 = vmatpush1.msra.mxu0 %v5858
        %7082 = vmatprep.subr.mxu0 0.0
        %7083 = vmatpush1.msra.mxu0 %v5859
        %7084 = vmatprep.subr.mxu0 0.0
        %7085 = vmatpush1.msra.mxu0 %v5860
        %7086 = vmatprep.subr.mxu0 0.0
        %7087 = vmatpush1.msra.mxu0 %v5861
        %7088 = vmatprep.subr.mxu0 0.0
        %7089 = vmatpush1.msra.mxu0 %v5862
        %7090 = vmatprep.subr.mxu0 0.0
        %7091 = vmatpush1.msra.mxu0 %v5863
        %7092 = vmatprep.subr.mxu0 0.0
        %7093 = vmatpush1.msra.mxu0 %v5864
        %7094 = vmatprep.subr.mxu0 0.0
        %7095 = vmatpush1.msra.mxu0 0.0
        %7096 = vmatprep.subr.mxu0 0.0
        %7097 = vmatpush1.msra.mxu0 0.0
        %7098 = vmatprep.subr.mxu0 0.0
        %7099 = vmatpush1.msra.mxu0 0.0
        %7100 = vmatprep.subr.mxu0 0.0
        %7101 = vmatpush1.msra.mxu0 0.0
        %7102 = vmatprep.subr.mxu0 0.0
        %7103 = vmatpush1.msra.mxu0 0.0
        %7104 = vmatprep.subr.mxu0 0.0
        %7105 = vmatpush1.msra.mxu0 0.0
        %7106 = vmatprep.subr.mxu0 0.0
        %7107 = vmatpush1.msra.mxu0 0.0
        %7108 = vmatprep.subr.mxu0 0.0
        %7109 = vmatpush1.msra.mxu0 0.0
        %7110 = vmatprep.subr.mxu0 0.0
        %7111 = vmatpush1.msra.mxu0 0.0
        %7112 = vmatprep.subr.mxu0 0.0
        %7113 = vmatpush1.msra.mxu0 0.0
        %7114 = vmatprep.subr.mxu0 0.0
        %7115 = vmatpush1.msra.mxu0 0.0
        %7116 = vmatprep.subr.mxu0 0.0
        %7117 = vmatpush1.msra.mxu0 0.0
        %7118 = vmatprep.subr.mxu0 0.0
        %7119 = vmatpush1.msra.mxu0 0.0
        %7120 = vmatprep.subr.mxu0 0.0
        %7121 = vmatpush1.msra.mxu0 0.0
        %7122 = vmatprep.subr.mxu0 0.0
        %7123 = vmatpush1.msra.mxu0 0.0
        %7124 = vmatprep.subr.mxu0 0.0
        %7125 = vmatpush1.msra.mxu0 0.0
        %7126 = vmatprep.mubr.f32.mxu0 0.0
        %7127 = vmatmul.mubr.f32.gmra.mrb[0].mxu0 %v7060
        %v7128 = vpop.f32.mrb[0].mxu0
        %v7129 = vadd.f32 0.0, %v7128
        %v7130 = vpop.f32.mrb[0].mxu0
        %7131 = vmatprep.mubr.f32.mxu0 0.0
        %7132 = vmatmul.mubr.f32.gmra.mrb[0].mxu0 %v7061
        %v7133 = vpop.f32.mrb[0].mxu0
        %v7134 = vadd.f32 0.0, %v7133
        %v7135 = vpop.f32.mrb[0].mxu0
        %7136 = vdwg.mxu0
        %v7137 = vadd.f32 %v6927, %v7129
        %v7138 = vadd.f32 %v6928, %v7134
        %v7139 = vlaneseq
        %v7140 = vshrl.u32 %v7139, 7
        %v7141 = vsub.s32 0, %v7140
        %v7142 = vrot.slane %v5872, %v7141
        %v7143 = vadd.f32 %v7137, %v7142
        %v7144 = vadd.f32 %v7138, %v7142
        %v7145 = vsel %vm4391, %v7143, 0.0
        %v7146 = vsel %vm4391, %v7144, 0.0
        %v7147 = vadd.f32 %v7145, %v7146
        %v7148 = vrot.slane %v7147, 4
        %v7149 = vadd.f32 %v7147, %v7148
        %v7150 = vrot.slane %v7149, 2
        %v7151 = vadd.f32 %v7149, %v7150
        %v7152 = vrot.slane %v7151, 1
        %v7153 = vadd.f32 %v7151, %v7152
        %v7154 = vmul.f32 %v7153, %v589
        %v7155 = vld [vmem:[%s11] sm:$0x1]
        %v7156 = vld [vmem:[%s11 + $0x1] sm:$0x1]
        %v7157 = vld [vmem:[%s11 + $0x2] sm:$0xff]
        %v7158 = vld [vmem:[%s11 + $0xa] sm:$0xff]
        %v7159 = vld [vmem:[%s11 + $0x12] sm:$0xff]
        %v7160 = vld [vmem:[%s11 + $0x1a] sm:$0xff]
        %v7161 = vld [vmem:[%s11 + $0x22] sm:$0x1]
        %v7162 = vsel %vm4391, %v7154, 0.0
        %7163 = vadd.xlane.f32.xlu0 %v7162
        %v7164 = vpop.xlane.xlu0 %7163
        %v7165 = vmul.f32 %v7164, %v4569
        %v7166 = vsub.f32 %v7154, %v7165
        %v7167 = vmul.f32 %v7166, %v7166
        %v7168 = vsel %vm4391, %v7167, 0.0
        %7169 = vadd.xlane.f32.xlu0 %v7168
        %v7170 = vpop.xlane.xlu0 %7169
        %v7171 = vmul.f32 %v7170, %v4569
        %v7172 = vadd.f32 %v7171, 1e-05
        %v7173 = vrsqrt.pop %v7172
        %v7174 = vmul.f32 %v7166, %v7173
        %v7175 = vmul.f32 %v7174, %v7155
        %v7176 = vadd.f32 %v7175, %v7156
        %v7178 = vsel %vm4391, %v7176, 0
        %7180 = vmatprep.subr.mxu0 0.0
        %7181 = vmatpush1.msra.mxu0 %v7157
        %7182 = vmatprep.subr.mxu0 0.0
        %7183 = vmatpush1.msra.mxu0 %v7158
        %7184 = vmatprep.subr.mxu0 0.0
        %7185 = vmatpush1.msra.mxu0 %v7159
        %7186 = vmatprep.subr.mxu0 0.0
        %7187 = vmatpush1.msra.mxu0 %v7160
        %7188 = vmatprep.subr.mxu0 0.0
        %7189 = vmatpush1.msra.mxu0 0.0
        %7190 = vmatprep.subr.mxu0 0.0
        %7191 = vmatpush1.msra.mxu0 0.0
        %7192 = vmatprep.subr.mxu0 0.0
        %7193 = vmatpush1.msra.mxu0 0.0
        %7194 = vmatprep.subr.mxu0 0.0
        %7195 = vmatpush1.msra.mxu0 0.0
        %7196 = vmatprep.subr.mxu0 0.0
        %7197 = vmatpush1.msra.mxu0 0.0
        %7198 = vmatprep.subr.mxu0 0.0
        %7199 = vmatpush1.msra.mxu0 0.0
        %7200 = vmatprep.subr.mxu0 0.0
        %7201 = vmatpush1.msra.mxu0 0.0
        %7202 = vmatprep.subr.mxu0 0.0
        %7203 = vmatpush1.msra.mxu0 0.0
        %7204 = vmatprep.subr.mxu0 0.0
        %7205 = vmatpush1.msra.mxu0 0.0
        %7206 = vmatprep.subr.mxu0 0.0
        %7207 = vmatpush1.msra.mxu0 0.0
        %7208 = vmatprep.subr.mxu0 0.0
        %7209 = vmatpush1.msra.mxu0 0.0
        %7210 = vmatprep.subr.mxu0 0.0
        %7211 = vmatpush1.msra.mxu0 0.0
        %7212 = vmatprep.subr.mxu0 0.0
        %7213 = vmatpush1.msra.mxu0 0.0
        %7214 = vmatprep.subr.mxu0 0.0
        %7215 = vmatpush1.msra.mxu0 0.0
        %7216 = vmatprep.subr.mxu0 0.0
        %7217 = vmatpush1.msra.mxu0 0.0
        %7218 = vmatprep.subr.mxu0 0.0
        %7219 = vmatpush1.msra.mxu0 0.0
        %7220 = vmatprep.subr.mxu0 0.0
        %7221 = vmatpush1.msra.mxu0 0.0
        %7222 = vmatprep.subr.mxu0 0.0
        %7223 = vmatpush1.msra.mxu0 0.0
        %7224 = vmatprep.subr.mxu0 0.0
        %7225 = vmatpush1.msra.mxu0 0.0
        %7226 = vmatprep.subr.mxu0 0.0
        %7227 = vmatpush1.msra.mxu0 0.0
        %7228 = vmatprep.subr.mxu0 0.0
        %7229 = vmatpush1.msra.mxu0 0.0
        %7230 = vmatprep.subr.mxu0 0.0
        %7231 = vmatpush1.msra.mxu0 0.0
        %7232 = vmatprep.subr.mxu0 0.0
        %7233 = vmatpush1.msra.mxu0 0.0
        %7234 = vmatprep.subr.mxu0 0.0
        %7235 = vmatpush1.msra.mxu0 0.0
        %7236 = vmatprep.subr.mxu0 0.0
        %7237 = vmatpush1.msra.mxu0 0.0
        %7238 = vmatprep.subr.mxu0 0.0
        %7239 = vmatpush1.msra.mxu0 0.0
        %7240 = vmatprep.subr.mxu0 0.0
        %7241 = vmatpush1.msra.mxu0 0.0
        %7242 = vmatprep.subr.mxu0 0.0
        %7243 = vmatpush1.msra.mxu0 0.0
        %7244 = vmatprep.mubr.f32.mxu0 0.0
        %7245 = vmatmul.mubr.f32.gmra.mrb[0].mxu0 %v7178
        %v7246 = vpop.f32.mrb[0].mxu0
        %v7247 = vadd.f32 %v7161, %v7246
        %v7248 = vpop.f32.mrb[0].mxu0
        %7249 = vdwg.mxu0
        %vm7250 = vcmask 73728
        %7251 = vst.msk [vmem:[%s406] sm:$0x1] %vm7250, %v7247
        %s7252 = sand.u32 %s291, 1
        %s7253 = scalar_lea.sflag [#allocation3], %s7252
        %s7254 = sand.u32 %s291, 1
        %s7255 = scalar_lea.vmem [#allocation2], %s7254
        // Predicated region
        $region69: #{base_swin_forward.1} parent=67 // pred_check
          %p7256 = pneg %p301
        $region70: #{base_swin_forward.1} parent=67 // pred_check_branch
          %7258 = sbr.rel (%p7256) target = $region72
        $region71: #{base_swin_forward.1} parent=67 // pred_region
          %s7260 = ssub.s32 16, 16
          %7261 = vsyncadd %s7253, %s7260
          %s7262 = smul.addr %s26, 16
          %s7263 = scalar_lea.hbm %s12, %s7262
          %s7265 = sshll.u32 %s7255, 4
          %s7266 = int_to_ptr.vmem [resolvable:$true] %s7265
          %7268 = dma.vmem_to_hbm [thread:$0]  %s7266, 16, %s7263, %s7253
        $region72: #{base_swin_forward.1} parent=67 // pred_fallthru
          _
      $region68: #{base_swin_forward.1} parent=5 // pred_fallthru
        _
      %p7269 = scmp.le.s32.totalorder 2, %s21
      // Predicated region
      $region73: #{base_swin_forward.1} parent=5 // pred_check
        %p7270 = pneg %p7269
      $region74: #{base_swin_forward.1} parent=5 // pred_check_branch
        %7272 = sbr.rel (%p7270) target = $region76
      $region75: #{base_swin_forward.1} parent=5 // pred_region
        %s7273 = ssub.s32 %s21, 2
        // Predicated region
        $region77: #{base_swin_forward.1} parent=75 // pred_check
          %p7274 = pneg %p307
        $region78: #{base_swin_forward.1} parent=75 // pred_check_branch
          %7276 = sbr.rel (%p7274) target = $region80
        $region79: #{base_swin_forward.1} parent=75 // pred_region
          %s7277 = sand.u32 %s292, 1
          %s7278 = scalar_lea.sflag [#allocation3], %s7277
          %s7279 = sand.u32 %s292, 1
          %s7280 = scalar_lea.vmem [#allocation2], %s7279
          %7281 = dma.done %s7278, 16
        $region80: #{base_swin_forward.1} parent=75 // pred_fallthru
          _
      $region76: #{base_swin_forward.1} parent=5 // pred_fallthru
        _
    $region6: #{base_swin_forward.1} parent=1 // loop_footer
      %s25 = sadd.s32 1, %s21
    $region7: #{base_swin_forward.1} parent=1 // loop_footer_branch
      %20 = sbr.rel target = $region3
    $region8: #{base_swin_forward.1} parent=1 // loop_exit
      _
    %7282 = vsyncpa [#allocation3], 1
    %s7283 = scalar_lea.sflag [#allocation3], 1
    %7284 = vsyncpa %s7283, 1

</llo_original>
